<compile_context>
chip_gen: v7x
topology: tpu7x:2x2x1
jax: 0.10.0
libtpu: 0.0.40
codegen_flags: <defaults>
</compile_context>

<pallas_src>
import functools
import math

import jax
import jax.numpy as jnp
from jax.experimental import pallas as pl
from jax.experimental.pallas import tpu as pltpu


# --------------------------------------------------------------------------- helpers
def _layernorm(h, g, b, eps=1e-5):
    mu = jnp.mean(h, axis=-1, keepdims=True)
    var = jnp.mean((h - mu) ** 2, axis=-1, keepdims=True)
    return (h - mu) * jax.lax.rsqrt(var + eps) * g + b


def _erf(x):
    # Abramowitz & Stegun 7.1.26 (max abs error ~1.5e-7): avoids relying on an erf
    # lowering in Mosaic while staying numerically equivalent to torch.nn.GELU().
    a1, a2, a3, a4, a5 = 0.254829592, -0.284496736, 1.421413741, -1.453152027, 1.061405429
    p = 0.3275911
    ax = jnp.abs(x)
    t = 1.0 / (1.0 + p * ax)
    poly = ((((a5 * t + a4) * t + a3) * t + a2) * t + a1) * t
    y = 1.0 - poly * jnp.exp(-ax * ax)
    return jnp.where(x < 0, -y, y)


def _gelu_exact(x):
    return 0.5 * x * (1.0 + _erf(x * 0.7071067811865476))


def _vmem_limit(needed_bytes):
    cap = 64 << 20
    try:
        cap = int(getattr(pltpu.get_tpu_info(), "vmem_capacity_bytes", cap))
    except Exception:
        pass
    limit = max(32 << 20, int(needed_bytes) + (8 << 20))
    return int(min(limit, int(cap * 0.85)))


# --------------------------------------------------------------- attention kernel body
def _attn_kernel(n_heads, head_dim, tq, tkv, causal,
                 xq_ref, xkv_ref, mask_ref,
                 wq_ref, wk_ref, wv_ref, wo_ref,
                 ln1g_ref, ln1b_ref,
                 o_ref,
                 q_cache, k_cache, v_cache, m_sc, l_sc, acc_sc):
    qi = pl.program_id(1)
    ki = pl.program_id(2)
    num_kv = pl.num_programs(2)
    scale = 1.0 / math.sqrt(head_dim)

    # -- build the K/V cache for this batch element only on the first q-tile ---------
    @pl.when(qi == 0)
    def _project_kv():
        x_kv = xkv_ref[0].astype(jnp.float32)
        xkv_ln = _layernorm(x_kv, ln1g_ref[0], ln1b_ref[0]).astype(jnp.bfloat16)
        k = jnp.dot(xkv_ln, wk_ref[...], preferred_element_type=jnp.float32)
        v = jnp.dot(xkv_ln, wv_ref[...], preferred_element_type=jnp.float32)
        for h in range(n_heads):
            sl = slice(h * head_dim, (h + 1) * head_dim)
            k_cache[ki, h] = k[:, sl].astype(jnp.bfloat16)
            v_cache[ki, h] = v[:, sl].astype(jnp.bfloat16)

    # -- first kv step of each q-tile: init accumulators, cache pre-scaled Q ---------
    @pl.when(ki == 0)
    def _init():
        x_q = xq_ref[0].astype(jnp.float32)
        xq_ln = _layernorm(x_q, ln1g_ref[0], ln1b_ref[0]).astype(jnp.bfloat16)
        q = jnp.dot(xq_ln, wq_ref[...], preferred_element_type=jnp.float32) * scale
        for h in range(n_heads):
            q_cache[h] = q[:, h * head_dim:(h + 1) * head_dim].astype(jnp.bfloat16)
        m_sc[...] = jnp.full(m_sc.shape, -1e30, jnp.float32)
        l_sc[...] = jnp.zeros(l_sc.shape, jnp.float32)
        acc_sc[...] = jnp.zeros(acc_sc.shape, jnp.float32)

    # -- online-softmax update for this (q-tile, kv-tile) block ----------------------
    def _attend():
        q = q_cache[...]                                   # (H, tq, hd) bf16, pre-scaled
        k = k_cache[ki]                                    # (H, tkv, hd) bf16
        v = v_cache[ki]                                    # (H, tkv, hd) bf16
        mask = mask_ref[0].astype(jnp.float32)             # (tq, tkv) additive
        s = jnp.einsum('hqd,hkd->hqk', q, k,
                       preferred_element_type=jnp.float32)
        s = s + mask[None, :, :]
        m_prev = m_sc[...]
        m_new = jnp.maximum(m_prev, jnp.max(s, axis=-1, keepdims=True))
        alpha = jnp.exp(m_prev - m_new)
        p = jnp.exp(s - m_new)
        l_sc[...] = alpha * l_sc[...] + jnp.sum(p, axis=-1, keepdims=True)
        pv = jnp.einsum('hqk,hkd->hqd', p.astype(jnp.bfloat16), v,
                        preferred_element_type=jnp.float32)
        acc_sc[...] = alpha * acc_sc[...] + pv
        m_sc[...] = m_new

    if causal:
        # kv blocks strictly above the causal diagonal contribute exactly 0 — skip them.
        pl.when(ki * tkv < (qi + 1) * tq)(_attend)
    else:
        _attend()

    # -- last kv step: normalize, per-head output projection, residual ---------------
    @pl.when(ki == num_kv - 1)
    def _finalize():
        inv_l = pl.reciprocal(l_sc[...], approx=True)           # (H, tq, 1)
        ctx = (acc_sc[...] * inv_l).astype(jnp.bfloat16)        # (H, tq, hd)
        attn_out = jnp.dot(ctx[0], wo_ref[0], preferred_element_type=jnp.float32)
        for h in range(1, n_heads):
            attn_out = attn_out + jnp.dot(ctx[h], wo_ref[h],
                                          preferred_element_type=jnp.float32)
        # TODO(synk): attn_drop / resid_drop are identity (eval mode).
        x1 = xq_ref[0].astype(jnp.float32) + attn_out
        o_ref[0] = x1.astype(o_ref.dtype)


# --------------------------------------------------------------------- MLP kernel body
def _mlp_kernel(x1_ref, ln2g_ref, ln2b_ref, w1_ref, b1_ref, w2_ref, b2_ref, o_ref):
    x1 = x1_ref[...].astype(jnp.float32)                        # (tm, D)
    h = _layernorm(x1, ln2g_ref[0], ln2b_ref[0]).astype(jnp.bfloat16)
    h = jnp.dot(h, w1_ref[...], preferred_element_type=jnp.float32) + b1_ref[0]
    h = _gelu_exact(h)                                          # exact GELU (torch.nn.GELU())
    y = jnp.dot(h.astype(jnp.bfloat16), w2_ref[...],
                preferred_element_type=jnp.float32) + b2_ref[0]
    # TODO(synk): MLP dropout is identity (eval mode).
    o_ref[...] = (x1 + y).astype(o_ref.dtype)


# ------------------------------------------------------------------------------ wrapper
def prepare_params(params, n_heads):
    """One-time parameter prep: bf16 matmul weights, per-head output projection."""
    D = params["wq"].shape[0]
    hd = D // n_heads
    f32 = jnp.float32
    return {
        "wq": params["wq"].astype(jnp.bfloat16),
        "wk": params["wk"].astype(jnp.bfloat16),
        "wv": params["wv"].astype(jnp.bfloat16),
        "wo_h": params["wo"].astype(jnp.bfloat16).reshape(n_heads, hd, D),
        "w1": params["w1"].astype(jnp.bfloat16),
        "w2": params["w2"].astype(jnp.bfloat16),
        "b1": params["b1"].astype(f32),
        "b2": params["b2"].astype(f32),
        "ln1_g": params["ln1_g"].astype(f32), "ln1_b": params["ln1_b"].astype(f32),
        "ln2_g": params["ln2_g"].astype(f32), "ln2_b": params["ln2_b"].astype(f32),
    }


def causal_self_attn_block(x, attn_mask, prep, n_heads, *,
                           block_q=256, block_kv=256, block_mlp=256, causal=False):
    B, L, D = x.shape
    assert D % n_heads == 0
    head_dim = D // n_heads
    dff = prep["w1"].shape[1]

    # ---- (8,128)-aligned tiling; pad ragged L instead of one giant fallback tile ----
    L_pad = ((L + 127) // 128) * 128
    tq = min(block_q, L_pad)
    while L_pad % tq:
        tq //= 2
    tkv = min(block_kv, L_pad)
    while L_pad % tkv:
        tkv //= 2
    num_q, num_kv = L_pad // tq, L_pad // tkv

    x_p, mask_p = x, attn_mask
    if L_pad != L:
        pad = L_pad - L
        x_p = jnp.pad(x, ((0, 0), (0, pad), (0, 0)))
        mask_p = jnp.pad(attn_mask, ((0, 0), (0, pad), (0, pad)), constant_values=-1e9)
    mask_bf = mask_p.astype(jnp.bfloat16)        # halves mask HBM traffic vs f32

    def _const(shape):
        return pl.BlockSpec(shape, lambda *_: (0,) * len(shape))

    in_specs = [
        pl.BlockSpec((1, tq, D), lambda b, qi, ki: (b, qi, 0)),      # x, query rows
        # kv rows of x are only consumed while filling the K/V cache (qi == 0); for
        # qi > 0 the index map collapses to a constant block so the DMA is skipped.
        pl.BlockSpec((1, tkv, D),
                     lambda b, qi, ki: (b, jnp.where(qi == 0, ki, 0), 0)),
        pl.BlockSpec((1, tq, tkv), lambda b, qi, ki: (b, qi, ki)),   # additive mask (bf16)
        _const((D, D)), _const((D, D)), _const((D, D)),              # wq wk wv
        _const((n_heads, head_dim, D)),                              # wo, per-head
        _const((1, D)), _const((1, D)),                              # ln1 gamma / beta
    ]
    scratch_shapes = [
        pltpu.VMEM((n_heads, tq, head_dim), jnp.bfloat16),           # Q cache (pre-scaled)
        pltpu.VMEM((num_kv, n_heads, tkv, head_dim), jnp.bfloat16),  # K cache
        pltpu.VMEM((num_kv, n_heads, tkv, head_dim), jnp.bfloat16),  # V cache
        pltpu.VMEM((n_heads, tq, 1), jnp.float32),                   # running max
        pltpu.VMEM((n_heads, tq, 1), jnp.float32),                   # running denom
        pltpu.VMEM((n_heads, tq, head_dim), jnp.float32),            # context accumulator
    ]

    hd_pad = max(head_dim, 128)                                      # minor-dim padding
    attn_need = (2 * num_kv * n_heads * tkv * hd_pad * 2             # K/V caches
                 + n_heads * tq * hd_pad * (2 + 4)                   # Q cache + acc
                 + 2 * n_heads * tq * 128 * 4                        # m / l (lane-padded)
                 + 2 * 2 * (4 * D * D)                               # bf16 weights, 2 bufs
                 + 2 * (2 * tq * D + tkv * D) * 4                    # x / out tiles, 2 bufs
                 + 2 * tq * tkv * 2)                                 # mask tile, 2 bufs

    kernel = functools.partial(_attn_kernel, n_heads, head_dim, tq, tkv, bool(causal))
    x1 = pl.pallas_call(
        kernel,
        out_shape=jax.ShapeDtypeStruct((B, L_pad, D), jnp.float32),
        grid_spec=pltpu.PrefetchScalarGridSpec(
            num_scalar_prefetch=0,
            grid=(B, num_q, num_kv),
            in_specs=in_specs,
            out_specs=pl.BlockSpec((1, tq, D), lambda b, qi, ki: (b, qi, 0)),
            scratch_shapes=scratch_shapes),
        compiler_params=pltpu.CompilerParams(
            # K/V are cached at qi == 0 and the flash accumulators carry across ki,
            # so both inner axes must stay sequential; batch stays megacore-parallel.
            dimension_semantics=("parallel", "arbitrary", "arbitrary"),
            vmem_limit_bytes=_vmem_limit(attn_need)),
    )(x_p, x_p, mask_bf,
      prep["wq"], prep["wk"], prep["wv"], prep["wo_h"],
      prep["ln1_g"], prep["ln1_b"])

    # ---- LN2 + MLP + residual as a separate row-tiled kernel (keeps the big MLP
    #      weights out of the attention kernel's steady-state VMEM) -------------------
    rows = B * L_pad
    tm = min(block_mlp, rows)
    while rows % tm:
        tm //= 2
    x1_2d = x1.reshape(rows, D)

    mlp_need = (2 * 2 * (2 * D * dff)         # w1 / w2 bf16, double-buffered
                + 2 * 2 * tm * D * 4          # in / out tiles (f32), double-buffered
                + 2 * tm * dff * 4)           # hidden activation
    out = pl.pallas_call(
        _mlp_kernel,
        out_shape=jax.ShapeDtypeStruct((rows, D), x.dtype),
        grid_spec=pltpu.PrefetchScalarGridSpec(
            num_scalar_prefetch=0,
            grid=(rows // tm,),
            in_specs=[pl.BlockSpec((tm, D), lambda i: (i, 0)),
                      _const((1, D)), _const((1, D)),
                      _const((D, dff)), _const((1, dff)),
                      _const((dff, D)), _const((1, D))],
            out_specs=pl.BlockSpec((tm, D), lambda i: (i, 0))),
        compiler_params=pltpu.CompilerParams(
            dimension_semantics=("parallel",),
            vmem_limit_bytes=_vmem_limit(mlp_need)),
    )(x1_2d, prep["ln2_g"], prep["ln2_b"],
      prep["w1"], prep["b1"], prep["w2"], prep["b2"])

    out = out.reshape(B, L_pad, D)
    if L_pad != L:
        out = out[:, :L, :]
    return out


# --------------------------------------------------------------------------- reference
def reference_block(x, attn_mask, params, n_heads):
    """Pure-JAX reference mirroring the PyTorch forward (eval mode)."""
    B, L, D = x.shape
    hd = D // n_heads

    def ln(h, g, b):
        mu = jnp.mean(h, axis=-1, keepdims=True)
        var = jnp.mean((h - mu) ** 2, axis=-1, keepdims=True)
        return (h - mu) / jnp.sqrt(var + 1e-5) * g + b

    x_ln = ln(x, params["ln1_g"][0], params["ln1_b"][0])
    q = (x_ln @ params["wq"]).reshape(B, L, n_heads, hd).transpose(0, 2, 1, 3)
    k = (x_ln @ params["wk"]).reshape(B, L, n_heads, hd).transpose(0, 2, 1, 3)
    v = (x_ln @ params["wv"]).reshape(B, L, n_heads, hd).transpose(0, 2, 1, 3)
    scores = q @ k.transpose(0, 1, 3, 2) / math.sqrt(hd)
    scores = scores + attn_mask[:, None, :, :]
    attn = jax.nn.softmax(scores, axis=-1)
    ctx = (attn @ v).transpose(0, 2, 1, 3).reshape(B, L, D)
    x1 = x + ctx @ params["wo"]
    x1_ln = ln(x1, params["ln2_g"][0], params["ln2_b"][0])
    h = jax.nn.gelu(x1_ln @ params["w1"] + params["b1"][0], approximate=False)
    return x1 + h @ params["w2"] + params["b2"][0]


def init_params(key, d_model, dff):
    ks = jax.random.split(key, 6)
    s = 0.02
    return {
        "wq": jax.random.normal(ks[0], (d_model, d_model), jnp.float32) * s,
        "wk": jax.random.normal(ks[1], (d_model, d_model), jnp.float32) * s,
        "wv": jax.random.normal(ks[2], (d_model, d_model), jnp.float32) * s,
        "wo": jax.random.normal(ks[3], (d_model, d_model), jnp.float32) * s,
        "ln1_g": jnp.ones((1, d_model), jnp.float32),
        "ln1_b": jnp.zeros((1, d_model), jnp.float32),
        "ln2_g": jnp.ones((1, d_model), jnp.float32),
        "ln2_b": jnp.zeros((1, d_model), jnp.float32),
        "w1": jax.random.normal(ks[4], (d_model, dff), jnp.float32) * s,
        "b1": jnp.zeros((1, dff), jnp.float32),
        "w2": jax.random.normal(ks[5], (dff, d_model), jnp.float32) * s,
        "b2": jnp.zeros((1, d_model), jnp.float32),
    }


if __name__ == "__main__":
    B, L, D, H = 2, 256, 256, 4            # head_dim = 64, dff = 1024
    dff = 4 * D
    key = jax.random.PRNGKey(0)
    kx, kp = jax.random.split(key)

    x = jax.random.normal(kx, (B, L, D), jnp.float32)
    causal_bool = jnp.tril(jnp.ones((L, L), jnp.bool_))
    attn_mask = jnp.where(causal_bool, 0.0, -1e9).astype(jnp.float32)
    attn_mask = jnp.broadcast_to(attn_mask, (B, L, L))

    params = init_params(kp, D, dff)
    prep = prepare_params(params, n_heads=H)

    # 128x128 tiles -> grid (2, 2, 2): exercises K/V cache reuse across q-tiles,
    # the online-softmax carry across kv tiles, and causal block skipping.
    out_causal = causal_self_attn_block(x, attn_mask, prep, n_heads=H,
                                        block_q=128, block_kv=128, causal=True)
    out_causal = jax.block_until_ready(out_causal)

    out_general = causal_self_attn_block(x, attn_mask, prep, n_heads=H,
                                         block_q=128, block_kv=128, causal=False)
    out_general = jax.block_until_ready(out_general)

    # Reference uses the same bf16-rounded matmul weights the kernel feeds the MXU.
    mm = ("wq", "wk", "wv", "wo", "w1", "w2")
    params_ref = {k: (v.astype(jnp.bfloat16).astype(jnp.float32) if k in mm else v)
                  for k, v in params.items()}
    ref = reference_block(x, attn_mask, params_ref, n_heads=H)

    assert out_causal.shape == (B, L, D)
    err_c = float(jnp.max(jnp.abs(out_causal - ref)))
    err_g = float(jnp.max(jnp.abs(out_general - ref)))
    assert err_c < 2e-2, f"causal-path mismatch vs reference: max abs err {err_c}"
    assert err_g < 2e-2, f"general-path mismatch vs reference: max abs err {err_g}"

    print("KERNEL_OK")
</pallas_src>

<mosaic_0001>
module attributes {stable_mosaic.version = 11 : i64} {
  func.func @_attn_kernel(%arg0: i32, %arg1: i32, %arg2: i32, %arg3: memref<1x128x256xf32, #tpu.memory_space<vmem>>, %arg4: memref<1x128x256xf32, #tpu.memory_space<vmem>>, %arg5: memref<1x128x128xbf16, #tpu.memory_space<vmem>>, %arg6: memref<256x256xbf16, #tpu.memory_space<vmem>>, %arg7: memref<256x256xbf16, #tpu.memory_space<vmem>>, %arg8: memref<256x256xbf16, #tpu.memory_space<vmem>>, %arg9: memref<4x64x256xbf16, #tpu.memory_space<vmem>>, %arg10: memref<1x256xf32, #tpu.memory_space<vmem>>, %arg11: memref<1x256xf32, #tpu.memory_space<vmem>>, %arg12: memref<1x128x256xf32, #tpu.memory_space<vmem>>, %arg13: memref<4x128x64xbf16, #tpu.memory_space<vmem>>, %arg14: memref<2x4x128x64xbf16, #tpu.memory_space<vmem>>, %arg15: memref<2x4x128x64xbf16, #tpu.memory_space<vmem>>, %arg16: memref<4x128x1xf32, #tpu.memory_space<vmem>>, %arg17: memref<4x128x1xf32, #tpu.memory_space<vmem>>, %arg18: memref<4x128x64xf32, #tpu.memory_space<vmem>>) attributes {dimension_semantics = [#tpu.dimension_semantics<parallel>, #tpu.dimension_semantics<arbitrary>, #tpu.dimension_semantics<arbitrary>], iteration_bounds = array<i64: 2, 2, 2>, scalar_prefetch = 0 : i64, scratch_operands = 6 : i64, tpu.core_type = #tpu.core_type<tc>, window_params = [{transform_indices = @transform_0, window_bounds = array<i64: 1, 128, 256>}, {transform_indices = @transform_1, window_bounds = array<i64: 1, 128, 256>}, {transform_indices = @transform_2, window_bounds = array<i64: 1, 128, 128>}, {pipeline_mode = #tpu.pipeline_mode<synchronous>, transform_indices = @transform_3, window_bounds = array<i64: 256, 256>}, {pipeline_mode = #tpu.pipeline_mode<synchronous>, transform_indices = @transform_4, window_bounds = array<i64: 256, 256>}, {pipeline_mode = #tpu.pipeline_mode<synchronous>, transform_indices = @transform_5, window_bounds = array<i64: 256, 256>}, {pipeline_mode = #tpu.pipeline_mode<synchronous>, transform_indices = @transform_6, window_bounds = array<i64: 4, 64, 256>}, {pipeline_mode = #tpu.pipeline_mode<synchronous>, transform_indices = @transform_7, window_bounds = array<i64: 1, 256>}, {pipeline_mode = #tpu.pipeline_mode<synchronous>, transform_indices = @transform_8, window_bounds = array<i64: 1, 256>}, {transform_indices = @transform_9, window_bounds = array<i64: 1, 128, 256>}]} {
    %c0_i32 = arith.constant 0 : i32
    %0 = arith.cmpi eq, %arg1, %c0_i32 : i32
    %1 = arith.extui %0 : i1 to i32
    %c0_i32_0 = arith.constant 0 : i32
    %2 = arith.cmpi ne, %1, %c0_i32_0 : i32
    scf.if %2 {
      %c0 = arith.constant 0 : index
      %c0_7 = arith.constant 0 : index
      %c0_8 = arith.constant 0 : index
      %15 = vector.load %arg4[%c0, %c0_7, %c0_8] : memref<1x128x256xf32, #tpu.memory_space<vmem>>, vector<1x128x256xf32>
      %16 = vector.shape_cast %15 : vector<1x128x256xf32> to vector<128x256xf32>
      %c0_9 = arith.constant 0 : index
      %c0_10 = arith.constant 0 : index
      %17 = vector.load %arg10[%c0_9, %c0_10] : memref<1x256xf32, #tpu.memory_space<vmem>>, vector<1x256xf32>
      %18 = vector.shape_cast %17 : vector<1x256xf32> to vector<256xf32>
      %c0_11 = arith.constant 0 : index
      %c0_12 = arith.constant 0 : index
      %19 = vector.load %arg11[%c0_11, %c0_12] : memref<1x256xf32, #tpu.memory_space<vmem>>, vector<1x256xf32>
      %20 = vector.shape_cast %19 : vector<1x256xf32> to vector<256xf32>
      %cst = arith.constant dense<0.000000e+00> : vector<128xf32>
      %21 = vector.multi_reduction <add>, %16, %cst [1] : vector<128x256xf32> to vector<128xf32>
      %22 = vector.shape_cast %21 : vector<128xf32> to vector<128x1xf32>
      %cst_13 = arith.constant 2.560000e+02 : f32
      %23 = vector.broadcast %cst_13 : f32 to vector<128x1xf32>
      %24 = arith.divf %22, %23 : vector<128x1xf32>
      %25 = vector.broadcast %24 : vector<128x1xf32> to vector<128x256xf32>
      %26 = arith.subf %16, %25 : vector<128x256xf32>
      %27 = arith.mulf %26, %26 : vector<128x256xf32>
      %cst_14 = arith.constant dense<0.000000e+00> : vector<128xf32>
      %28 = vector.multi_reduction <add>, %27, %cst_14 [1] : vector<128x256xf32> to vector<128xf32>
      %29 = vector.shape_cast %28 : vector<128xf32> to vector<128x1xf32>
      %cst_15 = arith.constant 2.560000e+02 : f32
      %30 = vector.broadcast %cst_15 : f32 to vector<128x1xf32>
      %31 = arith.divf %29, %30 : vector<128x1xf32>
      %32 = vector.broadcast %24 : vector<128x1xf32> to vector<128x256xf32>
      %33 = arith.subf %16, %32 : vector<128x256xf32>
      %cst_16 = arith.constant 9.99999974E-6 : f32
      %34 = vector.broadcast %cst_16 : f32 to vector<128x1xf32>
      %35 = arith.addf %31, %34 : vector<128x1xf32>
      %36 = math.rsqrt %35 : vector<128x1xf32>
      %37 = vector.broadcast %36 : vector<128x1xf32> to vector<128x256xf32>
      %38 = arith.mulf %33, %37 : vector<128x256xf32>
      %39 = vector.shape_cast %18 : vector<256xf32> to vector<1x256xf32>
      %40 = vector.broadcast %39 : vector<1x256xf32> to vector<128x256xf32>
      %41 = arith.mulf %38, %40 : vector<128x256xf32>
      %42 = vector.shape_cast %20 : vector<256xf32> to vector<1x256xf32>
      %43 = vector.broadcast %42 : vector<1x256xf32> to vector<128x256xf32>
      %44 = arith.addf %41, %43 : vector<128x256xf32>
      %45 = arith.truncf %44 : vector<128x256xf32> to vector<128x256xbf16>
      %c0_17 = arith.constant 0 : index
      %c0_18 = arith.constant 0 : index
      %46 = vector.load %arg7[%c0_17, %c0_18] : memref<256x256xbf16, #tpu.memory_space<vmem>>, vector<256x256xbf16>
      %cst_19 = arith.constant dense<0.000000e+00> : vector<128x256xf32>
      %47 = tpu.matmul %45, %46, %cst_19 {dimension_numbers = #tpu.dot_dimension_numbers<[1], [0], [0], [1], [0, 0, 1, 1], [], []>} : vector<128x256xbf16>, vector<256x256xbf16>, vector<128x256xf32> -> vector<128x256xf32>
      %c0_20 = arith.constant 0 : index
      %c0_21 = arith.constant 0 : index
      %48 = vector.load %arg8[%c0_20, %c0_21] : memref<256x256xbf16, #tpu.memory_space<vmem>>, vector<256x256xbf16>
      %cst_22 = arith.constant dense<0.000000e+00> : vector<128x256xf32>
      %49 = tpu.matmul %45, %48, %cst_22 {dimension_numbers = #tpu.dot_dimension_numbers<[1], [0], [0], [1], [0, 0, 1, 1], [], []>} : vector<128x256xbf16>, vector<256x256xbf16>, vector<128x256xf32> -> vector<128x256xf32>
      %50 = vector.extract_strided_slice %47 {offsets = [0, 0], sizes = [128, 64], strides = [1, 1]} : vector<128x256xf32> to vector<128x64xf32>
      %51 = arith.truncf %50 : vector<128x64xf32> to vector<128x64xbf16>
      %52 = arith.index_cast %arg2 : i32 to index
      %c0_23 = arith.constant 0 : index
      %c0_24 = arith.constant 0 : index
      %c0_25 = arith.constant 0 : index
      %53 = vector.load %arg14[%52, %c0_23, %c0_24, %c0_25] : memref<2x4x128x64xbf16, #tpu.memory_space<vmem>>, vector<1x1x128x64xbf16>
      %54 = vector.shape_cast %53 : vector<1x1x128x64xbf16> to vector<128x64xbf16>
      %55 = vector.shape_cast %51 : vector<128x64xbf16> to vector<1x1x128x64xbf16>
      tpu.vector_store %arg14[%52, %c0_23, %c0_24, %c0_25], %55 {strides = array<i32>} : memref<2x4x128x64xbf16, #tpu.memory_space<vmem>>, vector<1x1x128x64xbf16>,
      %56 = vector.extract_strided_slice %49 {offsets = [0, 0], sizes = [128, 64], strides = [1, 1]} : vector<128x256xf32> to vector<128x64xf32>
      %57 = arith.truncf %56 : vector<128x64xf32> to vector<128x64xbf16>
      %58 = arith.index_cast %arg2 : i32 to index
      %c0_26 = arith.constant 0 : index
      %c0_27 = arith.constant 0 : index
      %c0_28 = arith.constant 0 : index
      %59 = vector.load %arg15[%58, %c0_26, %c0_27, %c0_28] : memref<2x4x128x64xbf16, #tpu.memory_space<vmem>>, vector<1x1x128x64xbf16>
      %60 = vector.shape_cast %59 : vector<1x1x128x64xbf16> to vector<128x64xbf16>
      %61 = vector.shape_cast %57 : vector<128x64xbf16> to vector<1x1x128x64xbf16>
      tpu.vector_store %arg15[%58, %c0_26, %c0_27, %c0_28], %61 {strides = array<i32>} : memref<2x4x128x64xbf16, #tpu.memory_space<vmem>>, vector<1x1x128x64xbf16>,
      %62 = vector.extract_strided_slice %47 {offsets = [0, 64], sizes = [128, 64], strides = [1, 1]} : vector<128x256xf32> to vector<128x64xf32>
      %63 = arith.truncf %62 : vector<128x64xf32> to vector<128x64xbf16>
      %64 = arith.index_cast %arg2 : i32 to index
      %c1 = arith.constant 1 : index
      %c0_29 = arith.constant 0 : index
      %c0_30 = arith.constant 0 : index
      %65 = vector.load %arg14[%64, %c1, %c0_29, %c0_30] : memref<2x4x128x64xbf16, #tpu.memory_space<vmem>>, vector<1x1x128x64xbf16>
      %66 = vector.shape_cast %65 : vector<1x1x128x64xbf16> to vector<128x64xbf16>
      %67 = vector.shape_cast %63 : vector<128x64xbf16> to vector<1x1x128x64xbf16>
      tpu.vector_store %arg14[%64, %c1, %c0_29, %c0_30], %67 {strides = array<i32>} : memref<2x4x128x64xbf16, #tpu.memory_space<vmem>>, vector<1x1x128x64xbf16>,
      %68 = vector.extract_strided_slice %49 {offsets = [0, 64], sizes = [128, 64], strides = [1, 1]} : vector<128x256xf32> to vector<128x64xf32>
      %69 = arith.truncf %68 : vector<128x64xf32> to vector<128x64xbf16>
      %70 = arith.index_cast %arg2 : i32 to index
      %c1_31 = arith.constant 1 : index
      %c0_32 = arith.constant 0 : index
      %c0_33 = arith.constant 0 : index
      %71 = vector.load %arg15[%70, %c1_31, %c0_32, %c0_33] : memref<2x4x128x64xbf16, #tpu.memory_space<vmem>>, vector<1x1x128x64xbf16>
      %72 = vector.shape_cast %71 : vector<1x1x128x64xbf16> to vector<128x64xbf16>
      %73 = vector.shape_cast %69 : vector<128x64xbf16> to vector<1x1x128x64xbf16>
      tpu.vector_store %arg15[%70, %c1_31, %c0_32, %c0_33], %73 {strides = array<i32>} : memref<2x4x128x64xbf16, #tpu.memory_space<vmem>>, vector<1x1x128x64xbf16>,
      %74 = vector.extract_strided_slice %47 {offsets = [0, 128], sizes = [128, 64], strides = [1, 1]} : vector<128x256xf32> to vector<128x64xf32>
      %75 = arith.truncf %74 : vector<128x64xf32> to vector<128x64xbf16>
      %76 = arith.index_cast %arg2 : i32 to index
      %c2 = arith.constant 2 : index
      %c0_34 = arith.constant 0 : index
      %c0_35 = arith.constant 0 : index
      %77 = vector.load %arg14[%76, %c2, %c0_34, %c0_35] : memref<2x4x128x64xbf16, #tpu.memory_space<vmem>>, vector<1x1x128x64xbf16>
      %78 = vector.shape_cast %77 : vector<1x1x128x64xbf16> to vector<128x64xbf16>
      %79 = vector.shape_cast %75 : vector<128x64xbf16> to vector<1x1x128x64xbf16>
      tpu.vector_store %arg14[%76, %c2, %c0_34, %c0_35], %79 {strides = array<i32>} : memref<2x4x128x64xbf16, #tpu.memory_space<vmem>>, vector<1x1x128x64xbf16>,
      %80 = vector.extract_strided_slice %49 {offsets = [0, 128], sizes = [128, 64], strides = [1, 1]} : vector<128x256xf32> to vector<128x64xf32>
      %81 = arith.truncf %80 : vector<128x64xf32> to vector<128x64xbf16>
      %82 = arith.index_cast %arg2 : i32 to index
      %c2_36 = arith.constant 2 : index
      %c0_37 = arith.constant 0 : index
      %c0_38 = arith.constant 0 : index
      %83 = vector.load %arg15[%82, %c2_36, %c0_37, %c0_38] : memref<2x4x128x64xbf16, #tpu.memory_space<vmem>>, vector<1x1x128x64xbf16>
      %84 = vector.shape_cast %83 : vector<1x1x128x64xbf16> to vector<128x64xbf16>
      %85 = vector.shape_cast %81 : vector<128x64xbf16> to vector<1x1x128x64xbf16>
      tpu.vector_store %arg15[%82, %c2_36, %c0_37, %c0_38], %85 {strides = array<i32>} : memref<2x4x128x64xbf16, #tpu.memory_space<vmem>>, vector<1x1x128x64xbf16>,
      %86 = vector.extract_strided_slice %47 {offsets = [0, 192], sizes = [128, 64], strides = [1, 1]} : vector<128x256xf32> to vector<128x64xf32>
      %87 = arith.truncf %86 : vector<128x64xf32> to vector<128x64xbf16>
      %88 = arith.index_cast %arg2 : i32 to index
      %c3 = arith.constant 3 : index
      %c0_39 = arith.constant 0 : index
      %c0_40 = arith.constant 0 : index
      %89 = vector.load %arg14[%88, %c3, %c0_39, %c0_40] : memref<2x4x128x64xbf16, #tpu.memory_space<vmem>>, vector<1x1x128x64xbf16>
      %90 = vector.shape_cast %89 : vector<1x1x128x64xbf16> to vector<128x64xbf16>
      %91 = vector.shape_cast %87 : vector<128x64xbf16> to vector<1x1x128x64xbf16>
      tpu.vector_store %arg14[%88, %c3, %c0_39, %c0_40], %91 {strides = array<i32>} : memref<2x4x128x64xbf16, #tpu.memory_space<vmem>>, vector<1x1x128x64xbf16>,
      %92 = vector.extract_strided_slice %49 {offsets = [0, 192], sizes = [128, 64], strides = [1, 1]} : vector<128x256xf32> to vector<128x64xf32>
      %93 = arith.truncf %92 : vector<128x64xf32> to vector<128x64xbf16>
      %94 = arith.index_cast %arg2 : i32 to index
      %c3_41 = arith.constant 3 : index
      %c0_42 = arith.constant 0 : index
      %c0_43 = arith.constant 0 : index
      %95 = vector.load %arg15[%94, %c3_41, %c0_42, %c0_43] : memref<2x4x128x64xbf16, #tpu.memory_space<vmem>>, vector<1x1x128x64xbf16>
      %96 = vector.shape_cast %95 : vector<1x1x128x64xbf16> to vector<128x64xbf16>
      %97 = vector.shape_cast %93 : vector<128x64xbf16> to vector<1x1x128x64xbf16>
      tpu.vector_store %arg15[%94, %c3_41, %c0_42, %c0_43], %97 {strides = array<i32>} : memref<2x4x128x64xbf16, #tpu.memory_space<vmem>>, vector<1x1x128x64xbf16>,
    } else {
    }
    %c0_i32_1 = arith.constant 0 : i32
    %3 = arith.cmpi eq, %arg2, %c0_i32_1 : i32
    %4 = arith.extui %3 : i1 to i32
    %c0_i32_2 = arith.constant 0 : i32
    %5 = arith.cmpi ne, %4, %c0_i32_2 : i32
    scf.if %5 {
      %c0 = arith.constant 0 : index
      %c0_7 = arith.constant 0 : index
      %c0_8 = arith.constant 0 : index
      %15 = vector.load %arg3[%c0, %c0_7, %c0_8] : memref<1x128x256xf32, #tpu.memory_space<vmem>>, vector<1x128x256xf32>
      %16 = vector.shape_cast %15 : vector<1x128x256xf32> to vector<128x256xf32>
      %c0_9 = arith.constant 0 : index
      %c0_10 = arith.constant 0 : index
      %17 = vector.load %arg10[%c0_9, %c0_10] : memref<1x256xf32, #tpu.memory_space<vmem>>, vector<1x256xf32>
      %18 = vector.shape_cast %17 : vector<1x256xf32> to vector<256xf32>
      %c0_11 = arith.constant 0 : index
      %c0_12 = arith.constant 0 : index
      %19 = vector.load %arg11[%c0_11, %c0_12] : memref<1x256xf32, #tpu.memory_space<vmem>>, vector<1x256xf32>
      %20 = vector.shape_cast %19 : vector<1x256xf32> to vector<256xf32>
      %cst = arith.constant dense<0.000000e+00> : vector<128xf32>
      %21 = vector.multi_reduction <add>, %16, %cst [1] : vector<128x256xf32> to vector<128xf32>
      %22 = vector.shape_cast %21 : vector<128xf32> to vector<128x1xf32>
      %cst_13 = arith.constant 2.560000e+02 : f32
      %23 = vector.broadcast %cst_13 : f32 to vector<128x1xf32>
      %24 = arith.divf %22, %23 : vector<128x1xf32>
      %25 = vector.broadcast %24 : vector<128x1xf32> to vector<128x256xf32>
      %26 = arith.subf %16, %25 : vector<128x256xf32>
      %27 = arith.mulf %26, %26 : vector<128x256xf32>
      %cst_14 = arith.constant dense<0.000000e+00> : vector<128xf32>
      %28 = vector.multi_reduction <add>, %27, %cst_14 [1] : vector<128x256xf32> to vector<128xf32>
      %29 = vector.shape_cast %28 : vector<128xf32> to vector<128x1xf32>
      %cst_15 = arith.constant 2.560000e+02 : f32
      %30 = vector.broadcast %cst_15 : f32 to vector<128x1xf32>
      %31 = arith.divf %29, %30 : vector<128x1xf32>
      %32 = vector.broadcast %24 : vector<128x1xf32> to vector<128x256xf32>
      %33 = arith.subf %16, %32 : vector<128x256xf32>
      %cst_16 = arith.constant 9.99999974E-6 : f32
      %34 = vector.broadcast %cst_16 : f32 to vector<128x1xf32>
      %35 = arith.addf %31, %34 : vector<128x1xf32>
      %36 = math.rsqrt %35 : vector<128x1xf32>
      %37 = vector.broadcast %36 : vector<128x1xf32> to vector<128x256xf32>
      %38 = arith.mulf %33, %37 : vector<128x256xf32>
      %39 = vector.shape_cast %18 : vector<256xf32> to vector<1x256xf32>
      %40 = vector.broadcast %39 : vector<1x256xf32> to vector<128x256xf32>
      %41 = arith.mulf %38, %40 : vector<128x256xf32>
      %42 = vector.shape_cast %20 : vector<256xf32> to vector<1x256xf32>
      %43 = vector.broadcast %42 : vector<1x256xf32> to vector<128x256xf32>
      %44 = arith.addf %41, %43 : vector<128x256xf32>
      %45 = arith.truncf %44 : vector<128x256xf32> to vector<128x256xbf16>
      %c0_17 = arith.constant 0 : index
      %c0_18 = arith.constant 0 : index
      %46 = vector.load %arg6[%c0_17, %c0_18] : memref<256x256xbf16, #tpu.memory_space<vmem>>, vector<256x256xbf16>
      %cst_19 = arith.constant dense<0.000000e+00> : vector<128x256xf32>
      %47 = tpu.matmul %45, %46, %cst_19 {dimension_numbers = #tpu.dot_dimension_numbers<[1], [0], [0], [1], [0, 0, 1, 1], [], []>} : vector<128x256xbf16>, vector<256x256xbf16>, vector<128x256xf32> -> vector<128x256xf32>
      %cst_20 = arith.constant 1.250000e-01 : f32
      %48 = vector.broadcast %cst_20 : f32 to vector<128x256xf32>
      %49 = arith.mulf %47, %48 : vector<128x256xf32>
      %50 = vector.extract_strided_slice %49 {offsets = [0, 0], sizes = [128, 64], strides = [1, 1]} : vector<128x256xf32> to vector<128x64xf32>
      %51 = arith.truncf %50 : vector<128x64xf32> to vector<128x64xbf16>
      %c0_21 = arith.constant 0 : index
      %c0_22 = arith.constant 0 : index
      %c0_23 = arith.constant 0 : index
      %52 = vector.load %arg13[%c0_21, %c0_22, %c0_23] : memref<4x128x64xbf16, #tpu.memory_space<vmem>>, vector<1x128x64xbf16>
      %53 = vector.shape_cast %52 : vector<1x128x64xbf16> to vector<128x64xbf16>
      %54 = vector.shape_cast %51 : vector<128x64xbf16> to vector<1x128x64xbf16>
      tpu.vector_store %arg13[%c0_21, %c0_22, %c0_23], %54 {strides = array<i32>} : memref<4x128x64xbf16, #tpu.memory_space<vmem>>, vector<1x128x64xbf16>,
      %55 = vector.extract_strided_slice %49 {offsets = [0, 64], sizes = [128, 64], strides = [1, 1]} : vector<128x256xf32> to vector<128x64xf32>
      %56 = arith.truncf %55 : vector<128x64xf32> to vector<128x64xbf16>
      %c1 = arith.constant 1 : index
      %c0_24 = arith.constant 0 : index
      %c0_25 = arith.constant 0 : index
      %57 = vector.load %arg13[%c1, %c0_24, %c0_25] : memref<4x128x64xbf16, #tpu.memory_space<vmem>>, vector<1x128x64xbf16>
      %58 = vector.shape_cast %57 : vector<1x128x64xbf16> to vector<128x64xbf16>
      %59 = vector.shape_cast %56 : vector<128x64xbf16> to vector<1x128x64xbf16>
      tpu.vector_store %arg13[%c1, %c0_24, %c0_25], %59 {strides = array<i32>} : memref<4x128x64xbf16, #tpu.memory_space<vmem>>, vector<1x128x64xbf16>,
      %60 = vector.extract_strided_slice %49 {offsets = [0, 128], sizes = [128, 64], strides = [1, 1]} : vector<128x256xf32> to vector<128x64xf32>
      %61 = arith.truncf %60 : vector<128x64xf32> to vector<128x64xbf16>
      %c2 = arith.constant 2 : index
      %c0_26 = arith.constant 0 : index
      %c0_27 = arith.constant 0 : index
      %62 = vector.load %arg13[%c2, %c0_26, %c0_27] : memref<4x128x64xbf16, #tpu.memory_space<vmem>>, vector<1x128x64xbf16>
      %63 = vector.shape_cast %62 : vector<1x128x64xbf16> to vector<128x64xbf16>
      %64 = vector.shape_cast %61 : vector<128x64xbf16> to vector<1x128x64xbf16>
      tpu.vector_store %arg13[%c2, %c0_26, %c0_27], %64 {strides = array<i32>} : memref<4x128x64xbf16, #tpu.memory_space<vmem>>, vector<1x128x64xbf16>,
      %65 = vector.extract_strided_slice %49 {offsets = [0, 192], sizes = [128, 64], strides = [1, 1]} : vector<128x256xf32> to vector<128x64xf32>
      %66 = arith.truncf %65 : vector<128x64xf32> to vector<128x64xbf16>
      %c3 = arith.constant 3 : index
      %c0_28 = arith.constant 0 : index
      %c0_29 = arith.constant 0 : index
      %67 = vector.load %arg13[%c3, %c0_28, %c0_29] : memref<4x128x64xbf16, #tpu.memory_space<vmem>>, vector<1x128x64xbf16>
      %68 = vector.shape_cast %67 : vector<1x128x64xbf16> to vector<128x64xbf16>
      %69 = vector.shape_cast %66 : vector<128x64xbf16> to vector<1x128x64xbf16>
      tpu.vector_store %arg13[%c3, %c0_28, %c0_29], %69 {strides = array<i32>} : memref<4x128x64xbf16, #tpu.memory_space<vmem>>, vector<1x128x64xbf16>,
      %cst_30 = arith.constant -1.000000e+30 : f32
      %70 = vector.broadcast %cst_30 : f32 to vector<4x128x1xf32>
      %c0_31 = arith.constant 0 : index
      %c0_32 = arith.constant 0 : index
      %c0_33 = arith.constant 0 : index
      %71 = vector.load %arg16[%c0_31, %c0_32, %c0_33] : memref<4x128x1xf32, #tpu.memory_space<vmem>>, vector<4x128x1xf32>
      tpu.vector_store %arg16[%c0_31, %c0_32, %c0_33], %70 {strides = array<i32>} : memref<4x128x1xf32, #tpu.memory_space<vmem>>, vector<4x128x1xf32>,
      %cst_34 = arith.constant 0.000000e+00 : f32
      %72 = vector.broadcast %cst_34 : f32 to vector<4x128x1xf32>
      %c0_35 = arith.constant 0 : index
      %c0_36 = arith.constant 0 : index
      %c0_37 = arith.constant 0 : index
      %73 = vector.load %arg17[%c0_35, %c0_36, %c0_37] : memref<4x128x1xf32, #tpu.memory_space<vmem>>, vector<4x128x1xf32>
      tpu.vector_store %arg17[%c0_35, %c0_36, %c0_37], %72 {strides = array<i32>} : memref<4x128x1xf32, #tpu.memory_space<vmem>>, vector<4x128x1xf32>,
      %cst_38 = arith.constant 0.000000e+00 : f32
      %74 = vector.broadcast %cst_38 : f32 to vector<4x128x64xf32>
      %c0_39 = arith.constant 0 : index
      %c0_40 = arith.constant 0 : index
      %c0_41 = arith.constant 0 : index
      %75 = vector.load %arg18[%c0_39, %c0_40, %c0_41] : memref<4x128x64xf32, #tpu.memory_space<vmem>>, vector<4x128x64xf32>
      tpu.vector_store %arg18[%c0_39, %c0_40, %c0_41], %74 {strides = array<i32>} : memref<4x128x64xf32, #tpu.memory_space<vmem>>, vector<4x128x64xf32>,
    } else {
    }
    %c128_i32 = arith.constant 128 : i32
    %6 = arith.muli %arg2, %c128_i32 : i32
    %c1_i32 = arith.constant 1 : i32
    %7 = arith.addi %arg1, %c1_i32 : i32
    %c128_i32_3 = arith.constant 128 : i32
    %8 = arith.muli %7, %c128_i32_3 : i32
    %9 = arith.cmpi slt, %6, %8 : i32
    %10 = arith.extui %9 : i1 to i32
    %c0_i32_4 = arith.constant 0 : i32
    %11 = arith.cmpi ne, %10, %c0_i32_4 : i32
    scf.if %11 {
      %c0 = arith.constant 0 : index
      %c0_7 = arith.constant 0 : index
      %c0_8 = arith.constant 0 : index
      %15 = vector.load %arg13[%c0, %c0_7, %c0_8] : memref<4x128x64xbf16, #tpu.memory_space<vmem>>, vector<4x128x64xbf16>
      %16 = arith.index_cast %arg2 : i32 to index
      %c0_9 = arith.constant 0 : index
      %c0_10 = arith.constant 0 : index
      %c0_11 = arith.constant 0 : index
      %17 = vector.load %arg14[%16, %c0_9, %c0_10, %c0_11] : memref<2x4x128x64xbf16, #tpu.memory_space<vmem>>, vector<1x4x128x64xbf16>
      %18 = vector.shape_cast %17 : vector<1x4x128x64xbf16> to vector<4x128x64xbf16>
      %19 = arith.index_cast %arg2 : i32 to index
      %c0_12 = arith.constant 0 : index
      %c0_13 = arith.constant 0 : index
      %c0_14 = arith.constant 0 : index
      %20 = vector.load %arg15[%19, %c0_12, %c0_13, %c0_14] : memref<2x4x128x64xbf16, #tpu.memory_space<vmem>>, vector<1x4x128x64xbf16>
      %21 = vector.shape_cast %20 : vector<1x4x128x64xbf16> to vector<4x128x64xbf16>
      %c0_15 = arith.constant 0 : index
      %c0_16 = arith.constant 0 : index
      %c0_17 = arith.constant 0 : index
      %22 = vector.load %arg5[%c0_15, %c0_16, %c0_17] : memref<1x128x128xbf16, #tpu.memory_space<vmem>>, vector<1x128x128xbf16>
      %23 = vector.shape_cast %22 : vector<1x128x128xbf16> to vector<128x128xbf16>
      %24 = arith.extf %23 : vector<128x128xbf16> to vector<128x128xf32>
      "tpu.trace_start"() <{level = 10 : i32, message = "hqd,hkd->hqk"}> : () -> ()
      %cst = arith.constant dense<0.000000e+00> : vector<4x128x128xf32>
      %25 = tpu.matmul %15, %18, %cst {dimension_numbers = #tpu.dot_dimension_numbers<[2], [2], [1], [1], [0, 0, 0, 1, 1, 1], [0], [0]>} : vector<4x128x64xbf16>, vector<4x128x64xbf16>, vector<4x128x128xf32> -> vector<4x128x128xf32>
      "tpu.trace_stop"() : () -> ()
      %26 = vector.shape_cast %24 : vector<128x128xf32> to vector<1x128x128xf32>
      %27 = vector.broadcast %26 : vector<1x128x128xf32> to vector<4x128x128xf32>
      %28 = arith.addf %25, %27 : vector<4x128x128xf32>
      %c0_18 = arith.constant 0 : index
      %c0_19 = arith.constant 0 : index
      %c0_20 = arith.constant 0 : index
      %29 = vector.load %arg16[%c0_18, %c0_19, %c0_20] : memref<4x128x1xf32, #tpu.memory_space<vmem>>, vector<4x128x1xf32>
      %cst_21 = arith.constant dense<0xFF800000> : vector<4x128xf32>
      %30 = vector.multi_reduction <maximumf>, %28, %cst_21 [2] : vector<4x128x128xf32> to vector<4x128xf32>
      %31 = vector.shape_cast %30 : vector<4x128xf32> to vector<4x128x1xf32>
      %32 = arith.maximumf %29, %31 : vector<4x128x1xf32>
      %33 = arith.subf %29, %32 : vector<4x128x1xf32>
      %34 = math.exp %33 : vector<4x128x1xf32>
      %35 = vector.broadcast %32 : vector<4x128x1xf32> to vector<4x128x128xf32>
      %36 = arith.subf %28, %35 : vector<4x128x128xf32>
      %37 = math.exp %36 : vector<4x128x128xf32>
      %c0_22 = arith.constant 0 : index
      %c0_23 = arith.constant 0 : index
      %c0_24 = arith.constant 0 : index
      %38 = vector.load %arg17[%c0_22, %c0_23, %c0_24] : memref<4x128x1xf32, #tpu.memory_space<vmem>>, vector<4x128x1xf32>
      %39 = arith.mulf %34, %38 : vector<4x128x1xf32>
      %cst_25 = arith.constant dense<0.000000e+00> : vector<4x128xf32>
      %40 = vector.multi_reduction <add>, %37, %cst_25 [2] : vector<4x128x128xf32> to vector<4x128xf32>
      %41 = vector.shape_cast %40 : vector<4x128xf32> to vector<4x128x1xf32>
      %42 = arith.addf %39, %41 : vector<4x128x1xf32>
      %c0_26 = arith.constant 0 : index
      %c0_27 = arith.constant 0 : index
      %c0_28 = arith.constant 0 : index
      %43 = vector.load %arg17[%c0_26, %c0_27, %c0_28] : memref<4x128x1xf32, #tpu.memory_space<vmem>>, vector<4x128x1xf32>
      tpu.vector_store %arg17[%c0_26, %c0_27, %c0_28], %42 {strides = array<i32>} : memref<4x128x1xf32, #tpu.memory_space<vmem>>, vector<4x128x1xf32>,
      %44 = arith.truncf %37 : vector<4x128x128xf32> to vector<4x128x128xbf16>
      "tpu.trace_start"() <{level = 10 : i32, message = "hqk,hkd->hqd"}> : () -> ()
      %cst_29 = arith.constant dense<0.000000e+00> : vector<4x128x64xf32>
      %45 = tpu.matmul %44, %21, %cst_29 {dimension_numbers = #tpu.dot_dimension_numbers<[2], [1], [1], [2], [0, 0, 0, 1, 1, 2], [0], [0]>} : vector<4x128x128xbf16>, vector<4x128x64xbf16>, vector<4x128x64xf32> -> vector<4x128x64xf32>
      "tpu.trace_stop"() : () -> ()
      %c0_30 = arith.constant 0 : index
      %c0_31 = arith.constant 0 : index
      %c0_32 = arith.constant 0 : index
      %46 = vector.load %arg18[%c0_30, %c0_31, %c0_32] : memref<4x128x64xf32, #tpu.memory_space<vmem>>, vector<4x128x64xf32>
      %47 = vector.broadcast %34 : vector<4x128x1xf32> to vector<4x128x64xf32>
      %48 = arith.mulf %47, %46 : vector<4x128x64xf32>
      %49 = arith.addf %48, %45 : vector<4x128x64xf32>
      %c0_33 = arith.constant 0 : index
      %c0_34 = arith.constant 0 : index
      %c0_35 = arith.constant 0 : index
      %50 = vector.load %arg18[%c0_33, %c0_34, %c0_35] : memref<4x128x64xf32, #tpu.memory_space<vmem>>, vector<4x128x64xf32>
      tpu.vector_store %arg18[%c0_33, %c0_34, %c0_35], %49 {strides = array<i32>} : memref<4x128x64xf32, #tpu.memory_space<vmem>>, vector<4x128x64xf32>,
      %c0_36 = arith.constant 0 : index
      %c0_37 = arith.constant 0 : index
      %c0_38 = arith.constant 0 : index
      %51 = vector.load %arg16[%c0_36, %c0_37, %c0_38] : memref<4x128x1xf32, #tpu.memory_space<vmem>>, vector<4x128x1xf32>
      tpu.vector_store %arg16[%c0_36, %c0_37, %c0_38], %32 {strides = array<i32>} : memref<4x128x1xf32, #tpu.memory_space<vmem>>, vector<4x128x1xf32>,
    } else {
    }
    %c1_i32_5 = arith.constant 1 : i32
    %12 = arith.cmpi eq, %arg2, %c1_i32_5 : i32
    %13 = arith.extui %12 : i1 to i32
    %c0_i32_6 = arith.constant 0 : i32
    %14 = arith.cmpi ne, %13, %c0_i32_6 : i32
    scf.if %14 {
      %c0 = arith.constant 0 : index
      %c0_7 = arith.constant 0 : index
      %c0_8 = arith.constant 0 : index
      %15 = vector.load %arg17[%c0, %c0_7, %c0_8] : memref<4x128x1xf32, #tpu.memory_space<vmem>>, vector<4x128x1xf32>
      %16 = tpu.reciprocal %15 {approx = true} : vector<4x128x1xf32> -> vector<4x128x1xf32>
      %c0_9 = arith.constant 0 : index
      %c0_10 = arith.constant 0 : index
      %c0_11 = arith.constant 0 : index
      %17 = vector.load %arg18[%c0_9, %c0_10, %c0_11] : memref<4x128x64xf32, #tpu.memory_space<vmem>>, vector<4x128x64xf32>
      %18 = vector.broadcast %16 : vector<4x128x1xf32> to vector<4x128x64xf32>
      %19 = arith.mulf %17, %18 : vector<4x128x64xf32>
      %20 = arith.truncf %19 : vector<4x128x64xf32> to vector<4x128x64xbf16>
      %21 = vector.extract_strided_slice %20 {offsets = [0, 0, 0], sizes = [1, 128, 64], strides = [1, 1, 1]} : vector<4x128x64xbf16> to vector<1x128x64xbf16>
      %22 = vector.shape_cast %21 : vector<1x128x64xbf16> to vector<128x64xbf16>
      %c0_12 = arith.constant 0 : index
      %c0_13 = arith.constant 0 : index
      %c0_14 = arith.constant 0 : index
      %23 = vector.load %arg9[%c0_12, %c0_13, %c0_14] : memref<4x64x256xbf16, #tpu.memory_space<vmem>>, vector<1x64x256xbf16>
      %24 = vector.shape_cast %23 : vector<1x64x256xbf16> to vector<64x256xbf16>
      %cst = arith.constant dense<0.000000e+00> : vector<128x256xf32>
      %25 = tpu.matmul %22, %24, %cst {dimension_numbers = #tpu.dot_dimension_numbers<[1], [0], [0], [1], [0, 0, 1, 1], [], []>} : vector<128x64xbf16>, vector<64x256xbf16>, vector<128x256xf32> -> vector<128x256xf32>
      %26 = vector.extract_strided_slice %20 {offsets = [1, 0, 0], sizes = [1, 128, 64], strides = [1, 1, 1]} : vector<4x128x64xbf16> to vector<1x128x64xbf16>
      %27 = vector.shape_cast %26 : vector<1x128x64xbf16> to vector<128x64xbf16>
      %c1 = arith.constant 1 : index
      %c0_15 = arith.constant 0 : index
      %c0_16 = arith.constant 0 : index
      %28 = vector.load %arg9[%c1, %c0_15, %c0_16] : memref<4x64x256xbf16, #tpu.memory_space<vmem>>, vector<1x64x256xbf16>
      %29 = vector.shape_cast %28 : vector<1x64x256xbf16> to vector<64x256xbf16>
      %cst_17 = arith.constant dense<0.000000e+00> : vector<128x256xf32>
      %30 = tpu.matmul %27, %29, %cst_17 {dimension_numbers = #tpu.dot_dimension_numbers<[1], [0], [0], [1], [0, 0, 1, 1], [], []>} : vector<128x64xbf16>, vector<64x256xbf16>, vector<128x256xf32> -> vector<128x256xf32>
      %31 = arith.addf %25, %30 : vector<128x256xf32>
      %32 = vector.extract_strided_slice %20 {offsets = [2, 0, 0], sizes = [1, 128, 64], strides = [1, 1, 1]} : vector<4x128x64xbf16> to vector<1x128x64xbf16>
      %33 = vector.shape_cast %32 : vector<1x128x64xbf16> to vector<128x64xbf16>
      %c2 = arith.constant 2 : index
      %c0_18 = arith.constant 0 : index
      %c0_19 = arith.constant 0 : index
      %34 = vector.load %arg9[%c2, %c0_18, %c0_19] : memref<4x64x256xbf16, #tpu.memory_space<vmem>>, vector<1x64x256xbf16>
      %35 = vector.shape_cast %34 : vector<1x64x256xbf16> to vector<64x256xbf16>
      %cst_20 = arith.constant dense<0.000000e+00> : vector<128x256xf32>
      %36 = tpu.matmul %33, %35, %cst_20 {dimension_numbers = #tpu.dot_dimension_numbers<[1], [0], [0], [1], [0, 0, 1, 1], [], []>} : vector<128x64xbf16>, vector<64x256xbf16>, vector<128x256xf32> -> vector<128x256xf32>
      %37 = arith.addf %31, %36 : vector<128x256xf32>
      %38 = vector.extract_strided_slice %20 {offsets = [3, 0, 0], sizes = [1, 128, 64], strides = [1, 1, 1]} : vector<4x128x64xbf16> to vector<1x128x64xbf16>
      %39 = vector.shape_cast %38 : vector<1x128x64xbf16> to vector<128x64xbf16>
      %c3 = arith.constant 3 : index
      %c0_21 = arith.constant 0 : index
      %c0_22 = arith.constant 0 : index
      %40 = vector.load %arg9[%c3, %c0_21, %c0_22] : memref<4x64x256xbf16, #tpu.memory_space<vmem>>, vector<1x64x256xbf16>
      %41 = vector.shape_cast %40 : vector<1x64x256xbf16> to vector<64x256xbf16>
      %cst_23 = arith.constant dense<0.000000e+00> : vector<128x256xf32>
      %42 = tpu.matmul %39, %41, %cst_23 {dimension_numbers = #tpu.dot_dimension_numbers<[1], [0], [0], [1], [0, 0, 1, 1], [], []>} : vector<128x64xbf16>, vector<64x256xbf16>, vector<128x256xf32> -> vector<128x256xf32>
      %43 = arith.addf %37, %42 : vector<128x256xf32>
      %c0_24 = arith.constant 0 : index
      %c0_25 = arith.constant 0 : index
      %c0_26 = arith.constant 0 : index
      %44 = vector.load %arg3[%c0_24, %c0_25, %c0_26] : memref<1x128x256xf32, #tpu.memory_space<vmem>>, vector<1x128x256xf32>
      %45 = vector.shape_cast %44 : vector<1x128x256xf32> to vector<128x256xf32>
      %46 = arith.addf %45, %43 : vector<128x256xf32>
      %c0_27 = arith.constant 0 : index
      %c0_28 = arith.constant 0 : index
      %c0_29 = arith.constant 0 : index
      %47 = vector.load %arg12[%c0_27, %c0_28, %c0_29] : memref<1x128x256xf32, #tpu.memory_space<vmem>>, vector<1x128x256xf32>
      %48 = vector.shape_cast %47 : vector<1x128x256xf32> to vector<128x256xf32>
      %49 = vector.shape_cast %46 : vector<128x256xf32> to vector<1x128x256xf32>
      tpu.vector_store %arg12[%c0_27, %c0_28, %c0_29], %49 {strides = array<i32>} : memref<1x128x256xf32, #tpu.memory_space<vmem>>, vector<1x128x256xf32>,
    } else {
    }
    return
  }
  func.func @transform_0(%arg0: i32, %arg1: i32, %arg2: i32) -> (i32, i32, i32) {
    %c0_i32 = arith.constant 0 : i32
    %c0_i32_0 = arith.constant 0 : i32
    return %arg0, %arg1, %c0_i32 : i32, i32, i32
  }
  func.func @transform_1(%arg0: i32, %arg1: i32, %arg2: i32) -> (i32, i32, i32) {
    %c0_i32 = arith.constant 0 : i32
    %0 = arith.cmpi eq, %arg1, %c0_i32 : i32
    %c0_i32_0 = arith.constant 0 : i32
    %1 = arith.select %0, %arg2, %c0_i32_0 : i32
    %c0_i32_1 = arith.constant 0 : i32
    %c0_i32_2 = arith.constant 0 : i32
    return %arg0, %1, %c0_i32_1 : i32, i32, i32
  }
  func.func @transform_2(%arg0: i32, %arg1: i32, %arg2: i32) -> (i32, i32, i32) {
    %c0_i32 = arith.constant 0 : i32
    return %arg0, %arg1, %arg2 : i32, i32, i32
  }
  func.func @transform_3(%arg0: i32, %arg1: i32, %arg2: i32) -> (i32, i32) {
    %c0_i32 = arith.constant 0 : i32
    %c0_i32_0 = arith.constant 0 : i32
    %c0_i32_1 = arith.constant 0 : i32
    return %c0_i32, %c0_i32_0 : i32, i32
  }
  func.func @transform_4(%arg0: i32, %arg1: i32, %arg2: i32) -> (i32, i32) {
    %c0_i32 = arith.constant 0 : i32
    %c0_i32_0 = arith.constant 0 : i32
    %c0_i32_1 = arith.constant 0 : i32
    return %c0_i32, %c0_i32_0 : i32, i32
  }
  func.func @transform_5(%arg0: i32, %arg1: i32, %arg2: i32) -> (i32, i32) {
    %c0_i32 = arith.constant 0 : i32
    %c0_i32_0 = arith.constant 0 : i32
    %c0_i32_1 = arith.constant 0 : i32
    return %c0_i32, %c0_i32_0 : i32, i32
  }
  func.func @transform_6(%arg0: i32, %arg1: i32, %arg2: i32) -> (i32, i32, i32) {
    %c0_i32 = arith.constant 0 : i32
    %c0_i32_0 = arith.constant 0 : i32
    %c0_i32_1 = arith.constant 0 : i32
    %c0_i32_2 = arith.constant 0 : i32
    return %c0_i32, %c0_i32_0, %c0_i32_1 : i32, i32, i32
  }
  func.func @transform_7(%arg0: i32, %arg1: i32, %arg2: i32) -> (i32, i32) {
    %c0_i32 = arith.constant 0 : i32
    %c0_i32_0 = arith.constant 0 : i32
    %c0_i32_1 = arith.constant 0 : i32
    return %c0_i32, %c0_i32_0 : i32, i32
  }
  func.func @transform_8(%arg0: i32, %arg1: i32, %arg2: i32) -> (i32, i32) {
    %c0_i32 = arith.constant 0 : i32
    %c0_i32_0 = arith.constant 0 : i32
    %c0_i32_1 = arith.constant 0 : i32
    return %c0_i32, %c0_i32_0 : i32, i32
  }
  func.func @transform_9(%arg0: i32, %arg1: i32, %arg2: i32) -> (i32, i32, i32) {
    %c0_i32 = arith.constant 0 : i32
    %c0_i32_0 = arith.constant 0 : i32
    return %arg0, %arg1, %c0_i32 : i32, i32, i32
  }
}

</mosaic_0001>

<llo_original>
// kernel: tpu_custom_call.1
$region0: #{tpu_custom_call.1}
  #allocation0 [shape = 'u32[]', space=smem, size = 0x4, offset = 0x4, fixed_abs, tag = 'smem constant byte address 0x4 - core index']
  #allocation1 [shape = 'u32[144,128]{1,0:T(1,128)}', space=vmem, size = 0x12000, scoped, tag = 'internal scratch']
  #allocation2 [shape = 'bf16[4,128,64]{2,1,0:T(16,128)(2,1)}', space=vmem, size = 0x20000, scoped, tag = 'scratch operand']
  #allocation3 [shape = 'bf16[2,4,128,64]{3,2,1,0:T(16,128)(2,1)}', space=vmem, size = 0x40000, scoped, tag = 'scratch operand']
  #allocation4 [shape = 'bf16[2,4,128,64]{3,2,1,0:T(16,128)(2,1)}', space=vmem, size = 0x40000, scoped, tag = 'scratch operand']
  #allocation5 [shape = 'f32[4,128,1]{2,1,0:T(8,128)}', space=vmem, size = 0x40000, scoped, tag = 'scratch operand']
  #allocation6 [shape = 'f32[4,128,1]{2,1,0:T(8,128)}', space=vmem, size = 0x40000, scoped, tag = 'scratch operand']
  #allocation7 [shape = 'f32[4,128,64]{2,1,0:T(8,128)}', space=vmem, size = 0x40000, scoped, tag = 'scratch operand']
  %s0 = inlined_call_operand.hbm [shape: f32[2,256,256], index: 0, kind: input, shape index: {}]
  %s1 = inlined_call_operand.hbm [shape: f32[2,256,256], index: 1, kind: input, shape index: {}]
  %s2 = inlined_call_operand.hbm [shape: bf16[2,256,256], index: 2, kind: input, shape index: {}]
  %s3 = inlined_call_operand.hbm [shape: bf16[256,256], index: 3, kind: input, shape index: {}]
  %s4 = inlined_call_operand.hbm [shape: bf16[256,256], index: 4, kind: input, shape index: {}]
  %s5 = inlined_call_operand.hbm [shape: bf16[256,256], index: 5, kind: input, shape index: {}]
  %s6 = inlined_call_operand.hbm [shape: bf16[4,64,256], index: 6, kind: input, shape index: {}]
  %s7 = inlined_call_operand.vmem [shape: f32[1,256], index: 7, kind: input, shape index: {}]
  %s8 = inlined_call_operand.vmem [shape: f32[1,256], index: 8, kind: input, shape index: {}]
  %s9 = inlined_call_operand.hbm [shape: f32[2,256,256], index: 9, kind: output, shape index: {}]
  %s10 = sld [smem:[#allocation0]]
  $region113: #{tpu_custom_call.1} parent=0
    _
  %s12 = ssub.s32 1, %s10
  %s13 = scalar_select 0, %s12, %s10
  $region1: #{tpu_custom_call.1} parent=0
    #allocation8 [shape = 'u8[262144]{0}', space=vmem, size = 0x40000, scoped, tag = 'input window, operand 0']
    #allocation9 [shape = 's32[2]{0}', space=sflag, size = 0x8, scoped, tag = 'scoped memory for tpu_custom_call.1']
    #allocation10 [shape = 's32[2]{0}', space=sflag, size = 0x8, scoped, tag = 'scoped memory for tpu_custom_call.1']
    #allocation11 [shape = 'u8[262144]{0}', space=vmem, size = 0x40000, scoped, tag = 'input window, operand 1']
    #allocation12 [shape = 's32[2]{0}', space=sflag, size = 0x8, scoped, tag = 'scoped memory for tpu_custom_call.1']
    #allocation13 [shape = 'u8[65536]{0}', space=vmem, size = 0x10000, scoped, tag = 'input window, operand 2']
    #allocation14 [shape = 'u8[131072]{0}', space=vmem, size = 0x20000, scoped, tag = 'input window, operand 3, single buffered']
    #allocation15 [shape = 's32[1]{0}', space=sflag, size = 0x4, scoped, tag = 'scoped memory for tpu_custom_call.1']
    #allocation16 [shape = 'u8[131072]{0}', space=vmem, size = 0x20000, scoped, tag = 'input window, operand 4, single buffered']
    #allocation17 [shape = 'u8[131072]{0}', space=vmem, size = 0x20000, scoped, tag = 'input window, operand 5, single buffered']
    #allocation18 [shape = 's32[1]{0}', space=sflag, size = 0x4, scoped, tag = 'scoped memory for tpu_custom_call.1']
    #allocation19 [shape = 'u8[131072]{0}', space=vmem, size = 0x20000, scoped, tag = 'input window, operand 6, single buffered']
    #allocation20 [shape = 'u8[262144]{0}', space=vmem, size = 0x40000, scoped, tag = 'output window, operand 0']
    %14 = vsyncpa [#allocation9], 0
    %s15 = scalar_lea.sflag [#allocation9], 1
    %16 = vsyncpa %s15, 0
    %17 = vsyncpa [#allocation12], 0
    %s18 = scalar_lea.sflag [#allocation12], 1
    %19 = vsyncpa %s18, 0
    %20 = vsyncpa [#allocation15], 0
    %21 = vsyncpa [#allocation18], 0
    %22 = vsyncpa [#allocation10], 0
    %s23 = scalar_lea.sflag [#allocation10], 1
    %24 = vsyncpa %s23, 0
    loop: start=0, step=1, limit=10
    $region2: #{tpu_custom_call.1} parent=1 // loop_pre_header
      _
    $region3: #{tpu_custom_call.1} parent=1 // loop_header
      %s26 = sphi 0, %s30
      %p27 = scmp.ge.s32.totalorder %s26, 10
      %s33 = sphi 0, %s52
      %s34 = sphi 0, %s48
      %s35 = sphi 0, %s44
      %s36 = sphi 0, %s33
      %s37 = sphi 0, %s34
      %s38 = sphi 0, %s35
      %s39 = sphi 0, %s36
      %s40 = sphi 0, %s37
      %s41 = sphi 0, %s38
      %s57 = sphi 0, %s59
      %s60 = sphi 0, %s57
      %s61 = sphi 0, %s60
      %s77 = sphi 0, %s61
      %s89 = sphi 0, %s91
      %s92 = sphi 0, %s89
      %s93 = sphi 0, %s92
      %s109 = sphi 0, %s93
      %s119 = sphi 0, %s121
      %s122 = sphi 0, %s119
      %s123 = sphi 0, %s122
      %s139 = sphi 0, %s123
      %s143 = sphi 0, %s143
      %s145 = sphi 0, %s143
      %s146 = sphi 0, %s145
      %s160 = sphi 0, %s146
      %s164 = sphi 0, %s164
      %s166 = sphi 0, %s164
      %s167 = sphi 0, %s166
      %s181 = sphi 0, %s167
      %s185 = sphi 0, %s185
      %s187 = sphi 0, %s185
      %s188 = sphi 0, %s187
      %s202 = sphi 0, %s188
      %s206 = sphi 0, %s206
      %s208 = sphi 0, %s206
      %s209 = sphi 0, %s208
      %s223 = sphi 0, %s209
      %s227 = sphi 0, %s227
      %s229 = sphi 0, %s227
      %s230 = sphi 0, %s229
      %s244 = sphi 0, %s230
      %s248 = sphi 0, %s248
      %s250 = sphi 0, %s248
      %s251 = sphi 0, %s250
      %s265 = sphi 0, %s251
      %s273 = sphi 0, %s275
      %s276 = sphi 0, %s273
      %s277 = sphi 0, %s276
      %s293 = sphi 0, %s277
    $region4: #{tpu_custom_call.1} parent=1 // loop_header_branch
      %29 = sbr.rel (%p27) target = $region8
    $region5: #{tpu_custom_call.1} parent=1 // loop_body
      %s31 = ssub.s32 %s26, 1
      %s32 = ssub.s32 %s26, 2
      %s42 = sadd.s32 1, %s35
      %p43 = scmp.ge.s32.totalorder %s42, 2
      %s44 = scalar_select %p43, 0, %s42
      %s45 = sadd.s32 1, %s34
      %s46 = scalar_select %p43, %s45, %s34
      %p47 = scmp.ge.s32.totalorder %s46, 2
      %s48 = scalar_select %p47, 0, %s46
      %s49 = sadd.s32 1, %s33
      %s50 = scalar_select %p47, %s49, %s33
      %p51 = scmp.ge.s32.totalorder %s50, 2
      %s52 = scalar_select %p51, 0, %s50
      %s53 = ssub.s32 %s33, %s52
      %s54 = ssub.s32 %s34, %s48
      %s55 = sor.u32 %s53, %s54
      %p56 = scmp.eq.s32.totalorder %s55, 0
      %s58 = sadd.s32 %s57, 1
      %s59 = scalar_select %p56, %s57, %s58
      %p62 = pneg %p56
      %p63 = scmp.eq.s32.totalorder %s26, 7
      %p64 = por %p62, %p63
      %p65 = scmp.ne.s32.totalorder %s57, %s60
      %p66 = scmp.eq.s32.totalorder %s26, 0
      %p67 = por %p65, %p66
      %p68 = scmp.ne.s32.totalorder %s57, %s60
      %p69 = scmp.eq.s32.totalorder %s31, 7
      %p70 = por %p68, %p69
      %p71 = scmp.ne.s32.totalorder %s60, %s61
      %p72 = scmp.eq.s32.totalorder %s31, 0
      %p73 = por %p71, %p72
      %p74 = scmp.ne.s32.totalorder %s60, %s61
      %p75 = scmp.eq.s32.totalorder %s32, 7
      %p76 = por %p74, %p75
      %p78 = scmp.ne.s32.totalorder %s61, %s77
      %p79 = scmp.eq.s32.totalorder %s32, 0
      %p80 = por %p78, %p79
      %p81 = scmp.eq.s32.totalorder %s34, 0
      %s82 = scalar_select %p81, %s35, 0
      %p83 = scmp.eq.s32.totalorder %s48, 0
      %s84 = scalar_select %p83, %s44, 0
      %s85 = ssub.s32 %s33, %s52
      %s86 = ssub.s32 %s82, %s84
      %s87 = sor.u32 %s85, %s86
      %p88 = scmp.eq.s32.totalorder %s87, 0
      %s90 = sadd.s32 %s89, 1
      %s91 = scalar_select %p88, %s89, %s90
      %p94 = pneg %p88
      %p95 = scmp.eq.s32.totalorder %s26, 7
      %p96 = por %p94, %p95
      %p97 = scmp.ne.s32.totalorder %s89, %s92
      %p98 = scmp.eq.s32.totalorder %s26, 0
      %p99 = por %p97, %p98
      %p100 = scmp.ne.s32.totalorder %s89, %s92
      %p101 = scmp.eq.s32.totalorder %s31, 7
      %p102 = por %p100, %p101
      %p103 = scmp.ne.s32.totalorder %s92, %s93
      %p104 = scmp.eq.s32.totalorder %s31, 0
      %p105 = por %p103, %p104
      %p106 = scmp.ne.s32.totalorder %s92, %s93
      %p107 = scmp.eq.s32.totalorder %s32, 7
      %p108 = por %p106, %p107
      %p110 = scmp.ne.s32.totalorder %s93, %s109
      %p111 = scmp.eq.s32.totalorder %s32, 0
      %p112 = por %p110, %p111
      %s113 = ssub.s32 %s33, %s52
      %s114 = ssub.s32 %s34, %s48
      %s115 = sor.u32 %s113, %s114
      %s116 = ssub.s32 %s35, %s44
      %s117 = sor.u32 %s115, %s116
      %p118 = scmp.eq.s32.totalorder %s117, 0
      %s120 = sadd.s32 %s119, 1
      %s121 = scalar_select %p118, %s119, %s120
      %p124 = pneg %p118
      %p125 = scmp.eq.s32.totalorder %s26, 7
      %p126 = por %p124, %p125
      %p127 = scmp.ne.s32.totalorder %s119, %s122
      %p128 = scmp.eq.s32.totalorder %s26, 0
      %p129 = por %p127, %p128
      %p130 = scmp.ne.s32.totalorder %s119, %s122
      %p131 = scmp.eq.s32.totalorder %s31, 7
      %p132 = por %p130, %p131
      %p133 = scmp.ne.s32.totalorder %s122, %s123
      %p134 = scmp.eq.s32.totalorder %s31, 0
      %p135 = por %p133, %p134
      %p136 = scmp.ne.s32.totalorder %s122, %s123
      %p137 = scmp.eq.s32.totalorder %s32, 7
      %p138 = por %p136, %p137
      %p140 = scmp.ne.s32.totalorder %s123, %s139
      %p141 = scmp.eq.s32.totalorder %s32, 0
      %p142 = por %p140, %p141
      %s144 = sadd.s32 %s143, 1
      %p147 = scmp.eq.s32.totalorder %s26, 7
      %p148 = scmp.ne.s32.totalorder %s143, %s145
      %p149 = scmp.eq.s32.totalorder %s26, 0
      %p150 = por %p148, %p149
      %p151 = scmp.ne.s32.totalorder %s143, %s145
      %p152 = scmp.eq.s32.totalorder %s31, 7
      %p153 = por %p151, %p152
      %p154 = scmp.ne.s32.totalorder %s145, %s146
      %p155 = scmp.eq.s32.totalorder %s31, 0
      %p156 = por %p154, %p155
      %p157 = scmp.ne.s32.totalorder %s145, %s146
      %p158 = scmp.eq.s32.totalorder %s32, 7
      %p159 = por %p157, %p158
      %p161 = scmp.ne.s32.totalorder %s146, %s160
      %p162 = scmp.eq.s32.totalorder %s32, 0
      %p163 = por %p161, %p162
      %s165 = sadd.s32 %s164, 1
      %p168 = scmp.eq.s32.totalorder %s26, 7
      %p169 = scmp.ne.s32.totalorder %s164, %s166
      %p170 = scmp.eq.s32.totalorder %s26, 0
      %p171 = por %p169, %p170
      %p172 = scmp.ne.s32.totalorder %s164, %s166
      %p173 = scmp.eq.s32.totalorder %s31, 7
      %p174 = por %p172, %p173
      %p175 = scmp.ne.s32.totalorder %s166, %s167
      %p176 = scmp.eq.s32.totalorder %s31, 0
      %p177 = por %p175, %p176
      %p178 = scmp.ne.s32.totalorder %s166, %s167
      %p179 = scmp.eq.s32.totalorder %s32, 7
      %p180 = por %p178, %p179
      %p182 = scmp.ne.s32.totalorder %s167, %s181
      %p183 = scmp.eq.s32.totalorder %s32, 0
      %p184 = por %p182, %p183
      %s186 = sadd.s32 %s185, 1
      %p189 = scmp.eq.s32.totalorder %s26, 7
      %p190 = scmp.ne.s32.totalorder %s185, %s187
      %p191 = scmp.eq.s32.totalorder %s26, 0
      %p192 = por %p190, %p191
      %p193 = scmp.ne.s32.totalorder %s185, %s187
      %p194 = scmp.eq.s32.totalorder %s31, 7
      %p195 = por %p193, %p194
      %p196 = scmp.ne.s32.totalorder %s187, %s188
      %p197 = scmp.eq.s32.totalorder %s31, 0
      %p198 = por %p196, %p197
      %p199 = scmp.ne.s32.totalorder %s187, %s188
      %p200 = scmp.eq.s32.totalorder %s32, 7
      %p201 = por %p199, %p200
      %p203 = scmp.ne.s32.totalorder %s188, %s202
      %p204 = scmp.eq.s32.totalorder %s32, 0
      %p205 = por %p203, %p204
      %s207 = sadd.s32 %s206, 1
      %p210 = scmp.eq.s32.totalorder %s26, 7
      %p211 = scmp.ne.s32.totalorder %s206, %s208
      %p212 = scmp.eq.s32.totalorder %s26, 0
      %p213 = por %p211, %p212
      %p214 = scmp.ne.s32.totalorder %s206, %s208
      %p215 = scmp.eq.s32.totalorder %s31, 7
      %p216 = por %p214, %p215
      %p217 = scmp.ne.s32.totalorder %s208, %s209
      %p218 = scmp.eq.s32.totalorder %s31, 0
      %p219 = por %p217, %p218
      %p220 = scmp.ne.s32.totalorder %s208, %s209
      %p221 = scmp.eq.s32.totalorder %s32, 7
      %p222 = por %p220, %p221
      %p224 = scmp.ne.s32.totalorder %s209, %s223
      %p225 = scmp.eq.s32.totalorder %s32, 0
      %p226 = por %p224, %p225
      %s228 = sadd.s32 %s227, 1
      %p231 = scmp.eq.s32.totalorder %s26, 7
      %p232 = scmp.ne.s32.totalorder %s227, %s229
      %p233 = scmp.eq.s32.totalorder %s26, 0
      %p234 = por %p232, %p233
      %p235 = scmp.ne.s32.totalorder %s227, %s229
      %p236 = scmp.eq.s32.totalorder %s31, 7
      %p237 = por %p235, %p236
      %p238 = scmp.ne.s32.totalorder %s229, %s230
      %p239 = scmp.eq.s32.totalorder %s31, 0
      %p240 = por %p238, %p239
      %p241 = scmp.ne.s32.totalorder %s229, %s230
      %p242 = scmp.eq.s32.totalorder %s32, 7
      %p243 = por %p241, %p242
      %p245 = scmp.ne.s32.totalorder %s230, %s244
      %p246 = scmp.eq.s32.totalorder %s32, 0
      %p247 = por %p245, %p246
      %s249 = sadd.s32 %s248, 1
      %p252 = scmp.eq.s32.totalorder %s26, 7
      %p253 = scmp.ne.s32.totalorder %s248, %s250
      %p254 = scmp.eq.s32.totalorder %s26, 0
      %p255 = por %p253, %p254
      %p256 = scmp.ne.s32.totalorder %s248, %s250
      %p257 = scmp.eq.s32.totalorder %s31, 7
      %p258 = por %p256, %p257
      %p259 = scmp.ne.s32.totalorder %s250, %s251
      %p260 = scmp.eq.s32.totalorder %s31, 0
      %p261 = por %p259, %p260
      %p262 = scmp.ne.s32.totalorder %s250, %s251
      %p263 = scmp.eq.s32.totalorder %s32, 7
      %p264 = por %p262, %p263
      %p266 = scmp.ne.s32.totalorder %s251, %s265
      %p267 = scmp.eq.s32.totalorder %s32, 0
      %p268 = por %p266, %p267
      %s269 = ssub.s32 %s33, %s52
      %s270 = ssub.s32 %s34, %s48
      %s271 = sor.u32 %s269, %s270
      %p272 = scmp.eq.s32.totalorder %s271, 0
      %s274 = sadd.s32 %s273, 1
      %s275 = scalar_select %p272, %s273, %s274
      %p278 = pneg %p272
      %p279 = scmp.eq.s32.totalorder %s26, 7
      %p280 = por %p278, %p279
      %p281 = scmp.ne.s32.totalorder %s273, %s276
      %p282 = scmp.eq.s32.totalorder %s26, 0
      %p283 = por %p281, %p282
      %p284 = scmp.ne.s32.totalorder %s273, %s276
      %p285 = scmp.eq.s32.totalorder %s31, 7
      %p286 = por %p284, %p285
      %p287 = scmp.ne.s32.totalorder %s276, %s277
      %p288 = scmp.eq.s32.totalorder %s31, 0
      %p289 = por %p287, %p288
      %p290 = scmp.ne.s32.totalorder %s276, %s277
      %p291 = scmp.eq.s32.totalorder %s32, 7
      %p292 = por %p290, %p291
      %p294 = scmp.ne.s32.totalorder %s277, %s293
      %p295 = scmp.eq.s32.totalorder %s32, 0
      %p296 = por %p294, %p295
      %p297 = scmp.le.s32.totalorder 1, %s26
      %p298 = scmp.lt.s32.totalorder %s26, 9
      %p299 = pnand %p297, %p298
      %p300 = pneg %p299
      // Predicated region
      $region9: #{tpu_custom_call.1} parent=5 // pred_check
        _
      $region10: #{tpu_custom_call.1} parent=5 // pred_check_branch
        %302 = sbr.rel (%p299) target = $region12
      $region11: #{tpu_custom_call.1} parent=5 // pred_region
        %s303 = ssub.s32 %s26, 1
        // Predicated region
        $region13: #{tpu_custom_call.1} parent=11 // pred_check
          %p304 = pneg %p156
        $region14: #{tpu_custom_call.1} parent=11 // pred_check_branch
          %306 = sbr.rel (%p304) target = $region16
        $region15: #{tpu_custom_call.1} parent=11 // pred_region
          %s308 = ssub.s32 4096, 4096
          %309 = vsyncadd [#allocation15], %s308
          %s310 = sshll.u32 [#allocation14], 4
          %s311 = int_to_ptr.vmem [resolvable:$true] %s310
          %316 = dma.hbm_to_vmem [thread:$0]  %s3, 4096, %s311, [#allocation15], 128, 128, 8
        $region16: #{tpu_custom_call.1} parent=11 // pred_fallthru
          _
        // Predicated region
        $region17: #{tpu_custom_call.1} parent=11 // pred_check
          %p317 = pneg %p177
        $region18: #{tpu_custom_call.1} parent=11 // pred_check_branch
          %319 = sbr.rel (%p317) target = $region20
        $region19: #{tpu_custom_call.1} parent=11 // pred_region
          %s321 = ssub.s32 4096, 4096
          %322 = vsyncadd [#allocation15], %s321
          %s323 = sshll.u32 [#allocation16], 4
          %s324 = int_to_ptr.vmem [resolvable:$true] %s323
          %329 = dma.hbm_to_vmem [thread:$0]  %s4, 4096, %s324, [#allocation15], 128, 128, 8
        $region20: #{tpu_custom_call.1} parent=11 // pred_fallthru
          _
        // Predicated region
        $region21: #{tpu_custom_call.1} parent=11 // pred_check
          %p330 = pneg %p198
        $region22: #{tpu_custom_call.1} parent=11 // pred_check_branch
          %332 = sbr.rel (%p330) target = $region24
        $region23: #{tpu_custom_call.1} parent=11 // pred_region
          %s334 = ssub.s32 4096, 4096
          %335 = vsyncadd [#allocation18], %s334
          %s336 = sshll.u32 [#allocation17], 4
          %s337 = int_to_ptr.vmem [resolvable:$true] %s336
          %342 = dma.hbm_to_vmem [thread:$0]  %s5, 4096, %s337, [#allocation18], 128, 128, 8
        $region24: #{tpu_custom_call.1} parent=11 // pred_fallthru
          _
        // Predicated region
        $region25: #{tpu_custom_call.1} parent=11 // pred_check
          %p343 = pneg %p219
        $region26: #{tpu_custom_call.1} parent=11 // pred_check_branch
          %345 = sbr.rel (%p343) target = $region28
        $region27: #{tpu_custom_call.1} parent=11 // pred_region
          %s347 = ssub.s32 4096, 4096
          %348 = vsyncadd [#allocation18], %s347
          %s349 = sshll.u32 [#allocation19], 4
          %s350 = int_to_ptr.vmem [resolvable:$true] %s349
          %355 = dma.hbm_to_vmem [thread:$0]  %s6, 4096, %s350, [#allocation18], 128, 128, 8
        $region28: #{tpu_custom_call.1} parent=11 // pred_fallthru
          _
        // Predicated region
        $region29: #{tpu_custom_call.1} parent=11 // pred_check
          %p356 = pneg %p240
        $region30: #{tpu_custom_call.1} parent=11 // pred_check_branch
          %358 = sbr.rel (%p356) target = $region32
        $region31: #{tpu_custom_call.1} parent=11 // pred_region
          _
        $region32: #{tpu_custom_call.1} parent=11 // pred_fallthru
          _
        // Predicated region
        $region33: #{tpu_custom_call.1} parent=11 // pred_check
          %p359 = pneg %p261
        $region34: #{tpu_custom_call.1} parent=11 // pred_check_branch
          %361 = sbr.rel (%p359) target = $region36
        $region35: #{tpu_custom_call.1} parent=11 // pred_region
          _
        $region36: #{tpu_custom_call.1} parent=11 // pred_fallthru
          _
      $region12: #{tpu_custom_call.1} parent=5 // pred_fallthru
        _
      %p362 = scmp.lt.s32.totalorder %s26, 8
      // Predicated region
      $region37: #{tpu_custom_call.1} parent=5 // pred_check
        %p363 = pneg %p362
      $region38: #{tpu_custom_call.1} parent=5 // pred_check_branch
        %365 = sbr.rel (%p363) target = $region40
      $region39: #{tpu_custom_call.1} parent=5 // pred_region
        // Predicated region
        $region41: #{tpu_custom_call.1} parent=39 // pred_check
          %p366 = pneg %p67
        $region42: #{tpu_custom_call.1} parent=39 // pred_check_branch
          %368 = sbr.rel (%p366) target = $region44
        $region43: #{tpu_custom_call.1} parent=39 // pred_region
          %s369 = sand.u32 %s57, 1
          %s370 = scalar_lea.sflag [#allocation9], %s369
          %s371 = sand.u32 %s57, 1
          %s372 = smul.addr %s371, 256
          %s373 = scalar_lea.vmem [#allocation8], %s372
          %s374 = smul.u32 16, %s34
          %s376 = ssub.s32 4096, 4096
          %377 = vsyncadd %s370, %s376
          %s378 = smul.addr %s374, 2
          %s379 = smul.addr %s33, 64
          %s380 = sadd.s32 %s378, %s379
          %s381 = smul.addr %s380, 128
          %s382 = scalar_lea.hbm %s0, %s381
          %s383 = sshll.u32 %s373, 4
          %s384 = int_to_ptr.vmem [resolvable:$true] %s383
          %389 = dma.hbm_to_vmem [thread:$0]  %s382, 4096, %s384, %s370, 256, 256, 16
        $region44: #{tpu_custom_call.1} parent=39 // pred_fallthru
          _
        // Predicated region
        $region45: #{tpu_custom_call.1} parent=39 // pred_check
          %p390 = pneg %p99
        $region46: #{tpu_custom_call.1} parent=39 // pred_check_branch
          %392 = sbr.rel (%p390) target = $region48
        $region47: #{tpu_custom_call.1} parent=39 // pred_region
          %s393 = sand.u32 %s26, 1
          %s394 = scalar_lea.sflag [#allocation12], %s393
          %s395 = sand.u32 %s89, 1
          %s396 = smul.addr %s395, 256
          %s397 = scalar_lea.vmem [#allocation11], %s396
          %p398 = scmp.eq.s32.totalorder %s34, 0
          %s399 = scalar_select %p398, %s35, 0
          %s400 = smul.u32 16, %s399
          %s402 = ssub.s32 4096, 4096
          %403 = vsyncadd %s394, %s402
          %s404 = smul.addr %s400, 2
          %s405 = smul.addr %s33, 64
          %s406 = sadd.s32 %s404, %s405
          %s407 = smul.addr %s406, 128
          %s408 = scalar_lea.hbm %s1, %s407
          %s409 = sshll.u32 %s397, 4
          %s410 = int_to_ptr.vmem [resolvable:$true] %s409
          %415 = dma.hbm_to_vmem [thread:$0]  %s408, 4096, %s410, %s394, 256, 256, 16
        $region48: #{tpu_custom_call.1} parent=39 // pred_fallthru
          _
        // Predicated region
        $region49: #{tpu_custom_call.1} parent=39 // pred_check
          %p416 = pneg %p129
        $region50: #{tpu_custom_call.1} parent=39 // pred_check_branch
          %418 = sbr.rel (%p416) target = $region52
        $region51: #{tpu_custom_call.1} parent=39 // pred_region
          %s419 = sand.u32 %s26, 1
          %s420 = scalar_lea.sflag [#allocation12], %s419
          %s421 = sand.u32 %s119, 1
          %s422 = smul.addr %s421, 64
          %s423 = scalar_lea.vmem [#allocation13], %s422
          %s424 = smul.u32 16, %s34
          %s426 = ssub.s32 1024, 1024
          %427 = vsyncadd %s420, %s426
          %s428 = smul.addr %s424, 2
          %s429 = sadd.s32 %s35, %s428
          %s430 = smul.addr %s33, 64
          %s431 = sadd.s32 %s429, %s430
          %s432 = smul.addr %s431, 64
          %s433 = scalar_lea.hbm %s2, %s432
          %s434 = sshll.u32 %s423, 4
          %s435 = int_to_ptr.vmem [resolvable:$true] %s434
          %440 = dma.hbm_to_vmem [thread:$0]  %s433, 1024, %s435, %s420, 128, 64, 4
        $region52: #{tpu_custom_call.1} parent=39 // pred_fallthru
          _
      $region40: #{tpu_custom_call.1} parent=5 // pred_fallthru
        _
      %p441 = scmp.le.s32.totalorder 1, %s26
      %p442 = scmp.lt.s32.totalorder %s26, 9
      %p443 = pnand %p441, %p442
      %p444 = pneg %p443
      // Predicated region
      $region53: #{tpu_custom_call.1} parent=5 // pred_check
        _
      $region54: #{tpu_custom_call.1} parent=5 // pred_check_branch
        %446 = sbr.rel (%p443) target = $region56
      $region55: #{tpu_custom_call.1} parent=5 // pred_region
        %s447 = ssub.s32 %s26, 1
        %s448 = sand.u32 %s60, 1
        %s449 = scalar_lea.sflag [#allocation9], %s448
        %s450 = sand.u32 %s60, 1
        %s451 = smul.addr %s450, 256
        %s452 = scalar_lea.vmem [#allocation8], %s451
        // Predicated region
        $region57: #{tpu_custom_call.1} parent=55 // pred_check
          %p453 = pneg %p73
        $region58: #{tpu_custom_call.1} parent=55 // pred_check_branch
          %455 = sbr.rel (%p453) target = $region60
        $region59: #{tpu_custom_call.1} parent=55 // pred_region
          %456 = dma.done %s449, 4096
        $region60: #{tpu_custom_call.1} parent=55 // pred_fallthru
          _
        %s457 = sand.u32 %s31, 1
        %s458 = scalar_lea.sflag [#allocation12], %s457
        %s459 = sand.u32 %s92, 1
        %s460 = smul.addr %s459, 256
        %s461 = scalar_lea.vmem [#allocation11], %s460
        // Predicated region
        $region61: #{tpu_custom_call.1} parent=55 // pred_check
          %p462 = pneg %p105
        $region62: #{tpu_custom_call.1} parent=55 // pred_check_branch
          %464 = sbr.rel (%p462) target = $region64
        $region63: #{tpu_custom_call.1} parent=55 // pred_region
          %465 = dma.done %s458, 4096
        $region64: #{tpu_custom_call.1} parent=55 // pred_fallthru
          _
        %s466 = sand.u32 %s31, 1
        %s467 = scalar_lea.sflag [#allocation12], %s466
        %s468 = sand.u32 %s122, 1
        %s469 = smul.addr %s468, 64
        %s470 = scalar_lea.vmem [#allocation13], %s469
        // Predicated region
        $region65: #{tpu_custom_call.1} parent=55 // pred_check
          %p471 = pneg %p135
        $region66: #{tpu_custom_call.1} parent=55 // pred_check_branch
          %473 = sbr.rel (%p471) target = $region68
        $region67: #{tpu_custom_call.1} parent=55 // pred_region
          %474 = dma.done %s467, 1024
        $region68: #{tpu_custom_call.1} parent=55 // pred_fallthru
          _
        // Predicated region
        $region69: #{tpu_custom_call.1} parent=55 // pred_check
          %p475 = pneg %p156
        $region70: #{tpu_custom_call.1} parent=55 // pred_check_branch
          %477 = sbr.rel (%p475) target = $region72
        $region71: #{tpu_custom_call.1} parent=55 // pred_region
          %478 = dma.done [#allocation15], 4096
        $region72: #{tpu_custom_call.1} parent=55 // pred_fallthru
          _
        // Predicated region
        $region73: #{tpu_custom_call.1} parent=55 // pred_check
          %p479 = pneg %p177
        $region74: #{tpu_custom_call.1} parent=55 // pred_check_branch
          %481 = sbr.rel (%p479) target = $region76
        $region75: #{tpu_custom_call.1} parent=55 // pred_region
          %482 = dma.done [#allocation15], 4096
        $region76: #{tpu_custom_call.1} parent=55 // pred_fallthru
          _
        // Predicated region
        $region77: #{tpu_custom_call.1} parent=55 // pred_check
          %p483 = pneg %p198
        $region78: #{tpu_custom_call.1} parent=55 // pred_check_branch
          %485 = sbr.rel (%p483) target = $region80
        $region79: #{tpu_custom_call.1} parent=55 // pred_region
          %486 = dma.done [#allocation18], 4096
        $region80: #{tpu_custom_call.1} parent=55 // pred_fallthru
          _
        // Predicated region
        $region81: #{tpu_custom_call.1} parent=55 // pred_check
          %p487 = pneg %p219
        $region82: #{tpu_custom_call.1} parent=55 // pred_check_branch
          %489 = sbr.rel (%p487) target = $region84
        $region83: #{tpu_custom_call.1} parent=55 // pred_region
          %490 = dma.done [#allocation18], 4096
        $region84: #{tpu_custom_call.1} parent=55 // pred_fallthru
          _
        %s491 = sand.u32 %s60, 1
        %s492 = scalar_lea.sflag [#allocation9], %s491
        %s493 = sand.u32 %s60, 1
        %s494 = smul.addr %s493, 256
        %s495 = scalar_lea.vmem [#allocation8], %s494
        %p496 = pneg %p73
        %p497 = pneg %p70
        %s498 = sand.u32 %s31, 1
        %s499 = scalar_lea.sflag [#allocation12], %s498
        %s500 = sand.u32 %s92, 1
        %s501 = smul.addr %s500, 256
        %s502 = scalar_lea.vmem [#allocation11], %s501
        %p503 = pneg %p105
        %p504 = pneg %p102
        %s505 = sand.u32 %s31, 1
        %s506 = scalar_lea.sflag [#allocation12], %s505
        %s507 = sand.u32 %s122, 1
        %s508 = smul.addr %s507, 64
        %s509 = scalar_lea.vmem [#allocation13], %s508
        %p510 = pneg %p135
        %p511 = pneg %p132
        %p512 = pneg %p156
        %p513 = pneg %p153
        %p514 = pneg %p177
        %p515 = pneg %p174
        %p516 = pneg %p198
        %p517 = pneg %p195
        %p518 = pneg %p219
        %p519 = pneg %p216
        %p520 = pneg %p240
        %p521 = pneg %p237
        %p522 = pneg %p261
        %p523 = pneg %p258
        %p524 = pneg %p289
        %p525 = pneg %p286
        %s526 = sand.u32 %s276, 1
        %s527 = scalar_lea.sflag [#allocation10], %s526
        %s528 = sand.u32 %s276, 1
        %s529 = smul.addr %s528, 256
        %s530 = scalar_lea.vmem [#allocation20], %s529
        %s531 = smul.u32 16, %s37
        %p532 = scmp.eq.s32.totalorder %s37, 0
        %s533 = scalar_select %p532, %s38, 0
        %s534 = smul.u32 16, %s533
        %s535 = smul.u32 16, %s37
        %s536 = smul.u32 16, %s37
        %p538 = scmp.eq.s32.totalorder %s37, 0
        // Predicated region
        $region85: #{tpu_custom_call.1} parent=55 // pred_check
          %p539 = pneg %p538
        $region86: #{tpu_custom_call.1} parent=55 // pred_check_branch
          %541 = sbr.rel (%p539) target = $region88
        $region87: #{tpu_custom_call.1} parent=55 // pred_region
          %v542 = vld [vmem:[%s461] sm:$0xff]
          %v543 = vld [vmem:[%s461 + $0x8] sm:$0xff]
          %v544 = vld [vmem:[%s461 + $0x10] sm:$0xff]
          %v545 = vld [vmem:[%s461 + $0x18] sm:$0xff]
          %v546 = vld [vmem:[%s461 + $0x20] sm:$0xff]
          %v547 = vld [vmem:[%s461 + $0x28] sm:$0xff]
          %v548 = vld [vmem:[%s461 + $0x30] sm:$0xff]
          %v549 = vld [vmem:[%s461 + $0x38] sm:$0xff]
          %v550 = vld [vmem:[%s461 + $0x40] sm:$0xff]
          %v551 = vld [vmem:[%s461 + $0x48] sm:$0xff]
          %v552 = vld [vmem:[%s461 + $0x50] sm:$0xff]
          %v553 = vld [vmem:[%s461 + $0x58] sm:$0xff]
          %v554 = vld [vmem:[%s461 + $0x60] sm:$0xff]
          %v555 = vld [vmem:[%s461 + $0x68] sm:$0xff]
          %v556 = vld [vmem:[%s461 + $0x70] sm:$0xff]
          %v557 = vld [vmem:[%s461 + $0x78] sm:$0xff]
          %v558 = vld [vmem:[%s461 + $0x80] sm:$0xff]
          %v559 = vld [vmem:[%s461 + $0x88] sm:$0xff]
          %v560 = vld [vmem:[%s461 + $0x90] sm:$0xff]
          %v561 = vld [vmem:[%s461 + $0x98] sm:$0xff]
          %v562 = vld [vmem:[%s461 + $0xa0] sm:$0xff]
          %v563 = vld [vmem:[%s461 + $0xa8] sm:$0xff]
          %v564 = vld [vmem:[%s461 + $0xb0] sm:$0xff]
          %v565 = vld [vmem:[%s461 + $0xb8] sm:$0xff]
          %v566 = vld [vmem:[%s461 + $0xc0] sm:$0xff]
          %v567 = vld [vmem:[%s461 + $0xc8] sm:$0xff]
          %v568 = vld [vmem:[%s461 + $0xd0] sm:$0xff]
          %v569 = vld [vmem:[%s461 + $0xd8] sm:$0xff]
          %v570 = vld [vmem:[%s461 + $0xe0] sm:$0xff]
          %v571 = vld [vmem:[%s461 + $0xe8] sm:$0xff]
          %v572 = vld [vmem:[%s461 + $0xf0] sm:$0xff]
          %v573 = vld [vmem:[%s461 + $0xf8] sm:$0xff]
          %v574 = vld [vmem:[%s7] sm:$0x3]
          %v575 = vld [vmem:[%s8] sm:$0x3]
          %v576 = vadd.f32 %v542, %v543
          %577 = vadd.xlane.f32.xlu0 %v576
          %v578 = vpop.xlane.xlu0 %577
          %v579 = vadd.f32 %v544, %v545
          %580 = vadd.xlane.f32.xlu0 %v579
          %v581 = vpop.xlane.xlu0 %580
          %v582 = vadd.f32 %v546, %v547
          %583 = vadd.xlane.f32.xlu0 %v582
          %v584 = vpop.xlane.xlu0 %583
          %v585 = vadd.f32 %v548, %v549
          %586 = vadd.xlane.f32.xlu0 %v585
          %v587 = vpop.xlane.xlu0 %586
          %v588 = vadd.f32 %v550, %v551
          %589 = vadd.xlane.f32.xlu0 %v588
          %v590 = vpop.xlane.xlu0 %589
          %v591 = vadd.f32 %v552, %v553
          %592 = vadd.xlane.f32.xlu0 %v591
          %v593 = vpop.xlane.xlu0 %592
          %v594 = vadd.f32 %v554, %v555
          %595 = vadd.xlane.f32.xlu0 %v594
          %v596 = vpop.xlane.xlu0 %595
          %v597 = vadd.f32 %v556, %v557
          %598 = vadd.xlane.f32.xlu0 %v597
          %v599 = vpop.xlane.xlu0 %598
          %v600 = vadd.f32 %v558, %v559
          %601 = vadd.xlane.f32.xlu0 %v600
          %v602 = vpop.xlane.xlu0 %601
          %v603 = vadd.f32 %v560, %v561
          %604 = vadd.xlane.f32.xlu0 %v603
          %v605 = vpop.xlane.xlu0 %604
          %v606 = vadd.f32 %v562, %v563
          %607 = vadd.xlane.f32.xlu0 %v606
          %v608 = vpop.xlane.xlu0 %607
          %v609 = vadd.f32 %v564, %v565
          %610 = vadd.xlane.f32.xlu0 %v609
          %v611 = vpop.xlane.xlu0 %610
          %v612 = vadd.f32 %v566, %v567
          %613 = vadd.xlane.f32.xlu0 %v612
          %v614 = vpop.xlane.xlu0 %613
          %v615 = vadd.f32 %v568, %v569
          %616 = vadd.xlane.f32.xlu0 %v615
          %v617 = vpop.xlane.xlu0 %616
          %v618 = vadd.f32 %v570, %v571
          %619 = vadd.xlane.f32.xlu0 %v618
          %v620 = vpop.xlane.xlu0 %619
          %v621 = vadd.f32 %v572, %v573
          %622 = vadd.xlane.f32.xlu0 %v621
          %v623 = vpop.xlane.xlu0 %622
          %v624 = vrcp.pop 256.0
          %v625 = vmul.f32 %v578, %v624
          %v626 = vmul.f32 %v581, %v624
          %v627 = vmul.f32 %v584, %v624
          %v628 = vmul.f32 %v587, %v624
          %v629 = vmul.f32 %v590, %v624
          %v630 = vmul.f32 %v593, %v624
          %v631 = vmul.f32 %v596, %v624
          %v632 = vmul.f32 %v599, %v624
          %v633 = vmul.f32 %v602, %v624
          %v634 = vmul.f32 %v605, %v624
          %v635 = vmul.f32 %v608, %v624
          %v636 = vmul.f32 %v611, %v624
          %v637 = vmul.f32 %v614, %v624
          %v638 = vmul.f32 %v617, %v624
          %v639 = vmul.f32 %v620, %v624
          %v640 = vmul.f32 %v623, %v624
          %v641 = vsub.f32 %v542, %v625
          %v642 = vsub.f32 %v543, %v625
          %v643 = vsub.f32 %v544, %v626
          %v644 = vsub.f32 %v545, %v626
          %v645 = vsub.f32 %v546, %v627
          %v646 = vsub.f32 %v547, %v627
          %v647 = vsub.f32 %v548, %v628
          %v648 = vsub.f32 %v549, %v628
          %v649 = vsub.f32 %v550, %v629
          %v650 = vsub.f32 %v551, %v629
          %v651 = vsub.f32 %v552, %v630
          %v652 = vsub.f32 %v553, %v630
          %v653 = vsub.f32 %v554, %v631
          %v654 = vsub.f32 %v555, %v631
          %v655 = vsub.f32 %v556, %v632
          %v656 = vsub.f32 %v557, %v632
          %v657 = vsub.f32 %v558, %v633
          %v658 = vsub.f32 %v559, %v633
          %v659 = vsub.f32 %v560, %v634
          %v660 = vsub.f32 %v561, %v634
          %v661 = vsub.f32 %v562, %v635
          %v662 = vsub.f32 %v563, %v635
          %v663 = vsub.f32 %v564, %v636
          %v664 = vsub.f32 %v565, %v636
          %v665 = vsub.f32 %v566, %v637
          %v666 = vsub.f32 %v567, %v637
          %v667 = vsub.f32 %v568, %v638
          %v668 = vsub.f32 %v569, %v638
          %v669 = vsub.f32 %v570, %v639
          %v670 = vsub.f32 %v571, %v639
          %v671 = vsub.f32 %v572, %v640
          %v672 = vsub.f32 %v573, %v640
          %v673 = vmul.f32 %v641, %v641
          %v674 = vmul.f32 %v642, %v642
          %v675 = vmul.f32 %v643, %v643
          %v676 = vmul.f32 %v644, %v644
          %v677 = vmul.f32 %v645, %v645
          %v678 = vmul.f32 %v646, %v646
          %v679 = vmul.f32 %v647, %v647
          %v680 = vmul.f32 %v648, %v648
          %v681 = vmul.f32 %v649, %v649
          %v682 = vmul.f32 %v650, %v650
          %v683 = vmul.f32 %v651, %v651
          %v684 = vmul.f32 %v652, %v652
          %v685 = vmul.f32 %v653, %v653
          %v686 = vmul.f32 %v654, %v654
          %v687 = vmul.f32 %v655, %v655
          %v688 = vmul.f32 %v656, %v656
          %v689 = vmul.f32 %v657, %v657
          %v690 = vmul.f32 %v658, %v658
          %v691 = vmul.f32 %v659, %v659
          %v692 = vmul.f32 %v660, %v660
          %v693 = vmul.f32 %v661, %v661
          %v694 = vmul.f32 %v662, %v662
          %v695 = vmul.f32 %v663, %v663
          %v696 = vmul.f32 %v664, %v664
          %v697 = vmul.f32 %v665, %v665
          %v698 = vmul.f32 %v666, %v666
          %v699 = vmul.f32 %v667, %v667
          %v700 = vmul.f32 %v668, %v668
          %v701 = vmul.f32 %v669, %v669
          %v702 = vmul.f32 %v670, %v670
          %v703 = vmul.f32 %v671, %v671
          %v704 = vmul.f32 %v672, %v672
          %v705 = vadd.f32 %v673, %v674
          %706 = vadd.xlane.f32.xlu0 %v705
          %v707 = vpop.xlane.xlu0 %706
          %v708 = vadd.f32 %v675, %v676
          %709 = vadd.xlane.f32.xlu0 %v708
          %v710 = vpop.xlane.xlu0 %709
          %v711 = vadd.f32 %v677, %v678
          %712 = vadd.xlane.f32.xlu0 %v711
          %v713 = vpop.xlane.xlu0 %712
          %v714 = vadd.f32 %v679, %v680
          %715 = vadd.xlane.f32.xlu0 %v714
          %v716 = vpop.xlane.xlu0 %715
          %v717 = vadd.f32 %v681, %v682
          %718 = vadd.xlane.f32.xlu0 %v717
          %v719 = vpop.xlane.xlu0 %718
          %v720 = vadd.f32 %v683, %v684
          %721 = vadd.xlane.f32.xlu0 %v720
          %v722 = vpop.xlane.xlu0 %721
          %v723 = vadd.f32 %v685, %v686
          %724 = vadd.xlane.f32.xlu0 %v723
          %v725 = vpop.xlane.xlu0 %724
          %v726 = vadd.f32 %v687, %v688
          %727 = vadd.xlane.f32.xlu0 %v726
          %v728 = vpop.xlane.xlu0 %727
          %v729 = vadd.f32 %v689, %v690
          %730 = vadd.xlane.f32.xlu0 %v729
          %v731 = vpop.xlane.xlu0 %730
          %v732 = vadd.f32 %v691, %v692
          %733 = vadd.xlane.f32.xlu0 %v732
          %v734 = vpop.xlane.xlu0 %733
          %v735 = vadd.f32 %v693, %v694
          %736 = vadd.xlane.f32.xlu0 %v735
          %v737 = vpop.xlane.xlu0 %736
          %v738 = vadd.f32 %v695, %v696
          %739 = vadd.xlane.f32.xlu0 %v738
          %v740 = vpop.xlane.xlu0 %739
          %v741 = vadd.f32 %v697, %v698
          %742 = vadd.xlane.f32.xlu0 %v741
          %v743 = vpop.xlane.xlu0 %742
          %v744 = vadd.f32 %v699, %v700
          %745 = vadd.xlane.f32.xlu0 %v744
          %v746 = vpop.xlane.xlu0 %745
          %v747 = vadd.f32 %v701, %v702
          %748 = vadd.xlane.f32.xlu0 %v747
          %v749 = vpop.xlane.xlu0 %748
          %v750 = vadd.f32 %v703, %v704
          %751 = vadd.xlane.f32.xlu0 %v750
          %v752 = vpop.xlane.xlu0 %751
          %v753 = vmul.f32 %v707, %v624
          %v754 = vmul.f32 %v710, %v624
          %v755 = vmul.f32 %v713, %v624
          %v756 = vmul.f32 %v716, %v624
          %v757 = vmul.f32 %v719, %v624
          %v758 = vmul.f32 %v722, %v624
          %v759 = vmul.f32 %v725, %v624
          %v760 = vmul.f32 %v728, %v624
          %v761 = vmul.f32 %v731, %v624
          %v762 = vmul.f32 %v734, %v624
          %v763 = vmul.f32 %v737, %v624
          %v764 = vmul.f32 %v740, %v624
          %v765 = vmul.f32 %v743, %v624
          %v766 = vmul.f32 %v746, %v624
          %v767 = vmul.f32 %v749, %v624
          %v768 = vmul.f32 %v752, %v624
          %v769 = vadd.f32 %v753, 1e-05
          %v770 = vadd.f32 %v754, 1e-05
          %v771 = vadd.f32 %v755, 1e-05
          %v772 = vadd.f32 %v756, 1e-05
          %v773 = vadd.f32 %v757, 1e-05
          %v774 = vadd.f32 %v758, 1e-05
          %v775 = vadd.f32 %v759, 1e-05
          %v776 = vadd.f32 %v760, 1e-05
          %v777 = vadd.f32 %v761, 1e-05
          %v778 = vadd.f32 %v762, 1e-05
          %v779 = vadd.f32 %v763, 1e-05
          %v780 = vadd.f32 %v764, 1e-05
          %v781 = vadd.f32 %v765, 1e-05
          %v782 = vadd.f32 %v766, 1e-05
          %v783 = vadd.f32 %v767, 1e-05
          %v784 = vadd.f32 %v768, 1e-05
          %v785 = vrsqrt.pop %v769
          %v786 = vrsqrt.pop %v770
          %v787 = vrsqrt.pop %v771
          %v788 = vrsqrt.pop %v772
          %v789 = vrsqrt.pop %v773
          %v790 = vrsqrt.pop %v774
          %v791 = vrsqrt.pop %v775
          %v792 = vrsqrt.pop %v776
          %v793 = vrsqrt.pop %v777
          %v794 = vrsqrt.pop %v778
          %v795 = vrsqrt.pop %v779
          %v796 = vrsqrt.pop %v780
          %v797 = vrsqrt.pop %v781
          %v798 = vrsqrt.pop %v782
          %v799 = vrsqrt.pop %v783
          %v800 = vrsqrt.pop %v784
          %v801 = vmul.f32 %v641, %v785
          %v802 = vmul.f32 %v642, %v785
          %v803 = vmul.f32 %v643, %v786
          %v804 = vmul.f32 %v644, %v786
          %v805 = vmul.f32 %v645, %v787
          %v806 = vmul.f32 %v646, %v787
          %v807 = vmul.f32 %v647, %v788
          %v808 = vmul.f32 %v648, %v788
          %v809 = vmul.f32 %v649, %v789
          %v810 = vmul.f32 %v650, %v789
          %v811 = vmul.f32 %v651, %v790
          %v812 = vmul.f32 %v652, %v790
          %v813 = vmul.f32 %v653, %v791
          %v814 = vmul.f32 %v654, %v791
          %v815 = vmul.f32 %v655, %v792
          %v816 = vmul.f32 %v656, %v792
          %v817 = vmul.f32 %v657, %v793
          %v818 = vmul.f32 %v658, %v793
          %v819 = vmul.f32 %v659, %v794
          %v820 = vmul.f32 %v660, %v794
          %v821 = vmul.f32 %v661, %v795
          %v822 = vmul.f32 %v662, %v795
          %v823 = vmul.f32 %v663, %v796
          %v824 = vmul.f32 %v664, %v796
          %v825 = vmul.f32 %v665, %v797
          %v826 = vmul.f32 %v666, %v797
          %v827 = vmul.f32 %v667, %v798
          %v828 = vmul.f32 %v668, %v798
          %v829 = vmul.f32 %v669, %v799
          %v830 = vmul.f32 %v670, %v799
          %v831 = vmul.f32 %v671, %v800
          %v832 = vmul.f32 %v672, %v800
          %v834 = vlaneseq
          %v835 = vshrl.u32 %v834, 7
          %v836 = vsub.s32 0, %v835
          %v837 = vrot.slane %v574, %v836
          %v838 = vlaneseq
          %v839 = vshrl.u32 %v838, 7
          %v840 = vsub.s32 1, %v839
          %v841 = vrot.slane %v574, %v840
          %v844 = vmul.f32 %v801, %v837
          %v845 = vmul.f32 %v802, %v841
          %v846 = vmul.f32 %v803, %v837
          %v847 = vmul.f32 %v804, %v841
          %v848 = vmul.f32 %v805, %v837
          %v849 = vmul.f32 %v806, %v841
          %v850 = vmul.f32 %v807, %v837
          %v851 = vmul.f32 %v808, %v841
          %v852 = vmul.f32 %v809, %v837
          %v853 = vmul.f32 %v810, %v841
          %v854 = vmul.f32 %v811, %v837
          %v855 = vmul.f32 %v812, %v841
          %v856 = vmul.f32 %v813, %v837
          %v857 = vmul.f32 %v814, %v841
          %v858 = vmul.f32 %v815, %v837
          %v859 = vmul.f32 %v816, %v841
          %v860 = vmul.f32 %v817, %v837
          %v861 = vmul.f32 %v818, %v841
          %v862 = vmul.f32 %v819, %v837
          %v863 = vmul.f32 %v820, %v841
          %v864 = vmul.f32 %v821, %v837
          %v865 = vmul.f32 %v822, %v841
          %v866 = vmul.f32 %v823, %v837
          %v867 = vmul.f32 %v824, %v841
          %v868 = vmul.f32 %v825, %v837
          %v869 = vmul.f32 %v826, %v841
          %v870 = vmul.f32 %v827, %v837
          %v871 = vmul.f32 %v828, %v841
          %v872 = vmul.f32 %v829, %v837
          %v873 = vmul.f32 %v830, %v841
          %v874 = vmul.f32 %v831, %v837
          %v875 = vmul.f32 %v832, %v841
          %v877 = vlaneseq
          %v878 = vshrl.u32 %v877, 7
          %v879 = vsub.s32 0, %v878
          %v880 = vrot.slane %v575, %v879
          %v881 = vlaneseq
          %v882 = vshrl.u32 %v881, 7
          %v883 = vsub.s32 1, %v882
          %v884 = vrot.slane %v575, %v883
          %v887 = vadd.f32 %v844, %v880
          %v888 = vadd.f32 %v845, %v884
          %v889 = vadd.f32 %v846, %v880
          %v890 = vadd.f32 %v847, %v884
          %v891 = vadd.f32 %v848, %v880
          %v892 = vadd.f32 %v849, %v884
          %v893 = vadd.f32 %v850, %v880
          %v894 = vadd.f32 %v851, %v884
          %v895 = vadd.f32 %v852, %v880
          %v896 = vadd.f32 %v853, %v884
          %v897 = vadd.f32 %v854, %v880
          %v898 = vadd.f32 %v855, %v884
          %v899 = vadd.f32 %v856, %v880
          %v900 = vadd.f32 %v857, %v884
          %v901 = vadd.f32 %v858, %v880
          %v902 = vadd.f32 %v859, %v884
          %v903 = vadd.f32 %v860, %v880
          %v904 = vadd.f32 %v861, %v884
          %v905 = vadd.f32 %v862, %v880
          %v906 = vadd.f32 %v863, %v884
          %v907 = vadd.f32 %v864, %v880
          %v908 = vadd.f32 %v865, %v884
          %v909 = vadd.f32 %v866, %v880
          %v910 = vadd.f32 %v867, %v884
          %v911 = vadd.f32 %v868, %v880
          %v912 = vadd.f32 %v869, %v884
          %v913 = vadd.f32 %v870, %v880
          %v914 = vadd.f32 %v871, %v884
          %v915 = vadd.f32 %v872, %v880
          %v916 = vadd.f32 %v873, %v884
          %v917 = vadd.f32 %v874, %v880
          %v918 = vadd.f32 %v875, %v884
          %v919 = vpack.c.bf16 %v889, %v887
          %v920 = vpack.c.bf16 %v890, %v888
          %v921 = vpack.c.bf16 %v893, %v891
          %v922 = vpack.c.bf16 %v894, %v892
          %v923 = vpack.c.bf16 %v897, %v895
          %v924 = vpack.c.bf16 %v898, %v896
          %v925 = vpack.c.bf16 %v901, %v899
          %v926 = vpack.c.bf16 %v902, %v900
          %v927 = vpack.c.bf16 %v905, %v903
          %v928 = vpack.c.bf16 %v906, %v904
          %v929 = vpack.c.bf16 %v909, %v907
          %v930 = vpack.c.bf16 %v910, %v908
          %v931 = vpack.c.bf16 %v913, %v911
          %v932 = vpack.c.bf16 %v914, %v912
          %v933 = vpack.c.bf16 %v917, %v915
          %v934 = vpack.c.bf16 %v918, %v916
          %v935 = vld [vmem:[#allocation16] sm:$0xff]
          %v936 = vld [vmem:[#allocation16 + $0x8] sm:$0xff]
          %v937 = vld [vmem:[#allocation16 + $0x10] sm:$0xff]
          %v938 = vld [vmem:[#allocation16 + $0x18] sm:$0xff]
          %v939 = vld [vmem:[#allocation16 + $0x20] sm:$0xff]
          %v940 = vld [vmem:[#allocation16 + $0x28] sm:$0xff]
          %v941 = vld [vmem:[#allocation16 + $0x30] sm:$0xff]
          %v942 = vld [vmem:[#allocation16 + $0x38] sm:$0xff]
          %v943 = vld [vmem:[#allocation16 + $0x40] sm:$0xff]
          %v944 = vld [vmem:[#allocation16 + $0x48] sm:$0xff]
          %v945 = vld [vmem:[#allocation16 + $0x50] sm:$0xff]
          %v946 = vld [vmem:[#allocation16 + $0x58] sm:$0xff]
          %v947 = vld [vmem:[#allocation16 + $0x60] sm:$0xff]
          %v948 = vld [vmem:[#allocation16 + $0x68] sm:$0xff]
          %v949 = vld [vmem:[#allocation16 + $0x70] sm:$0xff]
          %v950 = vld [vmem:[#allocation16 + $0x78] sm:$0xff]
          %v951 = vld [vmem:[#allocation16 + $0x80] sm:$0xff]
          %v952 = vld [vmem:[#allocation16 + $0x88] sm:$0xff]
          %v953 = vld [vmem:[#allocation16 + $0x90] sm:$0xff]
          %v954 = vld [vmem:[#allocation16 + $0x98] sm:$0xff]
          %v955 = vld [vmem:[#allocation16 + $0xa0] sm:$0xff]
          %v956 = vld [vmem:[#allocation16 + $0xa8] sm:$0xff]
          %v957 = vld [vmem:[#allocation16 + $0xb0] sm:$0xff]
          %v958 = vld [vmem:[#allocation16 + $0xb8] sm:$0xff]
          %v959 = vld [vmem:[#allocation16 + $0xc0] sm:$0xff]
          %v960 = vld [vmem:[#allocation16 + $0xc8] sm:$0xff]
          %v961 = vld [vmem:[#allocation16 + $0xd0] sm:$0xff]
          %v962 = vld [vmem:[#allocation16 + $0xd8] sm:$0xff]
          %v963 = vld [vmem:[#allocation16 + $0xe0] sm:$0xff]
          %v964 = vld [vmem:[#allocation16 + $0xe8] sm:$0xff]
          %v965 = vld [vmem:[#allocation16 + $0xf0] sm:$0xff]
          %v966 = vld [vmem:[#allocation16 + $0xf8] sm:$0xff]
          %v999 = vunpack.c.l.b16 %v935
          %v1000 = vunpack.c.h.b16 %v935
          %v1001 = vunpack.c.l.b16 %v936
          %v1002 = vunpack.c.h.b16 %v936
          %v1003 = vunpack.c.l.b16 %v937
          %v1004 = vunpack.c.h.b16 %v937
          %v1005 = vunpack.c.l.b16 %v938
          %v1006 = vunpack.c.h.b16 %v938
          %v1007 = vunpack.c.l.b16 %v939
          %v1008 = vunpack.c.h.b16 %v939
          %v1009 = vunpack.c.l.b16 %v940
          %v1010 = vunpack.c.h.b16 %v940
          %v1011 = vunpack.c.l.b16 %v941
          %v1012 = vunpack.c.h.b16 %v941
          %v1013 = vunpack.c.l.b16 %v942
          %v1014 = vunpack.c.h.b16 %v942
          %v1015 = vunpack.c.l.b16 %v943
          %v1016 = vunpack.c.h.b16 %v943
          %v1017 = vunpack.c.l.b16 %v944
          %v1018 = vunpack.c.h.b16 %v944
          %v1019 = vunpack.c.l.b16 %v945
          %v1020 = vunpack.c.h.b16 %v945
          %v1021 = vunpack.c.l.b16 %v946
          %v1022 = vunpack.c.h.b16 %v946
          %v1023 = vunpack.c.l.b16 %v947
          %v1024 = vunpack.c.h.b16 %v947
          %v1025 = vunpack.c.l.b16 %v948
          %v1026 = vunpack.c.h.b16 %v948
          %v1027 = vunpack.c.l.b16 %v949
          %v1028 = vunpack.c.h.b16 %v949
          %v1029 = vunpack.c.l.b16 %v950
          %v1030 = vunpack.c.h.b16 %v950
          %v1031 = vunpack.c.l.b16 %v951
          %v1032 = vunpack.c.h.b16 %v951
          %v1033 = vunpack.c.l.b16 %v952
          %v1034 = vunpack.c.h.b16 %v952
          %v1035 = vunpack.c.l.b16 %v953
          %v1036 = vunpack.c.h.b16 %v953
          %v1037 = vunpack.c.l.b16 %v954
          %v1038 = vunpack.c.h.b16 %v954
          %v1039 = vunpack.c.l.b16 %v955
          %v1040 = vunpack.c.h.b16 %v955
          %v1041 = vunpack.c.l.b16 %v956
          %v1042 = vunpack.c.h.b16 %v956
          %v1043 = vunpack.c.l.b16 %v957
          %v1044 = vunpack.c.h.b16 %v957
          %v1045 = vunpack.c.l.b16 %v958
          %v1046 = vunpack.c.h.b16 %v958
          %v1047 = vunpack.c.l.b16 %v959
          %v1048 = vunpack.c.h.b16 %v959
          %v1049 = vunpack.c.l.b16 %v960
          %v1050 = vunpack.c.h.b16 %v960
          %v1051 = vunpack.c.l.b16 %v961
          %v1052 = vunpack.c.h.b16 %v961
          %v1053 = vunpack.c.l.b16 %v962
          %v1054 = vunpack.c.h.b16 %v962
          %v1055 = vunpack.c.l.b16 %v963
          %v1056 = vunpack.c.h.b16 %v963
          %v1057 = vunpack.c.l.b16 %v964
          %v1058 = vunpack.c.h.b16 %v964
          %v1059 = vunpack.c.l.b16 %v965
          %v1060 = vunpack.c.h.b16 %v965
          %v1061 = vunpack.c.l.b16 %v966
          %v1062 = vunpack.c.h.b16 %v966
          %v1063 = vpack.c.b16 %v1001, %v999
          %v1064 = vpack.c.b16 %v1002, %v1000
          %v1065 = vpack.c.b16 %v1005, %v1003
          %v1066 = vpack.c.b16 %v1006, %v1004
          %v1067 = vpack.c.b16 %v1009, %v1007
          %v1068 = vpack.c.b16 %v1010, %v1008
          %v1069 = vpack.c.b16 %v1013, %v1011
          %v1070 = vpack.c.b16 %v1014, %v1012
          %v1071 = vpack.c.b16 %v1017, %v1015
          %v1072 = vpack.c.b16 %v1018, %v1016
          %v1073 = vpack.c.b16 %v1021, %v1019
          %v1074 = vpack.c.b16 %v1022, %v1020
          %v1075 = vpack.c.b16 %v1025, %v1023
          %v1076 = vpack.c.b16 %v1026, %v1024
          %v1077 = vpack.c.b16 %v1029, %v1027
          %v1078 = vpack.c.b16 %v1030, %v1028
          %v1079 = vpack.c.b16 %v1033, %v1031
          %v1080 = vpack.c.b16 %v1034, %v1032
          %v1081 = vpack.c.b16 %v1037, %v1035
          %v1082 = vpack.c.b16 %v1038, %v1036
          %v1083 = vpack.c.b16 %v1041, %v1039
          %v1084 = vpack.c.b16 %v1042, %v1040
          %v1085 = vpack.c.b16 %v1045, %v1043
          %v1086 = vpack.c.b16 %v1046, %v1044
          %v1087 = vpack.c.b16 %v1049, %v1047
          %v1088 = vpack.c.b16 %v1050, %v1048
          %v1089 = vpack.c.b16 %v1053, %v1051
          %v1090 = vpack.c.b16 %v1054, %v1052
          %v1091 = vpack.c.b16 %v1057, %v1055
          %v1092 = vpack.c.b16 %v1058, %v1056
          %v1093 = vpack.c.b16 %v1061, %v1059
          %v1094 = vpack.c.b16 %v1062, %v1060
          %1127 = vmatprep.subr.bf16.mxu0 %v1064
          %1128 = vmatpush1.bf16.msra.mxu0 %v1063
          %1129 = vmatprep.subr.bf16.mxu0 %v1066
          %1130 = vmatpush1.bf16.msra.mxu0 %v1065
          %1131 = vmatprep.subr.bf16.mxu0 %v1068
          %1132 = vmatpush1.bf16.msra.mxu0 %v1067
          %1133 = vmatprep.subr.bf16.mxu0 %v1070
          %1134 = vmatpush1.bf16.msra.mxu0 %v1069
          %1135 = vmatprep.subr.bf16.mxu0 %v1072
          %1136 = vmatpush1.bf16.msra.mxu0 %v1071
          %1137 = vmatprep.subr.bf16.mxu0 %v1074
          %1138 = vmatpush1.bf16.msra.mxu0 %v1073
          %1139 = vmatprep.subr.bf16.mxu0 %v1076
          %1140 = vmatpush1.bf16.msra.mxu0 %v1075
          %1141 = vmatprep.subr.bf16.mxu0 %v1078
          %1142 = vmatpush1.bf16.msra.mxu0 %v1077
          %1143 = vmatprep.subr.bf16.mxu0 %v1080
          %1144 = vmatpush1.bf16.msra.mxu0 %v1079
          %1145 = vmatprep.subr.bf16.mxu0 %v1082
          %1146 = vmatpush1.bf16.msra.mxu0 %v1081
          %1147 = vmatprep.subr.bf16.mxu0 %v1084
          %1148 = vmatpush1.bf16.msra.mxu0 %v1083
          %1149 = vmatprep.subr.bf16.mxu0 %v1086
          %1150 = vmatpush1.bf16.msra.mxu0 %v1085
          %1151 = vmatprep.subr.bf16.mxu0 %v1088
          %1152 = vmatpush1.bf16.msra.mxu0 %v1087
          %1153 = vmatprep.subr.bf16.mxu0 %v1090
          %1154 = vmatpush1.bf16.msra.mxu0 %v1089
          %1155 = vmatprep.subr.bf16.mxu0 %v1092
          %1156 = vmatpush1.bf16.msra.mxu0 %v1091
          %1157 = vmatprep.subr.bf16.mxu0 %v1094
          %1158 = vmatpush1.bf16.msra.mxu0 %v1093
          %1159 = vmatprep.mubr.bf16.mxu0 %v920
          %1160 = vmatmul.mubr.bf16.gmra.mrb[0].mxu0 %v919
          %v1161 = vpop.f32.mrb[0].mxu0
          %v1162 = vadd.f32 0.0, %v1161
          %v1163 = vpop.f32.mrb[0].mxu0
          %v1164 = vadd.f32 0.0, %v1163
          %v1165 = vpop.f32.mrb[0].mxu0
          %v1166 = vadd.f32 0.0, %v1165
          %v1167 = vpop.f32.mrb[0].mxu0
          %v1168 = vadd.f32 0.0, %v1167
          %1169 = vmatprep.mubr.bf16.mxu0 %v922
          %1170 = vmatmul.mubr.bf16.gmra.mrb[0].mxu0 %v921
          %v1171 = vpop.f32.mrb[0].mxu0
          %v1172 = vadd.f32 0.0, %v1171
          %v1173 = vpop.f32.mrb[0].mxu0
          %v1174 = vadd.f32 0.0, %v1173
          %v1175 = vpop.f32.mrb[0].mxu0
          %v1176 = vadd.f32 0.0, %v1175
          %v1177 = vpop.f32.mrb[0].mxu0
          %v1178 = vadd.f32 0.0, %v1177
          %1179 = vmatprep.mubr.bf16.mxu0 %v924
          %1180 = vmatmul.mubr.bf16.gmra.mrb[0].mxu0 %v923
          %v1181 = vpop.f32.mrb[0].mxu0
          %v1182 = vadd.f32 0.0, %v1181
          %v1183 = vpop.f32.mrb[0].mxu0
          %v1184 = vadd.f32 0.0, %v1183
          %v1185 = vpop.f32.mrb[0].mxu0
          %v1186 = vadd.f32 0.0, %v1185
          %v1187 = vpop.f32.mrb[0].mxu0
          %v1188 = vadd.f32 0.0, %v1187
          %1189 = vmatprep.mubr.bf16.mxu0 %v926
          %1190 = vmatmul.mubr.bf16.gmra.mrb[0].mxu0 %v925
          %v1191 = vpop.f32.mrb[0].mxu0
          %v1192 = vadd.f32 0.0, %v1191
          %v1193 = vpop.f32.mrb[0].mxu0
          %v1194 = vadd.f32 0.0, %v1193
          %v1195 = vpop.f32.mrb[0].mxu0
          %v1196 = vadd.f32 0.0, %v1195
          %v1197 = vpop.f32.mrb[0].mxu0
          %v1198 = vadd.f32 0.0, %v1197
          %1199 = vmatprep.mubr.bf16.mxu0 %v928
          %1200 = vmatmul.mubr.bf16.gmra.mrb[0].mxu0 %v927
          %v1201 = vpop.f32.mrb[0].mxu0
          %v1202 = vadd.f32 0.0, %v1201
          %v1203 = vpop.f32.mrb[0].mxu0
          %v1204 = vadd.f32 0.0, %v1203
          %v1205 = vpop.f32.mrb[0].mxu0
          %v1206 = vadd.f32 0.0, %v1205
          %v1207 = vpop.f32.mrb[0].mxu0
          %v1208 = vadd.f32 0.0, %v1207
          %1209 = vmatprep.mubr.bf16.mxu0 %v930
          %1210 = vmatmul.mubr.bf16.gmra.mrb[0].mxu0 %v929
          %v1211 = vpop.f32.mrb[0].mxu0
          %v1212 = vadd.f32 0.0, %v1211
          %v1213 = vpop.f32.mrb[0].mxu0
          %v1214 = vadd.f32 0.0, %v1213
          %v1215 = vpop.f32.mrb[0].mxu0
          %v1216 = vadd.f32 0.0, %v1215
          %v1217 = vpop.f32.mrb[0].mxu0
          %v1218 = vadd.f32 0.0, %v1217
          %1219 = vmatprep.mubr.bf16.mxu0 %v932
          %1220 = vmatmul.mubr.bf16.gmra.mrb[0].mxu0 %v931
          %v1221 = vpop.f32.mrb[0].mxu0
          %v1222 = vadd.f32 0.0, %v1221
          %v1223 = vpop.f32.mrb[0].mxu0
          %v1224 = vadd.f32 0.0, %v1223
          %v1225 = vpop.f32.mrb[0].mxu0
          %v1226 = vadd.f32 0.0, %v1225
          %v1227 = vpop.f32.mrb[0].mxu0
          %v1228 = vadd.f32 0.0, %v1227
          %1229 = vmatprep.mubr.bf16.mxu0 %v934
          %1230 = vmatmul.mubr.bf16.gmra.mrb[0].mxu0 %v933
          %v1231 = vpop.f32.mrb[0].mxu0
          %v1232 = vadd.f32 0.0, %v1231
          %v1233 = vpop.f32.mrb[0].mxu0
          %v1234 = vadd.f32 0.0, %v1233
          %v1235 = vpop.f32.mrb[0].mxu0
          %v1236 = vadd.f32 0.0, %v1235
          %v1237 = vpop.f32.mrb[0].mxu0
          %v1238 = vadd.f32 0.0, %v1237
          %1239 = vdwg.mxu0
          %v1240 = vld [vmem:[#allocation17] sm:$0xff]
          %v1241 = vld [vmem:[#allocation17 + $0x8] sm:$0xff]
          %v1242 = vld [vmem:[#allocation17 + $0x10] sm:$0xff]
          %v1243 = vld [vmem:[#allocation17 + $0x18] sm:$0xff]
          %v1244 = vld [vmem:[#allocation17 + $0x20] sm:$0xff]
          %v1245 = vld [vmem:[#allocation17 + $0x28] sm:$0xff]
          %v1246 = vld [vmem:[#allocation17 + $0x30] sm:$0xff]
          %v1247 = vld [vmem:[#allocation17 + $0x38] sm:$0xff]
          %v1248 = vld [vmem:[#allocation17 + $0x40] sm:$0xff]
          %v1249 = vld [vmem:[#allocation17 + $0x48] sm:$0xff]
          %v1250 = vld [vmem:[#allocation17 + $0x50] sm:$0xff]
          %v1251 = vld [vmem:[#allocation17 + $0x58] sm:$0xff]
          %v1252 = vld [vmem:[#allocation17 + $0x60] sm:$0xff]
          %v1253 = vld [vmem:[#allocation17 + $0x68] sm:$0xff]
          %v1254 = vld [vmem:[#allocation17 + $0x70] sm:$0xff]
          %v1255 = vld [vmem:[#allocation17 + $0x78] sm:$0xff]
          %v1256 = vld [vmem:[#allocation17 + $0x80] sm:$0xff]
          %v1257 = vld [vmem:[#allocation17 + $0x88] sm:$0xff]
          %v1258 = vld [vmem:[#allocation17 + $0x90] sm:$0xff]
          %v1259 = vld [vmem:[#allocation17 + $0x98] sm:$0xff]
          %v1260 = vld [vmem:[#allocation17 + $0xa0] sm:$0xff]
          %v1261 = vld [vmem:[#allocation17 + $0xa8] sm:$0xff]
          %v1262 = vld [vmem:[#allocation17 + $0xb0] sm:$0xff]
          %v1263 = vld [vmem:[#allocation17 + $0xb8] sm:$0xff]
          %v1264 = vld [vmem:[#allocation17 + $0xc0] sm:$0xff]
          %v1265 = vld [vmem:[#allocation17 + $0xc8] sm:$0xff]
          %v1266 = vld [vmem:[#allocation17 + $0xd0] sm:$0xff]
          %v1267 = vld [vmem:[#allocation17 + $0xd8] sm:$0xff]
          %v1268 = vld [vmem:[#allocation17 + $0xe0] sm:$0xff]
          %v1269 = vld [vmem:[#allocation17 + $0xe8] sm:$0xff]
          %v1270 = vld [vmem:[#allocation17 + $0xf0] sm:$0xff]
          %v1271 = vld [vmem:[#allocation17 + $0xf8] sm:$0xff]
          %v1304 = vunpack.c.l.b16 %v1240
          %v1305 = vunpack.c.h.b16 %v1240
          %v1306 = vunpack.c.l.b16 %v1241
          %v1307 = vunpack.c.h.b16 %v1241
          %v1308 = vunpack.c.l.b16 %v1242
          %v1309 = vunpack.c.h.b16 %v1242
          %v1310 = vunpack.c.l.b16 %v1243
          %v1311 = vunpack.c.h.b16 %v1243
          %v1312 = vunpack.c.l.b16 %v1244
          %v1313 = vunpack.c.h.b16 %v1244
          %v1314 = vunpack.c.l.b16 %v1245
          %v1315 = vunpack.c.h.b16 %v1245
          %v1316 = vunpack.c.l.b16 %v1246
          %v1317 = vunpack.c.h.b16 %v1246
          %v1318 = vunpack.c.l.b16 %v1247
          %v1319 = vunpack.c.h.b16 %v1247
          %v1320 = vunpack.c.l.b16 %v1248
          %v1321 = vunpack.c.h.b16 %v1248
          %v1322 = vunpack.c.l.b16 %v1249
          %v1323 = vunpack.c.h.b16 %v1249
          %v1324 = vunpack.c.l.b16 %v1250
          %v1325 = vunpack.c.h.b16 %v1250
          %v1326 = vunpack.c.l.b16 %v1251
          %v1327 = vunpack.c.h.b16 %v1251
          %v1328 = vunpack.c.l.b16 %v1252
          %v1329 = vunpack.c.h.b16 %v1252
          %v1330 = vunpack.c.l.b16 %v1253
          %v1331 = vunpack.c.h.b16 %v1253
          %v1332 = vunpack.c.l.b16 %v1254
          %v1333 = vunpack.c.h.b16 %v1254
          %v1334 = vunpack.c.l.b16 %v1255
          %v1335 = vunpack.c.h.b16 %v1255
          %v1336 = vunpack.c.l.b16 %v1256
          %v1337 = vunpack.c.h.b16 %v1256
          %v1338 = vunpack.c.l.b16 %v1257
          %v1339 = vunpack.c.h.b16 %v1257
          %v1340 = vunpack.c.l.b16 %v1258
          %v1341 = vunpack.c.h.b16 %v1258
          %v1342 = vunpack.c.l.b16 %v1259
          %v1343 = vunpack.c.h.b16 %v1259
          %v1344 = vunpack.c.l.b16 %v1260
          %v1345 = vunpack.c.h.b16 %v1260
          %v1346 = vunpack.c.l.b16 %v1261
          %v1347 = vunpack.c.h.b16 %v1261
          %v1348 = vunpack.c.l.b16 %v1262
          %v1349 = vunpack.c.h.b16 %v1262
          %v1350 = vunpack.c.l.b16 %v1263
          %v1351 = vunpack.c.h.b16 %v1263
          %v1352 = vunpack.c.l.b16 %v1264
          %v1353 = vunpack.c.h.b16 %v1264
          %v1354 = vunpack.c.l.b16 %v1265
          %v1355 = vunpack.c.h.b16 %v1265
          %v1356 = vunpack.c.l.b16 %v1266
          %v1357 = vunpack.c.h.b16 %v1266
          %v1358 = vunpack.c.l.b16 %v1267
          %v1359 = vunpack.c.h.b16 %v1267
          %v1360 = vunpack.c.l.b16 %v1268
          %v1361 = vunpack.c.h.b16 %v1268
          %v1362 = vunpack.c.l.b16 %v1269
          %v1363 = vunpack.c.h.b16 %v1269
          %v1364 = vunpack.c.l.b16 %v1270
          %v1365 = vunpack.c.h.b16 %v1270
          %v1366 = vunpack.c.l.b16 %v1271
          %v1367 = vunpack.c.h.b16 %v1271
          %v1368 = vpack.c.b16 %v1306, %v1304
          %v1369 = vpack.c.b16 %v1307, %v1305
          %v1370 = vpack.c.b16 %v1310, %v1308
          %v1371 = vpack.c.b16 %v1311, %v1309
          %v1372 = vpack.c.b16 %v1314, %v1312
          %v1373 = vpack.c.b16 %v1315, %v1313
          %v1374 = vpack.c.b16 %v1318, %v1316
          %v1375 = vpack.c.b16 %v1319, %v1317
          %v1376 = vpack.c.b16 %v1322, %v1320
          %v1377 = vpack.c.b16 %v1323, %v1321
          %v1378 = vpack.c.b16 %v1326, %v1324
          %v1379 = vpack.c.b16 %v1327, %v1325
          %v1380 = vpack.c.b16 %v1330, %v1328
          %v1381 = vpack.c.b16 %v1331, %v1329
          %v1382 = vpack.c.b16 %v1334, %v1332
          %v1383 = vpack.c.b16 %v1335, %v1333
          %v1384 = vpack.c.b16 %v1338, %v1336
          %v1385 = vpack.c.b16 %v1339, %v1337
          %v1386 = vpack.c.b16 %v1342, %v1340
          %v1387 = vpack.c.b16 %v1343, %v1341
          %v1388 = vpack.c.b16 %v1346, %v1344
          %v1389 = vpack.c.b16 %v1347, %v1345
          %v1390 = vpack.c.b16 %v1350, %v1348
          %v1391 = vpack.c.b16 %v1351, %v1349
          %v1392 = vpack.c.b16 %v1354, %v1352
          %v1393 = vpack.c.b16 %v1355, %v1353
          %v1394 = vpack.c.b16 %v1358, %v1356
          %v1395 = vpack.c.b16 %v1359, %v1357
          %v1396 = vpack.c.b16 %v1362, %v1360
          %v1397 = vpack.c.b16 %v1363, %v1361
          %v1398 = vpack.c.b16 %v1366, %v1364
          %v1399 = vpack.c.b16 %v1367, %v1365
          %1432 = vmatprep.subr.bf16.mxu0 %v1369
          %1433 = vmatpush1.bf16.msra.mxu0 %v1368
          %1434 = vmatprep.subr.bf16.mxu0 %v1371
          %1435 = vmatpush1.bf16.msra.mxu0 %v1370
          %1436 = vmatprep.subr.bf16.mxu0 %v1373
          %1437 = vmatpush1.bf16.msra.mxu0 %v1372
          %1438 = vmatprep.subr.bf16.mxu0 %v1375
          %1439 = vmatpush1.bf16.msra.mxu0 %v1374
          %1440 = vmatprep.subr.bf16.mxu0 %v1377
          %1441 = vmatpush1.bf16.msra.mxu0 %v1376
          %1442 = vmatprep.subr.bf16.mxu0 %v1379
          %1443 = vmatpush1.bf16.msra.mxu0 %v1378
          %1444 = vmatprep.subr.bf16.mxu0 %v1381
          %1445 = vmatpush1.bf16.msra.mxu0 %v1380
          %1446 = vmatprep.subr.bf16.mxu0 %v1383
          %1447 = vmatpush1.bf16.msra.mxu0 %v1382
          %1448 = vmatprep.subr.bf16.mxu0 %v1385
          %1449 = vmatpush1.bf16.msra.mxu0 %v1384
          %1450 = vmatprep.subr.bf16.mxu0 %v1387
          %1451 = vmatpush1.bf16.msra.mxu0 %v1386
          %1452 = vmatprep.subr.bf16.mxu0 %v1389
          %1453 = vmatpush1.bf16.msra.mxu0 %v1388
          %1454 = vmatprep.subr.bf16.mxu0 %v1391
          %1455 = vmatpush1.bf16.msra.mxu0 %v1390
          %1456 = vmatprep.subr.bf16.mxu0 %v1393
          %1457 = vmatpush1.bf16.msra.mxu0 %v1392
          %1458 = vmatprep.subr.bf16.mxu0 %v1395
          %1459 = vmatpush1.bf16.msra.mxu0 %v1394
          %1460 = vmatprep.subr.bf16.mxu0 %v1397
          %1461 = vmatpush1.bf16.msra.mxu0 %v1396
          %1462 = vmatprep.subr.bf16.mxu0 %v1399
          %1463 = vmatpush1.bf16.msra.mxu0 %v1398
          %1464 = vmatprep.mubr.bf16.mxu0 %v920
          %1465 = vmatmul.mubr.bf16.gmra.mrb[0].mxu0 %v919
          %v1466 = vpop.f32.mrb[0].mxu0
          %v1467 = vadd.f32 0.0, %v1466
          %v1468 = vpop.f32.mrb[0].mxu0
          %v1469 = vadd.f32 0.0, %v1468
          %v1470 = vpop.f32.mrb[0].mxu0
          %v1471 = vadd.f32 0.0, %v1470
          %v1472 = vpop.f32.mrb[0].mxu0
          %v1473 = vadd.f32 0.0, %v1472
          %1474 = vmatprep.mubr.bf16.mxu0 %v922
          %1475 = vmatmul.mubr.bf16.gmra.mrb[0].mxu0 %v921
          %v1476 = vpop.f32.mrb[0].mxu0
          %v1477 = vadd.f32 0.0, %v1476
          %v1478 = vpop.f32.mrb[0].mxu0
          %v1479 = vadd.f32 0.0, %v1478
          %v1480 = vpop.f32.mrb[0].mxu0
          %v1481 = vadd.f32 0.0, %v1480
          %v1482 = vpop.f32.mrb[0].mxu0
          %v1483 = vadd.f32 0.0, %v1482
          %1484 = vmatprep.mubr.bf16.mxu0 %v924
          %1485 = vmatmul.mubr.bf16.gmra.mrb[0].mxu0 %v923
          %v1486 = vpop.f32.mrb[0].mxu0
          %v1487 = vadd.f32 0.0, %v1486
          %v1488 = vpop.f32.mrb[0].mxu0
          %v1489 = vadd.f32 0.0, %v1488
          %v1490 = vpop.f32.mrb[0].mxu0
          %v1491 = vadd.f32 0.0, %v1490
          %v1492 = vpop.f32.mrb[0].mxu0
          %v1493 = vadd.f32 0.0, %v1492
          %1494 = vmatprep.mubr.bf16.mxu0 %v926
          %1495 = vmatmul.mubr.bf16.gmra.mrb[0].mxu0 %v925
          %v1496 = vpop.f32.mrb[0].mxu0
          %v1497 = vadd.f32 0.0, %v1496
          %v1498 = vpop.f32.mrb[0].mxu0
          %v1499 = vadd.f32 0.0, %v1498
          %v1500 = vpop.f32.mrb[0].mxu0
          %v1501 = vadd.f32 0.0, %v1500
          %v1502 = vpop.f32.mrb[0].mxu0
          %v1503 = vadd.f32 0.0, %v1502
          %1504 = vmatprep.mubr.bf16.mxu0 %v928
          %1505 = vmatmul.mubr.bf16.gmra.mrb[0].mxu0 %v927
          %v1506 = vpop.f32.mrb[0].mxu0
          %v1507 = vadd.f32 0.0, %v1506
          %v1508 = vpop.f32.mrb[0].mxu0
          %v1509 = vadd.f32 0.0, %v1508
          %v1510 = vpop.f32.mrb[0].mxu0
          %v1511 = vadd.f32 0.0, %v1510
          %v1512 = vpop.f32.mrb[0].mxu0
          %v1513 = vadd.f32 0.0, %v1512
          %1514 = vmatprep.mubr.bf16.mxu0 %v930
          %1515 = vmatmul.mubr.bf16.gmra.mrb[0].mxu0 %v929
          %v1516 = vpop.f32.mrb[0].mxu0
          %v1517 = vadd.f32 0.0, %v1516
          %v1518 = vpop.f32.mrb[0].mxu0
          %v1519 = vadd.f32 0.0, %v1518
          %v1520 = vpop.f32.mrb[0].mxu0
          %v1521 = vadd.f32 0.0, %v1520
          %v1522 = vpop.f32.mrb[0].mxu0
          %v1523 = vadd.f32 0.0, %v1522
          %1524 = vmatprep.mubr.bf16.mxu0 %v932
          %1525 = vmatmul.mubr.bf16.gmra.mrb[0].mxu0 %v931
          %v1526 = vpop.f32.mrb[0].mxu0
          %v1527 = vadd.f32 0.0, %v1526
          %v1528 = vpop.f32.mrb[0].mxu0
          %v1529 = vadd.f32 0.0, %v1528
          %v1530 = vpop.f32.mrb[0].mxu0
          %v1531 = vadd.f32 0.0, %v1530
          %v1532 = vpop.f32.mrb[0].mxu0
          %v1533 = vadd.f32 0.0, %v1532
          %1534 = vmatprep.mubr.bf16.mxu0 %v934
          %1535 = vmatmul.mubr.bf16.gmra.mrb[0].mxu0 %v933
          %v1536 = vpop.f32.mrb[0].mxu0
          %v1537 = vadd.f32 0.0, %v1536
          %v1538 = vpop.f32.mrb[0].mxu0
          %v1539 = vadd.f32 0.0, %v1538
          %v1540 = vpop.f32.mrb[0].mxu0
          %v1541 = vadd.f32 0.0, %v1540
          %v1542 = vpop.f32.mrb[0].mxu0
          %v1543 = vadd.f32 0.0, %v1542
          %1544 = vdwg.mxu0
          %v1545 = vpack.c.bf16 %v1166, %v1162
          %v1546 = vpack.c.bf16 %v1176, %v1172
          %v1547 = vpack.c.bf16 %v1186, %v1182
          %v1548 = vpack.c.bf16 %v1196, %v1192
          %v1549 = vpack.c.bf16 %v1206, %v1202
          %v1550 = vpack.c.bf16 %v1216, %v1212
          %v1551 = vpack.c.bf16 %v1226, %v1222
          %v1552 = vpack.c.bf16 %v1236, %v1232
          %s1553 = smul.u32 %s38, 32
          %s1554 = smul.addr %s1553, 8
          %s1555 = scalar_lea.vmem [#allocation3], %s1554
          %vm1556 = vcmask 523264
          %1557 = vst.msk [vmem:[%s1555] sm:$0xff] %vm1556, %v1545
          %1558 = vst.msk [vmem:[%s1555 + $0x8] sm:$0xff] %vm1556, %v1546
          %1559 = vst.msk [vmem:[%s1555 + $0x10] sm:$0xff] %vm1556, %v1547
          %1560 = vst.msk [vmem:[%s1555 + $0x18] sm:$0xff] %vm1556, %v1548
          %1561 = vst.msk [vmem:[%s1555 + $0x20] sm:$0xff] %vm1556, %v1549
          %1562 = vst.msk [vmem:[%s1555 + $0x28] sm:$0xff] %vm1556, %v1550
          %1563 = vst.msk [vmem:[%s1555 + $0x30] sm:$0xff] %vm1556, %v1551
          %1564 = vst.msk [vmem:[%s1555 + $0x38] sm:$0xff] %vm1556, %v1552
          %v1565 = vpack.c.bf16 %v1471, %v1467
          %v1566 = vpack.c.bf16 %v1481, %v1477
          %v1567 = vpack.c.bf16 %v1491, %v1487
          %v1568 = vpack.c.bf16 %v1501, %v1497
          %v1569 = vpack.c.bf16 %v1511, %v1507
          %v1570 = vpack.c.bf16 %v1521, %v1517
          %v1571 = vpack.c.bf16 %v1531, %v1527
          %v1572 = vpack.c.bf16 %v1541, %v1537
          %s1573 = smul.addr %s1553, 8
          %s1574 = scalar_lea.vmem [#allocation4], %s1573
          %1575 = vst.msk [vmem:[%s1574] sm:$0xff] %vm1556, %v1565
          %1576 = vst.msk [vmem:[%s1574 + $0x8] sm:$0xff] %vm1556, %v1566
          %1577 = vst.msk [vmem:[%s1574 + $0x10] sm:$0xff] %vm1556, %v1567
          %1578 = vst.msk [vmem:[%s1574 + $0x18] sm:$0xff] %vm1556, %v1568
          %1579 = vst.msk [vmem:[%s1574 + $0x20] sm:$0xff] %vm1556, %v1569
          %1580 = vst.msk [vmem:[%s1574 + $0x28] sm:$0xff] %vm1556, %v1570
          %1581 = vst.msk [vmem:[%s1574 + $0x30] sm:$0xff] %vm1556, %v1571
          %1582 = vst.msk [vmem:[%s1574 + $0x38] sm:$0xff] %vm1556, %v1572
          %1591 = vrot.lane.b32.xlu0 %v1545, 64
          %v1592 = vpop.permute.xlu0 %1591
          %1593 = vrot.lane.b32.xlu0 %v1546, 64
          %v1594 = vpop.permute.xlu0 %1593
          %1595 = vrot.lane.b32.xlu0 %v1547, 64
          %v1596 = vpop.permute.xlu0 %1595
          %1597 = vrot.lane.b32.xlu0 %v1548, 64
          %v1598 = vpop.permute.xlu0 %1597
          %1599 = vrot.lane.b32.xlu0 %v1549, 64
          %v1600 = vpop.permute.xlu0 %1599
          %1601 = vrot.lane.b32.xlu0 %v1550, 64
          %v1602 = vpop.permute.xlu0 %1601
          %1603 = vrot.lane.b32.xlu0 %v1551, 64
          %v1604 = vpop.permute.xlu0 %1603
          %1605 = vrot.lane.b32.xlu0 %v1552, 64
          %v1606 = vpop.permute.xlu0 %1605
          %s1615 = sadd.s32 8, %s1553
          %s1616 = smul.addr %s1615, 8
          %s1617 = scalar_lea.vmem [#allocation3], %s1616
          %1618 = vst.msk [vmem:[%s1617] sm:$0xff] %vm1556, %v1592
          %1619 = vst.msk [vmem:[%s1617 + $0x8] sm:$0xff] %vm1556, %v1594
          %1620 = vst.msk [vmem:[%s1617 + $0x10] sm:$0xff] %vm1556, %v1596
          %1621 = vst.msk [vmem:[%s1617 + $0x18] sm:$0xff] %vm1556, %v1598
          %1622 = vst.msk [vmem:[%s1617 + $0x20] sm:$0xff] %vm1556, %v1600
          %1623 = vst.msk [vmem:[%s1617 + $0x28] sm:$0xff] %vm1556, %v1602
          %1624 = vst.msk [vmem:[%s1617 + $0x30] sm:$0xff] %vm1556, %v1604
          %1625 = vst.msk [vmem:[%s1617 + $0x38] sm:$0xff] %vm1556, %v1606
          %1634 = vrot.lane.b32.xlu0 %v1565, 64
          %v1635 = vpop.permute.xlu0 %1634
          %1636 = vrot.lane.b32.xlu0 %v1566, 64
          %v1637 = vpop.permute.xlu0 %1636
          %1638 = vrot.lane.b32.xlu0 %v1567, 64
          %v1639 = vpop.permute.xlu0 %1638
          %1640 = vrot.lane.b32.xlu0 %v1568, 64
          %v1641 = vpop.permute.xlu0 %1640
          %1642 = vrot.lane.b32.xlu0 %v1569, 64
          %v1643 = vpop.permute.xlu0 %1642
          %1644 = vrot.lane.b32.xlu0 %v1570, 64
          %v1645 = vpop.permute.xlu0 %1644
          %1646 = vrot.lane.b32.xlu0 %v1571, 64
          %v1647 = vpop.permute.xlu0 %1646
          %1648 = vrot.lane.b32.xlu0 %v1572, 64
          %v1649 = vpop.permute.xlu0 %1648
          %s1658 = smul.addr %s1615, 8
          %s1659 = scalar_lea.vmem [#allocation4], %s1658
          %1660 = vst.msk [vmem:[%s1659] sm:$0xff] %vm1556, %v1635
          %1661 = vst.msk [vmem:[%s1659 + $0x8] sm:$0xff] %vm1556, %v1637
          %1662 = vst.msk [vmem:[%s1659 + $0x10] sm:$0xff] %vm1556, %v1639
          %1663 = vst.msk [vmem:[%s1659 + $0x18] sm:$0xff] %vm1556, %v1641
          %1664 = vst.msk [vmem:[%s1659 + $0x20] sm:$0xff] %vm1556, %v1643
          %1665 = vst.msk [vmem:[%s1659 + $0x28] sm:$0xff] %vm1556, %v1645
          %1666 = vst.msk [vmem:[%s1659 + $0x30] sm:$0xff] %vm1556, %v1647
          %1667 = vst.msk [vmem:[%s1659 + $0x38] sm:$0xff] %vm1556, %v1649
          %v1668 = vpack.c.bf16 %v1168, %v1164
          %v1669 = vpack.c.bf16 %v1178, %v1174
          %v1670 = vpack.c.bf16 %v1188, %v1184
          %v1671 = vpack.c.bf16 %v1198, %v1194
          %v1672 = vpack.c.bf16 %v1208, %v1204
          %v1673 = vpack.c.bf16 %v1218, %v1214
          %v1674 = vpack.c.bf16 %v1228, %v1224
          %v1675 = vpack.c.bf16 %v1238, %v1234
          %s1676 = sadd.s32 16, %s1553
          %s1677 = smul.addr %s1676, 8
          %s1678 = scalar_lea.vmem [#allocation3], %s1677
          %1679 = vst.msk [vmem:[%s1678] sm:$0xff] %vm1556, %v1668
          %1680 = vst.msk [vmem:[%s1678 + $0x8] sm:$0xff] %vm1556, %v1669
          %1681 = vst.msk [vmem:[%s1678 + $0x10] sm:$0xff] %vm1556, %v1670
          %1682 = vst.msk [vmem:[%s1678 + $0x18] sm:$0xff] %vm1556, %v1671
          %1683 = vst.msk [vmem:[%s1678 + $0x20] sm:$0xff] %vm1556, %v1672
          %1684 = vst.msk [vmem:[%s1678 + $0x28] sm:$0xff] %vm1556, %v1673
          %1685 = vst.msk [vmem:[%s1678 + $0x30] sm:$0xff] %vm1556, %v1674
          %1686 = vst.msk [vmem:[%s1678 + $0x38] sm:$0xff] %vm1556, %v1675
          %v1687 = vpack.c.bf16 %v1473, %v1469
          %v1688 = vpack.c.bf16 %v1483, %v1479
          %v1689 = vpack.c.bf16 %v1493, %v1489
          %v1690 = vpack.c.bf16 %v1503, %v1499
          %v1691 = vpack.c.bf16 %v1513, %v1509
          %v1692 = vpack.c.bf16 %v1523, %v1519
          %v1693 = vpack.c.bf16 %v1533, %v1529
          %v1694 = vpack.c.bf16 %v1543, %v1539
          %s1695 = smul.addr %s1676, 8
          %s1696 = scalar_lea.vmem [#allocation4], %s1695
          %1697 = vst.msk [vmem:[%s1696] sm:$0xff] %vm1556, %v1687
          %1698 = vst.msk [vmem:[%s1696 + $0x8] sm:$0xff] %vm1556, %v1688
          %1699 = vst.msk [vmem:[%s1696 + $0x10] sm:$0xff] %vm1556, %v1689
          %1700 = vst.msk [vmem:[%s1696 + $0x18] sm:$0xff] %vm1556, %v1690
          %1701 = vst.msk [vmem:[%s1696 + $0x20] sm:$0xff] %vm1556, %v1691
          %1702 = vst.msk [vmem:[%s1696 + $0x28] sm:$0xff] %vm1556, %v1692
          %1703 = vst.msk [vmem:[%s1696 + $0x30] sm:$0xff] %vm1556, %v1693
          %1704 = vst.msk [vmem:[%s1696 + $0x38] sm:$0xff] %vm1556, %v1694
          %1713 = vrot.lane.b32.xlu0 %v1668, 64
          %v1714 = vpop.permute.xlu0 %1713
          %1715 = vrot.lane.b32.xlu0 %v1669, 64
          %v1716 = vpop.permute.xlu0 %1715
          %1717 = vrot.lane.b32.xlu0 %v1670, 64
          %v1718 = vpop.permute.xlu0 %1717
          %1719 = vrot.lane.b32.xlu0 %v1671, 64
          %v1720 = vpop.permute.xlu0 %1719
          %1721 = vrot.lane.b32.xlu0 %v1672, 64
          %v1722 = vpop.permute.xlu0 %1721
          %1723 = vrot.lane.b32.xlu0 %v1673, 64
          %v1724 = vpop.permute.xlu0 %1723
          %1725 = vrot.lane.b32.xlu0 %v1674, 64
          %v1726 = vpop.permute.xlu0 %1725
          %1727 = vrot.lane.b32.xlu0 %v1675, 64
          %v1728 = vpop.permute.xlu0 %1727
          %s1737 = sadd.s32 24, %s1553
          %s1738 = smul.addr %s1737, 8
          %s1739 = scalar_lea.vmem [#allocation3], %s1738
          %1740 = vst.msk [vmem:[%s1739] sm:$0xff] %vm1556, %v1714
          %1741 = vst.msk [vmem:[%s1739 + $0x8] sm:$0xff] %vm1556, %v1716
          %1742 = vst.msk [vmem:[%s1739 + $0x10] sm:$0xff] %vm1556, %v1718
          %1743 = vst.msk [vmem:[%s1739 + $0x18] sm:$0xff] %vm1556, %v1720
          %1744 = vst.msk [vmem:[%s1739 + $0x20] sm:$0xff] %vm1556, %v1722
          %1745 = vst.msk [vmem:[%s1739 + $0x28] sm:$0xff] %vm1556, %v1724
          %1746 = vst.msk [vmem:[%s1739 + $0x30] sm:$0xff] %vm1556, %v1726
          %1747 = vst.msk [vmem:[%s1739 + $0x38] sm:$0xff] %vm1556, %v1728
          %1756 = vrot.lane.b32.xlu0 %v1687, 64
          %v1757 = vpop.permute.xlu0 %1756
          %1758 = vrot.lane.b32.xlu0 %v1688, 64
          %v1759 = vpop.permute.xlu0 %1758
          %1760 = vrot.lane.b32.xlu0 %v1689, 64
          %v1761 = vpop.permute.xlu0 %1760
          %1762 = vrot.lane.b32.xlu0 %v1690, 64
          %v1763 = vpop.permute.xlu0 %1762
          %1764 = vrot.lane.b32.xlu0 %v1691, 64
          %v1765 = vpop.permute.xlu0 %1764
          %1766 = vrot.lane.b32.xlu0 %v1692, 64
          %v1767 = vpop.permute.xlu0 %1766
          %1768 = vrot.lane.b32.xlu0 %v1693, 64
          %v1769 = vpop.permute.xlu0 %1768
          %1770 = vrot.lane.b32.xlu0 %v1694, 64
          %v1771 = vpop.permute.xlu0 %1770
          %s1780 = smul.addr %s1737, 8
          %s1781 = scalar_lea.vmem [#allocation4], %s1780
          %1782 = vst.msk [vmem:[%s1781] sm:$0xff] %vm1556, %v1757
          %1783 = vst.msk [vmem:[%s1781 + $0x8] sm:$0xff] %vm1556, %v1759
          %1784 = vst.msk [vmem:[%s1781 + $0x10] sm:$0xff] %vm1556, %v1761
          %1785 = vst.msk [vmem:[%s1781 + $0x18] sm:$0xff] %vm1556, %v1763
          %1786 = vst.msk [vmem:[%s1781 + $0x20] sm:$0xff] %vm1556, %v1765
          %1787 = vst.msk [vmem:[%s1781 + $0x28] sm:$0xff] %vm1556, %v1767
          %1788 = vst.msk [vmem:[%s1781 + $0x30] sm:$0xff] %vm1556, %v1769
          %1789 = vst.msk [vmem:[%s1781 + $0x38] sm:$0xff] %vm1556, %v1771
        $region88: #{tpu_custom_call.1} parent=55 // pred_fallthru
          _
        %p1790 = scmp.eq.s32.totalorder %s38, 0
        // Predicated region
        $region89: #{tpu_custom_call.1} parent=55 // pred_check
          %p1791 = pneg %p1790
        $region90: #{tpu_custom_call.1} parent=55 // pred_check_branch
          %1793 = sbr.rel (%p1791) target = $region92
        $region91: #{tpu_custom_call.1} parent=55 // pred_region
          %v1794 = vld [vmem:[%s452] sm:$0xff]
          %v1795 = vld [vmem:[%s452 + $0x8] sm:$0xff]
          %v1796 = vld [vmem:[%s452 + $0x10] sm:$0xff]
          %v1797 = vld [vmem:[%s452 + $0x18] sm:$0xff]
          %v1798 = vld [vmem:[%s452 + $0x20] sm:$0xff]
          %v1799 = vld [vmem:[%s452 + $0x28] sm:$0xff]
          %v1800 = vld [vmem:[%s452 + $0x30] sm:$0xff]
          %v1801 = vld [vmem:[%s452 + $0x38] sm:$0xff]
          %v1802 = vld [vmem:[%s452 + $0x40] sm:$0xff]
          %v1803 = vld [vmem:[%s452 + $0x48] sm:$0xff]
          %v1804 = vld [vmem:[%s452 + $0x50] sm:$0xff]
          %v1805 = vld [vmem:[%s452 + $0x58] sm:$0xff]
          %v1806 = vld [vmem:[%s452 + $0x60] sm:$0xff]
          %v1807 = vld [vmem:[%s452 + $0x68] sm:$0xff]
          %v1808 = vld [vmem:[%s452 + $0x70] sm:$0xff]
          %v1809 = vld [vmem:[%s452 + $0x78] sm:$0xff]
          %v1810 = vld [vmem:[%s452 + $0x80] sm:$0xff]
          %v1811 = vld [vmem:[%s452 + $0x88] sm:$0xff]
          %v1812 = vld [vmem:[%s452 + $0x90] sm:$0xff]
          %v1813 = vld [vmem:[%s452 + $0x98] sm:$0xff]
          %v1814 = vld [vmem:[%s452 + $0xa0] sm:$0xff]
          %v1815 = vld [vmem:[%s452 + $0xa8] sm:$0xff]
          %v1816 = vld [vmem:[%s452 + $0xb0] sm:$0xff]
          %v1817 = vld [vmem:[%s452 + $0xb8] sm:$0xff]
          %v1818 = vld [vmem:[%s452 + $0xc0] sm:$0xff]
          %v1819 = vld [vmem:[%s452 + $0xc8] sm:$0xff]
          %v1820 = vld [vmem:[%s452 + $0xd0] sm:$0xff]
          %v1821 = vld [vmem:[%s452 + $0xd8] sm:$0xff]
          %v1822 = vld [vmem:[%s452 + $0xe0] sm:$0xff]
          %v1823 = vld [vmem:[%s452 + $0xe8] sm:$0xff]
          %v1824 = vld [vmem:[%s452 + $0xf0] sm:$0xff]
          %v1825 = vld [vmem:[%s452 + $0xf8] sm:$0xff]
          %v1826 = vld [vmem:[%s7] sm:$0x3]
          %v1827 = vld [vmem:[%s8] sm:$0x3]
          %v1828 = vadd.f32 %v1794, %v1795
          %1829 = vadd.xlane.f32.xlu0 %v1828
          %v1830 = vpop.xlane.xlu0 %1829
          %v1831 = vadd.f32 %v1796, %v1797
          %1832 = vadd.xlane.f32.xlu0 %v1831
          %v1833 = vpop.xlane.xlu0 %1832
          %v1834 = vadd.f32 %v1798, %v1799
          %1835 = vadd.xlane.f32.xlu0 %v1834
          %v1836 = vpop.xlane.xlu0 %1835
          %v1837 = vadd.f32 %v1800, %v1801
          %1838 = vadd.xlane.f32.xlu0 %v1837
          %v1839 = vpop.xlane.xlu0 %1838
          %v1840 = vadd.f32 %v1802, %v1803
          %1841 = vadd.xlane.f32.xlu0 %v1840
          %v1842 = vpop.xlane.xlu0 %1841
          %v1843 = vadd.f32 %v1804, %v1805
          %1844 = vadd.xlane.f32.xlu0 %v1843
          %v1845 = vpop.xlane.xlu0 %1844
          %v1846 = vadd.f32 %v1806, %v1807
          %1847 = vadd.xlane.f32.xlu0 %v1846
          %v1848 = vpop.xlane.xlu0 %1847
          %v1849 = vadd.f32 %v1808, %v1809
          %1850 = vadd.xlane.f32.xlu0 %v1849
          %v1851 = vpop.xlane.xlu0 %1850
          %v1852 = vadd.f32 %v1810, %v1811
          %1853 = vadd.xlane.f32.xlu0 %v1852
          %v1854 = vpop.xlane.xlu0 %1853
          %v1855 = vadd.f32 %v1812, %v1813
          %1856 = vadd.xlane.f32.xlu0 %v1855
          %v1857 = vpop.xlane.xlu0 %1856
          %v1858 = vadd.f32 %v1814, %v1815
          %1859 = vadd.xlane.f32.xlu0 %v1858
          %v1860 = vpop.xlane.xlu0 %1859
          %v1861 = vadd.f32 %v1816, %v1817
          %1862 = vadd.xlane.f32.xlu0 %v1861
          %v1863 = vpop.xlane.xlu0 %1862
          %v1864 = vadd.f32 %v1818, %v1819
          %1865 = vadd.xlane.f32.xlu0 %v1864
          %v1866 = vpop.xlane.xlu0 %1865
          %v1867 = vadd.f32 %v1820, %v1821
          %1868 = vadd.xlane.f32.xlu0 %v1867
          %v1869 = vpop.xlane.xlu0 %1868
          %v1870 = vadd.f32 %v1822, %v1823
          %1871 = vadd.xlane.f32.xlu0 %v1870
          %v1872 = vpop.xlane.xlu0 %1871
          %v1873 = vadd.f32 %v1824, %v1825
          %1874 = vadd.xlane.f32.xlu0 %v1873
          %v1875 = vpop.xlane.xlu0 %1874
          %v1876 = vrcp.pop 256.0
          %v1877 = vmul.f32 %v1830, %v1876
          %v1878 = vmul.f32 %v1833, %v1876
          %v1879 = vmul.f32 %v1836, %v1876
          %v1880 = vmul.f32 %v1839, %v1876
          %v1881 = vmul.f32 %v1842, %v1876
          %v1882 = vmul.f32 %v1845, %v1876
          %v1883 = vmul.f32 %v1848, %v1876
          %v1884 = vmul.f32 %v1851, %v1876
          %v1885 = vmul.f32 %v1854, %v1876
          %v1886 = vmul.f32 %v1857, %v1876
          %v1887 = vmul.f32 %v1860, %v1876
          %v1888 = vmul.f32 %v1863, %v1876
          %v1889 = vmul.f32 %v1866, %v1876
          %v1890 = vmul.f32 %v1869, %v1876
          %v1891 = vmul.f32 %v1872, %v1876
          %v1892 = vmul.f32 %v1875, %v1876
          %v1893 = vsub.f32 %v1794, %v1877
          %v1894 = vsub.f32 %v1795, %v1877
          %v1895 = vsub.f32 %v1796, %v1878
          %v1896 = vsub.f32 %v1797, %v1878
          %v1897 = vsub.f32 %v1798, %v1879
          %v1898 = vsub.f32 %v1799, %v1879
          %v1899 = vsub.f32 %v1800, %v1880
          %v1900 = vsub.f32 %v1801, %v1880
          %v1901 = vsub.f32 %v1802, %v1881
          %v1902 = vsub.f32 %v1803, %v1881
          %v1903 = vsub.f32 %v1804, %v1882
          %v1904 = vsub.f32 %v1805, %v1882
          %v1905 = vsub.f32 %v1806, %v1883
          %v1906 = vsub.f32 %v1807, %v1883
          %v1907 = vsub.f32 %v1808, %v1884
          %v1908 = vsub.f32 %v1809, %v1884
          %v1909 = vsub.f32 %v1810, %v1885
          %v1910 = vsub.f32 %v1811, %v1885
          %v1911 = vsub.f32 %v1812, %v1886
          %v1912 = vsub.f32 %v1813, %v1886
          %v1913 = vsub.f32 %v1814, %v1887
          %v1914 = vsub.f32 %v1815, %v1887
          %v1915 = vsub.f32 %v1816, %v1888
          %v1916 = vsub.f32 %v1817, %v1888
          %v1917 = vsub.f32 %v1818, %v1889
          %v1918 = vsub.f32 %v1819, %v1889
          %v1919 = vsub.f32 %v1820, %v1890
          %v1920 = vsub.f32 %v1821, %v1890
          %v1921 = vsub.f32 %v1822, %v1891
          %v1922 = vsub.f32 %v1823, %v1891
          %v1923 = vsub.f32 %v1824, %v1892
          %v1924 = vsub.f32 %v1825, %v1892
          %v1925 = vmul.f32 %v1893, %v1893
          %v1926 = vmul.f32 %v1894, %v1894
          %v1927 = vmul.f32 %v1895, %v1895
          %v1928 = vmul.f32 %v1896, %v1896
          %v1929 = vmul.f32 %v1897, %v1897
          %v1930 = vmul.f32 %v1898, %v1898
          %v1931 = vmul.f32 %v1899, %v1899
          %v1932 = vmul.f32 %v1900, %v1900
          %v1933 = vmul.f32 %v1901, %v1901
          %v1934 = vmul.f32 %v1902, %v1902
          %v1935 = vmul.f32 %v1903, %v1903
          %v1936 = vmul.f32 %v1904, %v1904
          %v1937 = vmul.f32 %v1905, %v1905
          %v1938 = vmul.f32 %v1906, %v1906
          %v1939 = vmul.f32 %v1907, %v1907
          %v1940 = vmul.f32 %v1908, %v1908
          %v1941 = vmul.f32 %v1909, %v1909
          %v1942 = vmul.f32 %v1910, %v1910
          %v1943 = vmul.f32 %v1911, %v1911
          %v1944 = vmul.f32 %v1912, %v1912
          %v1945 = vmul.f32 %v1913, %v1913
          %v1946 = vmul.f32 %v1914, %v1914
          %v1947 = vmul.f32 %v1915, %v1915
          %v1948 = vmul.f32 %v1916, %v1916
          %v1949 = vmul.f32 %v1917, %v1917
          %v1950 = vmul.f32 %v1918, %v1918
          %v1951 = vmul.f32 %v1919, %v1919
          %v1952 = vmul.f32 %v1920, %v1920
          %v1953 = vmul.f32 %v1921, %v1921
          %v1954 = vmul.f32 %v1922, %v1922
          %v1955 = vmul.f32 %v1923, %v1923
          %v1956 = vmul.f32 %v1924, %v1924
          %v1957 = vadd.f32 %v1925, %v1926
          %1958 = vadd.xlane.f32.xlu0 %v1957
          %v1959 = vpop.xlane.xlu0 %1958
          %v1960 = vadd.f32 %v1927, %v1928
          %1961 = vadd.xlane.f32.xlu0 %v1960
          %v1962 = vpop.xlane.xlu0 %1961
          %v1963 = vadd.f32 %v1929, %v1930
          %1964 = vadd.xlane.f32.xlu0 %v1963
          %v1965 = vpop.xlane.xlu0 %1964
          %v1966 = vadd.f32 %v1931, %v1932
          %1967 = vadd.xlane.f32.xlu0 %v1966
          %v1968 = vpop.xlane.xlu0 %1967
          %v1969 = vadd.f32 %v1933, %v1934
          %1970 = vadd.xlane.f32.xlu0 %v1969
          %v1971 = vpop.xlane.xlu0 %1970
          %v1972 = vadd.f32 %v1935, %v1936
          %1973 = vadd.xlane.f32.xlu0 %v1972
          %v1974 = vpop.xlane.xlu0 %1973
          %v1975 = vadd.f32 %v1937, %v1938
          %1976 = vadd.xlane.f32.xlu0 %v1975
          %v1977 = vpop.xlane.xlu0 %1976
          %v1978 = vadd.f32 %v1939, %v1940
          %1979 = vadd.xlane.f32.xlu0 %v1978
          %v1980 = vpop.xlane.xlu0 %1979
          %v1981 = vadd.f32 %v1941, %v1942
          %1982 = vadd.xlane.f32.xlu0 %v1981
          %v1983 = vpop.xlane.xlu0 %1982
          %v1984 = vadd.f32 %v1943, %v1944
          %1985 = vadd.xlane.f32.xlu0 %v1984
          %v1986 = vpop.xlane.xlu0 %1985
          %v1987 = vadd.f32 %v1945, %v1946
          %1988 = vadd.xlane.f32.xlu0 %v1987
          %v1989 = vpop.xlane.xlu0 %1988
          %v1990 = vadd.f32 %v1947, %v1948
          %1991 = vadd.xlane.f32.xlu0 %v1990
          %v1992 = vpop.xlane.xlu0 %1991
          %v1993 = vadd.f32 %v1949, %v1950
          %1994 = vadd.xlane.f32.xlu0 %v1993
          %v1995 = vpop.xlane.xlu0 %1994
          %v1996 = vadd.f32 %v1951, %v1952
          %1997 = vadd.xlane.f32.xlu0 %v1996
          %v1998 = vpop.xlane.xlu0 %1997
          %v1999 = vadd.f32 %v1953, %v1954
          %2000 = vadd.xlane.f32.xlu0 %v1999
          %v2001 = vpop.xlane.xlu0 %2000
          %v2002 = vadd.f32 %v1955, %v1956
          %2003 = vadd.xlane.f32.xlu0 %v2002
          %v2004 = vpop.xlane.xlu0 %2003
          %v2005 = vmul.f32 %v1959, %v1876
          %v2006 = vmul.f32 %v1962, %v1876
          %v2007 = vmul.f32 %v1965, %v1876
          %v2008 = vmul.f32 %v1968, %v1876
          %v2009 = vmul.f32 %v1971, %v1876
          %v2010 = vmul.f32 %v1974, %v1876
          %v2011 = vmul.f32 %v1977, %v1876
          %v2012 = vmul.f32 %v1980, %v1876
          %v2013 = vmul.f32 %v1983, %v1876
          %v2014 = vmul.f32 %v1986, %v1876
          %v2015 = vmul.f32 %v1989, %v1876
          %v2016 = vmul.f32 %v1992, %v1876
          %v2017 = vmul.f32 %v1995, %v1876
          %v2018 = vmul.f32 %v1998, %v1876
          %v2019 = vmul.f32 %v2001, %v1876
          %v2020 = vmul.f32 %v2004, %v1876
          %v2021 = vadd.f32 %v2005, 1e-05
          %v2022 = vadd.f32 %v2006, 1e-05
          %v2023 = vadd.f32 %v2007, 1e-05
          %v2024 = vadd.f32 %v2008, 1e-05
          %v2025 = vadd.f32 %v2009, 1e-05
          %v2026 = vadd.f32 %v2010, 1e-05
          %v2027 = vadd.f32 %v2011, 1e-05
          %v2028 = vadd.f32 %v2012, 1e-05
          %v2029 = vadd.f32 %v2013, 1e-05
          %v2030 = vadd.f32 %v2014, 1e-05
          %v2031 = vadd.f32 %v2015, 1e-05
          %v2032 = vadd.f32 %v2016, 1e-05
          %v2033 = vadd.f32 %v2017, 1e-05
          %v2034 = vadd.f32 %v2018, 1e-05
          %v2035 = vadd.f32 %v2019, 1e-05
          %v2036 = vadd.f32 %v2020, 1e-05
          %v2037 = vrsqrt.pop %v2021
          %v2038 = vrsqrt.pop %v2022
          %v2039 = vrsqrt.pop %v2023
          %v2040 = vrsqrt.pop %v2024
          %v2041 = vrsqrt.pop %v2025
          %v2042 = vrsqrt.pop %v2026
          %v2043 = vrsqrt.pop %v2027
          %v2044 = vrsqrt.pop %v2028
          %v2045 = vrsqrt.pop %v2029
          %v2046 = vrsqrt.pop %v2030
          %v2047 = vrsqrt.pop %v2031
          %v2048 = vrsqrt.pop %v2032
          %v2049 = vrsqrt.pop %v2033
          %v2050 = vrsqrt.pop %v2034
          %v2051 = vrsqrt.pop %v2035
          %v2052 = vrsqrt.pop %v2036
          %v2053 = vmul.f32 %v1893, %v2037
          %v2054 = vmul.f32 %v1894, %v2037
          %v2055 = vmul.f32 %v1895, %v2038
          %v2056 = vmul.f32 %v1896, %v2038
          %v2057 = vmul.f32 %v1897, %v2039
          %v2058 = vmul.f32 %v1898, %v2039
          %v2059 = vmul.f32 %v1899, %v2040
          %v2060 = vmul.f32 %v1900, %v2040
          %v2061 = vmul.f32 %v1901, %v2041
          %v2062 = vmul.f32 %v1902, %v2041
          %v2063 = vmul.f32 %v1903, %v2042
          %v2064 = vmul.f32 %v1904, %v2042
          %v2065 = vmul.f32 %v1905, %v2043
          %v2066 = vmul.f32 %v1906, %v2043
          %v2067 = vmul.f32 %v1907, %v2044
          %v2068 = vmul.f32 %v1908, %v2044
          %v2069 = vmul.f32 %v1909, %v2045
          %v2070 = vmul.f32 %v1910, %v2045
          %v2071 = vmul.f32 %v1911, %v2046
          %v2072 = vmul.f32 %v1912, %v2046
          %v2073 = vmul.f32 %v1913, %v2047
          %v2074 = vmul.f32 %v1914, %v2047
          %v2075 = vmul.f32 %v1915, %v2048
          %v2076 = vmul.f32 %v1916, %v2048
          %v2077 = vmul.f32 %v1917, %v2049
          %v2078 = vmul.f32 %v1918, %v2049
          %v2079 = vmul.f32 %v1919, %v2050
          %v2080 = vmul.f32 %v1920, %v2050
          %v2081 = vmul.f32 %v1921, %v2051
          %v2082 = vmul.f32 %v1922, %v2051
          %v2083 = vmul.f32 %v1923, %v2052
          %v2084 = vmul.f32 %v1924, %v2052
          %v2086 = vlaneseq
          %v2087 = vshrl.u32 %v2086, 7
          %v2088 = vsub.s32 0, %v2087
          %v2089 = vrot.slane %v1826, %v2088
          %v2090 = vlaneseq
          %v2091 = vshrl.u32 %v2090, 7
          %v2092 = vsub.s32 1, %v2091
          %v2093 = vrot.slane %v1826, %v2092
          %v2096 = vmul.f32 %v2053, %v2089
          %v2097 = vmul.f32 %v2054, %v2093
          %v2098 = vmul.f32 %v2055, %v2089
          %v2099 = vmul.f32 %v2056, %v2093
          %v2100 = vmul.f32 %v2057, %v2089
          %v2101 = vmul.f32 %v2058, %v2093
          %v2102 = vmul.f32 %v2059, %v2089
          %v2103 = vmul.f32 %v2060, %v2093
          %v2104 = vmul.f32 %v2061, %v2089
          %v2105 = vmul.f32 %v2062, %v2093
          %v2106 = vmul.f32 %v2063, %v2089
          %v2107 = vmul.f32 %v2064, %v2093
          %v2108 = vmul.f32 %v2065, %v2089
          %v2109 = vmul.f32 %v2066, %v2093
          %v2110 = vmul.f32 %v2067, %v2089
          %v2111 = vmul.f32 %v2068, %v2093
          %v2112 = vmul.f32 %v2069, %v2089
          %v2113 = vmul.f32 %v2070, %v2093
          %v2114 = vmul.f32 %v2071, %v2089
          %v2115 = vmul.f32 %v2072, %v2093
          %v2116 = vmul.f32 %v2073, %v2089
          %v2117 = vmul.f32 %v2074, %v2093
          %v2118 = vmul.f32 %v2075, %v2089
          %v2119 = vmul.f32 %v2076, %v2093
          %v2120 = vmul.f32 %v2077, %v2089
          %v2121 = vmul.f32 %v2078, %v2093
          %v2122 = vmul.f32 %v2079, %v2089
          %v2123 = vmul.f32 %v2080, %v2093
          %v2124 = vmul.f32 %v2081, %v2089
          %v2125 = vmul.f32 %v2082, %v2093
          %v2126 = vmul.f32 %v2083, %v2089
          %v2127 = vmul.f32 %v2084, %v2093
          %v2129 = vlaneseq
          %v2130 = vshrl.u32 %v2129, 7
          %v2131 = vsub.s32 0, %v2130
          %v2132 = vrot.slane %v1827, %v2131
          %v2133 = vlaneseq
          %v2134 = vshrl.u32 %v2133, 7
          %v2135 = vsub.s32 1, %v2134
          %v2136 = vrot.slane %v1827, %v2135
          %v2139 = vadd.f32 %v2096, %v2132
          %v2140 = vadd.f32 %v2097, %v2136
          %v2141 = vadd.f32 %v2098, %v2132
          %v2142 = vadd.f32 %v2099, %v2136
          %v2143 = vadd.f32 %v2100, %v2132
          %v2144 = vadd.f32 %v2101, %v2136
          %v2145 = vadd.f32 %v2102, %v2132
          %v2146 = vadd.f32 %v2103, %v2136
          %v2147 = vadd.f32 %v2104, %v2132
          %v2148 = vadd.f32 %v2105, %v2136
          %v2149 = vadd.f32 %v2106, %v2132
          %v2150 = vadd.f32 %v2107, %v2136
          %v2151 = vadd.f32 %v2108, %v2132
          %v2152 = vadd.f32 %v2109, %v2136
          %v2153 = vadd.f32 %v2110, %v2132
          %v2154 = vadd.f32 %v2111, %v2136
          %v2155 = vadd.f32 %v2112, %v2132
          %v2156 = vadd.f32 %v2113, %v2136
          %v2157 = vadd.f32 %v2114, %v2132
          %v2158 = vadd.f32 %v2115, %v2136
          %v2159 = vadd.f32 %v2116, %v2132
          %v2160 = vadd.f32 %v2117, %v2136
          %v2161 = vadd.f32 %v2118, %v2132
          %v2162 = vadd.f32 %v2119, %v2136
          %v2163 = vadd.f32 %v2120, %v2132
          %v2164 = vadd.f32 %v2121, %v2136
          %v2165 = vadd.f32 %v2122, %v2132
          %v2166 = vadd.f32 %v2123, %v2136
          %v2167 = vadd.f32 %v2124, %v2132
          %v2168 = vadd.f32 %v2125, %v2136
          %v2169 = vadd.f32 %v2126, %v2132
          %v2170 = vadd.f32 %v2127, %v2136
          %v2171 = vpack.c.bf16 %v2141, %v2139
          %v2172 = vpack.c.bf16 %v2142, %v2140
          %v2173 = vpack.c.bf16 %v2145, %v2143
          %v2174 = vpack.c.bf16 %v2146, %v2144
          %v2175 = vpack.c.bf16 %v2149, %v2147
          %v2176 = vpack.c.bf16 %v2150, %v2148
          %v2177 = vpack.c.bf16 %v2153, %v2151
          %v2178 = vpack.c.bf16 %v2154, %v2152
          %v2179 = vpack.c.bf16 %v2157, %v2155
          %v2180 = vpack.c.bf16 %v2158, %v2156
          %v2181 = vpack.c.bf16 %v2161, %v2159
          %v2182 = vpack.c.bf16 %v2162, %v2160
          %v2183 = vpack.c.bf16 %v2165, %v2163
          %v2184 = vpack.c.bf16 %v2166, %v2164
          %v2185 = vpack.c.bf16 %v2169, %v2167
          %v2186 = vpack.c.bf16 %v2170, %v2168
          %v2187 = vld [vmem:[#allocation14] sm:$0xff]
          %v2188 = vld [vmem:[#allocation14 + $0x8] sm:$0xff]
          %v2189 = vld [vmem:[#allocation14 + $0x10] sm:$0xff]
          %v2190 = vld [vmem:[#allocation14 + $0x18] sm:$0xff]
          %v2191 = vld [vmem:[#allocation14 + $0x20] sm:$0xff]
          %v2192 = vld [vmem:[#allocation14 + $0x28] sm:$0xff]
          %v2193 = vld [vmem:[#allocation14 + $0x30] sm:$0xff]
          %v2194 = vld [vmem:[#allocation14 + $0x38] sm:$0xff]
          %v2195 = vld [vmem:[#allocation14 + $0x40] sm:$0xff]
          %v2196 = vld [vmem:[#allocation14 + $0x48] sm:$0xff]
          %v2197 = vld [vmem:[#allocation14 + $0x50] sm:$0xff]
          %v2198 = vld [vmem:[#allocation14 + $0x58] sm:$0xff]
          %v2199 = vld [vmem:[#allocation14 + $0x60] sm:$0xff]
          %v2200 = vld [vmem:[#allocation14 + $0x68] sm:$0xff]
          %v2201 = vld [vmem:[#allocation14 + $0x70] sm:$0xff]
          %v2202 = vld [vmem:[#allocation14 + $0x78] sm:$0xff]
          %v2203 = vld [vmem:[#allocation14 + $0x80] sm:$0xff]
          %v2204 = vld [vmem:[#allocation14 + $0x88] sm:$0xff]
          %v2205 = vld [vmem:[#allocation14 + $0x90] sm:$0xff]
          %v2206 = vld [vmem:[#allocation14 + $0x98] sm:$0xff]
          %v2207 = vld [vmem:[#allocation14 + $0xa0] sm:$0xff]
          %v2208 = vld [vmem:[#allocation14 + $0xa8] sm:$0xff]
          %v2209 = vld [vmem:[#allocation14 + $0xb0] sm:$0xff]
          %v2210 = vld [vmem:[#allocation14 + $0xb8] sm:$0xff]
          %v2211 = vld [vmem:[#allocation14 + $0xc0] sm:$0xff]
          %v2212 = vld [vmem:[#allocation14 + $0xc8] sm:$0xff]
          %v2213 = vld [vmem:[#allocation14 + $0xd0] sm:$0xff]
          %v2214 = vld [vmem:[#allocation14 + $0xd8] sm:$0xff]
          %v2215 = vld [vmem:[#allocation14 + $0xe0] sm:$0xff]
          %v2216 = vld [vmem:[#allocation14 + $0xe8] sm:$0xff]
          %v2217 = vld [vmem:[#allocation14 + $0xf0] sm:$0xff]
          %v2218 = vld [vmem:[#allocation14 + $0xf8] sm:$0xff]
          %v2251 = vunpack.c.l.b16 %v2187
          %v2252 = vunpack.c.h.b16 %v2187
          %v2253 = vunpack.c.l.b16 %v2188
          %v2254 = vunpack.c.h.b16 %v2188
          %v2255 = vunpack.c.l.b16 %v2189
          %v2256 = vunpack.c.h.b16 %v2189
          %v2257 = vunpack.c.l.b16 %v2190
          %v2258 = vunpack.c.h.b16 %v2190
          %v2259 = vunpack.c.l.b16 %v2191
          %v2260 = vunpack.c.h.b16 %v2191
          %v2261 = vunpack.c.l.b16 %v2192
          %v2262 = vunpack.c.h.b16 %v2192
          %v2263 = vunpack.c.l.b16 %v2193
          %v2264 = vunpack.c.h.b16 %v2193
          %v2265 = vunpack.c.l.b16 %v2194
          %v2266 = vunpack.c.h.b16 %v2194
          %v2267 = vunpack.c.l.b16 %v2195
          %v2268 = vunpack.c.h.b16 %v2195
          %v2269 = vunpack.c.l.b16 %v2196
          %v2270 = vunpack.c.h.b16 %v2196
          %v2271 = vunpack.c.l.b16 %v2197
          %v2272 = vunpack.c.h.b16 %v2197
          %v2273 = vunpack.c.l.b16 %v2198
          %v2274 = vunpack.c.h.b16 %v2198
          %v2275 = vunpack.c.l.b16 %v2199
          %v2276 = vunpack.c.h.b16 %v2199
          %v2277 = vunpack.c.l.b16 %v2200
          %v2278 = vunpack.c.h.b16 %v2200
          %v2279 = vunpack.c.l.b16 %v2201
          %v2280 = vunpack.c.h.b16 %v2201
          %v2281 = vunpack.c.l.b16 %v2202
          %v2282 = vunpack.c.h.b16 %v2202
          %v2283 = vunpack.c.l.b16 %v2203
          %v2284 = vunpack.c.h.b16 %v2203
          %v2285 = vunpack.c.l.b16 %v2204
          %v2286 = vunpack.c.h.b16 %v2204
          %v2287 = vunpack.c.l.b16 %v2205
          %v2288 = vunpack.c.h.b16 %v2205
          %v2289 = vunpack.c.l.b16 %v2206
          %v2290 = vunpack.c.h.b16 %v2206
          %v2291 = vunpack.c.l.b16 %v2207
          %v2292 = vunpack.c.h.b16 %v2207
          %v2293 = vunpack.c.l.b16 %v2208
          %v2294 = vunpack.c.h.b16 %v2208
          %v2295 = vunpack.c.l.b16 %v2209
          %v2296 = vunpack.c.h.b16 %v2209
          %v2297 = vunpack.c.l.b16 %v2210
          %v2298 = vunpack.c.h.b16 %v2210
          %v2299 = vunpack.c.l.b16 %v2211
          %v2300 = vunpack.c.h.b16 %v2211
          %v2301 = vunpack.c.l.b16 %v2212
          %v2302 = vunpack.c.h.b16 %v2212
          %v2303 = vunpack.c.l.b16 %v2213
          %v2304 = vunpack.c.h.b16 %v2213
          %v2305 = vunpack.c.l.b16 %v2214
          %v2306 = vunpack.c.h.b16 %v2214
          %v2307 = vunpack.c.l.b16 %v2215
          %v2308 = vunpack.c.h.b16 %v2215
          %v2309 = vunpack.c.l.b16 %v2216
          %v2310 = vunpack.c.h.b16 %v2216
          %v2311 = vunpack.c.l.b16 %v2217
          %v2312 = vunpack.c.h.b16 %v2217
          %v2313 = vunpack.c.l.b16 %v2218
          %v2314 = vunpack.c.h.b16 %v2218
          %v2315 = vpack.c.b16 %v2253, %v2251
          %v2316 = vpack.c.b16 %v2254, %v2252
          %v2317 = vpack.c.b16 %v2257, %v2255
          %v2318 = vpack.c.b16 %v2258, %v2256
          %v2319 = vpack.c.b16 %v2261, %v2259
          %v2320 = vpack.c.b16 %v2262, %v2260
          %v2321 = vpack.c.b16 %v2265, %v2263
          %v2322 = vpack.c.b16 %v2266, %v2264
          %v2323 = vpack.c.b16 %v2269, %v2267
          %v2324 = vpack.c.b16 %v2270, %v2268
          %v2325 = vpack.c.b16 %v2273, %v2271
          %v2326 = vpack.c.b16 %v2274, %v2272
          %v2327 = vpack.c.b16 %v2277, %v2275
          %v2328 = vpack.c.b16 %v2278, %v2276
          %v2329 = vpack.c.b16 %v2281, %v2279
          %v2330 = vpack.c.b16 %v2282, %v2280
          %v2331 = vpack.c.b16 %v2285, %v2283
          %v2332 = vpack.c.b16 %v2286, %v2284
          %v2333 = vpack.c.b16 %v2289, %v2287
          %v2334 = vpack.c.b16 %v2290, %v2288
          %v2335 = vpack.c.b16 %v2293, %v2291
          %v2336 = vpack.c.b16 %v2294, %v2292
          %v2337 = vpack.c.b16 %v2297, %v2295
          %v2338 = vpack.c.b16 %v2298, %v2296
          %v2339 = vpack.c.b16 %v2301, %v2299
          %v2340 = vpack.c.b16 %v2302, %v2300
          %v2341 = vpack.c.b16 %v2305, %v2303
          %v2342 = vpack.c.b16 %v2306, %v2304
          %v2343 = vpack.c.b16 %v2309, %v2307
          %v2344 = vpack.c.b16 %v2310, %v2308
          %v2345 = vpack.c.b16 %v2313, %v2311
          %v2346 = vpack.c.b16 %v2314, %v2312
          %2379 = vmatprep.subr.bf16.mxu0 %v2316
          %2380 = vmatpush1.bf16.msra.mxu0 %v2315
          %2381 = vmatprep.subr.bf16.mxu0 %v2318
          %2382 = vmatpush1.bf16.msra.mxu0 %v2317
          %2383 = vmatprep.subr.bf16.mxu0 %v2320
          %2384 = vmatpush1.bf16.msra.mxu0 %v2319
          %2385 = vmatprep.subr.bf16.mxu0 %v2322
          %2386 = vmatpush1.bf16.msra.mxu0 %v2321
          %2387 = vmatprep.subr.bf16.mxu0 %v2324
          %2388 = vmatpush1.bf16.msra.mxu0 %v2323
          %2389 = vmatprep.subr.bf16.mxu0 %v2326
          %2390 = vmatpush1.bf16.msra.mxu0 %v2325
          %2391 = vmatprep.subr.bf16.mxu0 %v2328
          %2392 = vmatpush1.bf16.msra.mxu0 %v2327
          %2393 = vmatprep.subr.bf16.mxu0 %v2330
          %2394 = vmatpush1.bf16.msra.mxu0 %v2329
          %2395 = vmatprep.subr.bf16.mxu0 %v2332
          %2396 = vmatpush1.bf16.msra.mxu0 %v2331
          %2397 = vmatprep.subr.bf16.mxu0 %v2334
          %2398 = vmatpush1.bf16.msra.mxu0 %v2333
          %2399 = vmatprep.subr.bf16.mxu0 %v2336
          %2400 = vmatpush1.bf16.msra.mxu0 %v2335
          %2401 = vmatprep.subr.bf16.mxu0 %v2338
          %2402 = vmatpush1.bf16.msra.mxu0 %v2337
          %2403 = vmatprep.subr.bf16.mxu0 %v2340
          %2404 = vmatpush1.bf16.msra.mxu0 %v2339
          %2405 = vmatprep.subr.bf16.mxu0 %v2342
          %2406 = vmatpush1.bf16.msra.mxu0 %v2341
          %2407 = vmatprep.subr.bf16.mxu0 %v2344
          %2408 = vmatpush1.bf16.msra.mxu0 %v2343
          %2409 = vmatprep.subr.bf16.mxu0 %v2346
          %2410 = vmatpush1.bf16.msra.mxu0 %v2345
          %2411 = vmatprep.mubr.bf16.mxu0 %v2172
          %2412 = vmatmul.mubr.bf16.gmra.mrb[0].mxu0 %v2171
          %v2413 = vpop.f32.mrb[0].mxu0
          %v2414 = vadd.f32 0.0, %v2413
          %v2415 = vpop.f32.mrb[0].mxu0
          %v2416 = vadd.f32 0.0, %v2415
          %v2417 = vpop.f32.mrb[0].mxu0
          %v2418 = vadd.f32 0.0, %v2417
          %v2419 = vpop.f32.mrb[0].mxu0
          %v2420 = vadd.f32 0.0, %v2419
          %2421 = vmatprep.mubr.bf16.mxu0 %v2174
          %2422 = vmatmul.mubr.bf16.gmra.mrb[0].mxu0 %v2173
          %v2423 = vpop.f32.mrb[0].mxu0
          %v2424 = vadd.f32 0.0, %v2423
          %v2425 = vpop.f32.mrb[0].mxu0
          %v2426 = vadd.f32 0.0, %v2425
          %v2427 = vpop.f32.mrb[0].mxu0
          %v2428 = vadd.f32 0.0, %v2427
          %v2429 = vpop.f32.mrb[0].mxu0
          %v2430 = vadd.f32 0.0, %v2429
          %2431 = vmatprep.mubr.bf16.mxu0 %v2176
          %2432 = vmatmul.mubr.bf16.gmra.mrb[0].mxu0 %v2175
          %v2433 = vpop.f32.mrb[0].mxu0
          %v2434 = vadd.f32 0.0, %v2433
          %v2435 = vpop.f32.mrb[0].mxu0
          %v2436 = vadd.f32 0.0, %v2435
          %v2437 = vpop.f32.mrb[0].mxu0
          %v2438 = vadd.f32 0.0, %v2437
          %v2439 = vpop.f32.mrb[0].mxu0
          %v2440 = vadd.f32 0.0, %v2439
          %2441 = vmatprep.mubr.bf16.mxu0 %v2178
          %2442 = vmatmul.mubr.bf16.gmra.mrb[0].mxu0 %v2177
          %v2443 = vpop.f32.mrb[0].mxu0
          %v2444 = vadd.f32 0.0, %v2443
          %v2445 = vpop.f32.mrb[0].mxu0
          %v2446 = vadd.f32 0.0, %v2445
          %v2447 = vpop.f32.mrb[0].mxu0
          %v2448 = vadd.f32 0.0, %v2447
          %v2449 = vpop.f32.mrb[0].mxu0
          %v2450 = vadd.f32 0.0, %v2449
          %2451 = vmatprep.mubr.bf16.mxu0 %v2180
          %2452 = vmatmul.mubr.bf16.gmra.mrb[0].mxu0 %v2179
          %v2453 = vpop.f32.mrb[0].mxu0
          %v2454 = vadd.f32 0.0, %v2453
          %v2455 = vpop.f32.mrb[0].mxu0
          %v2456 = vadd.f32 0.0, %v2455
          %v2457 = vpop.f32.mrb[0].mxu0
          %v2458 = vadd.f32 0.0, %v2457
          %v2459 = vpop.f32.mrb[0].mxu0
          %v2460 = vadd.f32 0.0, %v2459
          %2461 = vmatprep.mubr.bf16.mxu0 %v2182
          %2462 = vmatmul.mubr.bf16.gmra.mrb[0].mxu0 %v2181
          %v2463 = vpop.f32.mrb[0].mxu0
          %v2464 = vadd.f32 0.0, %v2463
          %v2465 = vpop.f32.mrb[0].mxu0
          %v2466 = vadd.f32 0.0, %v2465
          %v2467 = vpop.f32.mrb[0].mxu0
          %v2468 = vadd.f32 0.0, %v2467
          %v2469 = vpop.f32.mrb[0].mxu0
          %v2470 = vadd.f32 0.0, %v2469
          %2471 = vmatprep.mubr.bf16.mxu0 %v2184
          %2472 = vmatmul.mubr.bf16.gmra.mrb[0].mxu0 %v2183
          %v2473 = vpop.f32.mrb[0].mxu0
          %v2474 = vadd.f32 0.0, %v2473
          %v2475 = vpop.f32.mrb[0].mxu0
          %v2476 = vadd.f32 0.0, %v2475
          %v2477 = vpop.f32.mrb[0].mxu0
          %v2478 = vadd.f32 0.0, %v2477
          %v2479 = vpop.f32.mrb[0].mxu0
          %v2480 = vadd.f32 0.0, %v2479
          %2481 = vmatprep.mubr.bf16.mxu0 %v2186
          %2482 = vmatmul.mubr.bf16.gmra.mrb[0].mxu0 %v2185
          %v2483 = vpop.f32.mrb[0].mxu0
          %v2484 = vadd.f32 0.0, %v2483
          %v2485 = vpop.f32.mrb[0].mxu0
          %v2486 = vadd.f32 0.0, %v2485
          %v2487 = vpop.f32.mrb[0].mxu0
          %v2488 = vadd.f32 0.0, %v2487
          %v2489 = vpop.f32.mrb[0].mxu0
          %v2490 = vadd.f32 0.0, %v2489
          %2491 = vdwg.mxu0
          %v2492 = vmul.f32 %v2414, 0.125
          %v2493 = vmul.f32 %v2416, 0.125
          %v2494 = vmul.f32 %v2418, 0.125
          %v2495 = vmul.f32 %v2420, 0.125
          %v2496 = vmul.f32 %v2424, 0.125
          %v2497 = vmul.f32 %v2426, 0.125
          %v2498 = vmul.f32 %v2428, 0.125
          %v2499 = vmul.f32 %v2430, 0.125
          %v2500 = vmul.f32 %v2434, 0.125
          %v2501 = vmul.f32 %v2436, 0.125
          %v2502 = vmul.f32 %v2438, 0.125
          %v2503 = vmul.f32 %v2440, 0.125
          %v2504 = vmul.f32 %v2444, 0.125
          %v2505 = vmul.f32 %v2446, 0.125
          %v2506 = vmul.f32 %v2448, 0.125
          %v2507 = vmul.f32 %v2450, 0.125
          %v2508 = vmul.f32 %v2454, 0.125
          %v2509 = vmul.f32 %v2456, 0.125
          %v2510 = vmul.f32 %v2458, 0.125
          %v2511 = vmul.f32 %v2460, 0.125
          %v2512 = vmul.f32 %v2464, 0.125
          %v2513 = vmul.f32 %v2466, 0.125
          %v2514 = vmul.f32 %v2468, 0.125
          %v2515 = vmul.f32 %v2470, 0.125
          %v2516 = vmul.f32 %v2474, 0.125
          %v2517 = vmul.f32 %v2476, 0.125
          %v2518 = vmul.f32 %v2478, 0.125
          %v2519 = vmul.f32 %v2480, 0.125
          %v2520 = vmul.f32 %v2484, 0.125
          %v2521 = vmul.f32 %v2486, 0.125
          %v2522 = vmul.f32 %v2488, 0.125
          %v2523 = vmul.f32 %v2490, 0.125
          %v2524 = vpack.c.bf16 %v2494, %v2492
          %v2525 = vpack.c.bf16 %v2498, %v2496
          %v2526 = vpack.c.bf16 %v2502, %v2500
          %v2527 = vpack.c.bf16 %v2506, %v2504
          %v2528 = vpack.c.bf16 %v2510, %v2508
          %v2529 = vpack.c.bf16 %v2514, %v2512
          %v2530 = vpack.c.bf16 %v2518, %v2516
          %v2531 = vpack.c.bf16 %v2522, %v2520
          %vm2532 = vcmask 523264
          %2533 = vst.msk [vmem:[#allocation2] sm:$0xff] %vm2532, %v2524
          %2534 = vst.msk [vmem:[#allocation2 + $0x8] sm:$0xff] %vm2532, %v2525
          %2535 = vst.msk [vmem:[#allocation2 + $0x10] sm:$0xff] %vm2532, %v2526
          %2536 = vst.msk [vmem:[#allocation2 + $0x18] sm:$0xff] %vm2532, %v2527
          %2537 = vst.msk [vmem:[#allocation2 + $0x20] sm:$0xff] %vm2532, %v2528
          %2538 = vst.msk [vmem:[#allocation2 + $0x28] sm:$0xff] %vm2532, %v2529
          %2539 = vst.msk [vmem:[#allocation2 + $0x30] sm:$0xff] %vm2532, %v2530
          %2540 = vst.msk [vmem:[#allocation2 + $0x38] sm:$0xff] %vm2532, %v2531
          %2549 = vrot.lane.b32.xlu0 %v2524, 64
          %v2550 = vpop.permute.xlu0 %2549
          %2551 = vrot.lane.b32.xlu0 %v2525, 64
          %v2552 = vpop.permute.xlu0 %2551
          %2553 = vrot.lane.b32.xlu0 %v2526, 64
          %v2554 = vpop.permute.xlu0 %2553
          %2555 = vrot.lane.b32.xlu0 %v2527, 64
          %v2556 = vpop.permute.xlu0 %2555
          %2557 = vrot.lane.b32.xlu0 %v2528, 64
          %v2558 = vpop.permute.xlu0 %2557
          %2559 = vrot.lane.b32.xlu0 %v2529, 64
          %v2560 = vpop.permute.xlu0 %2559
          %2561 = vrot.lane.b32.xlu0 %v2530, 64
          %v2562 = vpop.permute.xlu0 %2561
          %2563 = vrot.lane.b32.xlu0 %v2531, 64
          %v2564 = vpop.permute.xlu0 %2563
          %s2573 = scalar_lea.vmem [#allocation2], 64
          %2574 = vst.msk [vmem:[%s2573] sm:$0xff] %vm2532, %v2550
          %2575 = vst.msk [vmem:[%s2573 + $0x8] sm:$0xff] %vm2532, %v2552
          %2576 = vst.msk [vmem:[%s2573 + $0x10] sm:$0xff] %vm2532, %v2554
          %2577 = vst.msk [vmem:[%s2573 + $0x18] sm:$0xff] %vm2532, %v2556
          %2578 = vst.msk [vmem:[%s2573 + $0x20] sm:$0xff] %vm2532, %v2558
          %2579 = vst.msk [vmem:[%s2573 + $0x28] sm:$0xff] %vm2532, %v2560
          %2580 = vst.msk [vmem:[%s2573 + $0x30] sm:$0xff] %vm2532, %v2562
          %2581 = vst.msk [vmem:[%s2573 + $0x38] sm:$0xff] %vm2532, %v2564
          %v2582 = vpack.c.bf16 %v2495, %v2493
          %v2583 = vpack.c.bf16 %v2499, %v2497
          %v2584 = vpack.c.bf16 %v2503, %v2501
          %v2585 = vpack.c.bf16 %v2507, %v2505
          %v2586 = vpack.c.bf16 %v2511, %v2509
          %v2587 = vpack.c.bf16 %v2515, %v2513
          %v2588 = vpack.c.bf16 %v2519, %v2517
          %v2589 = vpack.c.bf16 %v2523, %v2521
          %s2590 = scalar_lea.vmem [#allocation2], 128
          %2591 = vst.msk [vmem:[%s2590] sm:$0xff] %vm2532, %v2582
          %2592 = vst.msk [vmem:[%s2590 + $0x8] sm:$0xff] %vm2532, %v2583
          %2593 = vst.msk [vmem:[%s2590 + $0x10] sm:$0xff] %vm2532, %v2584
          %2594 = vst.msk [vmem:[%s2590 + $0x18] sm:$0xff] %vm2532, %v2585
          %2595 = vst.msk [vmem:[%s2590 + $0x20] sm:$0xff] %vm2532, %v2586
          %2596 = vst.msk [vmem:[%s2590 + $0x28] sm:$0xff] %vm2532, %v2587
          %2597 = vst.msk [vmem:[%s2590 + $0x30] sm:$0xff] %vm2532, %v2588
          %2598 = vst.msk [vmem:[%s2590 + $0x38] sm:$0xff] %vm2532, %v2589
          %2607 = vrot.lane.b32.xlu0 %v2582, 64
          %v2608 = vpop.permute.xlu0 %2607
          %2609 = vrot.lane.b32.xlu0 %v2583, 64
          %v2610 = vpop.permute.xlu0 %2609
          %2611 = vrot.lane.b32.xlu0 %v2584, 64
          %v2612 = vpop.permute.xlu0 %2611
          %2613 = vrot.lane.b32.xlu0 %v2585, 64
          %v2614 = vpop.permute.xlu0 %2613
          %2615 = vrot.lane.b32.xlu0 %v2586, 64
          %v2616 = vpop.permute.xlu0 %2615
          %2617 = vrot.lane.b32.xlu0 %v2587, 64
          %v2618 = vpop.permute.xlu0 %2617
          %2619 = vrot.lane.b32.xlu0 %v2588, 64
          %v2620 = vpop.permute.xlu0 %2619
          %2621 = vrot.lane.b32.xlu0 %v2589, 64
          %v2622 = vpop.permute.xlu0 %2621
          %s2631 = scalar_lea.vmem [#allocation2], 192
          %2632 = vst.msk [vmem:[%s2631] sm:$0xff] %vm2532, %v2608
          %2633 = vst.msk [vmem:[%s2631 + $0x8] sm:$0xff] %vm2532, %v2610
          %2634 = vst.msk [vmem:[%s2631 + $0x10] sm:$0xff] %vm2532, %v2612
          %2635 = vst.msk [vmem:[%s2631 + $0x18] sm:$0xff] %vm2532, %v2614
          %2636 = vst.msk [vmem:[%s2631 + $0x20] sm:$0xff] %vm2532, %v2616
          %2637 = vst.msk [vmem:[%s2631 + $0x28] sm:$0xff] %vm2532, %v2618
          %2638 = vst.msk [vmem:[%s2631 + $0x30] sm:$0xff] %vm2532, %v2620
          %2639 = vst.msk [vmem:[%s2631 + $0x38] sm:$0xff] %vm2532, %v2622
          %vm2640 = vcmask 7168
          %2641 = vst.msk [vmem:[#allocation5] sm:$0xff] %vm2640, -1e+30
          %2642 = vst.msk [vmem:[#allocation5 + $0x8] sm:$0xff] %vm2640, -1e+30
          %2643 = vst.msk [vmem:[#allocation5 + $0x10] sm:$0xff] %vm2640, -1e+30
          %2644 = vst.msk [vmem:[#allocation5 + $0x18] sm:$0xff] %vm2640, -1e+30
          %2645 = vst.msk [vmem:[#allocation5 + $0x20] sm:$0xff] %vm2640, -1e+30
          %2646 = vst.msk [vmem:[#allocation5 + $0x28] sm:$0xff] %vm2640, -1e+30
          %2647 = vst.msk [vmem:[#allocation5 + $0x30] sm:$0xff] %vm2640, -1e+30
          %2648 = vst.msk [vmem:[#allocation5 + $0x38] sm:$0xff] %vm2640, -1e+30
          %2649 = vst.msk [vmem:[#allocation5 + $0x40] sm:$0xff] %vm2640, -1e+30
          %2650 = vst.msk [vmem:[#allocation5 + $0x48] sm:$0xff] %vm2640, -1e+30
          %2651 = vst.msk [vmem:[#allocation5 + $0x50] sm:$0xff] %vm2640, -1e+30
          %2652 = vst.msk [vmem:[#allocation5 + $0x58] sm:$0xff] %vm2640, -1e+30
          %2653 = vst.msk [vmem:[#allocation5 + $0x60] sm:$0xff] %vm2640, -1e+30
          %2654 = vst.msk [vmem:[#allocation5 + $0x68] sm:$0xff] %vm2640, -1e+30
          %2655 = vst.msk [vmem:[#allocation5 + $0x70] sm:$0xff] %vm2640, -1e+30
          %2656 = vst.msk [vmem:[#allocation5 + $0x78] sm:$0xff] %vm2640, -1e+30
          %2657 = vst.msk [vmem:[#allocation5 + $0x80] sm:$0xff] %vm2640, -1e+30
          %2658 = vst.msk [vmem:[#allocation5 + $0x88] sm:$0xff] %vm2640, -1e+30
          %2659 = vst.msk [vmem:[#allocation5 + $0x90] sm:$0xff] %vm2640, -1e+30
          %2660 = vst.msk [vmem:[#allocation5 + $0x98] sm:$0xff] %vm2640, -1e+30
          %2661 = vst.msk [vmem:[#allocation5 + $0xa0] sm:$0xff] %vm2640, -1e+30
          %2662 = vst.msk [vmem:[#allocation5 + $0xa8] sm:$0xff] %vm2640, -1e+30
          %2663 = vst.msk [vmem:[#allocation5 + $0xb0] sm:$0xff] %vm2640, -1e+30
          %2664 = vst.msk [vmem:[#allocation5 + $0xb8] sm:$0xff] %vm2640, -1e+30
          %2665 = vst.msk [vmem:[#allocation5 + $0xc0] sm:$0xff] %vm2640, -1e+30
          %2666 = vst.msk [vmem:[#allocation5 + $0xc8] sm:$0xff] %vm2640, -1e+30
          %2667 = vst.msk [vmem:[#allocation5 + $0xd0] sm:$0xff] %vm2640, -1e+30
          %2668 = vst.msk [vmem:[#allocation5 + $0xd8] sm:$0xff] %vm2640, -1e+30
          %2669 = vst.msk [vmem:[#allocation5 + $0xe0] sm:$0xff] %vm2640, -1e+30
          %2670 = vst.msk [vmem:[#allocation5 + $0xe8] sm:$0xff] %vm2640, -1e+30
          %2671 = vst.msk [vmem:[#allocation5 + $0xf0] sm:$0xff] %vm2640, -1e+30
          %2672 = vst.msk [vmem:[#allocation5 + $0xf8] sm:$0xff] %vm2640, -1e+30
          %2673 = vst.msk [vmem:[#allocation5 + $0x100] sm:$0xff] %vm2640, -1e+30
          %2674 = vst.msk [vmem:[#allocation5 + $0x108] sm:$0xff] %vm2640, -1e+30
          %2675 = vst.msk [vmem:[#allocation5 + $0x110] sm:$0xff] %vm2640, -1e+30
          %2676 = vst.msk [vmem:[#allocation5 + $0x118] sm:$0xff] %vm2640, -1e+30
          %2677 = vst.msk [vmem:[#allocation5 + $0x120] sm:$0xff] %vm2640, -1e+30
          %2678 = vst.msk [vmem:[#allocation5 + $0x128] sm:$0xff] %vm2640, -1e+30
          %2679 = vst.msk [vmem:[#allocation5 + $0x130] sm:$0xff] %vm2640, -1e+30
          %2680 = vst.msk [vmem:[#allocation5 + $0x138] sm:$0xff] %vm2640, -1e+30
          %2681 = vst.msk [vmem:[#allocation5 + $0x140] sm:$0xff] %vm2640, -1e+30
          %2682 = vst.msk [vmem:[#allocation5 + $0x148] sm:$0xff] %vm2640, -1e+30
          %2683 = vst.msk [vmem:[#allocation5 + $0x150] sm:$0xff] %vm2640, -1e+30
          %2684 = vst.msk [vmem:[#allocation5 + $0x158] sm:$0xff] %vm2640, -1e+30
          %2685 = vst.msk [vmem:[#allocation5 + $0x160] sm:$0xff] %vm2640, -1e+30
          %2686 = vst.msk [vmem:[#allocation5 + $0x168] sm:$0xff] %vm2640, -1e+30
          %2687 = vst.msk [vmem:[#allocation5 + $0x170] sm:$0xff] %vm2640, -1e+30
          %2688 = vst.msk [vmem:[#allocation5 + $0x178] sm:$0xff] %vm2640, -1e+30
          %2689 = vst.msk [vmem:[#allocation5 + $0x180] sm:$0xff] %vm2640, -1e+30
          %2690 = vst.msk [vmem:[#allocation5 + $0x188] sm:$0xff] %vm2640, -1e+30
          %2691 = vst.msk [vmem:[#allocation5 + $0x190] sm:$0xff] %vm2640, -1e+30
          %2692 = vst.msk [vmem:[#allocation5 + $0x198] sm:$0xff] %vm2640, -1e+30
          %2693 = vst.msk [vmem:[#allocation5 + $0x1a0] sm:$0xff] %vm2640, -1e+30
          %2694 = vst.msk [vmem:[#allocation5 + $0x1a8] sm:$0xff] %vm2640, -1e+30
          %2695 = vst.msk [vmem:[#allocation5 + $0x1b0] sm:$0xff] %vm2640, -1e+30
          %2696 = vst.msk [vmem:[#allocation5 + $0x1b8] sm:$0xff] %vm2640, -1e+30
          %2697 = vst.msk [vmem:[#allocation5 + $0x1c0] sm:$0xff] %vm2640, -1e+30
          %2698 = vst.msk [vmem:[#allocation5 + $0x1c8] sm:$0xff] %vm2640, -1e+30
          %2699 = vst.msk [vmem:[#allocation5 + $0x1d0] sm:$0xff] %vm2640, -1e+30
          %2700 = vst.msk [vmem:[#allocation5 + $0x1d8] sm:$0xff] %vm2640, -1e+30
          %2701 = vst.msk [vmem:[#allocation5 + $0x1e0] sm:$0xff] %vm2640, -1e+30
          %2702 = vst.msk [vmem:[#allocation5 + $0x1e8] sm:$0xff] %vm2640, -1e+30
          %2703 = vst.msk [vmem:[#allocation5 + $0x1f0] sm:$0xff] %vm2640, -1e+30
          %2704 = vst.msk [vmem:[#allocation5 + $0x1f8] sm:$0xff] %vm2640, -1e+30
          %2705 = vst.msk [vmem:[#allocation6] sm:$0xff] %vm2640, 0.0
          %2706 = vst.msk [vmem:[#allocation6 + $0x8] sm:$0xff] %vm2640, 0.0
          %2707 = vst.msk [vmem:[#allocation6 + $0x10] sm:$0xff] %vm2640, 0.0
          %2708 = vst.msk [vmem:[#allocation6 + $0x18] sm:$0xff] %vm2640, 0.0
          %2709 = vst.msk [vmem:[#allocation6 + $0x20] sm:$0xff] %vm2640, 0.0
          %2710 = vst.msk [vmem:[#allocation6 + $0x28] sm:$0xff] %vm2640, 0.0
          %2711 = vst.msk [vmem:[#allocation6 + $0x30] sm:$0xff] %vm2640, 0.0
          %2712 = vst.msk [vmem:[#allocation6 + $0x38] sm:$0xff] %vm2640, 0.0
          %2713 = vst.msk [vmem:[#allocation6 + $0x40] sm:$0xff] %vm2640, 0.0
          %2714 = vst.msk [vmem:[#allocation6 + $0x48] sm:$0xff] %vm2640, 0.0
          %2715 = vst.msk [vmem:[#allocation6 + $0x50] sm:$0xff] %vm2640, 0.0
          %2716 = vst.msk [vmem:[#allocation6 + $0x58] sm:$0xff] %vm2640, 0.0
          %2717 = vst.msk [vmem:[#allocation6 + $0x60] sm:$0xff] %vm2640, 0.0
          %2718 = vst.msk [vmem:[#allocation6 + $0x68] sm:$0xff] %vm2640, 0.0
          %2719 = vst.msk [vmem:[#allocation6 + $0x70] sm:$0xff] %vm2640, 0.0
          %2720 = vst.msk [vmem:[#allocation6 + $0x78] sm:$0xff] %vm2640, 0.0
          %2721 = vst.msk [vmem:[#allocation6 + $0x80] sm:$0xff] %vm2640, 0.0
          %2722 = vst.msk [vmem:[#allocation6 + $0x88] sm:$0xff] %vm2640, 0.0
          %2723 = vst.msk [vmem:[#allocation6 + $0x90] sm:$0xff] %vm2640, 0.0
          %2724 = vst.msk [vmem:[#allocation6 + $0x98] sm:$0xff] %vm2640, 0.0
          %2725 = vst.msk [vmem:[#allocation6 + $0xa0] sm:$0xff] %vm2640, 0.0
          %2726 = vst.msk [vmem:[#allocation6 + $0xa8] sm:$0xff] %vm2640, 0.0
          %2727 = vst.msk [vmem:[#allocation6 + $0xb0] sm:$0xff] %vm2640, 0.0
          %2728 = vst.msk [vmem:[#allocation6 + $0xb8] sm:$0xff] %vm2640, 0.0
          %2729 = vst.msk [vmem:[#allocation6 + $0xc0] sm:$0xff] %vm2640, 0.0
          %2730 = vst.msk [vmem:[#allocation6 + $0xc8] sm:$0xff] %vm2640, 0.0
          %2731 = vst.msk [vmem:[#allocation6 + $0xd0] sm:$0xff] %vm2640, 0.0
          %2732 = vst.msk [vmem:[#allocation6 + $0xd8] sm:$0xff] %vm2640, 0.0
          %2733 = vst.msk [vmem:[#allocation6 + $0xe0] sm:$0xff] %vm2640, 0.0
          %2734 = vst.msk [vmem:[#allocation6 + $0xe8] sm:$0xff] %vm2640, 0.0
          %2735 = vst.msk [vmem:[#allocation6 + $0xf0] sm:$0xff] %vm2640, 0.0
          %2736 = vst.msk [vmem:[#allocation6 + $0xf8] sm:$0xff] %vm2640, 0.0
          %2737 = vst.msk [vmem:[#allocation6 + $0x100] sm:$0xff] %vm2640, 0.0
          %2738 = vst.msk [vmem:[#allocation6 + $0x108] sm:$0xff] %vm2640, 0.0
          %2739 = vst.msk [vmem:[#allocation6 + $0x110] sm:$0xff] %vm2640, 0.0
          %2740 = vst.msk [vmem:[#allocation6 + $0x118] sm:$0xff] %vm2640, 0.0
          %2741 = vst.msk [vmem:[#allocation6 + $0x120] sm:$0xff] %vm2640, 0.0
          %2742 = vst.msk [vmem:[#allocation6 + $0x128] sm:$0xff] %vm2640, 0.0
          %2743 = vst.msk [vmem:[#allocation6 + $0x130] sm:$0xff] %vm2640, 0.0
          %2744 = vst.msk [vmem:[#allocation6 + $0x138] sm:$0xff] %vm2640, 0.0
          %2745 = vst.msk [vmem:[#allocation6 + $0x140] sm:$0xff] %vm2640, 0.0
          %2746 = vst.msk [vmem:[#allocation6 + $0x148] sm:$0xff] %vm2640, 0.0
          %2747 = vst.msk [vmem:[#allocation6 + $0x150] sm:$0xff] %vm2640, 0.0
          %2748 = vst.msk [vmem:[#allocation6 + $0x158] sm:$0xff] %vm2640, 0.0
          %2749 = vst.msk [vmem:[#allocation6 + $0x160] sm:$0xff] %vm2640, 0.0
          %2750 = vst.msk [vmem:[#allocation6 + $0x168] sm:$0xff] %vm2640, 0.0
          %2751 = vst.msk [vmem:[#allocation6 + $0x170] sm:$0xff] %vm2640, 0.0
          %2752 = vst.msk [vmem:[#allocation6 + $0x178] sm:$0xff] %vm2640, 0.0
          %2753 = vst.msk [vmem:[#allocation6 + $0x180] sm:$0xff] %vm2640, 0.0
          %2754 = vst.msk [vmem:[#allocation6 + $0x188] sm:$0xff] %vm2640, 0.0
          %2755 = vst.msk [vmem:[#allocation6 + $0x190] sm:$0xff] %vm2640, 0.0
          %2756 = vst.msk [vmem:[#allocation6 + $0x198] sm:$0xff] %vm2640, 0.0
          %2757 = vst.msk [vmem:[#allocation6 + $0x1a0] sm:$0xff] %vm2640, 0.0
          %2758 = vst.msk [vmem:[#allocation6 + $0x1a8] sm:$0xff] %vm2640, 0.0
          %2759 = vst.msk [vmem:[#allocation6 + $0x1b0] sm:$0xff] %vm2640, 0.0
          %2760 = vst.msk [vmem:[#allocation6 + $0x1b8] sm:$0xff] %vm2640, 0.0
          %2761 = vst.msk [vmem:[#allocation6 + $0x1c0] sm:$0xff] %vm2640, 0.0
          %2762 = vst.msk [vmem:[#allocation6 + $0x1c8] sm:$0xff] %vm2640, 0.0
          %2763 = vst.msk [vmem:[#allocation6 + $0x1d0] sm:$0xff] %vm2640, 0.0
          %2764 = vst.msk [vmem:[#allocation6 + $0x1d8] sm:$0xff] %vm2640, 0.0
          %2765 = vst.msk [vmem:[#allocation6 + $0x1e0] sm:$0xff] %vm2640, 0.0
          %2766 = vst.msk [vmem:[#allocation6 + $0x1e8] sm:$0xff] %vm2640, 0.0
          %2767 = vst.msk [vmem:[#allocation6 + $0x1f0] sm:$0xff] %vm2640, 0.0
          %2768 = vst.msk [vmem:[#allocation6 + $0x1f8] sm:$0xff] %vm2640, 0.0
          %2769 = vst.msk [vmem:[#allocation7] sm:$0xff] %vm2532, 0.0
          %2770 = vst.msk [vmem:[#allocation7 + $0x8] sm:$0xff] %vm2532, 0.0
          %2771 = vst.msk [vmem:[#allocation7 + $0x10] sm:$0xff] %vm2532, 0.0
          %2772 = vst.msk [vmem:[#allocation7 + $0x18] sm:$0xff] %vm2532, 0.0
          %2773 = vst.msk [vmem:[#allocation7 + $0x20] sm:$0xff] %vm2532, 0.0
          %2774 = vst.msk [vmem:[#allocation7 + $0x28] sm:$0xff] %vm2532, 0.0
          %2775 = vst.msk [vmem:[#allocation7 + $0x30] sm:$0xff] %vm2532, 0.0
          %2776 = vst.msk [vmem:[#allocation7 + $0x38] sm:$0xff] %vm2532, 0.0
          %2777 = vst.msk [vmem:[#allocation7 + $0x40] sm:$0xff] %vm2532, 0.0
          %2778 = vst.msk [vmem:[#allocation7 + $0x48] sm:$0xff] %vm2532, 0.0
          %2779 = vst.msk [vmem:[#allocation7 + $0x50] sm:$0xff] %vm2532, 0.0
          %2780 = vst.msk [vmem:[#allocation7 + $0x58] sm:$0xff] %vm2532, 0.0
          %2781 = vst.msk [vmem:[#allocation7 + $0x60] sm:$0xff] %vm2532, 0.0
          %2782 = vst.msk [vmem:[#allocation7 + $0x68] sm:$0xff] %vm2532, 0.0
          %2783 = vst.msk [vmem:[#allocation7 + $0x70] sm:$0xff] %vm2532, 0.0
          %2784 = vst.msk [vmem:[#allocation7 + $0x78] sm:$0xff] %vm2532, 0.0
          %2785 = vst.msk [vmem:[#allocation7 + $0x80] sm:$0xff] %vm2532, 0.0
          %2786 = vst.msk [vmem:[#allocation7 + $0x88] sm:$0xff] %vm2532, 0.0
          %2787 = vst.msk [vmem:[#allocation7 + $0x90] sm:$0xff] %vm2532, 0.0
          %2788 = vst.msk [vmem:[#allocation7 + $0x98] sm:$0xff] %vm2532, 0.0
          %2789 = vst.msk [vmem:[#allocation7 + $0xa0] sm:$0xff] %vm2532, 0.0
          %2790 = vst.msk [vmem:[#allocation7 + $0xa8] sm:$0xff] %vm2532, 0.0
          %2791 = vst.msk [vmem:[#allocation7 + $0xb0] sm:$0xff] %vm2532, 0.0
          %2792 = vst.msk [vmem:[#allocation7 + $0xb8] sm:$0xff] %vm2532, 0.0
          %2793 = vst.msk [vmem:[#allocation7 + $0xc0] sm:$0xff] %vm2532, 0.0
          %2794 = vst.msk [vmem:[#allocation7 + $0xc8] sm:$0xff] %vm2532, 0.0
          %2795 = vst.msk [vmem:[#allocation7 + $0xd0] sm:$0xff] %vm2532, 0.0
          %2796 = vst.msk [vmem:[#allocation7 + $0xd8] sm:$0xff] %vm2532, 0.0
          %2797 = vst.msk [vmem:[#allocation7 + $0xe0] sm:$0xff] %vm2532, 0.0
          %2798 = vst.msk [vmem:[#allocation7 + $0xe8] sm:$0xff] %vm2532, 0.0
          %2799 = vst.msk [vmem:[#allocation7 + $0xf0] sm:$0xff] %vm2532, 0.0
          %2800 = vst.msk [vmem:[#allocation7 + $0xf8] sm:$0xff] %vm2532, 0.0
          %2801 = vst.msk [vmem:[#allocation7 + $0x100] sm:$0xff] %vm2532, 0.0
          %2802 = vst.msk [vmem:[#allocation7 + $0x108] sm:$0xff] %vm2532, 0.0
          %2803 = vst.msk [vmem:[#allocation7 + $0x110] sm:$0xff] %vm2532, 0.0
          %2804 = vst.msk [vmem:[#allocation7 + $0x118] sm:$0xff] %vm2532, 0.0
          %2805 = vst.msk [vmem:[#allocation7 + $0x120] sm:$0xff] %vm2532, 0.0
          %2806 = vst.msk [vmem:[#allocation7 + $0x128] sm:$0xff] %vm2532, 0.0
          %2807 = vst.msk [vmem:[#allocation7 + $0x130] sm:$0xff] %vm2532, 0.0
          %2808 = vst.msk [vmem:[#allocation7 + $0x138] sm:$0xff] %vm2532, 0.0
          %2809 = vst.msk [vmem:[#allocation7 + $0x140] sm:$0xff] %vm2532, 0.0
          %2810 = vst.msk [vmem:[#allocation7 + $0x148] sm:$0xff] %vm2532, 0.0
          %2811 = vst.msk [vmem:[#allocation7 + $0x150] sm:$0xff] %vm2532, 0.0
          %2812 = vst.msk [vmem:[#allocation7 + $0x158] sm:$0xff] %vm2532, 0.0
          %2813 = vst.msk [vmem:[#allocation7 + $0x160] sm:$0xff] %vm2532, 0.0
          %2814 = vst.msk [vmem:[#allocation7 + $0x168] sm:$0xff] %vm2532, 0.0
          %2815 = vst.msk [vmem:[#allocation7 + $0x170] sm:$0xff] %vm2532, 0.0
          %2816 = vst.msk [vmem:[#allocation7 + $0x178] sm:$0xff] %vm2532, 0.0
          %2817 = vst.msk [vmem:[#allocation7 + $0x180] sm:$0xff] %vm2532, 0.0
          %2818 = vst.msk [vmem:[#allocation7 + $0x188] sm:$0xff] %vm2532, 0.0
          %2819 = vst.msk [vmem:[#allocation7 + $0x190] sm:$0xff] %vm2532, 0.0
          %2820 = vst.msk [vmem:[#allocation7 + $0x198] sm:$0xff] %vm2532, 0.0
          %2821 = vst.msk [vmem:[#allocation7 + $0x1a0] sm:$0xff] %vm2532, 0.0
          %2822 = vst.msk [vmem:[#allocation7 + $0x1a8] sm:$0xff] %vm2532, 0.0
          %2823 = vst.msk [vmem:[#allocation7 + $0x1b0] sm:$0xff] %vm2532, 0.0
          %2824 = vst.msk [vmem:[#allocation7 + $0x1b8] sm:$0xff] %vm2532, 0.0
          %2825 = vst.msk [vmem:[#allocation7 + $0x1c0] sm:$0xff] %vm2532, 0.0
          %2826 = vst.msk [vmem:[#allocation7 + $0x1c8] sm:$0xff] %vm2532, 0.0
          %2827 = vst.msk [vmem:[#allocation7 + $0x1d0] sm:$0xff] %vm2532, 0.0
          %2828 = vst.msk [vmem:[#allocation7 + $0x1d8] sm:$0xff] %vm2532, 0.0
          %2829 = vst.msk [vmem:[#allocation7 + $0x1e0] sm:$0xff] %vm2532, 0.0
          %2830 = vst.msk [vmem:[#allocation7 + $0x1e8] sm:$0xff] %vm2532, 0.0
          %2831 = vst.msk [vmem:[#allocation7 + $0x1f0] sm:$0xff] %vm2532, 0.0
          %2832 = vst.msk [vmem:[#allocation7 + $0x1f8] sm:$0xff] %vm2532, 0.0
        $region92: #{tpu_custom_call.1} parent=55 // pred_fallthru
          _
        %s2833 = smul.u32 %s38, 128
        %s2834 = sadd.s32 %s37, 1
        %s2835 = smul.u32 %s2834, 128
        %p2836 = scmp.lt.s32.totalorder %s2833, %s2835
        // Predicated region
        $region93: #{tpu_custom_call.1} parent=55 // pred_check
          %p2837 = pneg %p2836
        $region94: #{tpu_custom_call.1} parent=55 // pred_check_branch
          %2839 = sbr.rel (%p2837) target = $region96
        $region95: #{tpu_custom_call.1} parent=55 // pred_region
          %v2840 = vld [vmem:[#allocation2] sm:$0xff]
          %v2841 = vld [vmem:[#allocation2 + $0x8] sm:$0xff]
          %v2842 = vld [vmem:[#allocation2 + $0x10] sm:$0xff]
          %v2843 = vld [vmem:[#allocation2 + $0x18] sm:$0xff]
          %v2844 = vld [vmem:[#allocation2 + $0x20] sm:$0xff]
          %v2845 = vld [vmem:[#allocation2 + $0x28] sm:$0xff]
          %v2846 = vld [vmem:[#allocation2 + $0x30] sm:$0xff]
          %v2847 = vld [vmem:[#allocation2 + $0x38] sm:$0xff]
          %v2848 = vld [vmem:[#allocation2 + $0x40] sm:$0xff]
          %v2849 = vld [vmem:[#allocation2 + $0x48] sm:$0xff]
          %v2850 = vld [vmem:[#allocation2 + $0x50] sm:$0xff]
          %v2851 = vld [vmem:[#allocation2 + $0x58] sm:$0xff]
          %v2852 = vld [vmem:[#allocation2 + $0x60] sm:$0xff]
          %v2853 = vld [vmem:[#allocation2 + $0x68] sm:$0xff]
          %v2854 = vld [vmem:[#allocation2 + $0x70] sm:$0xff]
          %v2855 = vld [vmem:[#allocation2 + $0x78] sm:$0xff]
          %v2856 = vld [vmem:[#allocation2 + $0x80] sm:$0xff]
          %v2857 = vld [vmem:[#allocation2 + $0x88] sm:$0xff]
          %v2858 = vld [vmem:[#allocation2 + $0x90] sm:$0xff]
          %v2859 = vld [vmem:[#allocation2 + $0x98] sm:$0xff]
          %v2860 = vld [vmem:[#allocation2 + $0xa0] sm:$0xff]
          %v2861 = vld [vmem:[#allocation2 + $0xa8] sm:$0xff]
          %v2862 = vld [vmem:[#allocation2 + $0xb0] sm:$0xff]
          %v2863 = vld [vmem:[#allocation2 + $0xb8] sm:$0xff]
          %v2864 = vld [vmem:[#allocation2 + $0xc0] sm:$0xff]
          %v2865 = vld [vmem:[#allocation2 + $0xc8] sm:$0xff]
          %v2866 = vld [vmem:[#allocation2 + $0xd0] sm:$0xff]
          %v2867 = vld [vmem:[#allocation2 + $0xd8] sm:$0xff]
          %v2868 = vld [vmem:[#allocation2 + $0xe0] sm:$0xff]
          %v2869 = vld [vmem:[#allocation2 + $0xe8] sm:$0xff]
          %v2870 = vld [vmem:[#allocation2 + $0xf0] sm:$0xff]
          %v2871 = vld [vmem:[#allocation2 + $0xf8] sm:$0xff]
          %s2872 = smul.u32 %s38, 32
          %s2873 = smul.addr %s2872, 8
          %s2874 = scalar_lea.vmem [#allocation3], %s2873
          %v2875 = vld [vmem:[%s2874] sm:$0xff]
          %v2876 = vld [vmem:[%s2874 + $0x8] sm:$0xff]
          %v2877 = vld [vmem:[%s2874 + $0x10] sm:$0xff]
          %v2878 = vld [vmem:[%s2874 + $0x18] sm:$0xff]
          %v2879 = vld [vmem:[%s2874 + $0x20] sm:$0xff]
          %v2880 = vld [vmem:[%s2874 + $0x28] sm:$0xff]
          %v2881 = vld [vmem:[%s2874 + $0x30] sm:$0xff]
          %v2882 = vld [vmem:[%s2874 + $0x38] sm:$0xff]
          %v2883 = vld [vmem:[%s2874 + $0x40] sm:$0xff]
          %v2884 = vld [vmem:[%s2874 + $0x48] sm:$0xff]
          %v2885 = vld [vmem:[%s2874 + $0x50] sm:$0xff]
          %v2886 = vld [vmem:[%s2874 + $0x58] sm:$0xff]
          %v2887 = vld [vmem:[%s2874 + $0x60] sm:$0xff]
          %v2888 = vld [vmem:[%s2874 + $0x68] sm:$0xff]
          %v2889 = vld [vmem:[%s2874 + $0x70] sm:$0xff]
          %v2890 = vld [vmem:[%s2874 + $0x78] sm:$0xff]
          %v2891 = vld [vmem:[%s2874 + $0x80] sm:$0xff]
          %v2892 = vld [vmem:[%s2874 + $0x88] sm:$0xff]
          %v2893 = vld [vmem:[%s2874 + $0x90] sm:$0xff]
          %v2894 = vld [vmem:[%s2874 + $0x98] sm:$0xff]
          %v2895 = vld [vmem:[%s2874 + $0xa0] sm:$0xff]
          %v2896 = vld [vmem:[%s2874 + $0xa8] sm:$0xff]
          %v2897 = vld [vmem:[%s2874 + $0xb0] sm:$0xff]
          %v2898 = vld [vmem:[%s2874 + $0xb8] sm:$0xff]
          %v2899 = vld [vmem:[%s2874 + $0xc0] sm:$0xff]
          %v2900 = vld [vmem:[%s2874 + $0xc8] sm:$0xff]
          %v2901 = vld [vmem:[%s2874 + $0xd0] sm:$0xff]
          %v2902 = vld [vmem:[%s2874 + $0xd8] sm:$0xff]
          %v2903 = vld [vmem:[%s2874 + $0xe0] sm:$0xff]
          %v2904 = vld [vmem:[%s2874 + $0xe8] sm:$0xff]
          %v2905 = vld [vmem:[%s2874 + $0xf0] sm:$0xff]
          %v2906 = vld [vmem:[%s2874 + $0xf8] sm:$0xff]
          %s2907 = smul.addr %s2872, 8
          %s2908 = scalar_lea.vmem [#allocation4], %s2907
          %v2909 = vld [vmem:[%s2908] sm:$0xff]
          %v2910 = vld [vmem:[%s2908 + $0x8] sm:$0xff]
          %v2911 = vld [vmem:[%s2908 + $0x10] sm:$0xff]
          %v2912 = vld [vmem:[%s2908 + $0x18] sm:$0xff]
          %v2913 = vld [vmem:[%s2908 + $0x20] sm:$0xff]
          %v2914 = vld [vmem:[%s2908 + $0x28] sm:$0xff]
          %v2915 = vld [vmem:[%s2908 + $0x30] sm:$0xff]
          %v2916 = vld [vmem:[%s2908 + $0x38] sm:$0xff]
          %v2917 = vld [vmem:[%s2908 + $0x40] sm:$0xff]
          %v2918 = vld [vmem:[%s2908 + $0x48] sm:$0xff]
          %v2919 = vld [vmem:[%s2908 + $0x50] sm:$0xff]
          %v2920 = vld [vmem:[%s2908 + $0x58] sm:$0xff]
          %v2921 = vld [vmem:[%s2908 + $0x60] sm:$0xff]
          %v2922 = vld [vmem:[%s2908 + $0x68] sm:$0xff]
          %v2923 = vld [vmem:[%s2908 + $0x70] sm:$0xff]
          %v2924 = vld [vmem:[%s2908 + $0x78] sm:$0xff]
          %v2925 = vld [vmem:[%s2908 + $0x80] sm:$0xff]
          %v2926 = vld [vmem:[%s2908 + $0x88] sm:$0xff]
          %v2927 = vld [vmem:[%s2908 + $0x90] sm:$0xff]
          %v2928 = vld [vmem:[%s2908 + $0x98] sm:$0xff]
          %v2929 = vld [vmem:[%s2908 + $0xa0] sm:$0xff]
          %v2930 = vld [vmem:[%s2908 + $0xa8] sm:$0xff]
          %v2931 = vld [vmem:[%s2908 + $0xb0] sm:$0xff]
          %v2932 = vld [vmem:[%s2908 + $0xb8] sm:$0xff]
          %v2933 = vld [vmem:[%s2908 + $0xc0] sm:$0xff]
          %v2934 = vld [vmem:[%s2908 + $0xc8] sm:$0xff]
          %v2935 = vld [vmem:[%s2908 + $0xd0] sm:$0xff]
          %v2936 = vld [vmem:[%s2908 + $0xd8] sm:$0xff]
          %v2937 = vld [vmem:[%s2908 + $0xe0] sm:$0xff]
          %v2938 = vld [vmem:[%s2908 + $0xe8] sm:$0xff]
          %v2939 = vld [vmem:[%s2908 + $0xf0] sm:$0xff]
          %v2940 = vld [vmem:[%s2908 + $0xf8] sm:$0xff]
          %v2941 = vld [vmem:[%s470] sm:$0xf]
          %v2942 = vld [vmem:[%s470 + $0x4] sm:$0xf]
          %v2943 = vld [vmem:[%s470 + $0x8] sm:$0xf]
          %v2944 = vld [vmem:[%s470 + $0xc] sm:$0xf]
          %v2945 = vld [vmem:[%s470 + $0x10] sm:$0xf]
          %v2946 = vld [vmem:[%s470 + $0x14] sm:$0xf]
          %v2947 = vld [vmem:[%s470 + $0x18] sm:$0xf]
          %v2948 = vld [vmem:[%s470 + $0x1c] sm:$0xf]
          %v2949 = vld [vmem:[%s470 + $0x20] sm:$0xf]
          %v2950 = vld [vmem:[%s470 + $0x24] sm:$0xf]
          %v2951 = vld [vmem:[%s470 + $0x28] sm:$0xf]
          %v2952 = vld [vmem:[%s470 + $0x2c] sm:$0xf]
          %v2953 = vld [vmem:[%s470 + $0x30] sm:$0xf]
          %v2954 = vld [vmem:[%s470 + $0x34] sm:$0xf]
          %v2955 = vld [vmem:[%s470 + $0x38] sm:$0xf]
          %v2956 = vld [vmem:[%s470 + $0x3c] sm:$0xf]
          %v2957 = vunpack.c.l.bf16 %v2941
          %v2958 = vunpack.c.l.bf16 %v2942
          %v2959 = vunpack.c.l.bf16 %v2943
          %v2960 = vunpack.c.l.bf16 %v2944
          %v2961 = vunpack.c.l.bf16 %v2945
          %v2962 = vunpack.c.l.bf16 %v2946
          %v2963 = vunpack.c.l.bf16 %v2947
          %v2964 = vunpack.c.l.bf16 %v2948
          %v2965 = vunpack.c.l.bf16 %v2949
          %v2966 = vunpack.c.l.bf16 %v2950
          %v2967 = vunpack.c.l.bf16 %v2951
          %v2968 = vunpack.c.l.bf16 %v2952
          %v2969 = vunpack.c.l.bf16 %v2953
          %v2970 = vunpack.c.l.bf16 %v2954
          %v2971 = vunpack.c.l.bf16 %v2955
          %v2972 = vunpack.c.l.bf16 %v2956
          %vm2973 = vcmask 523264
          %v2975 = vsel %vm2973, %v2840, 0
          %v2978 = vsel %vm2973, %v2841, 0
          %v2981 = vsel %vm2973, %v2842, 0
          %v2984 = vsel %vm2973, %v2843, 0
          %v2987 = vsel %vm2973, %v2844, 0
          %v2990 = vsel %vm2973, %v2845, 0
          %v2993 = vsel %vm2973, %v2846, 0
          %v2996 = vsel %vm2973, %v2847, 0
          %v2999 = vsel %vm2973, %v2875, 0
          %v3002 = vsel %vm2973, %v2876, 0
          %v3005 = vsel %vm2973, %v2877, 0
          %v3008 = vsel %vm2973, %v2878, 0
          %v3011 = vsel %vm2973, %v2879, 0
          %v3014 = vsel %vm2973, %v2880, 0
          %v3017 = vsel %vm2973, %v2881, 0
          %v3020 = vsel %vm2973, %v2882, 0
          %3022 = vmatprep.subr.bf16.mxu0 0
          %3023 = vmatpush1.bf16.xpose.msra.mxu0 %v2999
          %3024 = vmatprep.subr.bf16.mxu0 0
          %3025 = vmatpush1.bf16.xpose.msra.mxu0 %v3002
          %3026 = vmatprep.subr.bf16.mxu0 0
          %3027 = vmatpush1.bf16.xpose.msra.mxu0 %v3005
          %3028 = vmatprep.subr.bf16.mxu0 0
          %3029 = vmatpush1.bf16.xpose.msra.mxu0 %v3008
          %3030 = vmatprep.subr.bf16.mxu0 0
          %3031 = vmatpush1.bf16.xpose.msra.mxu0 %v3011
          %3032 = vmatprep.subr.bf16.mxu0 0
          %3033 = vmatpush1.bf16.xpose.msra.mxu0 %v3014
          %3034 = vmatprep.subr.bf16.mxu0 0
          %3035 = vmatpush1.bf16.xpose.msra.mxu0 %v3017
          %3036 = vmatprep.subr.bf16.mxu0 0
          %3037 = vmatpush1.bf16.xpose.msra.mxu0 %v3020
          %3038 = vmatprep.subr.bf16.mxu0 0
          %3039 = vmatpush1.bf16.xpose.msra.mxu0 0
          %3040 = vmatprep.subr.bf16.mxu0 0
          %3041 = vmatpush1.bf16.xpose.msra.mxu0 0
          %3042 = vmatprep.subr.bf16.mxu0 0
          %3043 = vmatpush1.bf16.xpose.msra.mxu0 0
          %3044 = vmatprep.subr.bf16.mxu0 0
          %3045 = vmatpush1.bf16.xpose.msra.mxu0 0
          %3046 = vmatprep.subr.bf16.mxu0 0
          %3047 = vmatpush1.bf16.xpose.msra.mxu0 0
          %3048 = vmatprep.subr.bf16.mxu0 0
          %3049 = vmatpush1.bf16.xpose.msra.mxu0 0
          %3050 = vmatprep.subr.bf16.mxu0 0
          %3051 = vmatpush1.bf16.xpose.msra.mxu0 0
          %3052 = vmatprep.subr.bf16.mxu0 0
          %3053 = vmatpush1.bf16.xpose.msra.mxu0 0
          %3054 = vmatprep.mubr.bf16.mxu0 0
          %3055 = vmatmul.mubr.bf16.gmra.mrb[0].mxu0 %v2975
          %v3056 = vpop.f32.mrb[0].mxu0
          %v3057 = vadd.f32 %v2957, %v3056
          %v3058 = vpop.f32.mrb[0].mxu0
          %v3059 = vpop.f32.mrb[0].mxu0
          %v3060 = vadd.f32 %v2958, %v3059
          %v3061 = vpop.f32.mrb[0].mxu0
          %3062 = vmatprep.mubr.bf16.mxu0 0
          %3063 = vmatmul.mubr.bf16.gmra.mrb[0].mxu0 %v2978
          %v3064 = vpop.f32.mrb[0].mxu0
          %v3065 = vadd.f32 %v2959, %v3064
          %v3066 = vpop.f32.mrb[0].mxu0
          %v3067 = vpop.f32.mrb[0].mxu0
          %v3068 = vadd.f32 %v2960, %v3067
          %v3069 = vpop.f32.mrb[0].mxu0
          %3070 = vmatprep.mubr.bf16.mxu0 0
          %3071 = vmatmul.mubr.bf16.gmra.mrb[0].mxu0 %v2981
          %v3072 = vpop.f32.mrb[0].mxu0
          %v3073 = vadd.f32 %v2961, %v3072
          %v3074 = vpop.f32.mrb[0].mxu0
          %v3075 = vpop.f32.mrb[0].mxu0
          %v3076 = vadd.f32 %v2962, %v3075
          %v3077 = vpop.f32.mrb[0].mxu0
          %3078 = vmatprep.mubr.bf16.mxu0 0
          %3079 = vmatmul.mubr.bf16.gmra.mrb[0].mxu0 %v2984
          %v3080 = vpop.f32.mrb[0].mxu0
          %v3081 = vadd.f32 %v2963, %v3080
          %v3082 = vpop.f32.mrb[0].mxu0
          %v3083 = vpop.f32.mrb[0].mxu0
          %v3084 = vadd.f32 %v2964, %v3083
          %v3085 = vpop.f32.mrb[0].mxu0
          %3086 = vmatprep.mubr.bf16.mxu0 0
          %3087 = vmatmul.mubr.bf16.gmra.mrb[0].mxu0 %v2987
          %v3088 = vpop.f32.mrb[0].mxu0
          %v3089 = vadd.f32 %v2965, %v3088
          %v3090 = vpop.f32.mrb[0].mxu0
          %v3091 = vpop.f32.mrb[0].mxu0
          %v3092 = vadd.f32 %v2966, %v3091
          %v3093 = vpop.f32.mrb[0].mxu0
          %3094 = vmatprep.mubr.bf16.mxu0 0
          %3095 = vmatmul.mubr.bf16.gmra.mrb[0].mxu0 %v2990
          %v3096 = vpop.f32.mrb[0].mxu0
          %v3097 = vadd.f32 %v2967, %v3096
          %v3098 = vpop.f32.mrb[0].mxu0
          %v3099 = vpop.f32.mrb[0].mxu0
          %v3100 = vadd.f32 %v2968, %v3099
          %v3101 = vpop.f32.mrb[0].mxu0
          %3102 = vmatprep.mubr.bf16.mxu0 0
          %3103 = vmatmul.mubr.bf16.gmra.mrb[0].mxu0 %v2993
          %v3104 = vpop.f32.mrb[0].mxu0
          %v3105 = vadd.f32 %v2969, %v3104
          %v3106 = vpop.f32.mrb[0].mxu0
          %v3107 = vpop.f32.mrb[0].mxu0
          %v3108 = vadd.f32 %v2970, %v3107
          %v3109 = vpop.f32.mrb[0].mxu0
          %3110 = vmatprep.mubr.bf16.mxu0 0
          %3111 = vmatmul.mubr.bf16.gmra.mrb[0].mxu0 %v2996
          %v3112 = vpop.f32.mrb[0].mxu0
          %v3113 = vadd.f32 %v2971, %v3112
          %v3114 = vpop.f32.mrb[0].mxu0
          %v3115 = vpop.f32.mrb[0].mxu0
          %v3116 = vadd.f32 %v2972, %v3115
          %v3117 = vpop.f32.mrb[0].mxu0
          %3118 = vdwg.mxu0
          %v3120 = vsel %vm2973, %v2848, 0
          %v3123 = vsel %vm2973, %v2849, 0
          %v3126 = vsel %vm2973, %v2850, 0
          %v3129 = vsel %vm2973, %v2851, 0
          %v3132 = vsel %vm2973, %v2852, 0
          %v3135 = vsel %vm2973, %v2853, 0
          %v3138 = vsel %vm2973, %v2854, 0
          %v3141 = vsel %vm2973, %v2855, 0
          %v3144 = vsel %vm2973, %v2883, 0
          %v3147 = vsel %vm2973, %v2884, 0
          %v3150 = vsel %vm2973, %v2885, 0
          %v3153 = vsel %vm2973, %v2886, 0
          %v3156 = vsel %vm2973, %v2887, 0
          %v3159 = vsel %vm2973, %v2888, 0
          %v3162 = vsel %vm2973, %v2889, 0
          %v3165 = vsel %vm2973, %v2890, 0
          %3167 = vmatprep.subr.bf16.mxu0 0
          %3168 = vmatpush1.bf16.xpose.msra.mxu0 %v3144
          %3169 = vmatprep.subr.bf16.mxu0 0
          %3170 = vmatpush1.bf16.xpose.msra.mxu0 %v3147
          %3171 = vmatprep.subr.bf16.mxu0 0
          %3172 = vmatpush1.bf16.xpose.msra.mxu0 %v3150
          %3173 = vmatprep.subr.bf16.mxu0 0
          %3174 = vmatpush1.bf16.xpose.msra.mxu0 %v3153
          %3175 = vmatprep.subr.bf16.mxu0 0
          %3176 = vmatpush1.bf16.xpose.msra.mxu0 %v3156
          %3177 = vmatprep.subr.bf16.mxu0 0
          %3178 = vmatpush1.bf16.xpose.msra.mxu0 %v3159
          %3179 = vmatprep.subr.bf16.mxu0 0
          %3180 = vmatpush1.bf16.xpose.msra.mxu0 %v3162
          %3181 = vmatprep.subr.bf16.mxu0 0
          %3182 = vmatpush1.bf16.xpose.msra.mxu0 %v3165
          %3183 = vmatprep.subr.bf16.mxu0 0
          %3184 = vmatpush1.bf16.xpose.msra.mxu0 0
          %3185 = vmatprep.subr.bf16.mxu0 0
          %3186 = vmatpush1.bf16.xpose.msra.mxu0 0
          %3187 = vmatprep.subr.bf16.mxu0 0
          %3188 = vmatpush1.bf16.xpose.msra.mxu0 0
          %3189 = vmatprep.subr.bf16.mxu0 0
          %3190 = vmatpush1.bf16.xpose.msra.mxu0 0
          %3191 = vmatprep.subr.bf16.mxu0 0
          %3192 = vmatpush1.bf16.xpose.msra.mxu0 0
          %3193 = vmatprep.subr.bf16.mxu0 0
          %3194 = vmatpush1.bf16.xpose.msra.mxu0 0
          %3195 = vmatprep.subr.bf16.mxu0 0
          %3196 = vmatpush1.bf16.xpose.msra.mxu0 0
          %3197 = vmatprep.subr.bf16.mxu0 0
          %3198 = vmatpush1.bf16.xpose.msra.mxu0 0
          %3199 = vmatprep.mubr.bf16.mxu0 0
          %3200 = vmatmul.mubr.bf16.gmra.mrb[0].mxu0 %v3120
          %v3201 = vpop.f32.mrb[0].mxu0
          %v3202 = vadd.f32 %v2957, %v3201
          %v3203 = vpop.f32.mrb[0].mxu0
          %v3204 = vpop.f32.mrb[0].mxu0
          %v3205 = vadd.f32 %v2958, %v3204
          %v3206 = vpop.f32.mrb[0].mxu0
          %3207 = vmatprep.mubr.bf16.mxu0 0
          %3208 = vmatmul.mubr.bf16.gmra.mrb[0].mxu0 %v3123
          %v3209 = vpop.f32.mrb[0].mxu0
          %v3210 = vadd.f32 %v2959, %v3209
          %v3211 = vpop.f32.mrb[0].mxu0
          %v3212 = vpop.f32.mrb[0].mxu0
          %v3213 = vadd.f32 %v2960, %v3212
          %v3214 = vpop.f32.mrb[0].mxu0
          %3215 = vmatprep.mubr.bf16.mxu0 0
          %3216 = vmatmul.mubr.bf16.gmra.mrb[0].mxu0 %v3126
          %v3217 = vpop.f32.mrb[0].mxu0
          %v3218 = vadd.f32 %v2961, %v3217
          %v3219 = vpop.f32.mrb[0].mxu0
          %v3220 = vpop.f32.mrb[0].mxu0
          %v3221 = vadd.f32 %v2962, %v3220
          %v3222 = vpop.f32.mrb[0].mxu0
          %3223 = vmatprep.mubr.bf16.mxu0 0
          %3224 = vmatmul.mubr.bf16.gmra.mrb[0].mxu0 %v3129
          %v3225 = vpop.f32.mrb[0].mxu0
          %v3226 = vadd.f32 %v2963, %v3225
          %v3227 = vpop.f32.mrb[0].mxu0
          %v3228 = vpop.f32.mrb[0].mxu0
          %v3229 = vadd.f32 %v2964, %v3228
          %v3230 = vpop.f32.mrb[0].mxu0
          %3231 = vmatprep.mubr.bf16.mxu0 0
          %3232 = vmatmul.mubr.bf16.gmra.mrb[0].mxu0 %v3132
          %v3233 = vpop.f32.mrb[0].mxu0
          %v3234 = vadd.f32 %v2965, %v3233
          %v3235 = vpop.f32.mrb[0].mxu0
          %v3236 = vpop.f32.mrb[0].mxu0
          %v3237 = vadd.f32 %v2966, %v3236
          %v3238 = vpop.f32.mrb[0].mxu0
          %3239 = vmatprep.mubr.bf16.mxu0 0
          %3240 = vmatmul.mubr.bf16.gmra.mrb[0].mxu0 %v3135
          %v3241 = vpop.f32.mrb[0].mxu0
          %v3242 = vadd.f32 %v2967, %v3241
          %v3243 = vpop.f32.mrb[0].mxu0
          %v3244 = vpop.f32.mrb[0].mxu0
          %v3245 = vadd.f32 %v2968, %v3244
          %v3246 = vpop.f32.mrb[0].mxu0
          %3247 = vmatprep.mubr.bf16.mxu0 0
          %3248 = vmatmul.mubr.bf16.gmra.mrb[0].mxu0 %v3138
          %v3249 = vpop.f32.mrb[0].mxu0
          %v3250 = vadd.f32 %v2969, %v3249
          %v3251 = vpop.f32.mrb[0].mxu0
          %v3252 = vpop.f32.mrb[0].mxu0
          %v3253 = vadd.f32 %v2970, %v3252
          %v3254 = vpop.f32.mrb[0].mxu0
          %3255 = vmatprep.mubr.bf16.mxu0 0
          %3256 = vmatmul.mubr.bf16.gmra.mrb[0].mxu0 %v3141
          %v3257 = vpop.f32.mrb[0].mxu0
          %v3258 = vadd.f32 %v2971, %v3257
          %v3259 = vpop.f32.mrb[0].mxu0
          %v3260 = vpop.f32.mrb[0].mxu0
          %v3261 = vadd.f32 %v2972, %v3260
          %v3262 = vpop.f32.mrb[0].mxu0
          %3263 = vdwg.mxu0
          %v3265 = vsel %vm2973, %v2856, 0
          %v3268 = vsel %vm2973, %v2857, 0
          %v3271 = vsel %vm2973, %v2858, 0
          %v3274 = vsel %vm2973, %v2859, 0
          %v3277 = vsel %vm2973, %v2860, 0
          %v3280 = vsel %vm2973, %v2861, 0
          %v3283 = vsel %vm2973, %v2862, 0
          %v3286 = vsel %vm2973, %v2863, 0
          %v3289 = vsel %vm2973, %v2891, 0
          %v3292 = vsel %vm2973, %v2892, 0
          %v3295 = vsel %vm2973, %v2893, 0
          %v3298 = vsel %vm2973, %v2894, 0
          %v3301 = vsel %vm2973, %v2895, 0
          %v3304 = vsel %vm2973, %v2896, 0
          %v3307 = vsel %vm2973, %v2897, 0
          %v3310 = vsel %vm2973, %v2898, 0
          %3312 = vmatprep.subr.bf16.mxu0 0
          %3313 = vmatpush1.bf16.xpose.msra.mxu0 %v3289
          %3314 = vmatprep.subr.bf16.mxu0 0
          %3315 = vmatpush1.bf16.xpose.msra.mxu0 %v3292
          %3316 = vmatprep.subr.bf16.mxu0 0
          %3317 = vmatpush1.bf16.xpose.msra.mxu0 %v3295
          %3318 = vmatprep.subr.bf16.mxu0 0
          %3319 = vmatpush1.bf16.xpose.msra.mxu0 %v3298
          %3320 = vmatprep.subr.bf16.mxu0 0
          %3321 = vmatpush1.bf16.xpose.msra.mxu0 %v3301
          %3322 = vmatprep.subr.bf16.mxu0 0
          %3323 = vmatpush1.bf16.xpose.msra.mxu0 %v3304
          %3324 = vmatprep.subr.bf16.mxu0 0
          %3325 = vmatpush1.bf16.xpose.msra.mxu0 %v3307
          %3326 = vmatprep.subr.bf16.mxu0 0
          %3327 = vmatpush1.bf16.xpose.msra.mxu0 %v3310
          %3328 = vmatprep.subr.bf16.mxu0 0
          %3329 = vmatpush1.bf16.xpose.msra.mxu0 0
          %3330 = vmatprep.subr.bf16.mxu0 0
          %3331 = vmatpush1.bf16.xpose.msra.mxu0 0
          %3332 = vmatprep.subr.bf16.mxu0 0
          %3333 = vmatpush1.bf16.xpose.msra.mxu0 0
          %3334 = vmatprep.subr.bf16.mxu0 0
          %3335 = vmatpush1.bf16.xpose.msra.mxu0 0
          %3336 = vmatprep.subr.bf16.mxu0 0
          %3337 = vmatpush1.bf16.xpose.msra.mxu0 0
          %3338 = vmatprep.subr.bf16.mxu0 0
          %3339 = vmatpush1.bf16.xpose.msra.mxu0 0
          %3340 = vmatprep.subr.bf16.mxu0 0
          %3341 = vmatpush1.bf16.xpose.msra.mxu0 0
          %3342 = vmatprep.subr.bf16.mxu0 0
          %3343 = vmatpush1.bf16.xpose.msra.mxu0 0
          %3344 = vmatprep.mubr.bf16.mxu0 0
          %3345 = vmatmul.mubr.bf16.gmra.mrb[0].mxu0 %v3265
          %v3346 = vpop.f32.mrb[0].mxu0
          %v3347 = vadd.f32 %v2957, %v3346
          %v3348 = vpop.f32.mrb[0].mxu0
          %v3349 = vpop.f32.mrb[0].mxu0
          %v3350 = vadd.f32 %v2958, %v3349
          %v3351 = vpop.f32.mrb[0].mxu0
          %3352 = vmatprep.mubr.bf16.mxu0 0
          %3353 = vmatmul.mubr.bf16.gmra.mrb[0].mxu0 %v3268
          %v3354 = vpop.f32.mrb[0].mxu0
          %v3355 = vadd.f32 %v2959, %v3354
          %v3356 = vpop.f32.mrb[0].mxu0
          %v3357 = vpop.f32.mrb[0].mxu0
          %v3358 = vadd.f32 %v2960, %v3357
          %v3359 = vpop.f32.mrb[0].mxu0
          %3360 = vmatprep.mubr.bf16.mxu0 0
          %3361 = vmatmul.mubr.bf16.gmra.mrb[0].mxu0 %v3271
          %v3362 = vpop.f32.mrb[0].mxu0
          %v3363 = vadd.f32 %v2961, %v3362
          %v3364 = vpop.f32.mrb[0].mxu0
          %v3365 = vpop.f32.mrb[0].mxu0
          %v3366 = vadd.f32 %v2962, %v3365
          %v3367 = vpop.f32.mrb[0].mxu0
          %3368 = vmatprep.mubr.bf16.mxu0 0
          %3369 = vmatmul.mubr.bf16.gmra.mrb[0].mxu0 %v3274
          %v3370 = vpop.f32.mrb[0].mxu0
          %v3371 = vadd.f32 %v2963, %v3370
          %v3372 = vpop.f32.mrb[0].mxu0
          %v3373 = vpop.f32.mrb[0].mxu0
          %v3374 = vadd.f32 %v2964, %v3373
          %v3375 = vpop.f32.mrb[0].mxu0
          %3376 = vmatprep.mubr.bf16.mxu0 0
          %3377 = vmatmul.mubr.bf16.gmra.mrb[0].mxu0 %v3277
          %v3378 = vpop.f32.mrb[0].mxu0
          %v3379 = vadd.f32 %v2965, %v3378
          %v3380 = vpop.f32.mrb[0].mxu0
          %v3381 = vpop.f32.mrb[0].mxu0
          %v3382 = vadd.f32 %v2966, %v3381
          %v3383 = vpop.f32.mrb[0].mxu0
          %3384 = vmatprep.mubr.bf16.mxu0 0
          %3385 = vmatmul.mubr.bf16.gmra.mrb[0].mxu0 %v3280
          %v3386 = vpop.f32.mrb[0].mxu0
          %v3387 = vadd.f32 %v2967, %v3386
          %v3388 = vpop.f32.mrb[0].mxu0
          %v3389 = vpop.f32.mrb[0].mxu0
          %v3390 = vadd.f32 %v2968, %v3389
          %v3391 = vpop.f32.mrb[0].mxu0
          %3392 = vmatprep.mubr.bf16.mxu0 0
          %3393 = vmatmul.mubr.bf16.gmra.mrb[0].mxu0 %v3283
          %v3394 = vpop.f32.mrb[0].mxu0
          %v3395 = vadd.f32 %v2969, %v3394
          %v3396 = vpop.f32.mrb[0].mxu0
          %v3397 = vpop.f32.mrb[0].mxu0
          %v3398 = vadd.f32 %v2970, %v3397
          %v3399 = vpop.f32.mrb[0].mxu0
          %3400 = vmatprep.mubr.bf16.mxu0 0
          %3401 = vmatmul.mubr.bf16.gmra.mrb[0].mxu0 %v3286
          %v3402 = vpop.f32.mrb[0].mxu0
          %v3403 = vadd.f32 %v2971, %v3402
          %v3404 = vpop.f32.mrb[0].mxu0
          %v3405 = vpop.f32.mrb[0].mxu0
          %v3406 = vadd.f32 %v2972, %v3405
          %v3407 = vpop.f32.mrb[0].mxu0
          %3408 = vdwg.mxu0
          %v3410 = vsel %vm2973, %v2864, 0
          %v3413 = vsel %vm2973, %v2865, 0
          %v3416 = vsel %vm2973, %v2866, 0
          %v3419 = vsel %vm2973, %v2867, 0
          %v3422 = vsel %vm2973, %v2868, 0
          %v3425 = vsel %vm2973, %v2869, 0
          %v3428 = vsel %vm2973, %v2870, 0
          %v3431 = vsel %vm2973, %v2871, 0
          %v3434 = vsel %vm2973, %v2899, 0
          %v3437 = vsel %vm2973, %v2900, 0
          %v3440 = vsel %vm2973, %v2901, 0
          %v3443 = vsel %vm2973, %v2902, 0
          %v3446 = vsel %vm2973, %v2903, 0
          %v3449 = vsel %vm2973, %v2904, 0
          %v3452 = vsel %vm2973, %v2905, 0
          %v3455 = vsel %vm2973, %v2906, 0
          %3457 = vmatprep.subr.bf16.mxu0 0
          %3458 = vmatpush1.bf16.xpose.msra.mxu0 %v3434
          %3459 = vmatprep.subr.bf16.mxu0 0
          %3460 = vmatpush1.bf16.xpose.msra.mxu0 %v3437
          %3461 = vmatprep.subr.bf16.mxu0 0
          %3462 = vmatpush1.bf16.xpose.msra.mxu0 %v3440
          %3463 = vmatprep.subr.bf16.mxu0 0
          %3464 = vmatpush1.bf16.xpose.msra.mxu0 %v3443
          %3465 = vmatprep.subr.bf16.mxu0 0
          %3466 = vmatpush1.bf16.xpose.msra.mxu0 %v3446
          %3467 = vmatprep.subr.bf16.mxu0 0
          %3468 = vmatpush1.bf16.xpose.msra.mxu0 %v3449
          %3469 = vmatprep.subr.bf16.mxu0 0
          %3470 = vmatpush1.bf16.xpose.msra.mxu0 %v3452
          %3471 = vmatprep.subr.bf16.mxu0 0
          %3472 = vmatpush1.bf16.xpose.msra.mxu0 %v3455
          %3473 = vmatprep.subr.bf16.mxu0 0
          %3474 = vmatpush1.bf16.xpose.msra.mxu0 0
          %3475 = vmatprep.subr.bf16.mxu0 0
          %3476 = vmatpush1.bf16.xpose.msra.mxu0 0
          %3477 = vmatprep.subr.bf16.mxu0 0
          %3478 = vmatpush1.bf16.xpose.msra.mxu0 0
          %3479 = vmatprep.subr.bf16.mxu0 0
          %3480 = vmatpush1.bf16.xpose.msra.mxu0 0
          %3481 = vmatprep.subr.bf16.mxu0 0
          %3482 = vmatpush1.bf16.xpose.msra.mxu0 0
          %3483 = vmatprep.subr.bf16.mxu0 0
          %3484 = vmatpush1.bf16.xpose.msra.mxu0 0
          %3485 = vmatprep.subr.bf16.mxu0 0
          %3486 = vmatpush1.bf16.xpose.msra.mxu0 0
          %3487 = vmatprep.subr.bf16.mxu0 0
          %3488 = vmatpush1.bf16.xpose.msra.mxu0 0
          %3489 = vmatprep.mubr.bf16.mxu0 0
          %3490 = vmatmul.mubr.bf16.gmra.mrb[0].mxu0 %v3410
          %v3491 = vpop.f32.mrb[0].mxu0
          %v3492 = vadd.f32 %v2957, %v3491
          %v3493 = vpop.f32.mrb[0].mxu0
          %v3494 = vpop.f32.mrb[0].mxu0
          %v3495 = vadd.f32 %v2958, %v3494
          %v3496 = vpop.f32.mrb[0].mxu0
          %3497 = vmatprep.mubr.bf16.mxu0 0
          %3498 = vmatmul.mubr.bf16.gmra.mrb[0].mxu0 %v3413
          %v3499 = vpop.f32.mrb[0].mxu0
          %v3500 = vadd.f32 %v2959, %v3499
          %v3501 = vpop.f32.mrb[0].mxu0
          %v3502 = vpop.f32.mrb[0].mxu0
          %v3503 = vadd.f32 %v2960, %v3502
          %v3504 = vpop.f32.mrb[0].mxu0
          %3505 = vmatprep.mubr.bf16.mxu0 0
          %3506 = vmatmul.mubr.bf16.gmra.mrb[0].mxu0 %v3416
          %v3507 = vpop.f32.mrb[0].mxu0
          %v3508 = vadd.f32 %v2961, %v3507
          %v3509 = vpop.f32.mrb[0].mxu0
          %v3510 = vpop.f32.mrb[0].mxu0
          %v3511 = vadd.f32 %v2962, %v3510
          %v3512 = vpop.f32.mrb[0].mxu0
          %3513 = vmatprep.mubr.bf16.mxu0 0
          %3514 = vmatmul.mubr.bf16.gmra.mrb[0].mxu0 %v3419
          %v3515 = vpop.f32.mrb[0].mxu0
          %v3516 = vadd.f32 %v2963, %v3515
          %v3517 = vpop.f32.mrb[0].mxu0
          %v3518 = vpop.f32.mrb[0].mxu0
          %v3519 = vadd.f32 %v2964, %v3518
          %v3520 = vpop.f32.mrb[0].mxu0
          %3521 = vmatprep.mubr.bf16.mxu0 0
          %3522 = vmatmul.mubr.bf16.gmra.mrb[0].mxu0 %v3422
          %v3523 = vpop.f32.mrb[0].mxu0
          %v3524 = vadd.f32 %v2965, %v3523
          %v3525 = vpop.f32.mrb[0].mxu0
          %v3526 = vpop.f32.mrb[0].mxu0
          %v3527 = vadd.f32 %v2966, %v3526
          %v3528 = vpop.f32.mrb[0].mxu0
          %3529 = vmatprep.mubr.bf16.mxu0 0
          %3530 = vmatmul.mubr.bf16.gmra.mrb[0].mxu0 %v3425
          %v3531 = vpop.f32.mrb[0].mxu0
          %v3532 = vadd.f32 %v2967, %v3531
          %v3533 = vpop.f32.mrb[0].mxu0
          %v3534 = vpop.f32.mrb[0].mxu0
          %v3535 = vadd.f32 %v2968, %v3534
          %v3536 = vpop.f32.mrb[0].mxu0
          %3537 = vmatprep.mubr.bf16.mxu0 0
          %3538 = vmatmul.mubr.bf16.gmra.mrb[0].mxu0 %v3428
          %v3539 = vpop.f32.mrb[0].mxu0
          %v3540 = vadd.f32 %v2969, %v3539
          %v3541 = vpop.f32.mrb[0].mxu0
          %v3542 = vpop.f32.mrb[0].mxu0
          %v3543 = vadd.f32 %v2970, %v3542
          %v3544 = vpop.f32.mrb[0].mxu0
          %3545 = vmatprep.mubr.bf16.mxu0 0
          %3546 = vmatmul.mubr.bf16.gmra.mrb[0].mxu0 %v3431
          %v3547 = vpop.f32.mrb[0].mxu0
          %v3548 = vadd.f32 %v2971, %v3547
          %v3549 = vpop.f32.mrb[0].mxu0
          %v3550 = vpop.f32.mrb[0].mxu0
          %v3551 = vadd.f32 %v2972, %v3550
          %v3552 = vpop.f32.mrb[0].mxu0
          %3553 = vdwg.mxu0
          %v3554 = vld [vmem:[#allocation5] sm:$0xff]
          %v3555 = vld [vmem:[#allocation5 + $0x8] sm:$0xff]
          %v3556 = vld [vmem:[#allocation5 + $0x10] sm:$0xff]
          %v3557 = vld [vmem:[#allocation5 + $0x18] sm:$0xff]
          %v3558 = vld [vmem:[#allocation5 + $0x20] sm:$0xff]
          %v3559 = vld [vmem:[#allocation5 + $0x28] sm:$0xff]
          %v3560 = vld [vmem:[#allocation5 + $0x30] sm:$0xff]
          %v3561 = vld [vmem:[#allocation5 + $0x38] sm:$0xff]
          %v3562 = vld [vmem:[#allocation5 + $0x40] sm:$0xff]
          %v3563 = vld [vmem:[#allocation5 + $0x48] sm:$0xff]
          %v3564 = vld [vmem:[#allocation5 + $0x50] sm:$0xff]
          %v3565 = vld [vmem:[#allocation5 + $0x58] sm:$0xff]
          %v3566 = vld [vmem:[#allocation5 + $0x60] sm:$0xff]
          %v3567 = vld [vmem:[#allocation5 + $0x68] sm:$0xff]
          %v3568 = vld [vmem:[#allocation5 + $0x70] sm:$0xff]
          %v3569 = vld [vmem:[#allocation5 + $0x78] sm:$0xff]
          %v3570 = vld [vmem:[#allocation5 + $0x80] sm:$0xff]
          %v3571 = vld [vmem:[#allocation5 + $0x88] sm:$0xff]
          %v3572 = vld [vmem:[#allocation5 + $0x90] sm:$0xff]
          %v3573 = vld [vmem:[#allocation5 + $0x98] sm:$0xff]
          %v3574 = vld [vmem:[#allocation5 + $0xa0] sm:$0xff]
          %v3575 = vld [vmem:[#allocation5 + $0xa8] sm:$0xff]
          %v3576 = vld [vmem:[#allocation5 + $0xb0] sm:$0xff]
          %v3577 = vld [vmem:[#allocation5 + $0xb8] sm:$0xff]
          %v3578 = vld [vmem:[#allocation5 + $0xc0] sm:$0xff]
          %v3579 = vld [vmem:[#allocation5 + $0xc8] sm:$0xff]
          %v3580 = vld [vmem:[#allocation5 + $0xd0] sm:$0xff]
          %v3581 = vld [vmem:[#allocation5 + $0xd8] sm:$0xff]
          %v3582 = vld [vmem:[#allocation5 + $0xe0] sm:$0xff]
          %v3583 = vld [vmem:[#allocation5 + $0xe8] sm:$0xff]
          %v3584 = vld [vmem:[#allocation5 + $0xf0] sm:$0xff]
          %v3585 = vld [vmem:[#allocation5 + $0xf8] sm:$0xff]
          %v3586 = vld [vmem:[#allocation5 + $0x100] sm:$0xff]
          %v3587 = vld [vmem:[#allocation5 + $0x108] sm:$0xff]
          %v3588 = vld [vmem:[#allocation5 + $0x110] sm:$0xff]
          %v3589 = vld [vmem:[#allocation5 + $0x118] sm:$0xff]
          %v3590 = vld [vmem:[#allocation5 + $0x120] sm:$0xff]
          %v3591 = vld [vmem:[#allocation5 + $0x128] sm:$0xff]
          %v3592 = vld [vmem:[#allocation5 + $0x130] sm:$0xff]
          %v3593 = vld [vmem:[#allocation5 + $0x138] sm:$0xff]
          %v3594 = vld [vmem:[#allocation5 + $0x140] sm:$0xff]
          %v3595 = vld [vmem:[#allocation5 + $0x148] sm:$0xff]
          %v3596 = vld [vmem:[#allocation5 + $0x150] sm:$0xff]
          %v3597 = vld [vmem:[#allocation5 + $0x158] sm:$0xff]
          %v3598 = vld [vmem:[#allocation5 + $0x160] sm:$0xff]
          %v3599 = vld [vmem:[#allocation5 + $0x168] sm:$0xff]
          %v3600 = vld [vmem:[#allocation5 + $0x170] sm:$0xff]
          %v3601 = vld [vmem:[#allocation5 + $0x178] sm:$0xff]
          %v3602 = vld [vmem:[#allocation5 + $0x180] sm:$0xff]
          %v3603 = vld [vmem:[#allocation5 + $0x188] sm:$0xff]
          %v3604 = vld [vmem:[#allocation5 + $0x190] sm:$0xff]
          %v3605 = vld [vmem:[#allocation5 + $0x198] sm:$0xff]
          %v3606 = vld [vmem:[#allocation5 + $0x1a0] sm:$0xff]
          %v3607 = vld [vmem:[#allocation5 + $0x1a8] sm:$0xff]
          %v3608 = vld [vmem:[#allocation5 + $0x1b0] sm:$0xff]
          %v3609 = vld [vmem:[#allocation5 + $0x1b8] sm:$0xff]
          %v3610 = vld [vmem:[#allocation5 + $0x1c0] sm:$0xff]
          %v3611 = vld [vmem:[#allocation5 + $0x1c8] sm:$0xff]
          %v3612 = vld [vmem:[#allocation5 + $0x1d0] sm:$0xff]
          %v3613 = vld [vmem:[#allocation5 + $0x1d8] sm:$0xff]
          %v3614 = vld [vmem:[#allocation5 + $0x1e0] sm:$0xff]
          %v3615 = vld [vmem:[#allocation5 + $0x1e8] sm:$0xff]
          %v3616 = vld [vmem:[#allocation5 + $0x1f0] sm:$0xff]
          %v3617 = vld [vmem:[#allocation5 + $0x1f8] sm:$0xff]
          %3618 = vmax.xlane.f32.xlu0 %v3057
          %v3619 = vpop.xlane.xlu0 %3618
          %3620 = vmax.xlane.f32.xlu0 %v3060
          %v3621 = vpop.xlane.xlu0 %3620
          %3622 = vmax.xlane.f32.xlu0 %v3065
          %v3623 = vpop.xlane.xlu0 %3622
          %3624 = vmax.xlane.f32.xlu0 %v3068
          %v3625 = vpop.xlane.xlu0 %3624
          %3626 = vmax.xlane.f32.xlu0 %v3073
          %v3627 = vpop.xlane.xlu0 %3626
          %3628 = vmax.xlane.f32.xlu0 %v3076
          %v3629 = vpop.xlane.xlu0 %3628
          %3630 = vmax.xlane.f32.xlu0 %v3081
          %v3631 = vpop.xlane.xlu0 %3630
          %3632 = vmax.xlane.f32.xlu0 %v3084
          %v3633 = vpop.xlane.xlu0 %3632
          %3634 = vmax.xlane.f32.xlu0 %v3089
          %v3635 = vpop.xlane.xlu0 %3634
          %3636 = vmax.xlane.f32.xlu0 %v3092
          %v3637 = vpop.xlane.xlu0 %3636
          %3638 = vmax.xlane.f32.xlu0 %v3097
          %v3639 = vpop.xlane.xlu0 %3638
          %3640 = vmax.xlane.f32.xlu0 %v3100
          %v3641 = vpop.xlane.xlu0 %3640
          %3642 = vmax.xlane.f32.xlu0 %v3105
          %v3643 = vpop.xlane.xlu0 %3642
          %3644 = vmax.xlane.f32.xlu0 %v3108
          %v3645 = vpop.xlane.xlu0 %3644
          %3646 = vmax.xlane.f32.xlu0 %v3113
          %v3647 = vpop.xlane.xlu0 %3646
          %3648 = vmax.xlane.f32.xlu0 %v3116
          %v3649 = vpop.xlane.xlu0 %3648
          %3650 = vmax.xlane.f32.xlu0 %v3202
          %v3651 = vpop.xlane.xlu0 %3650
          %3652 = vmax.xlane.f32.xlu0 %v3205
          %v3653 = vpop.xlane.xlu0 %3652
          %3654 = vmax.xlane.f32.xlu0 %v3210
          %v3655 = vpop.xlane.xlu0 %3654
          %3656 = vmax.xlane.f32.xlu0 %v3213
          %v3657 = vpop.xlane.xlu0 %3656
          %3658 = vmax.xlane.f32.xlu0 %v3218
          %v3659 = vpop.xlane.xlu0 %3658
          %3660 = vmax.xlane.f32.xlu0 %v3221
          %v3661 = vpop.xlane.xlu0 %3660
          %3662 = vmax.xlane.f32.xlu0 %v3226
          %v3663 = vpop.xlane.xlu0 %3662
          %3664 = vmax.xlane.f32.xlu0 %v3229
          %v3665 = vpop.xlane.xlu0 %3664
          %3666 = vmax.xlane.f32.xlu0 %v3234
          %v3667 = vpop.xlane.xlu0 %3666
          %3668 = vmax.xlane.f32.xlu0 %v3237
          %v3669 = vpop.xlane.xlu0 %3668
          %3670 = vmax.xlane.f32.xlu0 %v3242
          %v3671 = vpop.xlane.xlu0 %3670
          %3672 = vmax.xlane.f32.xlu0 %v3245
          %v3673 = vpop.xlane.xlu0 %3672
          %3674 = vmax.xlane.f32.xlu0 %v3250
          %v3675 = vpop.xlane.xlu0 %3674
          %3676 = vmax.xlane.f32.xlu0 %v3253
          %v3677 = vpop.xlane.xlu0 %3676
          %3678 = vmax.xlane.f32.xlu0 %v3258
          %v3679 = vpop.xlane.xlu0 %3678
          %3680 = vmax.xlane.f32.xlu0 %v3261
          %v3681 = vpop.xlane.xlu0 %3680
          %3682 = vmax.xlane.f32.xlu0 %v3347
          %v3683 = vpop.xlane.xlu0 %3682
          %3684 = vmax.xlane.f32.xlu0 %v3350
          %v3685 = vpop.xlane.xlu0 %3684
          %3686 = vmax.xlane.f32.xlu0 %v3355
          %v3687 = vpop.xlane.xlu0 %3686
          %3688 = vmax.xlane.f32.xlu0 %v3358
          %v3689 = vpop.xlane.xlu0 %3688
          %3690 = vmax.xlane.f32.xlu0 %v3363
          %v3691 = vpop.xlane.xlu0 %3690
          %3692 = vmax.xlane.f32.xlu0 %v3366
          %v3693 = vpop.xlane.xlu0 %3692
          %3694 = vmax.xlane.f32.xlu0 %v3371
          %v3695 = vpop.xlane.xlu0 %3694
          %3696 = vmax.xlane.f32.xlu0 %v3374
          %v3697 = vpop.xlane.xlu0 %3696
          %3698 = vmax.xlane.f32.xlu0 %v3379
          %v3699 = vpop.xlane.xlu0 %3698
          %3700 = vmax.xlane.f32.xlu0 %v3382
          %v3701 = vpop.xlane.xlu0 %3700
          %3702 = vmax.xlane.f32.xlu0 %v3387
          %v3703 = vpop.xlane.xlu0 %3702
          %3704 = vmax.xlane.f32.xlu0 %v3390
          %v3705 = vpop.xlane.xlu0 %3704
          %3706 = vmax.xlane.f32.xlu0 %v3395
          %v3707 = vpop.xlane.xlu0 %3706
          %3708 = vmax.xlane.f32.xlu0 %v3398
          %v3709 = vpop.xlane.xlu0 %3708
          %3710 = vmax.xlane.f32.xlu0 %v3403
          %v3711 = vpop.xlane.xlu0 %3710
          %3712 = vmax.xlane.f32.xlu0 %v3406
          %v3713 = vpop.xlane.xlu0 %3712
          %3714 = vmax.xlane.f32.xlu0 %v3492
          %v3715 = vpop.xlane.xlu0 %3714
          %3716 = vmax.xlane.f32.xlu0 %v3495
          %v3717 = vpop.xlane.xlu0 %3716
          %3718 = vmax.xlane.f32.xlu0 %v3500
          %v3719 = vpop.xlane.xlu0 %3718
          %3720 = vmax.xlane.f32.xlu0 %v3503
          %v3721 = vpop.xlane.xlu0 %3720
          %3722 = vmax.xlane.f32.xlu0 %v3508
          %v3723 = vpop.xlane.xlu0 %3722
          %3724 = vmax.xlane.f32.xlu0 %v3511
          %v3725 = vpop.xlane.xlu0 %3724
          %3726 = vmax.xlane.f32.xlu0 %v3516
          %v3727 = vpop.xlane.xlu0 %3726
          %3728 = vmax.xlane.f32.xlu0 %v3519
          %v3729 = vpop.xlane.xlu0 %3728
          %3730 = vmax.xlane.f32.xlu0 %v3524
          %v3731 = vpop.xlane.xlu0 %3730
          %3732 = vmax.xlane.f32.xlu0 %v3527
          %v3733 = vpop.xlane.xlu0 %3732
          %3734 = vmax.xlane.f32.xlu0 %v3532
          %v3735 = vpop.xlane.xlu0 %3734
          %3736 = vmax.xlane.f32.xlu0 %v3535
          %v3737 = vpop.xlane.xlu0 %3736
          %3738 = vmax.xlane.f32.xlu0 %v3540
          %v3739 = vpop.xlane.xlu0 %3738
          %3740 = vmax.xlane.f32.xlu0 %v3543
          %v3741 = vpop.xlane.xlu0 %3740
          %3742 = vmax.xlane.f32.xlu0 %v3548
          %v3743 = vpop.xlane.xlu0 %3742
          %3744 = vmax.xlane.f32.xlu0 %v3551
          %v3745 = vpop.xlane.xlu0 %3744
          %v3746 = vmax.f32 %v3554, %v3619
          %v3747 = vmax.f32 %v3555, %v3621
          %v3748 = vmax.f32 %v3556, %v3623
          %v3749 = vmax.f32 %v3557, %v3625
          %v3750 = vmax.f32 %v3558, %v3627
          %v3751 = vmax.f32 %v3559, %v3629
          %v3752 = vmax.f32 %v3560, %v3631
          %v3753 = vmax.f32 %v3561, %v3633
          %v3754 = vmax.f32 %v3562, %v3635
          %v3755 = vmax.f32 %v3563, %v3637
          %v3756 = vmax.f32 %v3564, %v3639
          %v3757 = vmax.f32 %v3565, %v3641
          %v3758 = vmax.f32 %v3566, %v3643
          %v3759 = vmax.f32 %v3567, %v3645
          %v3760 = vmax.f32 %v3568, %v3647
          %v3761 = vmax.f32 %v3569, %v3649
          %v3762 = vmax.f32 %v3570, %v3651
          %v3763 = vmax.f32 %v3571, %v3653
          %v3764 = vmax.f32 %v3572, %v3655
          %v3765 = vmax.f32 %v3573, %v3657
          %v3766 = vmax.f32 %v3574, %v3659
          %v3767 = vmax.f32 %v3575, %v3661
          %v3768 = vmax.f32 %v3576, %v3663
          %v3769 = vmax.f32 %v3577, %v3665
          %v3770 = vmax.f32 %v3578, %v3667
          %v3771 = vmax.f32 %v3579, %v3669
          %v3772 = vmax.f32 %v3580, %v3671
          %v3773 = vmax.f32 %v3581, %v3673
          %v3774 = vmax.f32 %v3582, %v3675
          %v3775 = vmax.f32 %v3583, %v3677
          %v3776 = vmax.f32 %v3584, %v3679
          %v3777 = vmax.f32 %v3585, %v3681
          %v3778 = vmax.f32 %v3586, %v3683
          %v3779 = vmax.f32 %v3587, %v3685
          %v3780 = vmax.f32 %v3588, %v3687
          %v3781 = vmax.f32 %v3589, %v3689
          %v3782 = vmax.f32 %v3590, %v3691
          %v3783 = vmax.f32 %v3591, %v3693
          %v3784 = vmax.f32 %v3592, %v3695
          %v3785 = vmax.f32 %v3593, %v3697
          %v3786 = vmax.f32 %v3594, %v3699
          %v3787 = vmax.f32 %v3595, %v3701
          %v3788 = vmax.f32 %v3596, %v3703
          %v3789 = vmax.f32 %v3597, %v3705
          %v3790 = vmax.f32 %v3598, %v3707
          %v3791 = vmax.f32 %v3599, %v3709
          %v3792 = vmax.f32 %v3600, %v3711
          %v3793 = vmax.f32 %v3601, %v3713
          %v3794 = vmax.f32 %v3602, %v3715
          %v3795 = vmax.f32 %v3603, %v3717
          %v3796 = vmax.f32 %v3604, %v3719
          %v3797 = vmax.f32 %v3605, %v3721
          %v3798 = vmax.f32 %v3606, %v3723
          %v3799 = vmax.f32 %v3607, %v3725
          %v3800 = vmax.f32 %v3608, %v3727
          %v3801 = vmax.f32 %v3609, %v3729
          %v3802 = vmax.f32 %v3610, %v3731
          %v3803 = vmax.f32 %v3611, %v3733
          %v3804 = vmax.f32 %v3612, %v3735
          %v3805 = vmax.f32 %v3613, %v3737
          %v3806 = vmax.f32 %v3614, %v3739
          %v3807 = vmax.f32 %v3615, %v3741
          %v3808 = vmax.f32 %v3616, %v3743
          %v3809 = vmax.f32 %v3617, %v3745
          %v3810 = vsub.f32 %v3554, %v3746
          %v3811 = vsub.f32 %v3555, %v3747
          %v3812 = vsub.f32 %v3556, %v3748
          %v3813 = vsub.f32 %v3557, %v3749
          %v3814 = vsub.f32 %v3558, %v3750
          %v3815 = vsub.f32 %v3559, %v3751
          %v3816 = vsub.f32 %v3560, %v3752
          %v3817 = vsub.f32 %v3561, %v3753
          %v3818 = vsub.f32 %v3562, %v3754
          %v3819 = vsub.f32 %v3563, %v3755
          %v3820 = vsub.f32 %v3564, %v3756
          %v3821 = vsub.f32 %v3565, %v3757
          %v3822 = vsub.f32 %v3566, %v3758
          %v3823 = vsub.f32 %v3567, %v3759
          %v3824 = vsub.f32 %v3568, %v3760
          %v3825 = vsub.f32 %v3569, %v3761
          %v3826 = vsub.f32 %v3570, %v3762
          %v3827 = vsub.f32 %v3571, %v3763
          %v3828 = vsub.f32 %v3572, %v3764
          %v3829 = vsub.f32 %v3573, %v3765
          %v3830 = vsub.f32 %v3574, %v3766
          %v3831 = vsub.f32 %v3575, %v3767
          %v3832 = vsub.f32 %v3576, %v3768
          %v3833 = vsub.f32 %v3577, %v3769
          %v3834 = vsub.f32 %v3578, %v3770
          %v3835 = vsub.f32 %v3579, %v3771
          %v3836 = vsub.f32 %v3580, %v3772
          %v3837 = vsub.f32 %v3581, %v3773
          %v3838 = vsub.f32 %v3582, %v3774
          %v3839 = vsub.f32 %v3583, %v3775
          %v3840 = vsub.f32 %v3584, %v3776
          %v3841 = vsub.f32 %v3585, %v3777
          %v3842 = vsub.f32 %v3586, %v3778
          %v3843 = vsub.f32 %v3587, %v3779
          %v3844 = vsub.f32 %v3588, %v3780
          %v3845 = vsub.f32 %v3589, %v3781
          %v3846 = vsub.f32 %v3590, %v3782
          %v3847 = vsub.f32 %v3591, %v3783
          %v3848 = vsub.f32 %v3592, %v3784
          %v3849 = vsub.f32 %v3593, %v3785
          %v3850 = vsub.f32 %v3594, %v3786
          %v3851 = vsub.f32 %v3595, %v3787
          %v3852 = vsub.f32 %v3596, %v3788
          %v3853 = vsub.f32 %v3597, %v3789
          %v3854 = vsub.f32 %v3598, %v3790
          %v3855 = vsub.f32 %v3599, %v3791
          %v3856 = vsub.f32 %v3600, %v3792
          %v3857 = vsub.f32 %v3601, %v3793
          %v3858 = vsub.f32 %v3602, %v3794
          %v3859 = vsub.f32 %v3603, %v3795
          %v3860 = vsub.f32 %v3604, %v3796
          %v3861 = vsub.f32 %v3605, %v3797
          %v3862 = vsub.f32 %v3606, %v3798
          %v3863 = vsub.f32 %v3607, %v3799
          %v3864 = vsub.f32 %v3608, %v3800
          %v3865 = vsub.f32 %v3609, %v3801
          %v3866 = vsub.f32 %v3610, %v3802
          %v3867 = vsub.f32 %v3611, %v3803
          %v3868 = vsub.f32 %v3612, %v3804
          %v3869 = vsub.f32 %v3613, %v3805
          %v3870 = vsub.f32 %v3614, %v3806
          %v3871 = vsub.f32 %v3615, %v3807
          %v3872 = vsub.f32 %v3616, %v3808
          %v3873 = vsub.f32 %v3617, %v3809
          %v3874 = vmul.f32 %v3810, 1.442695
          %v3875 = vpow.pop %v3874
          %v3876 = vmul.f32 %v3811, 1.442695
          %v3877 = vpow.pop %v3876
          %v3878 = vmul.f32 %v3812, 1.442695
          %v3879 = vpow.pop %v3878
          %v3880 = vmul.f32 %v3813, 1.442695
          %v3881 = vpow.pop %v3880
          %v3882 = vmul.f32 %v3814, 1.442695
          %v3883 = vpow.pop %v3882
          %v3884 = vmul.f32 %v3815, 1.442695
          %v3885 = vpow.pop %v3884
          %v3886 = vmul.f32 %v3816, 1.442695
          %v3887 = vpow.pop %v3886
          %v3888 = vmul.f32 %v3817, 1.442695
          %v3889 = vpow.pop %v3888
          %v3890 = vmul.f32 %v3818, 1.442695
          %v3891 = vpow.pop %v3890
          %v3892 = vmul.f32 %v3819, 1.442695
          %v3893 = vpow.pop %v3892
          %v3894 = vmul.f32 %v3820, 1.442695
          %v3895 = vpow.pop %v3894
          %v3896 = vmul.f32 %v3821, 1.442695
          %v3897 = vpow.pop %v3896
          %v3898 = vmul.f32 %v3822, 1.442695
          %v3899 = vpow.pop %v3898
          %v3900 = vmul.f32 %v3823, 1.442695
          %v3901 = vpow.pop %v3900
          %v3902 = vmul.f32 %v3824, 1.442695
          %v3903 = vpow.pop %v3902
          %v3904 = vmul.f32 %v3825, 1.442695
          %v3905 = vpow.pop %v3904
          %v3906 = vmul.f32 %v3826, 1.442695
          %v3907 = vpow.pop %v3906
          %v3908 = vmul.f32 %v3827, 1.442695
          %v3909 = vpow.pop %v3908
          %v3910 = vmul.f32 %v3828, 1.442695
          %v3911 = vpow.pop %v3910
          %v3912 = vmul.f32 %v3829, 1.442695
          %v3913 = vpow.pop %v3912
          %v3914 = vmul.f32 %v3830, 1.442695
          %v3915 = vpow.pop %v3914
          %v3916 = vmul.f32 %v3831, 1.442695
          %v3917 = vpow.pop %v3916
          %v3918 = vmul.f32 %v3832, 1.442695
          %v3919 = vpow.pop %v3918
          %v3920 = vmul.f32 %v3833, 1.442695
          %v3921 = vpow.pop %v3920
          %v3922 = vmul.f32 %v3834, 1.442695
          %v3923 = vpow.pop %v3922
          %v3924 = vmul.f32 %v3835, 1.442695
          %v3925 = vpow.pop %v3924
          %v3926 = vmul.f32 %v3836, 1.442695
          %v3927 = vpow.pop %v3926
          %v3928 = vmul.f32 %v3837, 1.442695
          %v3929 = vpow.pop %v3928
          %v3930 = vmul.f32 %v3838, 1.442695
          %v3931 = vpow.pop %v3930
          %v3932 = vmul.f32 %v3839, 1.442695
          %v3933 = vpow.pop %v3932
          %v3934 = vmul.f32 %v3840, 1.442695
          %v3935 = vpow.pop %v3934
          %v3936 = vmul.f32 %v3841, 1.442695
          %v3937 = vpow.pop %v3936
          %v3938 = vmul.f32 %v3842, 1.442695
          %v3939 = vpow.pop %v3938
          %v3940 = vmul.f32 %v3843, 1.442695
          %v3941 = vpow.pop %v3940
          %v3942 = vmul.f32 %v3844, 1.442695
          %v3943 = vpow.pop %v3942
          %v3944 = vmul.f32 %v3845, 1.442695
          %v3945 = vpow.pop %v3944
          %v3946 = vmul.f32 %v3846, 1.442695
          %v3947 = vpow.pop %v3946
          %v3948 = vmul.f32 %v3847, 1.442695
          %v3949 = vpow.pop %v3948
          %v3950 = vmul.f32 %v3848, 1.442695
          %v3951 = vpow.pop %v3950
          %v3952 = vmul.f32 %v3849, 1.442695
          %v3953 = vpow.pop %v3952
          %v3954 = vmul.f32 %v3850, 1.442695
          %v3955 = vpow.pop %v3954
          %v3956 = vmul.f32 %v3851, 1.442695
          %v3957 = vpow.pop %v3956
          %v3958 = vmul.f32 %v3852, 1.442695
          %v3959 = vpow.pop %v3958
          %v3960 = vmul.f32 %v3853, 1.442695
          %v3961 = vpow.pop %v3960
          %v3962 = vmul.f32 %v3854, 1.442695
          %v3963 = vpow.pop %v3962
          %v3964 = vmul.f32 %v3855, 1.442695
          %v3965 = vpow.pop %v3964
          %v3966 = vmul.f32 %v3856, 1.442695
          %v3967 = vpow.pop %v3966
          %v3968 = vmul.f32 %v3857, 1.442695
          %v3969 = vpow.pop %v3968
          %v3970 = vmul.f32 %v3858, 1.442695
          %v3971 = vpow.pop %v3970
          %v3972 = vmul.f32 %v3859, 1.442695
          %v3973 = vpow.pop %v3972
          %v3974 = vmul.f32 %v3860, 1.442695
          %v3975 = vpow.pop %v3974
          %v3976 = vmul.f32 %v3861, 1.442695
          %v3977 = vpow.pop %v3976
          %v3978 = vmul.f32 %v3862, 1.442695
          %v3979 = vpow.pop %v3978
          %v3980 = vmul.f32 %v3863, 1.442695
          %v3981 = vpow.pop %v3980
          %v3982 = vmul.f32 %v3864, 1.442695
          %v3983 = vpow.pop %v3982
          %v3984 = vmul.f32 %v3865, 1.442695
          %v3985 = vpow.pop %v3984
          %v3986 = vmul.f32 %v3866, 1.442695
          %v3987 = vpow.pop %v3986
          %v3988 = vmul.f32 %v3867, 1.442695
          %v3989 = vpow.pop %v3988
          %v3990 = vmul.f32 %v3868, 1.442695
          %v3991 = vpow.pop %v3990
          %v3992 = vmul.f32 %v3869, 1.442695
          %v3993 = vpow.pop %v3992
          %v3994 = vmul.f32 %v3870, 1.442695
          %v3995 = vpow.pop %v3994
          %v3996 = vmul.f32 %v3871, 1.442695
          %v3997 = vpow.pop %v3996
          %v3998 = vmul.f32 %v3872, 1.442695
          %v3999 = vpow.pop %v3998
          %v4000 = vmul.f32 %v3873, 1.442695
          %v4001 = vpow.pop %v4000
          %4003 = vset.pattern.permute.xlu0 0
          %4004 = vperm.xlu0 %4003, %v3746
          %v4005 = vpop.permute.xlu0 %4004
          %4008 = vset.pattern.permute.xlu0 0
          %4009 = vperm.xlu0 %4008, %v3747
          %v4010 = vpop.permute.xlu0 %4009
          %4013 = vset.pattern.permute.xlu0 0
          %4014 = vperm.xlu0 %4013, %v3748
          %v4015 = vpop.permute.xlu0 %4014
          %4018 = vset.pattern.permute.xlu0 0
          %4019 = vperm.xlu0 %4018, %v3749
          %v4020 = vpop.permute.xlu0 %4019
          %4023 = vset.pattern.permute.xlu0 0
          %4024 = vperm.xlu0 %4023, %v3750
          %v4025 = vpop.permute.xlu0 %4024
          %4028 = vset.pattern.permute.xlu0 0
          %4029 = vperm.xlu0 %4028, %v3751
          %v4030 = vpop.permute.xlu0 %4029
          %4033 = vset.pattern.permute.xlu0 0
          %4034 = vperm.xlu0 %4033, %v3752
          %v4035 = vpop.permute.xlu0 %4034
          %4038 = vset.pattern.permute.xlu0 0
          %4039 = vperm.xlu0 %4038, %v3753
          %v4040 = vpop.permute.xlu0 %4039
          %4043 = vset.pattern.permute.xlu0 0
          %4044 = vperm.xlu0 %4043, %v3754
          %v4045 = vpop.permute.xlu0 %4044
          %4048 = vset.pattern.permute.xlu0 0
          %4049 = vperm.xlu0 %4048, %v3755
          %v4050 = vpop.permute.xlu0 %4049
          %4053 = vset.pattern.permute.xlu0 0
          %4054 = vperm.xlu0 %4053, %v3756
          %v4055 = vpop.permute.xlu0 %4054
          %4058 = vset.pattern.permute.xlu0 0
          %4059 = vperm.xlu0 %4058, %v3757
          %v4060 = vpop.permute.xlu0 %4059
          %4063 = vset.pattern.permute.xlu0 0
          %4064 = vperm.xlu0 %4063, %v3758
          %v4065 = vpop.permute.xlu0 %4064
          %4068 = vset.pattern.permute.xlu0 0
          %4069 = vperm.xlu0 %4068, %v3759
          %v4070 = vpop.permute.xlu0 %4069
          %4073 = vset.pattern.permute.xlu0 0
          %4074 = vperm.xlu0 %4073, %v3760
          %v4075 = vpop.permute.xlu0 %4074
          %4078 = vset.pattern.permute.xlu0 0
          %4079 = vperm.xlu0 %4078, %v3761
          %v4080 = vpop.permute.xlu0 %4079
          %4083 = vset.pattern.permute.xlu0 0
          %4084 = vperm.xlu0 %4083, %v3762
          %v4085 = vpop.permute.xlu0 %4084
          %4088 = vset.pattern.permute.xlu0 0
          %4089 = vperm.xlu0 %4088, %v3763
          %v4090 = vpop.permute.xlu0 %4089
          %4093 = vset.pattern.permute.xlu0 0
          %4094 = vperm.xlu0 %4093, %v3764
          %v4095 = vpop.permute.xlu0 %4094
          %4098 = vset.pattern.permute.xlu0 0
          %4099 = vperm.xlu0 %4098, %v3765
          %v4100 = vpop.permute.xlu0 %4099
          %4103 = vset.pattern.permute.xlu0 0
          %4104 = vperm.xlu0 %4103, %v3766
          %v4105 = vpop.permute.xlu0 %4104
          %4108 = vset.pattern.permute.xlu0 0
          %4109 = vperm.xlu0 %4108, %v3767
          %v4110 = vpop.permute.xlu0 %4109
          %4113 = vset.pattern.permute.xlu0 0
          %4114 = vperm.xlu0 %4113, %v3768
          %v4115 = vpop.permute.xlu0 %4114
          %4118 = vset.pattern.permute.xlu0 0
          %4119 = vperm.xlu0 %4118, %v3769
          %v4120 = vpop.permute.xlu0 %4119
          %4123 = vset.pattern.permute.xlu0 0
          %4124 = vperm.xlu0 %4123, %v3770
          %v4125 = vpop.permute.xlu0 %4124
          %4128 = vset.pattern.permute.xlu0 0
          %4129 = vperm.xlu0 %4128, %v3771
          %v4130 = vpop.permute.xlu0 %4129
          %4133 = vset.pattern.permute.xlu0 0
          %4134 = vperm.xlu0 %4133, %v3772
          %v4135 = vpop.permute.xlu0 %4134
          %4138 = vset.pattern.permute.xlu0 0
          %4139 = vperm.xlu0 %4138, %v3773
          %v4140 = vpop.permute.xlu0 %4139
          %4143 = vset.pattern.permute.xlu0 0
          %4144 = vperm.xlu0 %4143, %v3774
          %v4145 = vpop.permute.xlu0 %4144
          %4148 = vset.pattern.permute.xlu0 0
          %4149 = vperm.xlu0 %4148, %v3775
          %v4150 = vpop.permute.xlu0 %4149
          %4153 = vset.pattern.permute.xlu0 0
          %4154 = vperm.xlu0 %4153, %v3776
          %v4155 = vpop.permute.xlu0 %4154
          %4158 = vset.pattern.permute.xlu0 0
          %4159 = vperm.xlu0 %4158, %v3777
          %v4160 = vpop.permute.xlu0 %4159
          %4163 = vset.pattern.permute.xlu0 0
          %4164 = vperm.xlu0 %4163, %v3778
          %v4165 = vpop.permute.xlu0 %4164
          %4168 = vset.pattern.permute.xlu0 0
          %4169 = vperm.xlu0 %4168, %v3779
          %v4170 = vpop.permute.xlu0 %4169
          %4173 = vset.pattern.permute.xlu0 0
          %4174 = vperm.xlu0 %4173, %v3780
          %v4175 = vpop.permute.xlu0 %4174
          %4178 = vset.pattern.permute.xlu0 0
          %4179 = vperm.xlu0 %4178, %v3781
          %v4180 = vpop.permute.xlu0 %4179
          %4183 = vset.pattern.permute.xlu0 0
          %4184 = vperm.xlu0 %4183, %v3782
          %v4185 = vpop.permute.xlu0 %4184
          %4188 = vset.pattern.permute.xlu0 0
          %4189 = vperm.xlu0 %4188, %v3783
          %v4190 = vpop.permute.xlu0 %4189
          %4193 = vset.pattern.permute.xlu0 0
          %4194 = vperm.xlu0 %4193, %v3784
          %v4195 = vpop.permute.xlu0 %4194
          %4198 = vset.pattern.permute.xlu0 0
          %4199 = vperm.xlu0 %4198, %v3785
          %v4200 = vpop.permute.xlu0 %4199
          %4203 = vset.pattern.permute.xlu0 0
          %4204 = vperm.xlu0 %4203, %v3786
          %v4205 = vpop.permute.xlu0 %4204
          %4208 = vset.pattern.permute.xlu0 0
          %4209 = vperm.xlu0 %4208, %v3787
          %v4210 = vpop.permute.xlu0 %4209
          %4213 = vset.pattern.permute.xlu0 0
          %4214 = vperm.xlu0 %4213, %v3788
          %v4215 = vpop.permute.xlu0 %4214
          %4218 = vset.pattern.permute.xlu0 0
          %4219 = vperm.xlu0 %4218, %v3789
          %v4220 = vpop.permute.xlu0 %4219
          %4223 = vset.pattern.permute.xlu0 0
          %4224 = vperm.xlu0 %4223, %v3790
          %v4225 = vpop.permute.xlu0 %4224
          %4228 = vset.pattern.permute.xlu0 0
          %4229 = vperm.xlu0 %4228, %v3791
          %v4230 = vpop.permute.xlu0 %4229
          %4233 = vset.pattern.permute.xlu0 0
          %4234 = vperm.xlu0 %4233, %v3792
          %v4235 = vpop.permute.xlu0 %4234
          %4238 = vset.pattern.permute.xlu0 0
          %4239 = vperm.xlu0 %4238, %v3793
          %v4240 = vpop.permute.xlu0 %4239
          %4243 = vset.pattern.permute.xlu0 0
          %4244 = vperm.xlu0 %4243, %v3794
          %v4245 = vpop.permute.xlu0 %4244
          %4248 = vset.pattern.permute.xlu0 0
          %4249 = vperm.xlu0 %4248, %v3795
          %v4250 = vpop.permute.xlu0 %4249
          %4253 = vset.pattern.permute.xlu0 0
          %4254 = vperm.xlu0 %4253, %v3796
          %v4255 = vpop.permute.xlu0 %4254
          %4258 = vset.pattern.permute.xlu0 0
          %4259 = vperm.xlu0 %4258, %v3797
          %v4260 = vpop.permute.xlu0 %4259
          %4263 = vset.pattern.permute.xlu0 0
          %4264 = vperm.xlu0 %4263, %v3798
          %v4265 = vpop.permute.xlu0 %4264
          %4268 = vset.pattern.permute.xlu0 0
          %4269 = vperm.xlu0 %4268, %v3799
          %v4270 = vpop.permute.xlu0 %4269
          %4273 = vset.pattern.permute.xlu0 0
          %4274 = vperm.xlu0 %4273, %v3800
          %v4275 = vpop.permute.xlu0 %4274
          %4278 = vset.pattern.permute.xlu0 0
          %4279 = vperm.xlu0 %4278, %v3801
          %v4280 = vpop.permute.xlu0 %4279
          %4283 = vset.pattern.permute.xlu0 0
          %4284 = vperm.xlu0 %4283, %v3802
          %v4285 = vpop.permute.xlu0 %4284
          %4288 = vset.pattern.permute.xlu0 0
          %4289 = vperm.xlu0 %4288, %v3803
          %v4290 = vpop.permute.xlu0 %4289
          %4293 = vset.pattern.permute.xlu0 0
          %4294 = vperm.xlu0 %4293, %v3804
          %v4295 = vpop.permute.xlu0 %4294
          %4298 = vset.pattern.permute.xlu0 0
          %4299 = vperm.xlu0 %4298, %v3805
          %v4300 = vpop.permute.xlu0 %4299
          %4303 = vset.pattern.permute.xlu0 0
          %4304 = vperm.xlu0 %4303, %v3806
          %v4305 = vpop.permute.xlu0 %4304
          %4308 = vset.pattern.permute.xlu0 0
          %4309 = vperm.xlu0 %4308, %v3807
          %v4310 = vpop.permute.xlu0 %4309
          %4313 = vset.pattern.permute.xlu0 0
          %4314 = vperm.xlu0 %4313, %v3808
          %v4315 = vpop.permute.xlu0 %4314
          %4318 = vset.pattern.permute.xlu0 0
          %4319 = vperm.xlu0 %4318, %v3809
          %v4320 = vpop.permute.xlu0 %4319
          %v4322 = vsub.f32 %v3057, %v4005
          %v4323 = vsub.f32 %v3060, %v4010
          %v4324 = vsub.f32 %v3065, %v4015
          %v4325 = vsub.f32 %v3068, %v4020
          %v4326 = vsub.f32 %v3073, %v4025
          %v4327 = vsub.f32 %v3076, %v4030
          %v4328 = vsub.f32 %v3081, %v4035
          %v4329 = vsub.f32 %v3084, %v4040
          %v4330 = vsub.f32 %v3089, %v4045
          %v4331 = vsub.f32 %v3092, %v4050
          %v4332 = vsub.f32 %v3097, %v4055
          %v4333 = vsub.f32 %v3100, %v4060
          %v4334 = vsub.f32 %v3105, %v4065
          %v4335 = vsub.f32 %v3108, %v4070
          %v4336 = vsub.f32 %v3113, %v4075
          %v4337 = vsub.f32 %v3116, %v4080
          %v4338 = vsub.f32 %v3202, %v4085
          %v4339 = vsub.f32 %v3205, %v4090
          %v4340 = vsub.f32 %v3210, %v4095
          %v4341 = vsub.f32 %v3213, %v4100
          %v4342 = vsub.f32 %v3218, %v4105
          %v4343 = vsub.f32 %v3221, %v4110
          %v4344 = vsub.f32 %v3226, %v4115
          %v4345 = vsub.f32 %v3229, %v4120
          %v4346 = vsub.f32 %v3234, %v4125
          %v4347 = vsub.f32 %v3237, %v4130
          %v4348 = vsub.f32 %v3242, %v4135
          %v4349 = vsub.f32 %v3245, %v4140
          %v4350 = vsub.f32 %v3250, %v4145
          %v4351 = vsub.f32 %v3253, %v4150
          %v4352 = vsub.f32 %v3258, %v4155
          %v4353 = vsub.f32 %v3261, %v4160
          %v4354 = vsub.f32 %v3347, %v4165
          %v4355 = vsub.f32 %v3350, %v4170
          %v4356 = vsub.f32 %v3355, %v4175
          %v4357 = vsub.f32 %v3358, %v4180
          %v4358 = vsub.f32 %v3363, %v4185
          %v4359 = vsub.f32 %v3366, %v4190
          %v4360 = vsub.f32 %v3371, %v4195
          %v4361 = vsub.f32 %v3374, %v4200
          %v4362 = vsub.f32 %v3379, %v4205
          %v4363 = vsub.f32 %v3382, %v4210
          %v4364 = vsub.f32 %v3387, %v4215
          %v4365 = vsub.f32 %v3390, %v4220
          %v4366 = vsub.f32 %v3395, %v4225
          %v4367 = vsub.f32 %v3398, %v4230
          %v4368 = vsub.f32 %v3403, %v4235
          %v4369 = vsub.f32 %v3406, %v4240
          %v4370 = vsub.f32 %v3492, %v4245
          %v4371 = vsub.f32 %v3495, %v4250
          %v4372 = vsub.f32 %v3500, %v4255
          %v4373 = vsub.f32 %v3503, %v4260
          %v4374 = vsub.f32 %v3508, %v4265
          %v4375 = vsub.f32 %v3511, %v4270
          %v4376 = vsub.f32 %v3516, %v4275
          %v4377 = vsub.f32 %v3519, %v4280
          %v4378 = vsub.f32 %v3524, %v4285
          %v4379 = vsub.f32 %v3527, %v4290
          %v4380 = vsub.f32 %v3532, %v4295
          %v4381 = vsub.f32 %v3535, %v4300
          %v4382 = vsub.f32 %v3540, %v4305
          %v4383 = vsub.f32 %v3543, %v4310
          %v4384 = vsub.f32 %v3548, %v4315
          %v4385 = vsub.f32 %v3551, %v4320
          %v4386 = vmul.f32 %v4322, 1.442695
          %v4387 = vpow.pop %v4386
          %v4388 = vmul.f32 %v4323, 1.442695
          %v4389 = vpow.pop %v4388
          %v4390 = vmul.f32 %v4324, 1.442695
          %v4391 = vpow.pop %v4390
          %v4392 = vmul.f32 %v4325, 1.442695
          %v4393 = vpow.pop %v4392
          %v4394 = vmul.f32 %v4326, 1.442695
          %v4395 = vpow.pop %v4394
          %v4396 = vmul.f32 %v4327, 1.442695
          %v4397 = vpow.pop %v4396
          %v4398 = vmul.f32 %v4328, 1.442695
          %v4399 = vpow.pop %v4398
          %v4400 = vmul.f32 %v4329, 1.442695
          %v4401 = vpow.pop %v4400
          %v4402 = vmul.f32 %v4330, 1.442695
          %v4403 = vpow.pop %v4402
          %v4404 = vmul.f32 %v4331, 1.442695
          %v4405 = vpow.pop %v4404
          %v4406 = vmul.f32 %v4332, 1.442695
          %v4407 = vpow.pop %v4406
          %v4408 = vmul.f32 %v4333, 1.442695
          %v4409 = vpow.pop %v4408
          %v4410 = vmul.f32 %v4334, 1.442695
          %v4411 = vpow.pop %v4410
          %v4412 = vmul.f32 %v4335, 1.442695
          %v4413 = vpow.pop %v4412
          %v4414 = vmul.f32 %v4336, 1.442695
          %v4415 = vpow.pop %v4414
          %v4416 = vmul.f32 %v4337, 1.442695
          %v4417 = vpow.pop %v4416
          %v4418 = vmul.f32 %v4338, 1.442695
          %v4419 = vpow.pop %v4418
          %v4420 = vmul.f32 %v4339, 1.442695
          %v4421 = vpow.pop %v4420
          %v4422 = vmul.f32 %v4340, 1.442695
          %v4423 = vpow.pop %v4422
          %v4424 = vmul.f32 %v4341, 1.442695
          %v4425 = vpow.pop %v4424
          %v4426 = vmul.f32 %v4342, 1.442695
          %v4427 = vpow.pop %v4426
          %v4428 = vmul.f32 %v4343, 1.442695
          %v4429 = vpow.pop %v4428
          %v4430 = vmul.f32 %v4344, 1.442695
          %v4431 = vpow.pop %v4430
          %v4432 = vmul.f32 %v4345, 1.442695
          %v4433 = vpow.pop %v4432
          %v4434 = vmul.f32 %v4346, 1.442695
          %v4435 = vpow.pop %v4434
          %v4436 = vmul.f32 %v4347, 1.442695
          %v4437 = vpow.pop %v4436
          %v4438 = vmul.f32 %v4348, 1.442695
          %v4439 = vpow.pop %v4438
          %v4440 = vmul.f32 %v4349, 1.442695
          %v4441 = vpow.pop %v4440
          %v4442 = vmul.f32 %v4350, 1.442695
          %v4443 = vpow.pop %v4442
          %v4444 = vmul.f32 %v4351, 1.442695
          %v4445 = vpow.pop %v4444
          %v4446 = vmul.f32 %v4352, 1.442695
          %v4447 = vpow.pop %v4446
          %v4448 = vmul.f32 %v4353, 1.442695
          %v4449 = vpow.pop %v4448
          %v4450 = vmul.f32 %v4354, 1.442695
          %v4451 = vpow.pop %v4450
          %v4452 = vmul.f32 %v4355, 1.442695
          %v4453 = vpow.pop %v4452
          %v4454 = vmul.f32 %v4356, 1.442695
          %v4455 = vpow.pop %v4454
          %v4456 = vmul.f32 %v4357, 1.442695
          %v4457 = vpow.pop %v4456
          %v4458 = vmul.f32 %v4358, 1.442695
          %v4459 = vpow.pop %v4458
          %v4460 = vmul.f32 %v4359, 1.442695
          %v4461 = vpow.pop %v4460
          %v4462 = vmul.f32 %v4360, 1.442695
          %v4463 = vpow.pop %v4462
          %v4464 = vmul.f32 %v4361, 1.442695
          %v4465 = vpow.pop %v4464
          %v4466 = vmul.f32 %v4362, 1.442695
          %v4467 = vpow.pop %v4466
          %v4468 = vmul.f32 %v4363, 1.442695
          %v4469 = vpow.pop %v4468
          %v4470 = vmul.f32 %v4364, 1.442695
          %v4471 = vpow.pop %v4470
          %v4472 = vmul.f32 %v4365, 1.442695
          %v4473 = vpow.pop %v4472
          %v4474 = vmul.f32 %v4366, 1.442695
          %v4475 = vpow.pop %v4474
          %v4476 = vmul.f32 %v4367, 1.442695
          %v4477 = vpow.pop %v4476
          %v4478 = vmul.f32 %v4368, 1.442695
          %v4479 = vpow.pop %v4478
          %v4480 = vmul.f32 %v4369, 1.442695
          %v4481 = vpow.pop %v4480
          %v4482 = vmul.f32 %v4370, 1.442695
          %v4483 = vpow.pop %v4482
          %v4484 = vmul.f32 %v4371, 1.442695
          %v4485 = vpow.pop %v4484
          %v4486 = vmul.f32 %v4372, 1.442695
          %v4487 = vpow.pop %v4486
          %v4488 = vmul.f32 %v4373, 1.442695
          %v4489 = vpow.pop %v4488
          %v4490 = vmul.f32 %v4374, 1.442695
          %v4491 = vpow.pop %v4490
          %v4492 = vmul.f32 %v4375, 1.442695
          %v4493 = vpow.pop %v4492
          %v4494 = vmul.f32 %v4376, 1.442695
          %v4495 = vpow.pop %v4494
          %v4496 = vmul.f32 %v4377, 1.442695
          %v4497 = vpow.pop %v4496
          %v4498 = vmul.f32 %v4378, 1.442695
          %v4499 = vpow.pop %v4498
          %v4500 = vmul.f32 %v4379, 1.442695
          %v4501 = vpow.pop %v4500
          %v4502 = vmul.f32 %v4380, 1.442695
          %v4503 = vpow.pop %v4502
          %v4504 = vmul.f32 %v4381, 1.442695
          %v4505 = vpow.pop %v4504
          %v4506 = vmul.f32 %v4382, 1.442695
          %v4507 = vpow.pop %v4506
          %v4508 = vmul.f32 %v4383, 1.442695
          %v4509 = vpow.pop %v4508
          %v4510 = vmul.f32 %v4384, 1.442695
          %v4511 = vpow.pop %v4510
          %v4512 = vmul.f32 %v4385, 1.442695
          %v4513 = vpow.pop %v4512
          %v4514 = vld [vmem:[#allocation6] sm:$0xff]
          %v4515 = vld [vmem:[#allocation6 + $0x8] sm:$0xff]
          %v4516 = vld [vmem:[#allocation6 + $0x10] sm:$0xff]
          %v4517 = vld [vmem:[#allocation6 + $0x18] sm:$0xff]
          %v4518 = vld [vmem:[#allocation6 + $0x20] sm:$0xff]
          %v4519 = vld [vmem:[#allocation6 + $0x28] sm:$0xff]
          %v4520 = vld [vmem:[#allocation6 + $0x30] sm:$0xff]
          %v4521 = vld [vmem:[#allocation6 + $0x38] sm:$0xff]
          %v4522 = vld [vmem:[#allocation6 + $0x40] sm:$0xff]
          %v4523 = vld [vmem:[#allocation6 + $0x48] sm:$0xff]
          %v4524 = vld [vmem:[#allocation6 + $0x50] sm:$0xff]
          %v4525 = vld [vmem:[#allocation6 + $0x58] sm:$0xff]
          %v4526 = vld [vmem:[#allocation6 + $0x60] sm:$0xff]
          %v4527 = vld [vmem:[#allocation6 + $0x68] sm:$0xff]
          %v4528 = vld [vmem:[#allocation6 + $0x70] sm:$0xff]
          %v4529 = vld [vmem:[#allocation6 + $0x78] sm:$0xff]
          %v4530 = vld [vmem:[#allocation6 + $0x80] sm:$0xff]
          %v4531 = vld [vmem:[#allocation6 + $0x88] sm:$0xff]
          %v4532 = vld [vmem:[#allocation6 + $0x90] sm:$0xff]
          %v4533 = vld [vmem:[#allocation6 + $0x98] sm:$0xff]
          %v4534 = vld [vmem:[#allocation6 + $0xa0] sm:$0xff]
          %v4535 = vld [vmem:[#allocation6 + $0xa8] sm:$0xff]
          %v4536 = vld [vmem:[#allocation6 + $0xb0] sm:$0xff]
          %v4537 = vld [vmem:[#allocation6 + $0xb8] sm:$0xff]
          %v4538 = vld [vmem:[#allocation6 + $0xc0] sm:$0xff]
          %v4539 = vld [vmem:[#allocation6 + $0xc8] sm:$0xff]
          %v4540 = vld [vmem:[#allocation6 + $0xd0] sm:$0xff]
          %v4541 = vld [vmem:[#allocation6 + $0xd8] sm:$0xff]
          %v4542 = vld [vmem:[#allocation6 + $0xe0] sm:$0xff]
          %v4543 = vld [vmem:[#allocation6 + $0xe8] sm:$0xff]
          %v4544 = vld [vmem:[#allocation6 + $0xf0] sm:$0xff]
          %v4545 = vld [vmem:[#allocation6 + $0xf8] sm:$0xff]
          %v4546 = vld [vmem:[#allocation6 + $0x100] sm:$0xff]
          %v4547 = vld [vmem:[#allocation6 + $0x108] sm:$0xff]
          %v4548 = vld [vmem:[#allocation6 + $0x110] sm:$0xff]
          %v4549 = vld [vmem:[#allocation6 + $0x118] sm:$0xff]
          %v4550 = vld [vmem:[#allocation6 + $0x120] sm:$0xff]
          %v4551 = vld [vmem:[#allocation6 + $0x128] sm:$0xff]
          %v4552 = vld [vmem:[#allocation6 + $0x130] sm:$0xff]
          %v4553 = vld [vmem:[#allocation6 + $0x138] sm:$0xff]
          %v4554 = vld [vmem:[#allocation6 + $0x140] sm:$0xff]
          %v4555 = vld [vmem:[#allocation6 + $0x148] sm:$0xff]
          %v4556 = vld [vmem:[#allocation6 + $0x150] sm:$0xff]
          %v4557 = vld [vmem:[#allocation6 + $0x158] sm:$0xff]
          %v4558 = vld [vmem:[#allocation6 + $0x160] sm:$0xff]
          %v4559 = vld [vmem:[#allocation6 + $0x168] sm:$0xff]
          %v4560 = vld [vmem:[#allocation6 + $0x170] sm:$0xff]
          %v4561 = vld [vmem:[#allocation6 + $0x178] sm:$0xff]
          %v4562 = vld [vmem:[#allocation6 + $0x180] sm:$0xff]
          %v4563 = vld [vmem:[#allocation6 + $0x188] sm:$0xff]
          %v4564 = vld [vmem:[#allocation6 + $0x190] sm:$0xff]
          %v4565 = vld [vmem:[#allocation6 + $0x198] sm:$0xff]
          %v4566 = vld [vmem:[#allocation6 + $0x1a0] sm:$0xff]
          %v4567 = vld [vmem:[#allocation6 + $0x1a8] sm:$0xff]
          %v4568 = vld [vmem:[#allocation6 + $0x1b0] sm:$0xff]
          %v4569 = vld [vmem:[#allocation6 + $0x1b8] sm:$0xff]
          %v4570 = vld [vmem:[#allocation6 + $0x1c0] sm:$0xff]
          %v4571 = vld [vmem:[#allocation6 + $0x1c8] sm:$0xff]
          %v4572 = vld [vmem:[#allocation6 + $0x1d0] sm:$0xff]
          %v4573 = vld [vmem:[#allocation6 + $0x1d8] sm:$0xff]
          %v4574 = vld [vmem:[#allocation6 + $0x1e0] sm:$0xff]
          %v4575 = vld [vmem:[#allocation6 + $0x1e8] sm:$0xff]
          %v4576 = vld [vmem:[#allocation6 + $0x1f0] sm:$0xff]
          %v4577 = vld [vmem:[#allocation6 + $0x1f8] sm:$0xff]
          %v4578 = vmul.f32 %v3875, %v4514
          %v4579 = vmul.f32 %v3877, %v4515
          %v4580 = vmul.f32 %v3879, %v4516
          %v4581 = vmul.f32 %v3881, %v4517
          %v4582 = vmul.f32 %v3883, %v4518
          %v4583 = vmul.f32 %v3885, %v4519
          %v4584 = vmul.f32 %v3887, %v4520
          %v4585 = vmul.f32 %v3889, %v4521
          %v4586 = vmul.f32 %v3891, %v4522
          %v4587 = vmul.f32 %v3893, %v4523
          %v4588 = vmul.f32 %v3895, %v4524
          %v4589 = vmul.f32 %v3897, %v4525
          %v4590 = vmul.f32 %v3899, %v4526
          %v4591 = vmul.f32 %v3901, %v4527
          %v4592 = vmul.f32 %v3903, %v4528
          %v4593 = vmul.f32 %v3905, %v4529
          %v4594 = vmul.f32 %v3907, %v4530
          %v4595 = vmul.f32 %v3909, %v4531
          %v4596 = vmul.f32 %v3911, %v4532
          %v4597 = vmul.f32 %v3913, %v4533
          %v4598 = vmul.f32 %v3915, %v4534
          %v4599 = vmul.f32 %v3917, %v4535
          %v4600 = vmul.f32 %v3919, %v4536
          %v4601 = vmul.f32 %v3921, %v4537
          %v4602 = vmul.f32 %v3923, %v4538
          %v4603 = vmul.f32 %v3925, %v4539
          %v4604 = vmul.f32 %v3927, %v4540
          %v4605 = vmul.f32 %v3929, %v4541
          %v4606 = vmul.f32 %v3931, %v4542
          %v4607 = vmul.f32 %v3933, %v4543
          %v4608 = vmul.f32 %v3935, %v4544
          %v4609 = vmul.f32 %v3937, %v4545
          %v4610 = vmul.f32 %v3939, %v4546
          %v4611 = vmul.f32 %v3941, %v4547
          %v4612 = vmul.f32 %v3943, %v4548
          %v4613 = vmul.f32 %v3945, %v4549
          %v4614 = vmul.f32 %v3947, %v4550
          %v4615 = vmul.f32 %v3949, %v4551
          %v4616 = vmul.f32 %v3951, %v4552
          %v4617 = vmul.f32 %v3953, %v4553
          %v4618 = vmul.f32 %v3955, %v4554
          %v4619 = vmul.f32 %v3957, %v4555
          %v4620 = vmul.f32 %v3959, %v4556
          %v4621 = vmul.f32 %v3961, %v4557
          %v4622 = vmul.f32 %v3963, %v4558
          %v4623 = vmul.f32 %v3965, %v4559
          %v4624 = vmul.f32 %v3967, %v4560
          %v4625 = vmul.f32 %v3969, %v4561
          %v4626 = vmul.f32 %v3971, %v4562
          %v4627 = vmul.f32 %v3973, %v4563
          %v4628 = vmul.f32 %v3975, %v4564
          %v4629 = vmul.f32 %v3977, %v4565
          %v4630 = vmul.f32 %v3979, %v4566
          %v4631 = vmul.f32 %v3981, %v4567
          %v4632 = vmul.f32 %v3983, %v4568
          %v4633 = vmul.f32 %v3985, %v4569
          %v4634 = vmul.f32 %v3987, %v4570
          %v4635 = vmul.f32 %v3989, %v4571
          %v4636 = vmul.f32 %v3991, %v4572
          %v4637 = vmul.f32 %v3993, %v4573
          %v4638 = vmul.f32 %v3995, %v4574
          %v4639 = vmul.f32 %v3997, %v4575
          %v4640 = vmul.f32 %v3999, %v4576
          %v4641 = vmul.f32 %v4001, %v4577
          %4642 = vadd.xlane.f32.xlu0 %v4387
          %v4643 = vpop.xlane.xlu0 %4642
          %4644 = vadd.xlane.f32.xlu0 %v4389
          %v4645 = vpop.xlane.xlu0 %4644
          %4646 = vadd.xlane.f32.xlu0 %v4391
          %v4647 = vpop.xlane.xlu0 %4646
          %4648 = vadd.xlane.f32.xlu0 %v4393
          %v4649 = vpop.xlane.xlu0 %4648
          %4650 = vadd.xlane.f32.xlu0 %v4395
          %v4651 = vpop.xlane.xlu0 %4650
          %4652 = vadd.xlane.f32.xlu0 %v4397
          %v4653 = vpop.xlane.xlu0 %4652
          %4654 = vadd.xlane.f32.xlu0 %v4399
          %v4655 = vpop.xlane.xlu0 %4654
          %4656 = vadd.xlane.f32.xlu0 %v4401
          %v4657 = vpop.xlane.xlu0 %4656
          %4658 = vadd.xlane.f32.xlu0 %v4403
          %v4659 = vpop.xlane.xlu0 %4658
          %4660 = vadd.xlane.f32.xlu0 %v4405
          %v4661 = vpop.xlane.xlu0 %4660
          %4662 = vadd.xlane.f32.xlu0 %v4407
          %v4663 = vpop.xlane.xlu0 %4662
          %4664 = vadd.xlane.f32.xlu0 %v4409
          %v4665 = vpop.xlane.xlu0 %4664
          %4666 = vadd.xlane.f32.xlu0 %v4411
          %v4667 = vpop.xlane.xlu0 %4666
          %4668 = vadd.xlane.f32.xlu0 %v4413
          %v4669 = vpop.xlane.xlu0 %4668
          %4670 = vadd.xlane.f32.xlu0 %v4415
          %v4671 = vpop.xlane.xlu0 %4670
          %4672 = vadd.xlane.f32.xlu0 %v4417
          %v4673 = vpop.xlane.xlu0 %4672
          %4674 = vadd.xlane.f32.xlu0 %v4419
          %v4675 = vpop.xlane.xlu0 %4674
          %4676 = vadd.xlane.f32.xlu0 %v4421
          %v4677 = vpop.xlane.xlu0 %4676
          %4678 = vadd.xlane.f32.xlu0 %v4423
          %v4679 = vpop.xlane.xlu0 %4678
          %4680 = vadd.xlane.f32.xlu0 %v4425
          %v4681 = vpop.xlane.xlu0 %4680
          %4682 = vadd.xlane.f32.xlu0 %v4427
          %v4683 = vpop.xlane.xlu0 %4682
          %4684 = vadd.xlane.f32.xlu0 %v4429
          %v4685 = vpop.xlane.xlu0 %4684
          %4686 = vadd.xlane.f32.xlu0 %v4431
          %v4687 = vpop.xlane.xlu0 %4686
          %4688 = vadd.xlane.f32.xlu0 %v4433
          %v4689 = vpop.xlane.xlu0 %4688
          %4690 = vadd.xlane.f32.xlu0 %v4435
          %v4691 = vpop.xlane.xlu0 %4690
          %4692 = vadd.xlane.f32.xlu0 %v4437
          %v4693 = vpop.xlane.xlu0 %4692
          %4694 = vadd.xlane.f32.xlu0 %v4439
          %v4695 = vpop.xlane.xlu0 %4694
          %4696 = vadd.xlane.f32.xlu0 %v4441
          %v4697 = vpop.xlane.xlu0 %4696
          %4698 = vadd.xlane.f32.xlu0 %v4443
          %v4699 = vpop.xlane.xlu0 %4698
          %4700 = vadd.xlane.f32.xlu0 %v4445
          %v4701 = vpop.xlane.xlu0 %4700
          %4702 = vadd.xlane.f32.xlu0 %v4447
          %v4703 = vpop.xlane.xlu0 %4702
          %4704 = vadd.xlane.f32.xlu0 %v4449
          %v4705 = vpop.xlane.xlu0 %4704
          %4706 = vadd.xlane.f32.xlu0 %v4451
          %v4707 = vpop.xlane.xlu0 %4706
          %4708 = vadd.xlane.f32.xlu0 %v4453
          %v4709 = vpop.xlane.xlu0 %4708
          %4710 = vadd.xlane.f32.xlu0 %v4455
          %v4711 = vpop.xlane.xlu0 %4710
          %4712 = vadd.xlane.f32.xlu0 %v4457
          %v4713 = vpop.xlane.xlu0 %4712
          %4714 = vadd.xlane.f32.xlu0 %v4459
          %v4715 = vpop.xlane.xlu0 %4714
          %4716 = vadd.xlane.f32.xlu0 %v4461
          %v4717 = vpop.xlane.xlu0 %4716
          %4718 = vadd.xlane.f32.xlu0 %v4463
          %v4719 = vpop.xlane.xlu0 %4718
          %4720 = vadd.xlane.f32.xlu0 %v4465
          %v4721 = vpop.xlane.xlu0 %4720
          %4722 = vadd.xlane.f32.xlu0 %v4467
          %v4723 = vpop.xlane.xlu0 %4722
          %4724 = vadd.xlane.f32.xlu0 %v4469
          %v4725 = vpop.xlane.xlu0 %4724
          %4726 = vadd.xlane.f32.xlu0 %v4471
          %v4727 = vpop.xlane.xlu0 %4726
          %4728 = vadd.xlane.f32.xlu0 %v4473
          %v4729 = vpop.xlane.xlu0 %4728
          %4730 = vadd.xlane.f32.xlu0 %v4475
          %v4731 = vpop.xlane.xlu0 %4730
          %4732 = vadd.xlane.f32.xlu0 %v4477
          %v4733 = vpop.xlane.xlu0 %4732
          %4734 = vadd.xlane.f32.xlu0 %v4479
          %v4735 = vpop.xlane.xlu0 %4734
          %4736 = vadd.xlane.f32.xlu0 %v4481
          %v4737 = vpop.xlane.xlu0 %4736
          %4738 = vadd.xlane.f32.xlu0 %v4483
          %v4739 = vpop.xlane.xlu0 %4738
          %4740 = vadd.xlane.f32.xlu0 %v4485
          %v4741 = vpop.xlane.xlu0 %4740
          %4742 = vadd.xlane.f32.xlu0 %v4487
          %v4743 = vpop.xlane.xlu0 %4742
          %4744 = vadd.xlane.f32.xlu0 %v4489
          %v4745 = vpop.xlane.xlu0 %4744
          %4746 = vadd.xlane.f32.xlu0 %v4491
          %v4747 = vpop.xlane.xlu0 %4746
          %4748 = vadd.xlane.f32.xlu0 %v4493
          %v4749 = vpop.xlane.xlu0 %4748
          %4750 = vadd.xlane.f32.xlu0 %v4495
          %v4751 = vpop.xlane.xlu0 %4750
          %4752 = vadd.xlane.f32.xlu0 %v4497
          %v4753 = vpop.xlane.xlu0 %4752
          %4754 = vadd.xlane.f32.xlu0 %v4499
          %v4755 = vpop.xlane.xlu0 %4754
          %4756 = vadd.xlane.f32.xlu0 %v4501
          %v4757 = vpop.xlane.xlu0 %4756
          %4758 = vadd.xlane.f32.xlu0 %v4503
          %v4759 = vpop.xlane.xlu0 %4758
          %4760 = vadd.xlane.f32.xlu0 %v4505
          %v4761 = vpop.xlane.xlu0 %4760
          %4762 = vadd.xlane.f32.xlu0 %v4507
          %v4763 = vpop.xlane.xlu0 %4762
          %4764 = vadd.xlane.f32.xlu0 %v4509
          %v4765 = vpop.xlane.xlu0 %4764
          %4766 = vadd.xlane.f32.xlu0 %v4511
          %v4767 = vpop.xlane.xlu0 %4766
          %4768 = vadd.xlane.f32.xlu0 %v4513
          %v4769 = vpop.xlane.xlu0 %4768
          %v4770 = vadd.f32 %v4578, %v4643
          %v4771 = vadd.f32 %v4579, %v4645
          %v4772 = vadd.f32 %v4580, %v4647
          %v4773 = vadd.f32 %v4581, %v4649
          %v4774 = vadd.f32 %v4582, %v4651
          %v4775 = vadd.f32 %v4583, %v4653
          %v4776 = vadd.f32 %v4584, %v4655
          %v4777 = vadd.f32 %v4585, %v4657
          %v4778 = vadd.f32 %v4586, %v4659
          %v4779 = vadd.f32 %v4587, %v4661
          %v4780 = vadd.f32 %v4588, %v4663
          %v4781 = vadd.f32 %v4589, %v4665
          %v4782 = vadd.f32 %v4590, %v4667
          %v4783 = vadd.f32 %v4591, %v4669
          %v4784 = vadd.f32 %v4592, %v4671
          %v4785 = vadd.f32 %v4593, %v4673
          %v4786 = vadd.f32 %v4594, %v4675
          %v4787 = vadd.f32 %v4595, %v4677
          %v4788 = vadd.f32 %v4596, %v4679
          %v4789 = vadd.f32 %v4597, %v4681
          %v4790 = vadd.f32 %v4598, %v4683
          %v4791 = vadd.f32 %v4599, %v4685
          %v4792 = vadd.f32 %v4600, %v4687
          %v4793 = vadd.f32 %v4601, %v4689
          %v4794 = vadd.f32 %v4602, %v4691
          %v4795 = vadd.f32 %v4603, %v4693
          %v4796 = vadd.f32 %v4604, %v4695
          %v4797 = vadd.f32 %v4605, %v4697
          %v4798 = vadd.f32 %v4606, %v4699
          %v4799 = vadd.f32 %v4607, %v4701
          %v4800 = vadd.f32 %v4608, %v4703
          %v4801 = vadd.f32 %v4609, %v4705
          %v4802 = vadd.f32 %v4610, %v4707
          %v4803 = vadd.f32 %v4611, %v4709
          %v4804 = vadd.f32 %v4612, %v4711
          %v4805 = vadd.f32 %v4613, %v4713
          %v4806 = vadd.f32 %v4614, %v4715
          %v4807 = vadd.f32 %v4615, %v4717
          %v4808 = vadd.f32 %v4616, %v4719
          %v4809 = vadd.f32 %v4617, %v4721
          %v4810 = vadd.f32 %v4618, %v4723
          %v4811 = vadd.f32 %v4619, %v4725
          %v4812 = vadd.f32 %v4620, %v4727
          %v4813 = vadd.f32 %v4621, %v4729
          %v4814 = vadd.f32 %v4622, %v4731
          %v4815 = vadd.f32 %v4623, %v4733
          %v4816 = vadd.f32 %v4624, %v4735
          %v4817 = vadd.f32 %v4625, %v4737
          %v4818 = vadd.f32 %v4626, %v4739
          %v4819 = vadd.f32 %v4627, %v4741
          %v4820 = vadd.f32 %v4628, %v4743
          %v4821 = vadd.f32 %v4629, %v4745
          %v4822 = vadd.f32 %v4630, %v4747
          %v4823 = vadd.f32 %v4631, %v4749
          %v4824 = vadd.f32 %v4632, %v4751
          %v4825 = vadd.f32 %v4633, %v4753
          %v4826 = vadd.f32 %v4634, %v4755
          %v4827 = vadd.f32 %v4635, %v4757
          %v4828 = vadd.f32 %v4636, %v4759
          %v4829 = vadd.f32 %v4637, %v4761
          %v4830 = vadd.f32 %v4638, %v4763
          %v4831 = vadd.f32 %v4639, %v4765
          %v4832 = vadd.f32 %v4640, %v4767
          %v4833 = vadd.f32 %v4641, %v4769
          %vm4834 = vcmask 7168
          %4835 = vst.msk [vmem:[#allocation6] sm:$0xff] %vm4834, %v4770
          %4836 = vst.msk [vmem:[#allocation6 + $0x8] sm:$0xff] %vm4834, %v4771
          %4837 = vst.msk [vmem:[#allocation6 + $0x10] sm:$0xff] %vm4834, %v4772
          %4838 = vst.msk [vmem:[#allocation6 + $0x18] sm:$0xff] %vm4834, %v4773
          %4839 = vst.msk [vmem:[#allocation6 + $0x20] sm:$0xff] %vm4834, %v4774
          %4840 = vst.msk [vmem:[#allocation6 + $0x28] sm:$0xff] %vm4834, %v4775
          %4841 = vst.msk [vmem:[#allocation6 + $0x30] sm:$0xff] %vm4834, %v4776
          %4842 = vst.msk [vmem:[#allocation6 + $0x38] sm:$0xff] %vm4834, %v4777
          %4843 = vst.msk [vmem:[#allocation6 + $0x40] sm:$0xff] %vm4834, %v4778
          %4844 = vst.msk [vmem:[#allocation6 + $0x48] sm:$0xff] %vm4834, %v4779
          %4845 = vst.msk [vmem:[#allocation6 + $0x50] sm:$0xff] %vm4834, %v4780
          %4846 = vst.msk [vmem:[#allocation6 + $0x58] sm:$0xff] %vm4834, %v4781
          %4847 = vst.msk [vmem:[#allocation6 + $0x60] sm:$0xff] %vm4834, %v4782
          %4848 = vst.msk [vmem:[#allocation6 + $0x68] sm:$0xff] %vm4834, %v4783
          %4849 = vst.msk [vmem:[#allocation6 + $0x70] sm:$0xff] %vm4834, %v4784
          %4850 = vst.msk [vmem:[#allocation6 + $0x78] sm:$0xff] %vm4834, %v4785
          %4851 = vst.msk [vmem:[#allocation6 + $0x80] sm:$0xff] %vm4834, %v4786
          %4852 = vst.msk [vmem:[#allocation6 + $0x88] sm:$0xff] %vm4834, %v4787
          %4853 = vst.msk [vmem:[#allocation6 + $0x90] sm:$0xff] %vm4834, %v4788
          %4854 = vst.msk [vmem:[#allocation6 + $0x98] sm:$0xff] %vm4834, %v4789
          %4855 = vst.msk [vmem:[#allocation6 + $0xa0] sm:$0xff] %vm4834, %v4790
          %4856 = vst.msk [vmem:[#allocation6 + $0xa8] sm:$0xff] %vm4834, %v4791
          %4857 = vst.msk [vmem:[#allocation6 + $0xb0] sm:$0xff] %vm4834, %v4792
          %4858 = vst.msk [vmem:[#allocation6 + $0xb8] sm:$0xff] %vm4834, %v4793
          %4859 = vst.msk [vmem:[#allocation6 + $0xc0] sm:$0xff] %vm4834, %v4794
          %4860 = vst.msk [vmem:[#allocation6 + $0xc8] sm:$0xff] %vm4834, %v4795
          %4861 = vst.msk [vmem:[#allocation6 + $0xd0] sm:$0xff] %vm4834, %v4796
          %4862 = vst.msk [vmem:[#allocation6 + $0xd8] sm:$0xff] %vm4834, %v4797
          %4863 = vst.msk [vmem:[#allocation6 + $0xe0] sm:$0xff] %vm4834, %v4798
          %4864 = vst.msk [vmem:[#allocation6 + $0xe8] sm:$0xff] %vm4834, %v4799
          %4865 = vst.msk [vmem:[#allocation6 + $0xf0] sm:$0xff] %vm4834, %v4800
          %4866 = vst.msk [vmem:[#allocation6 + $0xf8] sm:$0xff] %vm4834, %v4801
          %4867 = vst.msk [vmem:[#allocation6 + $0x100] sm:$0xff] %vm4834, %v4802
          %4868 = vst.msk [vmem:[#allocation6 + $0x108] sm:$0xff] %vm4834, %v4803
          %4869 = vst.msk [vmem:[#allocation6 + $0x110] sm:$0xff] %vm4834, %v4804
          %4870 = vst.msk [vmem:[#allocation6 + $0x118] sm:$0xff] %vm4834, %v4805
          %4871 = vst.msk [vmem:[#allocation6 + $0x120] sm:$0xff] %vm4834, %v4806
          %4872 = vst.msk [vmem:[#allocation6 + $0x128] sm:$0xff] %vm4834, %v4807
          %4873 = vst.msk [vmem:[#allocation6 + $0x130] sm:$0xff] %vm4834, %v4808
          %4874 = vst.msk [vmem:[#allocation6 + $0x138] sm:$0xff] %vm4834, %v4809
          %4875 = vst.msk [vmem:[#allocation6 + $0x140] sm:$0xff] %vm4834, %v4810
          %4876 = vst.msk [vmem:[#allocation6 + $0x148] sm:$0xff] %vm4834, %v4811
          %4877 = vst.msk [vmem:[#allocation6 + $0x150] sm:$0xff] %vm4834, %v4812
          %4878 = vst.msk [vmem:[#allocation6 + $0x158] sm:$0xff] %vm4834, %v4813
          %4879 = vst.msk [vmem:[#allocation6 + $0x160] sm:$0xff] %vm4834, %v4814
          %4880 = vst.msk [vmem:[#allocation6 + $0x168] sm:$0xff] %vm4834, %v4815
          %4881 = vst.msk [vmem:[#allocation6 + $0x170] sm:$0xff] %vm4834, %v4816
          %4882 = vst.msk [vmem:[#allocation6 + $0x178] sm:$0xff] %vm4834, %v4817
          %4883 = vst.msk [vmem:[#allocation6 + $0x180] sm:$0xff] %vm4834, %v4818
          %4884 = vst.msk [vmem:[#allocation6 + $0x188] sm:$0xff] %vm4834, %v4819
          %4885 = vst.msk [vmem:[#allocation6 + $0x190] sm:$0xff] %vm4834, %v4820
          %4886 = vst.msk [vmem:[#allocation6 + $0x198] sm:$0xff] %vm4834, %v4821
          %4887 = vst.msk [vmem:[#allocation6 + $0x1a0] sm:$0xff] %vm4834, %v4822
          %4888 = vst.msk [vmem:[#allocation6 + $0x1a8] sm:$0xff] %vm4834, %v4823
          %4889 = vst.msk [vmem:[#allocation6 + $0x1b0] sm:$0xff] %vm4834, %v4824
          %4890 = vst.msk [vmem:[#allocation6 + $0x1b8] sm:$0xff] %vm4834, %v4825
          %4891 = vst.msk [vmem:[#allocation6 + $0x1c0] sm:$0xff] %vm4834, %v4826
          %4892 = vst.msk [vmem:[#allocation6 + $0x1c8] sm:$0xff] %vm4834, %v4827
          %4893 = vst.msk [vmem:[#allocation6 + $0x1d0] sm:$0xff] %vm4834, %v4828
          %4894 = vst.msk [vmem:[#allocation6 + $0x1d8] sm:$0xff] %vm4834, %v4829
          %4895 = vst.msk [vmem:[#allocation6 + $0x1e0] sm:$0xff] %vm4834, %v4830
          %4896 = vst.msk [vmem:[#allocation6 + $0x1e8] sm:$0xff] %vm4834, %v4831
          %4897 = vst.msk [vmem:[#allocation6 + $0x1f0] sm:$0xff] %vm4834, %v4832
          %4898 = vst.msk [vmem:[#allocation6 + $0x1f8] sm:$0xff] %vm4834, %v4833
          %v4899 = vpack.c.bf16 %v4389, %v4387
          %v4900 = vpack.c.bf16 %v4393, %v4391
          %v4901 = vpack.c.bf16 %v4397, %v4395
          %v4902 = vpack.c.bf16 %v4401, %v4399
          %v4903 = vpack.c.bf16 %v4405, %v4403
          %v4904 = vpack.c.bf16 %v4409, %v4407
          %v4905 = vpack.c.bf16 %v4413, %v4411
          %v4906 = vpack.c.bf16 %v4417, %v4415
          %v4907 = vpack.c.bf16 %v4421, %v4419
          %v4908 = vpack.c.bf16 %v4425, %v4423
          %v4909 = vpack.c.bf16 %v4429, %v4427
          %v4910 = vpack.c.bf16 %v4433, %v4431
          %v4911 = vpack.c.bf16 %v4437, %v4435
          %v4912 = vpack.c.bf16 %v4441, %v4439
          %v4913 = vpack.c.bf16 %v4445, %v4443
          %v4914 = vpack.c.bf16 %v4449, %v4447
          %v4915 = vpack.c.bf16 %v4453, %v4451
          %v4916 = vpack.c.bf16 %v4457, %v4455
          %v4917 = vpack.c.bf16 %v4461, %v4459
          %v4918 = vpack.c.bf16 %v4465, %v4463
          %v4919 = vpack.c.bf16 %v4469, %v4467
          %v4920 = vpack.c.bf16 %v4473, %v4471
          %v4921 = vpack.c.bf16 %v4477, %v4475
          %v4922 = vpack.c.bf16 %v4481, %v4479
          %v4923 = vpack.c.bf16 %v4485, %v4483
          %v4924 = vpack.c.bf16 %v4489, %v4487
          %v4925 = vpack.c.bf16 %v4493, %v4491
          %v4926 = vpack.c.bf16 %v4497, %v4495
          %v4927 = vpack.c.bf16 %v4501, %v4499
          %v4928 = vpack.c.bf16 %v4505, %v4503
          %v4929 = vpack.c.bf16 %v4509, %v4507
          %v4930 = vpack.c.bf16 %v4513, %v4511
          %4931 = vmatprep.subr.bf16.mxu0 0
          %4932 = vmatpush1.bf16.msra.mxu0 %v2909
          %4933 = vmatprep.subr.bf16.mxu0 0
          %4934 = vmatpush1.bf16.msra.mxu0 %v2910
          %4935 = vmatprep.subr.bf16.mxu0 0
          %4936 = vmatpush1.bf16.msra.mxu0 %v2911
          %4937 = vmatprep.subr.bf16.mxu0 0
          %4938 = vmatpush1.bf16.msra.mxu0 %v2912
          %4939 = vmatprep.subr.bf16.mxu0 0
          %4940 = vmatpush1.bf16.msra.mxu0 %v2913
          %4941 = vmatprep.subr.bf16.mxu0 0
          %4942 = vmatpush1.bf16.msra.mxu0 %v2914
          %4943 = vmatprep.subr.bf16.mxu0 0
          %4944 = vmatpush1.bf16.msra.mxu0 %v2915
          %4945 = vmatprep.subr.bf16.mxu0 0
          %4946 = vmatpush1.bf16.msra.mxu0 %v2916
          %4947 = vmatprep.subr.bf16.mxu0 0
          %4948 = vmatpush1.bf16.msra.mxu0 0
          %4949 = vmatprep.subr.bf16.mxu0 0
          %4950 = vmatpush1.bf16.msra.mxu0 0
          %4951 = vmatprep.subr.bf16.mxu0 0
          %4952 = vmatpush1.bf16.msra.mxu0 0
          %4953 = vmatprep.subr.bf16.mxu0 0
          %4954 = vmatpush1.bf16.msra.mxu0 0
          %4955 = vmatprep.subr.bf16.mxu0 0
          %4956 = vmatpush1.bf16.msra.mxu0 0
          %4957 = vmatprep.subr.bf16.mxu0 0
          %4958 = vmatpush1.bf16.msra.mxu0 0
          %4959 = vmatprep.subr.bf16.mxu0 0
          %4960 = vmatpush1.bf16.msra.mxu0 0
          %4961 = vmatprep.subr.bf16.mxu0 0
          %4962 = vmatpush1.bf16.msra.mxu0 0
          %4963 = vmatprep.mubr.bf16.mxu0 0
          %4964 = vmatmul.mubr.bf16.gmra.mrb[0].mxu0 %v4899
          %v4965 = vpop.f32.mrb[0].mxu0
          %v4966 = vadd.f32 0.0, %v4965
          %v4967 = vpop.f32.mrb[0].mxu0
          %v4968 = vpop.f32.mrb[0].mxu0
          %v4969 = vadd.f32 0.0, %v4968
          %v4970 = vpop.f32.mrb[0].mxu0
          %4971 = vmatprep.mubr.bf16.mxu0 0
          %4972 = vmatmul.mubr.bf16.gmra.mrb[0].mxu0 %v4900
          %v4973 = vpop.f32.mrb[0].mxu0
          %v4974 = vadd.f32 0.0, %v4973
          %v4975 = vpop.f32.mrb[0].mxu0
          %v4976 = vpop.f32.mrb[0].mxu0
          %v4977 = vadd.f32 0.0, %v4976
          %v4978 = vpop.f32.mrb[0].mxu0
          %4979 = vmatprep.mubr.bf16.mxu0 0
          %4980 = vmatmul.mubr.bf16.gmra.mrb[0].mxu0 %v4901
          %v4981 = vpop.f32.mrb[0].mxu0
          %v4982 = vadd.f32 0.0, %v4981
          %v4983 = vpop.f32.mrb[0].mxu0
          %v4984 = vpop.f32.mrb[0].mxu0
          %v4985 = vadd.f32 0.0, %v4984
          %v4986 = vpop.f32.mrb[0].mxu0
          %4987 = vmatprep.mubr.bf16.mxu0 0
          %4988 = vmatmul.mubr.bf16.gmra.mrb[0].mxu0 %v4902
          %v4989 = vpop.f32.mrb[0].mxu0
          %v4990 = vadd.f32 0.0, %v4989
          %v4991 = vpop.f32.mrb[0].mxu0
          %v4992 = vpop.f32.mrb[0].mxu0
          %v4993 = vadd.f32 0.0, %v4992
          %v4994 = vpop.f32.mrb[0].mxu0
          %4995 = vmatprep.mubr.bf16.mxu0 0
          %4996 = vmatmul.mubr.bf16.gmra.mrb[0].mxu0 %v4903
          %v4997 = vpop.f32.mrb[0].mxu0
          %v4998 = vadd.f32 0.0, %v4997
          %v4999 = vpop.f32.mrb[0].mxu0
          %v5000 = vpop.f32.mrb[0].mxu0
          %v5001 = vadd.f32 0.0, %v5000
          %v5002 = vpop.f32.mrb[0].mxu0
          %5003 = vmatprep.mubr.bf16.mxu0 0
          %5004 = vmatmul.mubr.bf16.gmra.mrb[0].mxu0 %v4904
          %v5005 = vpop.f32.mrb[0].mxu0
          %v5006 = vadd.f32 0.0, %v5005
          %v5007 = vpop.f32.mrb[0].mxu0
          %v5008 = vpop.f32.mrb[0].mxu0
          %v5009 = vadd.f32 0.0, %v5008
          %v5010 = vpop.f32.mrb[0].mxu0
          %5011 = vmatprep.mubr.bf16.mxu0 0
          %5012 = vmatmul.mubr.bf16.gmra.mrb[0].mxu0 %v4905
          %v5013 = vpop.f32.mrb[0].mxu0
          %v5014 = vadd.f32 0.0, %v5013
          %v5015 = vpop.f32.mrb[0].mxu0
          %v5016 = vpop.f32.mrb[0].mxu0
          %v5017 = vadd.f32 0.0, %v5016
          %v5018 = vpop.f32.mrb[0].mxu0
          %5019 = vmatprep.mubr.bf16.mxu0 0
          %5020 = vmatmul.mubr.bf16.gmra.mrb[0].mxu0 %v4906
          %v5021 = vpop.f32.mrb[0].mxu0
          %v5022 = vadd.f32 0.0, %v5021
          %v5023 = vpop.f32.mrb[0].mxu0
          %v5024 = vpop.f32.mrb[0].mxu0
          %v5025 = vadd.f32 0.0, %v5024
          %v5026 = vpop.f32.mrb[0].mxu0
          %5027 = vdwg.mxu0
          %5028 = vmatprep.subr.bf16.mxu0 0
          %5029 = vmatpush1.bf16.msra.mxu0 %v2917
          %5030 = vmatprep.subr.bf16.mxu0 0
          %5031 = vmatpush1.bf16.msra.mxu0 %v2918
          %5032 = vmatprep.subr.bf16.mxu0 0
          %5033 = vmatpush1.bf16.msra.mxu0 %v2919
          %5034 = vmatprep.subr.bf16.mxu0 0
          %5035 = vmatpush1.bf16.msra.mxu0 %v2920
          %5036 = vmatprep.subr.bf16.mxu0 0
          %5037 = vmatpush1.bf16.msra.mxu0 %v2921
          %5038 = vmatprep.subr.bf16.mxu0 0
          %5039 = vmatpush1.bf16.msra.mxu0 %v2922
          %5040 = vmatprep.subr.bf16.mxu0 0
          %5041 = vmatpush1.bf16.msra.mxu0 %v2923
          %5042 = vmatprep.subr.bf16.mxu0 0
          %5043 = vmatpush1.bf16.msra.mxu0 %v2924
          %5044 = vmatprep.subr.bf16.mxu0 0
          %5045 = vmatpush1.bf16.msra.mxu0 0
          %5046 = vmatprep.subr.bf16.mxu0 0
          %5047 = vmatpush1.bf16.msra.mxu0 0
          %5048 = vmatprep.subr.bf16.mxu0 0
          %5049 = vmatpush1.bf16.msra.mxu0 0
          %5050 = vmatprep.subr.bf16.mxu0 0
          %5051 = vmatpush1.bf16.msra.mxu0 0
          %5052 = vmatprep.subr.bf16.mxu0 0
          %5053 = vmatpush1.bf16.msra.mxu0 0
          %5054 = vmatprep.subr.bf16.mxu0 0
          %5055 = vmatpush1.bf16.msra.mxu0 0
          %5056 = vmatprep.subr.bf16.mxu0 0
          %5057 = vmatpush1.bf16.msra.mxu0 0
          %5058 = vmatprep.subr.bf16.mxu0 0
          %5059 = vmatpush1.bf16.msra.mxu0 0
          %5060 = vmatprep.mubr.bf16.mxu0 0
          %5061 = vmatmul.mubr.bf16.gmra.mrb[0].mxu0 %v4907
          %v5062 = vpop.f32.mrb[0].mxu0
          %v5063 = vadd.f32 0.0, %v5062
          %v5064 = vpop.f32.mrb[0].mxu0
          %v5065 = vpop.f32.mrb[0].mxu0
          %v5066 = vadd.f32 0.0, %v5065
          %v5067 = vpop.f32.mrb[0].mxu0
          %5068 = vmatprep.mubr.bf16.mxu0 0
          %5069 = vmatmul.mubr.bf16.gmra.mrb[0].mxu0 %v4908
          %v5070 = vpop.f32.mrb[0].mxu0
          %v5071 = vadd.f32 0.0, %v5070
          %v5072 = vpop.f32.mrb[0].mxu0
          %v5073 = vpop.f32.mrb[0].mxu0
          %v5074 = vadd.f32 0.0, %v5073
          %v5075 = vpop.f32.mrb[0].mxu0
          %5076 = vmatprep.mubr.bf16.mxu0 0
          %5077 = vmatmul.mubr.bf16.gmra.mrb[0].mxu0 %v4909
          %v5078 = vpop.f32.mrb[0].mxu0
          %v5079 = vadd.f32 0.0, %v5078
          %v5080 = vpop.f32.mrb[0].mxu0
          %v5081 = vpop.f32.mrb[0].mxu0
          %v5082 = vadd.f32 0.0, %v5081
          %v5083 = vpop.f32.mrb[0].mxu0
          %5084 = vmatprep.mubr.bf16.mxu0 0
          %5085 = vmatmul.mubr.bf16.gmra.mrb[0].mxu0 %v4910
          %v5086 = vpop.f32.mrb[0].mxu0
          %v5087 = vadd.f32 0.0, %v5086
          %v5088 = vpop.f32.mrb[0].mxu0
          %v5089 = vpop.f32.mrb[0].mxu0
          %v5090 = vadd.f32 0.0, %v5089
          %v5091 = vpop.f32.mrb[0].mxu0
          %5092 = vmatprep.mubr.bf16.mxu0 0
          %5093 = vmatmul.mubr.bf16.gmra.mrb[0].mxu0 %v4911
          %v5094 = vpop.f32.mrb[0].mxu0
          %v5095 = vadd.f32 0.0, %v5094
          %v5096 = vpop.f32.mrb[0].mxu0
          %v5097 = vpop.f32.mrb[0].mxu0
          %v5098 = vadd.f32 0.0, %v5097
          %v5099 = vpop.f32.mrb[0].mxu0
          %5100 = vmatprep.mubr.bf16.mxu0 0
          %5101 = vmatmul.mubr.bf16.gmra.mrb[0].mxu0 %v4912
          %v5102 = vpop.f32.mrb[0].mxu0
          %v5103 = vadd.f32 0.0, %v5102
          %v5104 = vpop.f32.mrb[0].mxu0
          %v5105 = vpop.f32.mrb[0].mxu0
          %v5106 = vadd.f32 0.0, %v5105
          %v5107 = vpop.f32.mrb[0].mxu0
          %5108 = vmatprep.mubr.bf16.mxu0 0
          %5109 = vmatmul.mubr.bf16.gmra.mrb[0].mxu0 %v4913
          %v5110 = vpop.f32.mrb[0].mxu0
          %v5111 = vadd.f32 0.0, %v5110
          %v5112 = vpop.f32.mrb[0].mxu0
          %v5113 = vpop.f32.mrb[0].mxu0
          %v5114 = vadd.f32 0.0, %v5113
          %v5115 = vpop.f32.mrb[0].mxu0
          %5116 = vmatprep.mubr.bf16.mxu0 0
          %5117 = vmatmul.mubr.bf16.gmra.mrb[0].mxu0 %v4914
          %v5118 = vpop.f32.mrb[0].mxu0
          %v5119 = vadd.f32 0.0, %v5118
          %v5120 = vpop.f32.mrb[0].mxu0
          %v5121 = vpop.f32.mrb[0].mxu0
          %v5122 = vadd.f32 0.0, %v5121
          %v5123 = vpop.f32.mrb[0].mxu0
          %5124 = vdwg.mxu0
          %5125 = vmatprep.subr.bf16.mxu0 0
          %5126 = vmatpush1.bf16.msra.mxu0 %v2925
          %5127 = vmatprep.subr.bf16.mxu0 0
          %5128 = vmatpush1.bf16.msra.mxu0 %v2926
          %5129 = vmatprep.subr.bf16.mxu0 0
          %5130 = vmatpush1.bf16.msra.mxu0 %v2927
          %5131 = vmatprep.subr.bf16.mxu0 0
          %5132 = vmatpush1.bf16.msra.mxu0 %v2928
          %5133 = vmatprep.subr.bf16.mxu0 0
          %5134 = vmatpush1.bf16.msra.mxu0 %v2929
          %5135 = vmatprep.subr.bf16.mxu0 0
          %5136 = vmatpush1.bf16.msra.mxu0 %v2930
          %5137 = vmatprep.subr.bf16.mxu0 0
          %5138 = vmatpush1.bf16.msra.mxu0 %v2931
          %5139 = vmatprep.subr.bf16.mxu0 0
          %5140 = vmatpush1.bf16.msra.mxu0 %v2932
          %5141 = vmatprep.subr.bf16.mxu0 0
          %5142 = vmatpush1.bf16.msra.mxu0 0
          %5143 = vmatprep.subr.bf16.mxu0 0
          %5144 = vmatpush1.bf16.msra.mxu0 0
          %5145 = vmatprep.subr.bf16.mxu0 0
          %5146 = vmatpush1.bf16.msra.mxu0 0
          %5147 = vmatprep.subr.bf16.mxu0 0
          %5148 = vmatpush1.bf16.msra.mxu0 0
          %5149 = vmatprep.subr.bf16.mxu0 0
          %5150 = vmatpush1.bf16.msra.mxu0 0
          %5151 = vmatprep.subr.bf16.mxu0 0
          %5152 = vmatpush1.bf16.msra.mxu0 0
          %5153 = vmatprep.subr.bf16.mxu0 0
          %5154 = vmatpush1.bf16.msra.mxu0 0
          %5155 = vmatprep.subr.bf16.mxu0 0
          %5156 = vmatpush1.bf16.msra.mxu0 0
          %5157 = vmatprep.mubr.bf16.mxu0 0
          %5158 = vmatmul.mubr.bf16.gmra.mrb[0].mxu0 %v4915
          %v5159 = vpop.f32.mrb[0].mxu0
          %v5160 = vadd.f32 0.0, %v5159
          %v5161 = vpop.f32.mrb[0].mxu0
          %v5162 = vpop.f32.mrb[0].mxu0
          %v5163 = vadd.f32 0.0, %v5162
          %v5164 = vpop.f32.mrb[0].mxu0
          %5165 = vmatprep.mubr.bf16.mxu0 0
          %5166 = vmatmul.mubr.bf16.gmra.mrb[0].mxu0 %v4916
          %v5167 = vpop.f32.mrb[0].mxu0
          %v5168 = vadd.f32 0.0, %v5167
          %v5169 = vpop.f32.mrb[0].mxu0
          %v5170 = vpop.f32.mrb[0].mxu0
          %v5171 = vadd.f32 0.0, %v5170
          %v5172 = vpop.f32.mrb[0].mxu0
          %5173 = vmatprep.mubr.bf16.mxu0 0
          %5174 = vmatmul.mubr.bf16.gmra.mrb[0].mxu0 %v4917
          %v5175 = vpop.f32.mrb[0].mxu0
          %v5176 = vadd.f32 0.0, %v5175
          %v5177 = vpop.f32.mrb[0].mxu0
          %v5178 = vpop.f32.mrb[0].mxu0
          %v5179 = vadd.f32 0.0, %v5178
          %v5180 = vpop.f32.mrb[0].mxu0
          %5181 = vmatprep.mubr.bf16.mxu0 0
          %5182 = vmatmul.mubr.bf16.gmra.mrb[0].mxu0 %v4918
          %v5183 = vpop.f32.mrb[0].mxu0
          %v5184 = vadd.f32 0.0, %v5183
          %v5185 = vpop.f32.mrb[0].mxu0
          %v5186 = vpop.f32.mrb[0].mxu0
          %v5187 = vadd.f32 0.0, %v5186
          %v5188 = vpop.f32.mrb[0].mxu0
          %5189 = vmatprep.mubr.bf16.mxu0 0
          %5190 = vmatmul.mubr.bf16.gmra.mrb[0].mxu0 %v4919
          %v5191 = vpop.f32.mrb[0].mxu0
          %v5192 = vadd.f32 0.0, %v5191
          %v5193 = vpop.f32.mrb[0].mxu0
          %v5194 = vpop.f32.mrb[0].mxu0
          %v5195 = vadd.f32 0.0, %v5194
          %v5196 = vpop.f32.mrb[0].mxu0
          %5197 = vmatprep.mubr.bf16.mxu0 0
          %5198 = vmatmul.mubr.bf16.gmra.mrb[0].mxu0 %v4920
          %v5199 = vpop.f32.mrb[0].mxu0
          %v5200 = vadd.f32 0.0, %v5199
          %v5201 = vpop.f32.mrb[0].mxu0
          %v5202 = vpop.f32.mrb[0].mxu0
          %v5203 = vadd.f32 0.0, %v5202
          %v5204 = vpop.f32.mrb[0].mxu0
          %5205 = vmatprep.mubr.bf16.mxu0 0
          %5206 = vmatmul.mubr.bf16.gmra.mrb[0].mxu0 %v4921
          %v5207 = vpop.f32.mrb[0].mxu0
          %v5208 = vadd.f32 0.0, %v5207
          %v5209 = vpop.f32.mrb[0].mxu0
          %v5210 = vpop.f32.mrb[0].mxu0
          %v5211 = vadd.f32 0.0, %v5210
          %v5212 = vpop.f32.mrb[0].mxu0
          %5213 = vmatprep.mubr.bf16.mxu0 0
          %5214 = vmatmul.mubr.bf16.gmra.mrb[0].mxu0 %v4922
          %v5215 = vpop.f32.mrb[0].mxu0
          %v5216 = vadd.f32 0.0, %v5215
          %v5217 = vpop.f32.mrb[0].mxu0
          %v5218 = vpop.f32.mrb[0].mxu0
          %v5219 = vadd.f32 0.0, %v5218
          %v5220 = vpop.f32.mrb[0].mxu0
          %5221 = vdwg.mxu0
          %5222 = vmatprep.subr.bf16.mxu0 0
          %5223 = vmatpush1.bf16.msra.mxu0 %v2933
          %5224 = vmatprep.subr.bf16.mxu0 0
          %5225 = vmatpush1.bf16.msra.mxu0 %v2934
          %5226 = vmatprep.subr.bf16.mxu0 0
          %5227 = vmatpush1.bf16.msra.mxu0 %v2935
          %5228 = vmatprep.subr.bf16.mxu0 0
          %5229 = vmatpush1.bf16.msra.mxu0 %v2936
          %5230 = vmatprep.subr.bf16.mxu0 0
          %5231 = vmatpush1.bf16.msra.mxu0 %v2937
          %5232 = vmatprep.subr.bf16.mxu0 0
          %5233 = vmatpush1.bf16.msra.mxu0 %v2938
          %5234 = vmatprep.subr.bf16.mxu0 0
          %5235 = vmatpush1.bf16.msra.mxu0 %v2939
          %5236 = vmatprep.subr.bf16.mxu0 0
          %5237 = vmatpush1.bf16.msra.mxu0 %v2940
          %5238 = vmatprep.subr.bf16.mxu0 0
          %5239 = vmatpush1.bf16.msra.mxu0 0
          %5240 = vmatprep.subr.bf16.mxu0 0
          %5241 = vmatpush1.bf16.msra.mxu0 0
          %5242 = vmatprep.subr.bf16.mxu0 0
          %5243 = vmatpush1.bf16.msra.mxu0 0
          %5244 = vmatprep.subr.bf16.mxu0 0
          %5245 = vmatpush1.bf16.msra.mxu0 0
          %5246 = vmatprep.subr.bf16.mxu0 0
          %5247 = vmatpush1.bf16.msra.mxu0 0
          %5248 = vmatprep.subr.bf16.mxu0 0
          %5249 = vmatpush1.bf16.msra.mxu0 0
          %5250 = vmatprep.subr.bf16.mxu0 0
          %5251 = vmatpush1.bf16.msra.mxu0 0
          %5252 = vmatprep.subr.bf16.mxu0 0
          %5253 = vmatpush1.bf16.msra.mxu0 0
          %5254 = vmatprep.mubr.bf16.mxu0 0
          %5255 = vmatmul.mubr.bf16.gmra.mrb[0].mxu0 %v4923
          %v5256 = vpop.f32.mrb[0].mxu0
          %v5257 = vadd.f32 0.0, %v5256
          %v5258 = vpop.f32.mrb[0].mxu0
          %v5259 = vpop.f32.mrb[0].mxu0
          %v5260 = vadd.f32 0.0, %v5259
          %v5261 = vpop.f32.mrb[0].mxu0
          %5262 = vmatprep.mubr.bf16.mxu0 0
          %5263 = vmatmul.mubr.bf16.gmra.mrb[0].mxu0 %v4924
          %v5264 = vpop.f32.mrb[0].mxu0
          %v5265 = vadd.f32 0.0, %v5264
          %v5266 = vpop.f32.mrb[0].mxu0
          %v5267 = vpop.f32.mrb[0].mxu0
          %v5268 = vadd.f32 0.0, %v5267
          %v5269 = vpop.f32.mrb[0].mxu0
          %5270 = vmatprep.mubr.bf16.mxu0 0
          %5271 = vmatmul.mubr.bf16.gmra.mrb[0].mxu0 %v4925
          %v5272 = vpop.f32.mrb[0].mxu0
          %v5273 = vadd.f32 0.0, %v5272
          %v5274 = vpop.f32.mrb[0].mxu0
          %v5275 = vpop.f32.mrb[0].mxu0
          %v5276 = vadd.f32 0.0, %v5275
          %v5277 = vpop.f32.mrb[0].mxu0
          %5278 = vmatprep.mubr.bf16.mxu0 0
          %5279 = vmatmul.mubr.bf16.gmra.mrb[0].mxu0 %v4926
          %v5280 = vpop.f32.mrb[0].mxu0
          %v5281 = vadd.f32 0.0, %v5280
          %v5282 = vpop.f32.mrb[0].mxu0
          %v5283 = vpop.f32.mrb[0].mxu0
          %v5284 = vadd.f32 0.0, %v5283
          %v5285 = vpop.f32.mrb[0].mxu0
          %5286 = vmatprep.mubr.bf16.mxu0 0
          %5287 = vmatmul.mubr.bf16.gmra.mrb[0].mxu0 %v4927
          %v5288 = vpop.f32.mrb[0].mxu0
          %v5289 = vadd.f32 0.0, %v5288
          %v5290 = vpop.f32.mrb[0].mxu0
          %v5291 = vpop.f32.mrb[0].mxu0
          %v5292 = vadd.f32 0.0, %v5291
          %v5293 = vpop.f32.mrb[0].mxu0
          %5294 = vmatprep.mubr.bf16.mxu0 0
          %5295 = vmatmul.mubr.bf16.gmra.mrb[0].mxu0 %v4928
          %v5296 = vpop.f32.mrb[0].mxu0
          %v5297 = vadd.f32 0.0, %v5296
          %v5298 = vpop.f32.mrb[0].mxu0
          %v5299 = vpop.f32.mrb[0].mxu0
          %v5300 = vadd.f32 0.0, %v5299
          %v5301 = vpop.f32.mrb[0].mxu0
          %5302 = vmatprep.mubr.bf16.mxu0 0
          %5303 = vmatmul.mubr.bf16.gmra.mrb[0].mxu0 %v4929
          %v5304 = vpop.f32.mrb[0].mxu0
          %v5305 = vadd.f32 0.0, %v5304
          %v5306 = vpop.f32.mrb[0].mxu0
          %v5307 = vpop.f32.mrb[0].mxu0
          %v5308 = vadd.f32 0.0, %v5307
          %v5309 = vpop.f32.mrb[0].mxu0
          %5310 = vmatprep.mubr.bf16.mxu0 0
          %5311 = vmatmul.mubr.bf16.gmra.mrb[0].mxu0 %v4930
          %v5312 = vpop.f32.mrb[0].mxu0
          %v5313 = vadd.f32 0.0, %v5312
          %v5314 = vpop.f32.mrb[0].mxu0
          %v5315 = vpop.f32.mrb[0].mxu0
          %v5316 = vadd.f32 0.0, %v5315
          %v5317 = vpop.f32.mrb[0].mxu0
          %5318 = vdwg.mxu0
          %v5319 = vld [vmem:[#allocation7] sm:$0xff]
          %v5320 = vld [vmem:[#allocation7 + $0x8] sm:$0xff]
          %v5321 = vld [vmem:[#allocation7 + $0x10] sm:$0xff]
          %v5322 = vld [vmem:[#allocation7 + $0x18] sm:$0xff]
          %v5323 = vld [vmem:[#allocation7 + $0x20] sm:$0xff]
          %v5324 = vld [vmem:[#allocation7 + $0x28] sm:$0xff]
          %v5325 = vld [vmem:[#allocation7 + $0x30] sm:$0xff]
          %v5326 = vld [vmem:[#allocation7 + $0x38] sm:$0xff]
          %v5327 = vld [vmem:[#allocation7 + $0x40] sm:$0xff]
          %v5328 = vld [vmem:[#allocation7 + $0x48] sm:$0xff]
          %v5329 = vld [vmem:[#allocation7 + $0x50] sm:$0xff]
          %v5330 = vld [vmem:[#allocation7 + $0x58] sm:$0xff]
          %v5331 = vld [vmem:[#allocation7 + $0x60] sm:$0xff]
          %v5332 = vld [vmem:[#allocation7 + $0x68] sm:$0xff]
          %v5333 = vld [vmem:[#allocation7 + $0x70] sm:$0xff]
          %v5334 = vld [vmem:[#allocation7 + $0x78] sm:$0xff]
          %v5335 = vld [vmem:[#allocation7 + $0x80] sm:$0xff]
          %v5336 = vld [vmem:[#allocation7 + $0x88] sm:$0xff]
          %v5337 = vld [vmem:[#allocation7 + $0x90] sm:$0xff]
          %v5338 = vld [vmem:[#allocation7 + $0x98] sm:$0xff]
          %v5339 = vld [vmem:[#allocation7 + $0xa0] sm:$0xff]
          %v5340 = vld [vmem:[#allocation7 + $0xa8] sm:$0xff]
          %v5341 = vld [vmem:[#allocation7 + $0xb0] sm:$0xff]
          %v5342 = vld [vmem:[#allocation7 + $0xb8] sm:$0xff]
          %v5343 = vld [vmem:[#allocation7 + $0xc0] sm:$0xff]
          %v5344 = vld [vmem:[#allocation7 + $0xc8] sm:$0xff]
          %v5345 = vld [vmem:[#allocation7 + $0xd0] sm:$0xff]
          %v5346 = vld [vmem:[#allocation7 + $0xd8] sm:$0xff]
          %v5347 = vld [vmem:[#allocation7 + $0xe0] sm:$0xff]
          %v5348 = vld [vmem:[#allocation7 + $0xe8] sm:$0xff]
          %v5349 = vld [vmem:[#allocation7 + $0xf0] sm:$0xff]
          %v5350 = vld [vmem:[#allocation7 + $0xf8] sm:$0xff]
          %v5351 = vld [vmem:[#allocation7 + $0x100] sm:$0xff]
          %v5352 = vld [vmem:[#allocation7 + $0x108] sm:$0xff]
          %v5353 = vld [vmem:[#allocation7 + $0x110] sm:$0xff]
          %v5354 = vld [vmem:[#allocation7 + $0x118] sm:$0xff]
          %v5355 = vld [vmem:[#allocation7 + $0x120] sm:$0xff]
          %v5356 = vld [vmem:[#allocation7 + $0x128] sm:$0xff]
          %v5357 = vld [vmem:[#allocation7 + $0x130] sm:$0xff]
          %v5358 = vld [vmem:[#allocation7 + $0x138] sm:$0xff]
          %v5359 = vld [vmem:[#allocation7 + $0x140] sm:$0xff]
          %v5360 = vld [vmem:[#allocation7 + $0x148] sm:$0xff]
          %v5361 = vld [vmem:[#allocation7 + $0x150] sm:$0xff]
          %v5362 = vld [vmem:[#allocation7 + $0x158] sm:$0xff]
          %v5363 = vld [vmem:[#allocation7 + $0x160] sm:$0xff]
          %v5364 = vld [vmem:[#allocation7 + $0x168] sm:$0xff]
          %v5365 = vld [vmem:[#allocation7 + $0x170] sm:$0xff]
          %v5366 = vld [vmem:[#allocation7 + $0x178] sm:$0xff]
          %v5367 = vld [vmem:[#allocation7 + $0x180] sm:$0xff]
          %v5368 = vld [vmem:[#allocation7 + $0x188] sm:$0xff]
          %v5369 = vld [vmem:[#allocation7 + $0x190] sm:$0xff]
          %v5370 = vld [vmem:[#allocation7 + $0x198] sm:$0xff]
          %v5371 = vld [vmem:[#allocation7 + $0x1a0] sm:$0xff]
          %v5372 = vld [vmem:[#allocation7 + $0x1a8] sm:$0xff]
          %v5373 = vld [vmem:[#allocation7 + $0x1b0] sm:$0xff]
          %v5374 = vld [vmem:[#allocation7 + $0x1b8] sm:$0xff]
          %v5375 = vld [vmem:[#allocation7 + $0x1c0] sm:$0xff]
          %v5376 = vld [vmem:[#allocation7 + $0x1c8] sm:$0xff]
          %v5377 = vld [vmem:[#allocation7 + $0x1d0] sm:$0xff]
          %v5378 = vld [vmem:[#allocation7 + $0x1d8] sm:$0xff]
          %v5379 = vld [vmem:[#allocation7 + $0x1e0] sm:$0xff]
          %v5380 = vld [vmem:[#allocation7 + $0x1e8] sm:$0xff]
          %v5381 = vld [vmem:[#allocation7 + $0x1f0] sm:$0xff]
          %v5382 = vld [vmem:[#allocation7 + $0x1f8] sm:$0xff]
          %5384 = vset.pattern.permute.xlu0 0
          %5385 = vperm.xlu0 %5384, %v3875
          %v5386 = vpop.permute.xlu0 %5385
          %5389 = vset.pattern.permute.xlu0 0
          %5390 = vperm.xlu0 %5389, %v3877
          %v5391 = vpop.permute.xlu0 %5390
          %5394 = vset.pattern.permute.xlu0 0
          %5395 = vperm.xlu0 %5394, %v3879
          %v5396 = vpop.permute.xlu0 %5395
          %5399 = vset.pattern.permute.xlu0 0
          %5400 = vperm.xlu0 %5399, %v3881
          %v5401 = vpop.permute.xlu0 %5400
          %5404 = vset.pattern.permute.xlu0 0
          %5405 = vperm.xlu0 %5404, %v3883
          %v5406 = vpop.permute.xlu0 %5405
          %5409 = vset.pattern.permute.xlu0 0
          %5410 = vperm.xlu0 %5409, %v3885
          %v5411 = vpop.permute.xlu0 %5410
          %5414 = vset.pattern.permute.xlu0 0
          %5415 = vperm.xlu0 %5414, %v3887
          %v5416 = vpop.permute.xlu0 %5415
          %5419 = vset.pattern.permute.xlu0 0
          %5420 = vperm.xlu0 %5419, %v3889
          %v5421 = vpop.permute.xlu0 %5420
          %5424 = vset.pattern.permute.xlu0 0
          %5425 = vperm.xlu0 %5424, %v3891
          %v5426 = vpop.permute.xlu0 %5425
          %5429 = vset.pattern.permute.xlu0 0
          %5430 = vperm.xlu0 %5429, %v3893
          %v5431 = vpop.permute.xlu0 %5430
          %5434 = vset.pattern.permute.xlu0 0
          %5435 = vperm.xlu0 %5434, %v3895
          %v5436 = vpop.permute.xlu0 %5435
          %5439 = vset.pattern.permute.xlu0 0
          %5440 = vperm.xlu0 %5439, %v3897
          %v5441 = vpop.permute.xlu0 %5440
          %5444 = vset.pattern.permute.xlu0 0
          %5445 = vperm.xlu0 %5444, %v3899
          %v5446 = vpop.permute.xlu0 %5445
          %5449 = vset.pattern.permute.xlu0 0
          %5450 = vperm.xlu0 %5449, %v3901
          %v5451 = vpop.permute.xlu0 %5450
          %5454 = vset.pattern.permute.xlu0 0
          %5455 = vperm.xlu0 %5454, %v3903
          %v5456 = vpop.permute.xlu0 %5455
          %5459 = vset.pattern.permute.xlu0 0
          %5460 = vperm.xlu0 %5459, %v3905
          %v5461 = vpop.permute.xlu0 %5460
          %5464 = vset.pattern.permute.xlu0 0
          %5465 = vperm.xlu0 %5464, %v3907
          %v5466 = vpop.permute.xlu0 %5465
          %5469 = vset.pattern.permute.xlu0 0
          %5470 = vperm.xlu0 %5469, %v3909
          %v5471 = vpop.permute.xlu0 %5470
          %5474 = vset.pattern.permute.xlu0 0
          %5475 = vperm.xlu0 %5474, %v3911
          %v5476 = vpop.permute.xlu0 %5475
          %5479 = vset.pattern.permute.xlu0 0
          %5480 = vperm.xlu0 %5479, %v3913
          %v5481 = vpop.permute.xlu0 %5480
          %5484 = vset.pattern.permute.xlu0 0
          %5485 = vperm.xlu0 %5484, %v3915
          %v5486 = vpop.permute.xlu0 %5485
          %5489 = vset.pattern.permute.xlu0 0
          %5490 = vperm.xlu0 %5489, %v3917
          %v5491 = vpop.permute.xlu0 %5490
          %5494 = vset.pattern.permute.xlu0 0
          %5495 = vperm.xlu0 %5494, %v3919
          %v5496 = vpop.permute.xlu0 %5495
          %5499 = vset.pattern.permute.xlu0 0
          %5500 = vperm.xlu0 %5499, %v3921
          %v5501 = vpop.permute.xlu0 %5500
          %5504 = vset.pattern.permute.xlu0 0
          %5505 = vperm.xlu0 %5504, %v3923
          %v5506 = vpop.permute.xlu0 %5505
          %5509 = vset.pattern.permute.xlu0 0
          %5510 = vperm.xlu0 %5509, %v3925
          %v5511 = vpop.permute.xlu0 %5510
          %5514 = vset.pattern.permute.xlu0 0
          %5515 = vperm.xlu0 %5514, %v3927
          %v5516 = vpop.permute.xlu0 %5515
          %5519 = vset.pattern.permute.xlu0 0
          %5520 = vperm.xlu0 %5519, %v3929
          %v5521 = vpop.permute.xlu0 %5520
          %5524 = vset.pattern.permute.xlu0 0
          %5525 = vperm.xlu0 %5524, %v3931
          %v5526 = vpop.permute.xlu0 %5525
          %5529 = vset.pattern.permute.xlu0 0
          %5530 = vperm.xlu0 %5529, %v3933
          %v5531 = vpop.permute.xlu0 %5530
          %5534 = vset.pattern.permute.xlu0 0
          %5535 = vperm.xlu0 %5534, %v3935
          %v5536 = vpop.permute.xlu0 %5535
          %5539 = vset.pattern.permute.xlu0 0
          %5540 = vperm.xlu0 %5539, %v3937
          %v5541 = vpop.permute.xlu0 %5540
          %5544 = vset.pattern.permute.xlu0 0
          %5545 = vperm.xlu0 %5544, %v3939
          %v5546 = vpop.permute.xlu0 %5545
          %5549 = vset.pattern.permute.xlu0 0
          %5550 = vperm.xlu0 %5549, %v3941
          %v5551 = vpop.permute.xlu0 %5550
          %5554 = vset.pattern.permute.xlu0 0
          %5555 = vperm.xlu0 %5554, %v3943
          %v5556 = vpop.permute.xlu0 %5555
          %5559 = vset.pattern.permute.xlu0 0
          %5560 = vperm.xlu0 %5559, %v3945
          %v5561 = vpop.permute.xlu0 %5560
          %5564 = vset.pattern.permute.xlu0 0
          %5565 = vperm.xlu0 %5564, %v3947
          %v5566 = vpop.permute.xlu0 %5565
          %5569 = vset.pattern.permute.xlu0 0
          %5570 = vperm.xlu0 %5569, %v3949
          %v5571 = vpop.permute.xlu0 %5570
          %5574 = vset.pattern.permute.xlu0 0
          %5575 = vperm.xlu0 %5574, %v3951
          %v5576 = vpop.permute.xlu0 %5575
          %5579 = vset.pattern.permute.xlu0 0
          %5580 = vperm.xlu0 %5579, %v3953
          %v5581 = vpop.permute.xlu0 %5580
          %5584 = vset.pattern.permute.xlu0 0
          %5585 = vperm.xlu0 %5584, %v3955
          %v5586 = vpop.permute.xlu0 %5585
          %5589 = vset.pattern.permute.xlu0 0
          %5590 = vperm.xlu0 %5589, %v3957
          %v5591 = vpop.permute.xlu0 %5590
          %5594 = vset.pattern.permute.xlu0 0
          %5595 = vperm.xlu0 %5594, %v3959
          %v5596 = vpop.permute.xlu0 %5595
          %5599 = vset.pattern.permute.xlu0 0
          %5600 = vperm.xlu0 %5599, %v3961
          %v5601 = vpop.permute.xlu0 %5600
          %5604 = vset.pattern.permute.xlu0 0
          %5605 = vperm.xlu0 %5604, %v3963
          %v5606 = vpop.permute.xlu0 %5605
          %5609 = vset.pattern.permute.xlu0 0
          %5610 = vperm.xlu0 %5609, %v3965
          %v5611 = vpop.permute.xlu0 %5610
          %5614 = vset.pattern.permute.xlu0 0
          %5615 = vperm.xlu0 %5614, %v3967
          %v5616 = vpop.permute.xlu0 %5615
          %5619 = vset.pattern.permute.xlu0 0
          %5620 = vperm.xlu0 %5619, %v3969
          %v5621 = vpop.permute.xlu0 %5620
          %5624 = vset.pattern.permute.xlu0 0
          %5625 = vperm.xlu0 %5624, %v3971
          %v5626 = vpop.permute.xlu0 %5625
          %5629 = vset.pattern.permute.xlu0 0
          %5630 = vperm.xlu0 %5629, %v3973
          %v5631 = vpop.permute.xlu0 %5630
          %5634 = vset.pattern.permute.xlu0 0
          %5635 = vperm.xlu0 %5634, %v3975
          %v5636 = vpop.permute.xlu0 %5635
          %5639 = vset.pattern.permute.xlu0 0
          %5640 = vperm.xlu0 %5639, %v3977
          %v5641 = vpop.permute.xlu0 %5640
          %5644 = vset.pattern.permute.xlu0 0
          %5645 = vperm.xlu0 %5644, %v3979
          %v5646 = vpop.permute.xlu0 %5645
          %5649 = vset.pattern.permute.xlu0 0
          %5650 = vperm.xlu0 %5649, %v3981
          %v5651 = vpop.permute.xlu0 %5650
          %5654 = vset.pattern.permute.xlu0 0
          %5655 = vperm.xlu0 %5654, %v3983
          %v5656 = vpop.permute.xlu0 %5655
          %5659 = vset.pattern.permute.xlu0 0
          %5660 = vperm.xlu0 %5659, %v3985
          %v5661 = vpop.permute.xlu0 %5660
          %5664 = vset.pattern.permute.xlu0 0
          %5665 = vperm.xlu0 %5664, %v3987
          %v5666 = vpop.permute.xlu0 %5665
          %5669 = vset.pattern.permute.xlu0 0
          %5670 = vperm.xlu0 %5669, %v3989
          %v5671 = vpop.permute.xlu0 %5670
          %5674 = vset.pattern.permute.xlu0 0
          %5675 = vperm.xlu0 %5674, %v3991
          %v5676 = vpop.permute.xlu0 %5675
          %5679 = vset.pattern.permute.xlu0 0
          %5680 = vperm.xlu0 %5679, %v3993
          %v5681 = vpop.permute.xlu0 %5680
          %5684 = vset.pattern.permute.xlu0 0
          %5685 = vperm.xlu0 %5684, %v3995
          %v5686 = vpop.permute.xlu0 %5685
          %5689 = vset.pattern.permute.xlu0 0
          %5690 = vperm.xlu0 %5689, %v3997
          %v5691 = vpop.permute.xlu0 %5690
          %5694 = vset.pattern.permute.xlu0 0
          %5695 = vperm.xlu0 %5694, %v3999
          %v5696 = vpop.permute.xlu0 %5695
          %5699 = vset.pattern.permute.xlu0 0
          %5700 = vperm.xlu0 %5699, %v4001
          %v5701 = vpop.permute.xlu0 %5700
          %v5703 = vmul.f32 %v5386, %v5319
          %v5704 = vmul.f32 %v5391, %v5320
          %v5705 = vmul.f32 %v5396, %v5321
          %v5706 = vmul.f32 %v5401, %v5322
          %v5707 = vmul.f32 %v5406, %v5323
          %v5708 = vmul.f32 %v5411, %v5324
          %v5709 = vmul.f32 %v5416, %v5325
          %v5710 = vmul.f32 %v5421, %v5326
          %v5711 = vmul.f32 %v5426, %v5327
          %v5712 = vmul.f32 %v5431, %v5328
          %v5713 = vmul.f32 %v5436, %v5329
          %v5714 = vmul.f32 %v5441, %v5330
          %v5715 = vmul.f32 %v5446, %v5331
          %v5716 = vmul.f32 %v5451, %v5332
          %v5717 = vmul.f32 %v5456, %v5333
          %v5718 = vmul.f32 %v5461, %v5334
          %v5719 = vmul.f32 %v5466, %v5335
          %v5720 = vmul.f32 %v5471, %v5336
          %v5721 = vmul.f32 %v5476, %v5337
          %v5722 = vmul.f32 %v5481, %v5338
          %v5723 = vmul.f32 %v5486, %v5339
          %v5724 = vmul.f32 %v5491, %v5340
          %v5725 = vmul.f32 %v5496, %v5341
          %v5726 = vmul.f32 %v5501, %v5342
          %v5727 = vmul.f32 %v5506, %v5343
          %v5728 = vmul.f32 %v5511, %v5344
          %v5729 = vmul.f32 %v5516, %v5345
          %v5730 = vmul.f32 %v5521, %v5346
          %v5731 = vmul.f32 %v5526, %v5347
          %v5732 = vmul.f32 %v5531, %v5348
          %v5733 = vmul.f32 %v5536, %v5349
          %v5734 = vmul.f32 %v5541, %v5350
          %v5735 = vmul.f32 %v5546, %v5351
          %v5736 = vmul.f32 %v5551, %v5352
          %v5737 = vmul.f32 %v5556, %v5353
          %v5738 = vmul.f32 %v5561, %v5354
          %v5739 = vmul.f32 %v5566, %v5355
          %v5740 = vmul.f32 %v5571, %v5356
          %v5741 = vmul.f32 %v5576, %v5357
          %v5742 = vmul.f32 %v5581, %v5358
          %v5743 = vmul.f32 %v5586, %v5359
          %v5744 = vmul.f32 %v5591, %v5360
          %v5745 = vmul.f32 %v5596, %v5361
          %v5746 = vmul.f32 %v5601, %v5362
          %v5747 = vmul.f32 %v5606, %v5363
          %v5748 = vmul.f32 %v5611, %v5364
          %v5749 = vmul.f32 %v5616, %v5365
          %v5750 = vmul.f32 %v5621, %v5366
          %v5751 = vmul.f32 %v5626, %v5367
          %v5752 = vmul.f32 %v5631, %v5368
          %v5753 = vmul.f32 %v5636, %v5369
          %v5754 = vmul.f32 %v5641, %v5370
          %v5755 = vmul.f32 %v5646, %v5371
          %v5756 = vmul.f32 %v5651, %v5372
          %v5757 = vmul.f32 %v5656, %v5373
          %v5758 = vmul.f32 %v5661, %v5374
          %v5759 = vmul.f32 %v5666, %v5375
          %v5760 = vmul.f32 %v5671, %v5376
          %v5761 = vmul.f32 %v5676, %v5377
          %v5762 = vmul.f32 %v5681, %v5378
          %v5763 = vmul.f32 %v5686, %v5379
          %v5764 = vmul.f32 %v5691, %v5380
          %v5765 = vmul.f32 %v5696, %v5381
          %v5766 = vmul.f32 %v5701, %v5382
          %v5767 = vadd.f32 %v5703, %v4966
          %v5768 = vadd.f32 %v5704, %v4969
          %v5769 = vadd.f32 %v5705, %v4974
          %v5770 = vadd.f32 %v5706, %v4977
          %v5771 = vadd.f32 %v5707, %v4982
          %v5772 = vadd.f32 %v5708, %v4985
          %v5773 = vadd.f32 %v5709, %v4990
          %v5774 = vadd.f32 %v5710, %v4993
          %v5775 = vadd.f32 %v5711, %v4998
          %v5776 = vadd.f32 %v5712, %v5001
          %v5777 = vadd.f32 %v5713, %v5006
          %v5778 = vadd.f32 %v5714, %v5009
          %v5779 = vadd.f32 %v5715, %v5014
          %v5780 = vadd.f32 %v5716, %v5017
          %v5781 = vadd.f32 %v5717, %v5022
          %v5782 = vadd.f32 %v5718, %v5025
          %v5783 = vadd.f32 %v5719, %v5063
          %v5784 = vadd.f32 %v5720, %v5066
          %v5785 = vadd.f32 %v5721, %v5071
          %v5786 = vadd.f32 %v5722, %v5074
          %v5787 = vadd.f32 %v5723, %v5079
          %v5788 = vadd.f32 %v5724, %v5082
          %v5789 = vadd.f32 %v5725, %v5087
          %v5790 = vadd.f32 %v5726, %v5090
          %v5791 = vadd.f32 %v5727, %v5095
          %v5792 = vadd.f32 %v5728, %v5098
          %v5793 = vadd.f32 %v5729, %v5103
          %v5794 = vadd.f32 %v5730, %v5106
          %v5795 = vadd.f32 %v5731, %v5111
          %v5796 = vadd.f32 %v5732, %v5114
          %v5797 = vadd.f32 %v5733, %v5119
          %v5798 = vadd.f32 %v5734, %v5122
          %v5799 = vadd.f32 %v5735, %v5160
          %v5800 = vadd.f32 %v5736, %v5163
          %v5801 = vadd.f32 %v5737, %v5168
          %v5802 = vadd.f32 %v5738, %v5171
          %v5803 = vadd.f32 %v5739, %v5176
          %v5804 = vadd.f32 %v5740, %v5179
          %v5805 = vadd.f32 %v5741, %v5184
          %v5806 = vadd.f32 %v5742, %v5187
          %v5807 = vadd.f32 %v5743, %v5192
          %v5808 = vadd.f32 %v5744, %v5195
          %v5809 = vadd.f32 %v5745, %v5200
          %v5810 = vadd.f32 %v5746, %v5203
          %v5811 = vadd.f32 %v5747, %v5208
          %v5812 = vadd.f32 %v5748, %v5211
          %v5813 = vadd.f32 %v5749, %v5216
          %v5814 = vadd.f32 %v5750, %v5219
          %v5815 = vadd.f32 %v5751, %v5257
          %v5816 = vadd.f32 %v5752, %v5260
          %v5817 = vadd.f32 %v5753, %v5265
          %v5818 = vadd.f32 %v5754, %v5268
          %v5819 = vadd.f32 %v5755, %v5273
          %v5820 = vadd.f32 %v5756, %v5276
          %v5821 = vadd.f32 %v5757, %v5281
          %v5822 = vadd.f32 %v5758, %v5284
          %v5823 = vadd.f32 %v5759, %v5289
          %v5824 = vadd.f32 %v5760, %v5292
          %v5825 = vadd.f32 %v5761, %v5297
          %v5826 = vadd.f32 %v5762, %v5300
          %v5827 = vadd.f32 %v5763, %v5305
          %v5828 = vadd.f32 %v5764, %v5308
          %v5829 = vadd.f32 %v5765, %v5313
          %v5830 = vadd.f32 %v5766, %v5316
          %5831 = vst.msk [vmem:[#allocation7] sm:$0xff] %vm2973, %v5767
          %5832 = vst.msk [vmem:[#allocation7 + $0x8] sm:$0xff] %vm2973, %v5768
          %5833 = vst.msk [vmem:[#allocation7 + $0x10] sm:$0xff] %vm2973, %v5769
          %5834 = vst.msk [vmem:[#allocation7 + $0x18] sm:$0xff] %vm2973, %v5770
          %5835 = vst.msk [vmem:[#allocation7 + $0x20] sm:$0xff] %vm2973, %v5771
          %5836 = vst.msk [vmem:[#allocation7 + $0x28] sm:$0xff] %vm2973, %v5772
          %5837 = vst.msk [vmem:[#allocation7 + $0x30] sm:$0xff] %vm2973, %v5773
          %5838 = vst.msk [vmem:[#allocation7 + $0x38] sm:$0xff] %vm2973, %v5774
          %5839 = vst.msk [vmem:[#allocation7 + $0x40] sm:$0xff] %vm2973, %v5775
          %5840 = vst.msk [vmem:[#allocation7 + $0x48] sm:$0xff] %vm2973, %v5776
          %5841 = vst.msk [vmem:[#allocation7 + $0x50] sm:$0xff] %vm2973, %v5777
          %5842 = vst.msk [vmem:[#allocation7 + $0x58] sm:$0xff] %vm2973, %v5778
          %5843 = vst.msk [vmem:[#allocation7 + $0x60] sm:$0xff] %vm2973, %v5779
          %5844 = vst.msk [vmem:[#allocation7 + $0x68] sm:$0xff] %vm2973, %v5780
          %5845 = vst.msk [vmem:[#allocation7 + $0x70] sm:$0xff] %vm2973, %v5781
          %5846 = vst.msk [vmem:[#allocation7 + $0x78] sm:$0xff] %vm2973, %v5782
          %5847 = vst.msk [vmem:[#allocation7 + $0x80] sm:$0xff] %vm2973, %v5783
          %5848 = vst.msk [vmem:[#allocation7 + $0x88] sm:$0xff] %vm2973, %v5784
          %5849 = vst.msk [vmem:[#allocation7 + $0x90] sm:$0xff] %vm2973, %v5785
          %5850 = vst.msk [vmem:[#allocation7 + $0x98] sm:$0xff] %vm2973, %v5786
          %5851 = vst.msk [vmem:[#allocation7 + $0xa0] sm:$0xff] %vm2973, %v5787
          %5852 = vst.msk [vmem:[#allocation7 + $0xa8] sm:$0xff] %vm2973, %v5788
          %5853 = vst.msk [vmem:[#allocation7 + $0xb0] sm:$0xff] %vm2973, %v5789
          %5854 = vst.msk [vmem:[#allocation7 + $0xb8] sm:$0xff] %vm2973, %v5790
          %5855 = vst.msk [vmem:[#allocation7 + $0xc0] sm:$0xff] %vm2973, %v5791
          %5856 = vst.msk [vmem:[#allocation7 + $0xc8] sm:$0xff] %vm2973, %v5792
          %5857 = vst.msk [vmem:[#allocation7 + $0xd0] sm:$0xff] %vm2973, %v5793
          %5858 = vst.msk [vmem:[#allocation7 + $0xd8] sm:$0xff] %vm2973, %v5794
          %5859 = vst.msk [vmem:[#allocation7 + $0xe0] sm:$0xff] %vm2973, %v5795
          %5860 = vst.msk [vmem:[#allocation7 + $0xe8] sm:$0xff] %vm2973, %v5796
          %5861 = vst.msk [vmem:[#allocation7 + $0xf0] sm:$0xff] %vm2973, %v5797
          %5862 = vst.msk [vmem:[#allocation7 + $0xf8] sm:$0xff] %vm2973, %v5798
          %5863 = vst.msk [vmem:[#allocation7 + $0x100] sm:$0xff] %vm2973, %v5799
          %5864 = vst.msk [vmem:[#allocation7 + $0x108] sm:$0xff] %vm2973, %v5800
          %5865 = vst.msk [vmem:[#allocation7 + $0x110] sm:$0xff] %vm2973, %v5801
          %5866 = vst.msk [vmem:[#allocation7 + $0x118] sm:$0xff] %vm2973, %v5802
          %5867 = vst.msk [vmem:[#allocation7 + $0x120] sm:$0xff] %vm2973, %v5803
          %5868 = vst.msk [vmem:[#allocation7 + $0x128] sm:$0xff] %vm2973, %v5804
          %5869 = vst.msk [vmem:[#allocation7 + $0x130] sm:$0xff] %vm2973, %v5805
          %5870 = vst.msk [vmem:[#allocation7 + $0x138] sm:$0xff] %vm2973, %v5806
          %5871 = vst.msk [vmem:[#allocation7 + $0x140] sm:$0xff] %vm2973, %v5807
          %5872 = vst.msk [vmem:[#allocation7 + $0x148] sm:$0xff] %vm2973, %v5808
          %5873 = vst.msk [vmem:[#allocation7 + $0x150] sm:$0xff] %vm2973, %v5809
          %5874 = vst.msk [vmem:[#allocation7 + $0x158] sm:$0xff] %vm2973, %v5810
          %5875 = vst.msk [vmem:[#allocation7 + $0x160] sm:$0xff] %vm2973, %v5811
          %5876 = vst.msk [vmem:[#allocation7 + $0x168] sm:$0xff] %vm2973, %v5812
          %5877 = vst.msk [vmem:[#allocation7 + $0x170] sm:$0xff] %vm2973, %v5813
          %5878 = vst.msk [vmem:[#allocation7 + $0x178] sm:$0xff] %vm2973, %v5814
          %5879 = vst.msk [vmem:[#allocation7 + $0x180] sm:$0xff] %vm2973, %v5815
          %5880 = vst.msk [vmem:[#allocation7 + $0x188] sm:$0xff] %vm2973, %v5816
          %5881 = vst.msk [vmem:[#allocation7 + $0x190] sm:$0xff] %vm2973, %v5817
          %5882 = vst.msk [vmem:[#allocation7 + $0x198] sm:$0xff] %vm2973, %v5818
          %5883 = vst.msk [vmem:[#allocation7 + $0x1a0] sm:$0xff] %vm2973, %v5819
          %5884 = vst.msk [vmem:[#allocation7 + $0x1a8] sm:$0xff] %vm2973, %v5820
          %5885 = vst.msk [vmem:[#allocation7 + $0x1b0] sm:$0xff] %vm2973, %v5821
          %5886 = vst.msk [vmem:[#allocation7 + $0x1b8] sm:$0xff] %vm2973, %v5822
          %5887 = vst.msk [vmem:[#allocation7 + $0x1c0] sm:$0xff] %vm2973, %v5823
          %5888 = vst.msk [vmem:[#allocation7 + $0x1c8] sm:$0xff] %vm2973, %v5824
          %5889 = vst.msk [vmem:[#allocation7 + $0x1d0] sm:$0xff] %vm2973, %v5825
          %5890 = vst.msk [vmem:[#allocation7 + $0x1d8] sm:$0xff] %vm2973, %v5826
          %5891 = vst.msk [vmem:[#allocation7 + $0x1e0] sm:$0xff] %vm2973, %v5827
          %5892 = vst.msk [vmem:[#allocation7 + $0x1e8] sm:$0xff] %vm2973, %v5828
          %5893 = vst.msk [vmem:[#allocation7 + $0x1f0] sm:$0xff] %vm2973, %v5829
          %5894 = vst.msk [vmem:[#allocation7 + $0x1f8] sm:$0xff] %vm2973, %v5830
          %5895 = vst.msk [vmem:[#allocation5] sm:$0xff] %vm4834, %v3746
          %5896 = vst.msk [vmem:[#allocation5 + $0x8] sm:$0xff] %vm4834, %v3747
          %5897 = vst.msk [vmem:[#allocation5 + $0x10] sm:$0xff] %vm4834, %v3748
          %5898 = vst.msk [vmem:[#allocation5 + $0x18] sm:$0xff] %vm4834, %v3749
          %5899 = vst.msk [vmem:[#allocation5 + $0x20] sm:$0xff] %vm4834, %v3750
          %5900 = vst.msk [vmem:[#allocation5 + $0x28] sm:$0xff] %vm4834, %v3751
          %5901 = vst.msk [vmem:[#allocation5 + $0x30] sm:$0xff] %vm4834, %v3752
          %5902 = vst.msk [vmem:[#allocation5 + $0x38] sm:$0xff] %vm4834, %v3753
          %5903 = vst.msk [vmem:[#allocation5 + $0x40] sm:$0xff] %vm4834, %v3754
          %5904 = vst.msk [vmem:[#allocation5 + $0x48] sm:$0xff] %vm4834, %v3755
          %5905 = vst.msk [vmem:[#allocation5 + $0x50] sm:$0xff] %vm4834, %v3756
          %5906 = vst.msk [vmem:[#allocation5 + $0x58] sm:$0xff] %vm4834, %v3757
          %5907 = vst.msk [vmem:[#allocation5 + $0x60] sm:$0xff] %vm4834, %v3758
          %5908 = vst.msk [vmem:[#allocation5 + $0x68] sm:$0xff] %vm4834, %v3759
          %5909 = vst.msk [vmem:[#allocation5 + $0x70] sm:$0xff] %vm4834, %v3760
          %5910 = vst.msk [vmem:[#allocation5 + $0x78] sm:$0xff] %vm4834, %v3761
          %5911 = vst.msk [vmem:[#allocation5 + $0x80] sm:$0xff] %vm4834, %v3762
          %5912 = vst.msk [vmem:[#allocation5 + $0x88] sm:$0xff] %vm4834, %v3763
          %5913 = vst.msk [vmem:[#allocation5 + $0x90] sm:$0xff] %vm4834, %v3764
          %5914 = vst.msk [vmem:[#allocation5 + $0x98] sm:$0xff] %vm4834, %v3765
          %5915 = vst.msk [vmem:[#allocation5 + $0xa0] sm:$0xff] %vm4834, %v3766
          %5916 = vst.msk [vmem:[#allocation5 + $0xa8] sm:$0xff] %vm4834, %v3767
          %5917 = vst.msk [vmem:[#allocation5 + $0xb0] sm:$0xff] %vm4834, %v3768
          %5918 = vst.msk [vmem:[#allocation5 + $0xb8] sm:$0xff] %vm4834, %v3769
          %5919 = vst.msk [vmem:[#allocation5 + $0xc0] sm:$0xff] %vm4834, %v3770
          %5920 = vst.msk [vmem:[#allocation5 + $0xc8] sm:$0xff] %vm4834, %v3771
          %5921 = vst.msk [vmem:[#allocation5 + $0xd0] sm:$0xff] %vm4834, %v3772
          %5922 = vst.msk [vmem:[#allocation5 + $0xd8] sm:$0xff] %vm4834, %v3773
          %5923 = vst.msk [vmem:[#allocation5 + $0xe0] sm:$0xff] %vm4834, %v3774
          %5924 = vst.msk [vmem:[#allocation5 + $0xe8] sm:$0xff] %vm4834, %v3775
          %5925 = vst.msk [vmem:[#allocation5 + $0xf0] sm:$0xff] %vm4834, %v3776
          %5926 = vst.msk [vmem:[#allocation5 + $0xf8] sm:$0xff] %vm4834, %v3777
          %5927 = vst.msk [vmem:[#allocation5 + $0x100] sm:$0xff] %vm4834, %v3778
          %5928 = vst.msk [vmem:[#allocation5 + $0x108] sm:$0xff] %vm4834, %v3779
          %5929 = vst.msk [vmem:[#allocation5 + $0x110] sm:$0xff] %vm4834, %v3780
          %5930 = vst.msk [vmem:[#allocation5 + $0x118] sm:$0xff] %vm4834, %v3781
          %5931 = vst.msk [vmem:[#allocation5 + $0x120] sm:$0xff] %vm4834, %v3782
          %5932 = vst.msk [vmem:[#allocation5 + $0x128] sm:$0xff] %vm4834, %v3783
          %5933 = vst.msk [vmem:[#allocation5 + $0x130] sm:$0xff] %vm4834, %v3784
          %5934 = vst.msk [vmem:[#allocation5 + $0x138] sm:$0xff] %vm4834, %v3785
          %5935 = vst.msk [vmem:[#allocation5 + $0x140] sm:$0xff] %vm4834, %v3786
          %5936 = vst.msk [vmem:[#allocation5 + $0x148] sm:$0xff] %vm4834, %v3787
          %5937 = vst.msk [vmem:[#allocation5 + $0x150] sm:$0xff] %vm4834, %v3788
          %5938 = vst.msk [vmem:[#allocation5 + $0x158] sm:$0xff] %vm4834, %v3789
          %5939 = vst.msk [vmem:[#allocation5 + $0x160] sm:$0xff] %vm4834, %v3790
          %5940 = vst.msk [vmem:[#allocation5 + $0x168] sm:$0xff] %vm4834, %v3791
          %5941 = vst.msk [vmem:[#allocation5 + $0x170] sm:$0xff] %vm4834, %v3792
          %5942 = vst.msk [vmem:[#allocation5 + $0x178] sm:$0xff] %vm4834, %v3793
          %5943 = vst.msk [vmem:[#allocation5 + $0x180] sm:$0xff] %vm4834, %v3794
          %5944 = vst.msk [vmem:[#allocation5 + $0x188] sm:$0xff] %vm4834, %v3795
          %5945 = vst.msk [vmem:[#allocation5 + $0x190] sm:$0xff] %vm4834, %v3796
          %5946 = vst.msk [vmem:[#allocation5 + $0x198] sm:$0xff] %vm4834, %v3797
          %5947 = vst.msk [vmem:[#allocation5 + $0x1a0] sm:$0xff] %vm4834, %v3798
          %5948 = vst.msk [vmem:[#allocation5 + $0x1a8] sm:$0xff] %vm4834, %v3799
          %5949 = vst.msk [vmem:[#allocation5 + $0x1b0] sm:$0xff] %vm4834, %v3800
          %5950 = vst.msk [vmem:[#allocation5 + $0x1b8] sm:$0xff] %vm4834, %v3801
          %5951 = vst.msk [vmem:[#allocation5 + $0x1c0] sm:$0xff] %vm4834, %v3802
          %5952 = vst.msk [vmem:[#allocation5 + $0x1c8] sm:$0xff] %vm4834, %v3803
          %5953 = vst.msk [vmem:[#allocation5 + $0x1d0] sm:$0xff] %vm4834, %v3804
          %5954 = vst.msk [vmem:[#allocation5 + $0x1d8] sm:$0xff] %vm4834, %v3805
          %5955 = vst.msk [vmem:[#allocation5 + $0x1e0] sm:$0xff] %vm4834, %v3806
          %5956 = vst.msk [vmem:[#allocation5 + $0x1e8] sm:$0xff] %vm4834, %v3807
          %5957 = vst.msk [vmem:[#allocation5 + $0x1f0] sm:$0xff] %vm4834, %v3808
          %5958 = vst.msk [vmem:[#allocation5 + $0x1f8] sm:$0xff] %vm4834, %v3809
        $region96: #{tpu_custom_call.1} parent=55 // pred_fallthru
          _
        %p5959 = scmp.eq.s32.totalorder %s38, 1
        // Predicated region
        $region97: #{tpu_custom_call.1} parent=55 // pred_check
          %p5960 = pneg %p5959
        $region98: #{tpu_custom_call.1} parent=55 // pred_check_branch
          %5962 = sbr.rel (%p5960) target = $region100
        $region99: #{tpu_custom_call.1} parent=55 // pred_region
          %v5963 = vld [vmem:[#allocation6] sm:$0xff]
          %v5964 = vld [vmem:[#allocation6 + $0x8] sm:$0xff]
          %v5965 = vld [vmem:[#allocation6 + $0x10] sm:$0xff]
          %v5966 = vld [vmem:[#allocation6 + $0x18] sm:$0xff]
          %v5967 = vld [vmem:[#allocation6 + $0x20] sm:$0xff]
          %v5968 = vld [vmem:[#allocation6 + $0x28] sm:$0xff]
          %v5969 = vld [vmem:[#allocation6 + $0x30] sm:$0xff]
          %v5970 = vld [vmem:[#allocation6 + $0x38] sm:$0xff]
          %v5971 = vld [vmem:[#allocation6 + $0x40] sm:$0xff]
          %v5972 = vld [vmem:[#allocation6 + $0x48] sm:$0xff]
          %v5973 = vld [vmem:[#allocation6 + $0x50] sm:$0xff]
          %v5974 = vld [vmem:[#allocation6 + $0x58] sm:$0xff]
          %v5975 = vld [vmem:[#allocation6 + $0x60] sm:$0xff]
          %v5976 = vld [vmem:[#allocation6 + $0x68] sm:$0xff]
          %v5977 = vld [vmem:[#allocation6 + $0x70] sm:$0xff]
          %v5978 = vld [vmem:[#allocation6 + $0x78] sm:$0xff]
          %v5979 = vld [vmem:[#allocation6 + $0x80] sm:$0xff]
          %v5980 = vld [vmem:[#allocation6 + $0x88] sm:$0xff]
          %v5981 = vld [vmem:[#allocation6 + $0x90] sm:$0xff]
          %v5982 = vld [vmem:[#allocation6 + $0x98] sm:$0xff]
          %v5983 = vld [vmem:[#allocation6 + $0xa0] sm:$0xff]
          %v5984 = vld [vmem:[#allocation6 + $0xa8] sm:$0xff]
          %v5985 = vld [vmem:[#allocation6 + $0xb0] sm:$0xff]
          %v5986 = vld [vmem:[#allocation6 + $0xb8] sm:$0xff]
          %v5987 = vld [vmem:[#allocation6 + $0xc0] sm:$0xff]
          %v5988 = vld [vmem:[#allocation6 + $0xc8] sm:$0xff]
          %v5989 = vld [vmem:[#allocation6 + $0xd0] sm:$0xff]
          %v5990 = vld [vmem:[#allocation6 + $0xd8] sm:$0xff]
          %v5991 = vld [vmem:[#allocation6 + $0xe0] sm:$0xff]
          %v5992 = vld [vmem:[#allocation6 + $0xe8] sm:$0xff]
          %v5993 = vld [vmem:[#allocation6 + $0xf0] sm:$0xff]
          %v5994 = vld [vmem:[#allocation6 + $0xf8] sm:$0xff]
          %v5995 = vld [vmem:[#allocation6 + $0x100] sm:$0xff]
          %v5996 = vld [vmem:[#allocation6 + $0x108] sm:$0xff]
          %v5997 = vld [vmem:[#allocation6 + $0x110] sm:$0xff]
          %v5998 = vld [vmem:[#allocation6 + $0x118] sm:$0xff]
          %v5999 = vld [vmem:[#allocation6 + $0x120] sm:$0xff]
          %v6000 = vld [vmem:[#allocation6 + $0x128] sm:$0xff]
          %v6001 = vld [vmem:[#allocation6 + $0x130] sm:$0xff]
          %v6002 = vld [vmem:[#allocation6 + $0x138] sm:$0xff]
          %v6003 = vld [vmem:[#allocation6 + $0x140] sm:$0xff]
          %v6004 = vld [vmem:[#allocation6 + $0x148] sm:$0xff]
          %v6005 = vld [vmem:[#allocation6 + $0x150] sm:$0xff]
          %v6006 = vld [vmem:[#allocation6 + $0x158] sm:$0xff]
          %v6007 = vld [vmem:[#allocation6 + $0x160] sm:$0xff]
          %v6008 = vld [vmem:[#allocation6 + $0x168] sm:$0xff]
          %v6009 = vld [vmem:[#allocation6 + $0x170] sm:$0xff]
          %v6010 = vld [vmem:[#allocation6 + $0x178] sm:$0xff]
          %v6011 = vld [vmem:[#allocation6 + $0x180] sm:$0xff]
          %v6012 = vld [vmem:[#allocation6 + $0x188] sm:$0xff]
          %v6013 = vld [vmem:[#allocation6 + $0x190] sm:$0xff]
          %v6014 = vld [vmem:[#allocation6 + $0x198] sm:$0xff]
          %v6015 = vld [vmem:[#allocation6 + $0x1a0] sm:$0xff]
          %v6016 = vld [vmem:[#allocation6 + $0x1a8] sm:$0xff]
          %v6017 = vld [vmem:[#allocation6 + $0x1b0] sm:$0xff]
          %v6018 = vld [vmem:[#allocation6 + $0x1b8] sm:$0xff]
          %v6019 = vld [vmem:[#allocation6 + $0x1c0] sm:$0xff]
          %v6020 = vld [vmem:[#allocation6 + $0x1c8] sm:$0xff]
          %v6021 = vld [vmem:[#allocation6 + $0x1d0] sm:$0xff]
          %v6022 = vld [vmem:[#allocation6 + $0x1d8] sm:$0xff]
          %v6023 = vld [vmem:[#allocation6 + $0x1e0] sm:$0xff]
          %v6024 = vld [vmem:[#allocation6 + $0x1e8] sm:$0xff]
          %v6025 = vld [vmem:[#allocation6 + $0x1f0] sm:$0xff]
          %v6026 = vld [vmem:[#allocation6 + $0x1f8] sm:$0xff]
          %v6027 = vrcp.pop %v5963
          %v6028 = vrcp.pop %v5964
          %v6029 = vrcp.pop %v5965
          %v6030 = vrcp.pop %v5966
          %v6031 = vrcp.pop %v5967
          %v6032 = vrcp.pop %v5968
          %v6033 = vrcp.pop %v5969
          %v6034 = vrcp.pop %v5970
          %v6035 = vrcp.pop %v5971
          %v6036 = vrcp.pop %v5972
          %v6037 = vrcp.pop %v5973
          %v6038 = vrcp.pop %v5974
          %v6039 = vrcp.pop %v5975
          %v6040 = vrcp.pop %v5976
          %v6041 = vrcp.pop %v5977
          %v6042 = vrcp.pop %v5978
          %v6043 = vrcp.pop %v5979
          %v6044 = vrcp.pop %v5980
          %v6045 = vrcp.pop %v5981
          %v6046 = vrcp.pop %v5982
          %v6047 = vrcp.pop %v5983
          %v6048 = vrcp.pop %v5984
          %v6049 = vrcp.pop %v5985
          %v6050 = vrcp.pop %v5986
          %v6051 = vrcp.pop %v5987
          %v6052 = vrcp.pop %v5988
          %v6053 = vrcp.pop %v5989
          %v6054 = vrcp.pop %v5990
          %v6055 = vrcp.pop %v5991
          %v6056 = vrcp.pop %v5992
          %v6057 = vrcp.pop %v5993
          %v6058 = vrcp.pop %v5994
          %v6059 = vrcp.pop %v5995
          %v6060 = vrcp.pop %v5996
          %v6061 = vrcp.pop %v5997
          %v6062 = vrcp.pop %v5998
          %v6063 = vrcp.pop %v5999
          %v6064 = vrcp.pop %v6000
          %v6065 = vrcp.pop %v6001
          %v6066 = vrcp.pop %v6002
          %v6067 = vrcp.pop %v6003
          %v6068 = vrcp.pop %v6004
          %v6069 = vrcp.pop %v6005
          %v6070 = vrcp.pop %v6006
          %v6071 = vrcp.pop %v6007
          %v6072 = vrcp.pop %v6008
          %v6073 = vrcp.pop %v6009
          %v6074 = vrcp.pop %v6010
          %v6075 = vrcp.pop %v6011
          %v6076 = vrcp.pop %v6012
          %v6077 = vrcp.pop %v6013
          %v6078 = vrcp.pop %v6014
          %v6079 = vrcp.pop %v6015
          %v6080 = vrcp.pop %v6016
          %v6081 = vrcp.pop %v6017
          %v6082 = vrcp.pop %v6018
          %v6083 = vrcp.pop %v6019
          %v6084 = vrcp.pop %v6020
          %v6085 = vrcp.pop %v6021
          %v6086 = vrcp.pop %v6022
          %v6087 = vrcp.pop %v6023
          %v6088 = vrcp.pop %v6024
          %v6089 = vrcp.pop %v6025
          %v6090 = vrcp.pop %v6026
          %v6091 = vld [vmem:[#allocation7] sm:$0xff]
          %v6092 = vld [vmem:[#allocation7 + $0x8] sm:$0xff]
          %v6093 = vld [vmem:[#allocation7 + $0x10] sm:$0xff]
          %v6094 = vld [vmem:[#allocation7 + $0x18] sm:$0xff]
          %v6095 = vld [vmem:[#allocation7 + $0x20] sm:$0xff]
          %v6096 = vld [vmem:[#allocation7 + $0x28] sm:$0xff]
          %v6097 = vld [vmem:[#allocation7 + $0x30] sm:$0xff]
          %v6098 = vld [vmem:[#allocation7 + $0x38] sm:$0xff]
          %v6099 = vld [vmem:[#allocation7 + $0x40] sm:$0xff]
          %v6100 = vld [vmem:[#allocation7 + $0x48] sm:$0xff]
          %v6101 = vld [vmem:[#allocation7 + $0x50] sm:$0xff]
          %v6102 = vld [vmem:[#allocation7 + $0x58] sm:$0xff]
          %v6103 = vld [vmem:[#allocation7 + $0x60] sm:$0xff]
          %v6104 = vld [vmem:[#allocation7 + $0x68] sm:$0xff]
          %v6105 = vld [vmem:[#allocation7 + $0x70] sm:$0xff]
          %v6106 = vld [vmem:[#allocation7 + $0x78] sm:$0xff]
          %v6107 = vld [vmem:[#allocation7 + $0x80] sm:$0xff]
          %v6108 = vld [vmem:[#allocation7 + $0x88] sm:$0xff]
          %v6109 = vld [vmem:[#allocation7 + $0x90] sm:$0xff]
          %v6110 = vld [vmem:[#allocation7 + $0x98] sm:$0xff]
          %v6111 = vld [vmem:[#allocation7 + $0xa0] sm:$0xff]
          %v6112 = vld [vmem:[#allocation7 + $0xa8] sm:$0xff]
          %v6113 = vld [vmem:[#allocation7 + $0xb0] sm:$0xff]
          %v6114 = vld [vmem:[#allocation7 + $0xb8] sm:$0xff]
          %v6115 = vld [vmem:[#allocation7 + $0xc0] sm:$0xff]
          %v6116 = vld [vmem:[#allocation7 + $0xc8] sm:$0xff]
          %v6117 = vld [vmem:[#allocation7 + $0xd0] sm:$0xff]
          %v6118 = vld [vmem:[#allocation7 + $0xd8] sm:$0xff]
          %v6119 = vld [vmem:[#allocation7 + $0xe0] sm:$0xff]
          %v6120 = vld [vmem:[#allocation7 + $0xe8] sm:$0xff]
          %v6121 = vld [vmem:[#allocation7 + $0xf0] sm:$0xff]
          %v6122 = vld [vmem:[#allocation7 + $0xf8] sm:$0xff]
          %v6123 = vld [vmem:[#allocation7 + $0x100] sm:$0xff]
          %v6124 = vld [vmem:[#allocation7 + $0x108] sm:$0xff]
          %v6125 = vld [vmem:[#allocation7 + $0x110] sm:$0xff]
          %v6126 = vld [vmem:[#allocation7 + $0x118] sm:$0xff]
          %v6127 = vld [vmem:[#allocation7 + $0x120] sm:$0xff]
          %v6128 = vld [vmem:[#allocation7 + $0x128] sm:$0xff]
          %v6129 = vld [vmem:[#allocation7 + $0x130] sm:$0xff]
          %v6130 = vld [vmem:[#allocation7 + $0x138] sm:$0xff]
          %v6131 = vld [vmem:[#allocation7 + $0x140] sm:$0xff]
          %v6132 = vld [vmem:[#allocation7 + $0x148] sm:$0xff]
          %v6133 = vld [vmem:[#allocation7 + $0x150] sm:$0xff]
          %v6134 = vld [vmem:[#allocation7 + $0x158] sm:$0xff]
          %v6135 = vld [vmem:[#allocation7 + $0x160] sm:$0xff]
          %v6136 = vld [vmem:[#allocation7 + $0x168] sm:$0xff]
          %v6137 = vld [vmem:[#allocation7 + $0x170] sm:$0xff]
          %v6138 = vld [vmem:[#allocation7 + $0x178] sm:$0xff]
          %v6139 = vld [vmem:[#allocation7 + $0x180] sm:$0xff]
          %v6140 = vld [vmem:[#allocation7 + $0x188] sm:$0xff]
          %v6141 = vld [vmem:[#allocation7 + $0x190] sm:$0xff]
          %v6142 = vld [vmem:[#allocation7 + $0x198] sm:$0xff]
          %v6143 = vld [vmem:[#allocation7 + $0x1a0] sm:$0xff]
          %v6144 = vld [vmem:[#allocation7 + $0x1a8] sm:$0xff]
          %v6145 = vld [vmem:[#allocation7 + $0x1b0] sm:$0xff]
          %v6146 = vld [vmem:[#allocation7 + $0x1b8] sm:$0xff]
          %v6147 = vld [vmem:[#allocation7 + $0x1c0] sm:$0xff]
          %v6148 = vld [vmem:[#allocation7 + $0x1c8] sm:$0xff]
          %v6149 = vld [vmem:[#allocation7 + $0x1d0] sm:$0xff]
          %v6150 = vld [vmem:[#allocation7 + $0x1d8] sm:$0xff]
          %v6151 = vld [vmem:[#allocation7 + $0x1e0] sm:$0xff]
          %v6152 = vld [vmem:[#allocation7 + $0x1e8] sm:$0xff]
          %v6153 = vld [vmem:[#allocation7 + $0x1f0] sm:$0xff]
          %v6154 = vld [vmem:[#allocation7 + $0x1f8] sm:$0xff]
          %6156 = vset.pattern.permute.xlu0 0
          %6157 = vperm.xlu0 %6156, %v6027
          %v6158 = vpop.permute.xlu0 %6157
          %6161 = vset.pattern.permute.xlu0 0
          %6162 = vperm.xlu0 %6161, %v6028
          %v6163 = vpop.permute.xlu0 %6162
          %6166 = vset.pattern.permute.xlu0 0
          %6167 = vperm.xlu0 %6166, %v6029
          %v6168 = vpop.permute.xlu0 %6167
          %6171 = vset.pattern.permute.xlu0 0
          %6172 = vperm.xlu0 %6171, %v6030
          %v6173 = vpop.permute.xlu0 %6172
          %6176 = vset.pattern.permute.xlu0 0
          %6177 = vperm.xlu0 %6176, %v6031
          %v6178 = vpop.permute.xlu0 %6177
          %6181 = vset.pattern.permute.xlu0 0
          %6182 = vperm.xlu0 %6181, %v6032
          %v6183 = vpop.permute.xlu0 %6182
          %6186 = vset.pattern.permute.xlu0 0
          %6187 = vperm.xlu0 %6186, %v6033
          %v6188 = vpop.permute.xlu0 %6187
          %6191 = vset.pattern.permute.xlu0 0
          %6192 = vperm.xlu0 %6191, %v6034
          %v6193 = vpop.permute.xlu0 %6192
          %6196 = vset.pattern.permute.xlu0 0
          %6197 = vperm.xlu0 %6196, %v6035
          %v6198 = vpop.permute.xlu0 %6197
          %6201 = vset.pattern.permute.xlu0 0
          %6202 = vperm.xlu0 %6201, %v6036
          %v6203 = vpop.permute.xlu0 %6202
          %6206 = vset.pattern.permute.xlu0 0
          %6207 = vperm.xlu0 %6206, %v6037
          %v6208 = vpop.permute.xlu0 %6207
          %6211 = vset.pattern.permute.xlu0 0
          %6212 = vperm.xlu0 %6211, %v6038
          %v6213 = vpop.permute.xlu0 %6212
          %6216 = vset.pattern.permute.xlu0 0
          %6217 = vperm.xlu0 %6216, %v6039
          %v6218 = vpop.permute.xlu0 %6217
          %6221 = vset.pattern.permute.xlu0 0
          %6222 = vperm.xlu0 %6221, %v6040
          %v6223 = vpop.permute.xlu0 %6222
          %6226 = vset.pattern.permute.xlu0 0
          %6227 = vperm.xlu0 %6226, %v6041
          %v6228 = vpop.permute.xlu0 %6227
          %6231 = vset.pattern.permute.xlu0 0
          %6232 = vperm.xlu0 %6231, %v6042
          %v6233 = vpop.permute.xlu0 %6232
          %6236 = vset.pattern.permute.xlu0 0
          %6237 = vperm.xlu0 %6236, %v6043
          %v6238 = vpop.permute.xlu0 %6237
          %6241 = vset.pattern.permute.xlu0 0
          %6242 = vperm.xlu0 %6241, %v6044
          %v6243 = vpop.permute.xlu0 %6242
          %6246 = vset.pattern.permute.xlu0 0
          %6247 = vperm.xlu0 %6246, %v6045
          %v6248 = vpop.permute.xlu0 %6247
          %6251 = vset.pattern.permute.xlu0 0
          %6252 = vperm.xlu0 %6251, %v6046
          %v6253 = vpop.permute.xlu0 %6252
          %6256 = vset.pattern.permute.xlu0 0
          %6257 = vperm.xlu0 %6256, %v6047
          %v6258 = vpop.permute.xlu0 %6257
          %6261 = vset.pattern.permute.xlu0 0
          %6262 = vperm.xlu0 %6261, %v6048
          %v6263 = vpop.permute.xlu0 %6262
          %6266 = vset.pattern.permute.xlu0 0
          %6267 = vperm.xlu0 %6266, %v6049
          %v6268 = vpop.permute.xlu0 %6267
          %6271 = vset.pattern.permute.xlu0 0
          %6272 = vperm.xlu0 %6271, %v6050
          %v6273 = vpop.permute.xlu0 %6272
          %6276 = vset.pattern.permute.xlu0 0
          %6277 = vperm.xlu0 %6276, %v6051
          %v6278 = vpop.permute.xlu0 %6277
          %6281 = vset.pattern.permute.xlu0 0
          %6282 = vperm.xlu0 %6281, %v6052
          %v6283 = vpop.permute.xlu0 %6282
          %6286 = vset.pattern.permute.xlu0 0
          %6287 = vperm.xlu0 %6286, %v6053
          %v6288 = vpop.permute.xlu0 %6287
          %6291 = vset.pattern.permute.xlu0 0
          %6292 = vperm.xlu0 %6291, %v6054
          %v6293 = vpop.permute.xlu0 %6292
          %6296 = vset.pattern.permute.xlu0 0
          %6297 = vperm.xlu0 %6296, %v6055
          %v6298 = vpop.permute.xlu0 %6297
          %6301 = vset.pattern.permute.xlu0 0
          %6302 = vperm.xlu0 %6301, %v6056
          %v6303 = vpop.permute.xlu0 %6302
          %6306 = vset.pattern.permute.xlu0 0
          %6307 = vperm.xlu0 %6306, %v6057
          %v6308 = vpop.permute.xlu0 %6307
          %6311 = vset.pattern.permute.xlu0 0
          %6312 = vperm.xlu0 %6311, %v6058
          %v6313 = vpop.permute.xlu0 %6312
          %6316 = vset.pattern.permute.xlu0 0
          %6317 = vperm.xlu0 %6316, %v6059
          %v6318 = vpop.permute.xlu0 %6317
          %6321 = vset.pattern.permute.xlu0 0
          %6322 = vperm.xlu0 %6321, %v6060
          %v6323 = vpop.permute.xlu0 %6322
          %6326 = vset.pattern.permute.xlu0 0
          %6327 = vperm.xlu0 %6326, %v6061
          %v6328 = vpop.permute.xlu0 %6327
          %6331 = vset.pattern.permute.xlu0 0
          %6332 = vperm.xlu0 %6331, %v6062
          %v6333 = vpop.permute.xlu0 %6332
          %6336 = vset.pattern.permute.xlu0 0
          %6337 = vperm.xlu0 %6336, %v6063
          %v6338 = vpop.permute.xlu0 %6337
          %6341 = vset.pattern.permute.xlu0 0
          %6342 = vperm.xlu0 %6341, %v6064
          %v6343 = vpop.permute.xlu0 %6342
          %6346 = vset.pattern.permute.xlu0 0
          %6347 = vperm.xlu0 %6346, %v6065
          %v6348 = vpop.permute.xlu0 %6347
          %6351 = vset.pattern.permute.xlu0 0
          %6352 = vperm.xlu0 %6351, %v6066
          %v6353 = vpop.permute.xlu0 %6352
          %6356 = vset.pattern.permute.xlu0 0
          %6357 = vperm.xlu0 %6356, %v6067
          %v6358 = vpop.permute.xlu0 %6357
          %6361 = vset.pattern.permute.xlu0 0
          %6362 = vperm.xlu0 %6361, %v6068
          %v6363 = vpop.permute.xlu0 %6362
          %6366 = vset.pattern.permute.xlu0 0
          %6367 = vperm.xlu0 %6366, %v6069
          %v6368 = vpop.permute.xlu0 %6367
          %6371 = vset.pattern.permute.xlu0 0
          %6372 = vperm.xlu0 %6371, %v6070
          %v6373 = vpop.permute.xlu0 %6372
          %6376 = vset.pattern.permute.xlu0 0
          %6377 = vperm.xlu0 %6376, %v6071
          %v6378 = vpop.permute.xlu0 %6377
          %6381 = vset.pattern.permute.xlu0 0
          %6382 = vperm.xlu0 %6381, %v6072
          %v6383 = vpop.permute.xlu0 %6382
          %6386 = vset.pattern.permute.xlu0 0
          %6387 = vperm.xlu0 %6386, %v6073
          %v6388 = vpop.permute.xlu0 %6387
          %6391 = vset.pattern.permute.xlu0 0
          %6392 = vperm.xlu0 %6391, %v6074
          %v6393 = vpop.permute.xlu0 %6392
          %6396 = vset.pattern.permute.xlu0 0
          %6397 = vperm.xlu0 %6396, %v6075
          %v6398 = vpop.permute.xlu0 %6397
          %6401 = vset.pattern.permute.xlu0 0
          %6402 = vperm.xlu0 %6401, %v6076
          %v6403 = vpop.permute.xlu0 %6402
          %6406 = vset.pattern.permute.xlu0 0
          %6407 = vperm.xlu0 %6406, %v6077
          %v6408 = vpop.permute.xlu0 %6407
          %6411 = vset.pattern.permute.xlu0 0
          %6412 = vperm.xlu0 %6411, %v6078
          %v6413 = vpop.permute.xlu0 %6412
          %6416 = vset.pattern.permute.xlu0 0
          %6417 = vperm.xlu0 %6416, %v6079
          %v6418 = vpop.permute.xlu0 %6417
          %6421 = vset.pattern.permute.xlu0 0
          %6422 = vperm.xlu0 %6421, %v6080
          %v6423 = vpop.permute.xlu0 %6422
          %6426 = vset.pattern.permute.xlu0 0
          %6427 = vperm.xlu0 %6426, %v6081
          %v6428 = vpop.permute.xlu0 %6427
          %6431 = vset.pattern.permute.xlu0 0
          %6432 = vperm.xlu0 %6431, %v6082
          %v6433 = vpop.permute.xlu0 %6432
          %6436 = vset.pattern.permute.xlu0 0
          %6437 = vperm.xlu0 %6436, %v6083
          %v6438 = vpop.permute.xlu0 %6437
          %6441 = vset.pattern.permute.xlu0 0
          %6442 = vperm.xlu0 %6441, %v6084
          %v6443 = vpop.permute.xlu0 %6442
          %6446 = vset.pattern.permute.xlu0 0
          %6447 = vperm.xlu0 %6446, %v6085
          %v6448 = vpop.permute.xlu0 %6447
          %6451 = vset.pattern.permute.xlu0 0
          %6452 = vperm.xlu0 %6451, %v6086
          %v6453 = vpop.permute.xlu0 %6452
          %6456 = vset.pattern.permute.xlu0 0
          %6457 = vperm.xlu0 %6456, %v6087
          %v6458 = vpop.permute.xlu0 %6457
          %6461 = vset.pattern.permute.xlu0 0
          %6462 = vperm.xlu0 %6461, %v6088
          %v6463 = vpop.permute.xlu0 %6462
          %6466 = vset.pattern.permute.xlu0 0
          %6467 = vperm.xlu0 %6466, %v6089
          %v6468 = vpop.permute.xlu0 %6467
          %6471 = vset.pattern.permute.xlu0 0
          %6472 = vperm.xlu0 %6471, %v6090
          %v6473 = vpop.permute.xlu0 %6472
          %v6475 = vmul.f32 %v6091, %v6158
          %v6476 = vmul.f32 %v6092, %v6163
          %v6477 = vmul.f32 %v6093, %v6168
          %v6478 = vmul.f32 %v6094, %v6173
          %v6479 = vmul.f32 %v6095, %v6178
          %v6480 = vmul.f32 %v6096, %v6183
          %v6481 = vmul.f32 %v6097, %v6188
          %v6482 = vmul.f32 %v6098, %v6193
          %v6483 = vmul.f32 %v6099, %v6198
          %v6484 = vmul.f32 %v6100, %v6203
          %v6485 = vmul.f32 %v6101, %v6208
          %v6486 = vmul.f32 %v6102, %v6213
          %v6487 = vmul.f32 %v6103, %v6218
          %v6488 = vmul.f32 %v6104, %v6223
          %v6489 = vmul.f32 %v6105, %v6228
          %v6490 = vmul.f32 %v6106, %v6233
          %v6491 = vmul.f32 %v6107, %v6238
          %v6492 = vmul.f32 %v6108, %v6243
          %v6493 = vmul.f32 %v6109, %v6248
          %v6494 = vmul.f32 %v6110, %v6253
          %v6495 = vmul.f32 %v6111, %v6258
          %v6496 = vmul.f32 %v6112, %v6263
          %v6497 = vmul.f32 %v6113, %v6268
          %v6498 = vmul.f32 %v6114, %v6273
          %v6499 = vmul.f32 %v6115, %v6278
          %v6500 = vmul.f32 %v6116, %v6283
          %v6501 = vmul.f32 %v6117, %v6288
          %v6502 = vmul.f32 %v6118, %v6293
          %v6503 = vmul.f32 %v6119, %v6298
          %v6504 = vmul.f32 %v6120, %v6303
          %v6505 = vmul.f32 %v6121, %v6308
          %v6506 = vmul.f32 %v6122, %v6313
          %v6507 = vmul.f32 %v6123, %v6318
          %v6508 = vmul.f32 %v6124, %v6323
          %v6509 = vmul.f32 %v6125, %v6328
          %v6510 = vmul.f32 %v6126, %v6333
          %v6511 = vmul.f32 %v6127, %v6338
          %v6512 = vmul.f32 %v6128, %v6343
          %v6513 = vmul.f32 %v6129, %v6348
          %v6514 = vmul.f32 %v6130, %v6353
          %v6515 = vmul.f32 %v6131, %v6358
          %v6516 = vmul.f32 %v6132, %v6363
          %v6517 = vmul.f32 %v6133, %v6368
          %v6518 = vmul.f32 %v6134, %v6373
          %v6519 = vmul.f32 %v6135, %v6378
          %v6520 = vmul.f32 %v6136, %v6383
          %v6521 = vmul.f32 %v6137, %v6388
          %v6522 = vmul.f32 %v6138, %v6393
          %v6523 = vmul.f32 %v6139, %v6398
          %v6524 = vmul.f32 %v6140, %v6403
          %v6525 = vmul.f32 %v6141, %v6408
          %v6526 = vmul.f32 %v6142, %v6413
          %v6527 = vmul.f32 %v6143, %v6418
          %v6528 = vmul.f32 %v6144, %v6423
          %v6529 = vmul.f32 %v6145, %v6428
          %v6530 = vmul.f32 %v6146, %v6433
          %v6531 = vmul.f32 %v6147, %v6438
          %v6532 = vmul.f32 %v6148, %v6443
          %v6533 = vmul.f32 %v6149, %v6448
          %v6534 = vmul.f32 %v6150, %v6453
          %v6535 = vmul.f32 %v6151, %v6458
          %v6536 = vmul.f32 %v6152, %v6463
          %v6537 = vmul.f32 %v6153, %v6468
          %v6538 = vmul.f32 %v6154, %v6473
          %v6539 = vpack.c.bf16 %v6476, %v6475
          %v6540 = vpack.c.bf16 %v6478, %v6477
          %v6541 = vpack.c.bf16 %v6480, %v6479
          %v6542 = vpack.c.bf16 %v6482, %v6481
          %v6543 = vpack.c.bf16 %v6484, %v6483
          %v6544 = vpack.c.bf16 %v6486, %v6485
          %v6545 = vpack.c.bf16 %v6488, %v6487
          %v6546 = vpack.c.bf16 %v6490, %v6489
          %v6547 = vpack.c.bf16 %v6492, %v6491
          %v6548 = vpack.c.bf16 %v6494, %v6493
          %v6549 = vpack.c.bf16 %v6496, %v6495
          %v6550 = vpack.c.bf16 %v6498, %v6497
          %v6551 = vpack.c.bf16 %v6500, %v6499
          %v6552 = vpack.c.bf16 %v6502, %v6501
          %v6553 = vpack.c.bf16 %v6504, %v6503
          %v6554 = vpack.c.bf16 %v6506, %v6505
          %v6555 = vpack.c.bf16 %v6508, %v6507
          %v6556 = vpack.c.bf16 %v6510, %v6509
          %v6557 = vpack.c.bf16 %v6512, %v6511
          %v6558 = vpack.c.bf16 %v6514, %v6513
          %v6559 = vpack.c.bf16 %v6516, %v6515
          %v6560 = vpack.c.bf16 %v6518, %v6517
          %v6561 = vpack.c.bf16 %v6520, %v6519
          %v6562 = vpack.c.bf16 %v6522, %v6521
          %v6563 = vpack.c.bf16 %v6524, %v6523
          %v6564 = vpack.c.bf16 %v6526, %v6525
          %v6565 = vpack.c.bf16 %v6528, %v6527
          %v6566 = vpack.c.bf16 %v6530, %v6529
          %v6567 = vpack.c.bf16 %v6532, %v6531
          %v6568 = vpack.c.bf16 %v6534, %v6533
          %v6569 = vpack.c.bf16 %v6536, %v6535
          %v6570 = vpack.c.bf16 %v6538, %v6537
          %v6571 = vld [vmem:[#allocation19] sm:$0xff]
          %v6572 = vld [vmem:[#allocation19 + $0x8] sm:$0xff]
          %v6573 = vld [vmem:[#allocation19 + $0x10] sm:$0xff]
          %v6574 = vld [vmem:[#allocation19 + $0x18] sm:$0xff]
          %v6575 = vld [vmem:[#allocation19 + $0x20] sm:$0xff]
          %v6576 = vld [vmem:[#allocation19 + $0x28] sm:$0xff]
          %v6577 = vld [vmem:[#allocation19 + $0x30] sm:$0xff]
          %v6578 = vld [vmem:[#allocation19 + $0x38] sm:$0xff]
          %s6579 = scalar_lea.vmem [#allocation19], 64
          %v6580 = vld [vmem:[%s6579] sm:$0xff]
          %v6581 = vld [vmem:[%s6579 + $0x8] sm:$0xff]
          %v6582 = vld [vmem:[%s6579 + $0x10] sm:$0xff]
          %v6583 = vld [vmem:[%s6579 + $0x18] sm:$0xff]
          %v6584 = vld [vmem:[%s6579 + $0x20] sm:$0xff]
          %v6585 = vld [vmem:[%s6579 + $0x28] sm:$0xff]
          %v6586 = vld [vmem:[%s6579 + $0x30] sm:$0xff]
          %v6587 = vld [vmem:[%s6579 + $0x38] sm:$0xff]
          %v6596 = vunpack.c.l.b16 %v6580
          %v6597 = vunpack.c.h.b16 %v6580
          %v6598 = vunpack.c.l.b16 %v6581
          %v6599 = vunpack.c.h.b16 %v6581
          %v6600 = vunpack.c.l.b16 %v6582
          %v6601 = vunpack.c.h.b16 %v6582
          %v6602 = vunpack.c.l.b16 %v6583
          %v6603 = vunpack.c.h.b16 %v6583
          %v6604 = vunpack.c.l.b16 %v6584
          %v6605 = vunpack.c.h.b16 %v6584
          %v6606 = vunpack.c.l.b16 %v6585
          %v6607 = vunpack.c.h.b16 %v6585
          %v6608 = vunpack.c.l.b16 %v6586
          %v6609 = vunpack.c.h.b16 %v6586
          %v6610 = vunpack.c.l.b16 %v6587
          %v6611 = vunpack.c.h.b16 %v6587
          %v6612 = vpack.c.b16 %v6598, %v6596
          %v6613 = vpack.c.b16 %v6599, %v6597
          %v6614 = vpack.c.b16 %v6602, %v6600
          %v6615 = vpack.c.b16 %v6603, %v6601
          %v6616 = vpack.c.b16 %v6606, %v6604
          %v6617 = vpack.c.b16 %v6607, %v6605
          %v6618 = vpack.c.b16 %v6610, %v6608
          %v6619 = vpack.c.b16 %v6611, %v6609
          %vm6628 = vcmask 523264
          %v6630 = vsel %vm6628, %v6547, 0
          %v6633 = vsel %vm6628, %v6548, 0
          %v6636 = vsel %vm6628, %v6549, 0
          %v6639 = vsel %vm6628, %v6550, 0
          %v6642 = vsel %vm6628, %v6551, 0
          %v6645 = vsel %vm6628, %v6552, 0
          %v6648 = vsel %vm6628, %v6553, 0
          %v6651 = vsel %vm6628, %v6554, 0
          %6653 = vmatprep.subr.bf16.mxu0 %v6613
          %6654 = vmatpush1.bf16.msra.mxu0 %v6612
          %6655 = vmatprep.subr.bf16.mxu0 %v6615
          %6656 = vmatpush1.bf16.msra.mxu0 %v6614
          %6657 = vmatprep.subr.bf16.mxu0 %v6617
          %6658 = vmatpush1.bf16.msra.mxu0 %v6616
          %6659 = vmatprep.subr.bf16.mxu0 %v6619
          %6660 = vmatpush1.bf16.msra.mxu0 %v6618
          %6661 = vmatprep.subr.bf16.mxu0 0
          %6662 = vmatpush1.bf16.msra.mxu0 0
          %6663 = vmatprep.subr.bf16.mxu0 0
          %6664 = vmatpush1.bf16.msra.mxu0 0
          %6665 = vmatprep.subr.bf16.mxu0 0
          %6666 = vmatpush1.bf16.msra.mxu0 0
          %6667 = vmatprep.subr.bf16.mxu0 0
          %6668 = vmatpush1.bf16.msra.mxu0 0
          %6669 = vmatprep.subr.bf16.mxu0 0
          %6670 = vmatpush1.bf16.msra.mxu0 0
          %6671 = vmatprep.subr.bf16.mxu0 0
          %6672 = vmatpush1.bf16.msra.mxu0 0
          %6673 = vmatprep.subr.bf16.mxu0 0
          %6674 = vmatpush1.bf16.msra.mxu0 0
          %6675 = vmatprep.subr.bf16.mxu0 0
          %6676 = vmatpush1.bf16.msra.mxu0 0
          %6677 = vmatprep.subr.bf16.mxu0 0
          %6678 = vmatpush1.bf16.msra.mxu0 0
          %6679 = vmatprep.subr.bf16.mxu0 0
          %6680 = vmatpush1.bf16.msra.mxu0 0
          %6681 = vmatprep.subr.bf16.mxu0 0
          %6682 = vmatpush1.bf16.msra.mxu0 0
          %6683 = vmatprep.subr.bf16.mxu0 0
          %6684 = vmatpush1.bf16.msra.mxu0 0
          %6685 = vmatprep.mubr.bf16.mxu0 0
          %6686 = vmatmul.mubr.bf16.gmra.mrb[0].mxu0 %v6630
          %v6687 = vpop.f32.mrb[0].mxu0
          %v6688 = vadd.f32 0.0, %v6687
          %v6689 = vpop.f32.mrb[0].mxu0
          %v6690 = vadd.f32 0.0, %v6689
          %v6691 = vpop.f32.mrb[0].mxu0
          %v6692 = vadd.f32 0.0, %v6691
          %v6693 = vpop.f32.mrb[0].mxu0
          %v6694 = vadd.f32 0.0, %v6693
          %6695 = vmatprep.mubr.bf16.mxu0 0
          %6696 = vmatmul.mubr.bf16.gmra.mrb[0].mxu0 %v6633
          %v6697 = vpop.f32.mrb[0].mxu0
          %v6698 = vadd.f32 0.0, %v6697
          %v6699 = vpop.f32.mrb[0].mxu0
          %v6700 = vadd.f32 0.0, %v6699
          %v6701 = vpop.f32.mrb[0].mxu0
          %v6702 = vadd.f32 0.0, %v6701
          %v6703 = vpop.f32.mrb[0].mxu0
          %v6704 = vadd.f32 0.0, %v6703
          %6705 = vmatprep.mubr.bf16.mxu0 0
          %6706 = vmatmul.mubr.bf16.gmra.mrb[0].mxu0 %v6636
          %v6707 = vpop.f32.mrb[0].mxu0
          %v6708 = vadd.f32 0.0, %v6707
          %v6709 = vpop.f32.mrb[0].mxu0
          %v6710 = vadd.f32 0.0, %v6709
          %v6711 = vpop.f32.mrb[0].mxu0
          %v6712 = vadd.f32 0.0, %v6711
          %v6713 = vpop.f32.mrb[0].mxu0
          %v6714 = vadd.f32 0.0, %v6713
          %6715 = vmatprep.mubr.bf16.mxu0 0
          %6716 = vmatmul.mubr.bf16.gmra.mrb[0].mxu0 %v6639
          %v6717 = vpop.f32.mrb[0].mxu0
          %v6718 = vadd.f32 0.0, %v6717
          %v6719 = vpop.f32.mrb[0].mxu0
          %v6720 = vadd.f32 0.0, %v6719
          %v6721 = vpop.f32.mrb[0].mxu0
          %v6722 = vadd.f32 0.0, %v6721
          %v6723 = vpop.f32.mrb[0].mxu0
          %v6724 = vadd.f32 0.0, %v6723
          %6725 = vmatprep.mubr.bf16.mxu0 0
          %6726 = vmatmul.mubr.bf16.gmra.mrb[0].mxu0 %v6642
          %v6727 = vpop.f32.mrb[0].mxu0
          %v6728 = vadd.f32 0.0, %v6727
          %v6729 = vpop.f32.mrb[0].mxu0
          %v6730 = vadd.f32 0.0, %v6729
          %v6731 = vpop.f32.mrb[0].mxu0
          %v6732 = vadd.f32 0.0, %v6731
          %v6733 = vpop.f32.mrb[0].mxu0
          %v6734 = vadd.f32 0.0, %v6733
          %6735 = vmatprep.mubr.bf16.mxu0 0
          %6736 = vmatmul.mubr.bf16.gmra.mrb[0].mxu0 %v6645
          %v6737 = vpop.f32.mrb[0].mxu0
          %v6738 = vadd.f32 0.0, %v6737
          %v6739 = vpop.f32.mrb[0].mxu0
          %v6740 = vadd.f32 0.0, %v6739
          %v6741 = vpop.f32.mrb[0].mxu0
          %v6742 = vadd.f32 0.0, %v6741
          %v6743 = vpop.f32.mrb[0].mxu0
          %v6744 = vadd.f32 0.0, %v6743
          %6745 = vmatprep.mubr.bf16.mxu0 0
          %6746 = vmatmul.mubr.bf16.gmra.mrb[0].mxu0 %v6648
          %v6747 = vpop.f32.mrb[0].mxu0
          %v6748 = vadd.f32 0.0, %v6747
          %v6749 = vpop.f32.mrb[0].mxu0
          %v6750 = vadd.f32 0.0, %v6749
          %v6751 = vpop.f32.mrb[0].mxu0
          %v6752 = vadd.f32 0.0, %v6751
          %v6753 = vpop.f32.mrb[0].mxu0
          %v6754 = vadd.f32 0.0, %v6753
          %6755 = vmatprep.mubr.bf16.mxu0 0
          %6756 = vmatmul.mubr.bf16.gmra.mrb[0].mxu0 %v6651
          %v6757 = vpop.f32.mrb[0].mxu0
          %v6758 = vadd.f32 0.0, %v6757
          %v6759 = vpop.f32.mrb[0].mxu0
          %v6760 = vadd.f32 0.0, %v6759
          %v6761 = vpop.f32.mrb[0].mxu0
          %v6762 = vadd.f32 0.0, %v6761
          %v6763 = vpop.f32.mrb[0].mxu0
          %v6764 = vadd.f32 0.0, %v6763
          %6765 = vdwg.mxu0
          %v6774 = vunpack.c.l.b16 %v6571
          %v6775 = vunpack.c.h.b16 %v6571
          %v6776 = vunpack.c.l.b16 %v6572
          %v6777 = vunpack.c.h.b16 %v6572
          %v6778 = vunpack.c.l.b16 %v6573
          %v6779 = vunpack.c.h.b16 %v6573
          %v6780 = vunpack.c.l.b16 %v6574
          %v6781 = vunpack.c.h.b16 %v6574
          %v6782 = vunpack.c.l.b16 %v6575
          %v6783 = vunpack.c.h.b16 %v6575
          %v6784 = vunpack.c.l.b16 %v6576
          %v6785 = vunpack.c.h.b16 %v6576
          %v6786 = vunpack.c.l.b16 %v6577
          %v6787 = vunpack.c.h.b16 %v6577
          %v6788 = vunpack.c.l.b16 %v6578
          %v6789 = vunpack.c.h.b16 %v6578
          %v6790 = vpack.c.b16 %v6776, %v6774
          %v6791 = vpack.c.b16 %v6777, %v6775
          %v6792 = vpack.c.b16 %v6780, %v6778
          %v6793 = vpack.c.b16 %v6781, %v6779
          %v6794 = vpack.c.b16 %v6784, %v6782
          %v6795 = vpack.c.b16 %v6785, %v6783
          %v6796 = vpack.c.b16 %v6788, %v6786
          %v6797 = vpack.c.b16 %v6789, %v6787
          %v6807 = vsel %vm6628, %v6539, 0
          %v6810 = vsel %vm6628, %v6540, 0
          %v6813 = vsel %vm6628, %v6541, 0
          %v6816 = vsel %vm6628, %v6542, 0
          %v6819 = vsel %vm6628, %v6543, 0
          %v6822 = vsel %vm6628, %v6544, 0
          %v6825 = vsel %vm6628, %v6545, 0
          %v6828 = vsel %vm6628, %v6546, 0
          %6830 = vmatprep.subr.bf16.mxu0 %v6791
          %6831 = vmatpush1.bf16.msra.mxu0 %v6790
          %6832 = vmatprep.subr.bf16.mxu0 %v6793
          %6833 = vmatpush1.bf16.msra.mxu0 %v6792
          %6834 = vmatprep.subr.bf16.mxu0 %v6795
          %6835 = vmatpush1.bf16.msra.mxu0 %v6794
          %6836 = vmatprep.subr.bf16.mxu0 %v6797
          %6837 = vmatpush1.bf16.msra.mxu0 %v6796
          %6838 = vmatprep.subr.bf16.mxu0 0
          %6839 = vmatpush1.bf16.msra.mxu0 0
          %6840 = vmatprep.subr.bf16.mxu0 0
          %6841 = vmatpush1.bf16.msra.mxu0 0
          %6842 = vmatprep.subr.bf16.mxu0 0
          %6843 = vmatpush1.bf16.msra.mxu0 0
          %6844 = vmatprep.subr.bf16.mxu0 0
          %6845 = vmatpush1.bf16.msra.mxu0 0
          %6846 = vmatprep.subr.bf16.mxu0 0
          %6847 = vmatpush1.bf16.msra.mxu0 0
          %6848 = vmatprep.subr.bf16.mxu0 0
          %6849 = vmatpush1.bf16.msra.mxu0 0
          %6850 = vmatprep.subr.bf16.mxu0 0
          %6851 = vmatpush1.bf16.msra.mxu0 0
          %6852 = vmatprep.subr.bf16.mxu0 0
          %6853 = vmatpush1.bf16.msra.mxu0 0
          %6854 = vmatprep.subr.bf16.mxu0 0
          %6855 = vmatpush1.bf16.msra.mxu0 0
          %6856 = vmatprep.subr.bf16.mxu0 0
          %6857 = vmatpush1.bf16.msra.mxu0 0
          %6858 = vmatprep.subr.bf16.mxu0 0
          %6859 = vmatpush1.bf16.msra.mxu0 0
          %6860 = vmatprep.subr.bf16.mxu0 0
          %6861 = vmatpush1.bf16.msra.mxu0 0
          %6862 = vmatprep.mubr.bf16.mxu0 0
          %6863 = vmatmul.mubr.bf16.gmra.mrb[0].mxu0 %v6807
          %v6864 = vpop.f32.mrb[0].mxu0
          %v6865 = vadd.f32 %v6688, %v6864
          %v6866 = vpop.f32.mrb[0].mxu0
          %v6867 = vadd.f32 %v6690, %v6866
          %v6868 = vpop.f32.mrb[0].mxu0
          %v6869 = vadd.f32 %v6692, %v6868
          %v6870 = vpop.f32.mrb[0].mxu0
          %v6871 = vadd.f32 %v6694, %v6870
          %6872 = vmatprep.mubr.bf16.mxu0 0
          %6873 = vmatmul.mubr.bf16.gmra.mrb[0].mxu0 %v6810
          %v6874 = vpop.f32.mrb[0].mxu0
          %v6875 = vadd.f32 %v6698, %v6874
          %v6876 = vpop.f32.mrb[0].mxu0
          %v6877 = vadd.f32 %v6700, %v6876
          %v6878 = vpop.f32.mrb[0].mxu0
          %v6879 = vadd.f32 %v6702, %v6878
          %v6880 = vpop.f32.mrb[0].mxu0
          %v6881 = vadd.f32 %v6704, %v6880
          %6882 = vmatprep.mubr.bf16.mxu0 0
          %6883 = vmatmul.mubr.bf16.gmra.mrb[0].mxu0 %v6813
          %v6884 = vpop.f32.mrb[0].mxu0
          %v6885 = vadd.f32 %v6708, %v6884
          %v6886 = vpop.f32.mrb[0].mxu0
          %v6887 = vadd.f32 %v6710, %v6886
          %v6888 = vpop.f32.mrb[0].mxu0
          %v6889 = vadd.f32 %v6712, %v6888
          %v6890 = vpop.f32.mrb[0].mxu0
          %v6891 = vadd.f32 %v6714, %v6890
          %6892 = vmatprep.mubr.bf16.mxu0 0
          %6893 = vmatmul.mubr.bf16.gmra.mrb[0].mxu0 %v6816
          %v6894 = vpop.f32.mrb[0].mxu0
          %v6895 = vadd.f32 %v6718, %v6894
          %v6896 = vpop.f32.mrb[0].mxu0
          %v6897 = vadd.f32 %v6720, %v6896
          %v6898 = vpop.f32.mrb[0].mxu0
          %v6899 = vadd.f32 %v6722, %v6898
          %v6900 = vpop.f32.mrb[0].mxu0
          %v6901 = vadd.f32 %v6724, %v6900
          %6902 = vmatprep.mubr.bf16.mxu0 0
          %6903 = vmatmul.mubr.bf16.gmra.mrb[0].mxu0 %v6819
          %v6904 = vpop.f32.mrb[0].mxu0
          %v6905 = vadd.f32 %v6728, %v6904
          %v6906 = vpop.f32.mrb[0].mxu0
          %v6907 = vadd.f32 %v6730, %v6906
          %v6908 = vpop.f32.mrb[0].mxu0
          %v6909 = vadd.f32 %v6732, %v6908
          %v6910 = vpop.f32.mrb[0].mxu0
          %v6911 = vadd.f32 %v6734, %v6910
          %6912 = vmatprep.mubr.bf16.mxu0 0
          %6913 = vmatmul.mubr.bf16.gmra.mrb[0].mxu0 %v6822
          %v6914 = vpop.f32.mrb[0].mxu0
          %v6915 = vadd.f32 %v6738, %v6914
          %v6916 = vpop.f32.mrb[0].mxu0
          %v6917 = vadd.f32 %v6740, %v6916
          %v6918 = vpop.f32.mrb[0].mxu0
          %v6919 = vadd.f32 %v6742, %v6918
          %v6920 = vpop.f32.mrb[0].mxu0
          %v6921 = vadd.f32 %v6744, %v6920
          %6922 = vmatprep.mubr.bf16.mxu0 0
          %6923 = vmatmul.mubr.bf16.gmra.mrb[0].mxu0 %v6825
          %v6924 = vpop.f32.mrb[0].mxu0
          %v6925 = vadd.f32 %v6748, %v6924
          %v6926 = vpop.f32.mrb[0].mxu0
          %v6927 = vadd.f32 %v6750, %v6926
          %v6928 = vpop.f32.mrb[0].mxu0
          %v6929 = vadd.f32 %v6752, %v6928
          %v6930 = vpop.f32.mrb[0].mxu0
          %v6931 = vadd.f32 %v6754, %v6930
          %6932 = vmatprep.mubr.bf16.mxu0 0
          %6933 = vmatmul.mubr.bf16.gmra.mrb[0].mxu0 %v6828
          %v6934 = vpop.f32.mrb[0].mxu0
          %v6935 = vadd.f32 %v6758, %v6934
          %v6936 = vpop.f32.mrb[0].mxu0
          %v6937 = vadd.f32 %v6760, %v6936
          %v6938 = vpop.f32.mrb[0].mxu0
          %v6939 = vadd.f32 %v6762, %v6938
          %v6940 = vpop.f32.mrb[0].mxu0
          %v6941 = vadd.f32 %v6764, %v6940
          %6942 = vdwg.mxu0
          %s6943 = scalar_lea.vmem [#allocation19], 128
          %v6944 = vld [vmem:[%s6943] sm:$0xff]
          %v6945 = vld [vmem:[%s6943 + $0x8] sm:$0xff]
          %v6946 = vld [vmem:[%s6943 + $0x10] sm:$0xff]
          %v6947 = vld [vmem:[%s6943 + $0x18] sm:$0xff]
          %v6948 = vld [vmem:[%s6943 + $0x20] sm:$0xff]
          %v6949 = vld [vmem:[%s6943 + $0x28] sm:$0xff]
          %v6950 = vld [vmem:[%s6943 + $0x30] sm:$0xff]
          %v6951 = vld [vmem:[%s6943 + $0x38] sm:$0xff]
          %v6960 = vunpack.c.l.b16 %v6944
          %v6961 = vunpack.c.h.b16 %v6944
          %v6962 = vunpack.c.l.b16 %v6945
          %v6963 = vunpack.c.h.b16 %v6945
          %v6964 = vunpack.c.l.b16 %v6946
          %v6965 = vunpack.c.h.b16 %v6946
          %v6966 = vunpack.c.l.b16 %v6947
          %v6967 = vunpack.c.h.b16 %v6947
          %v6968 = vunpack.c.l.b16 %v6948
          %v6969 = vunpack.c.h.b16 %v6948
          %v6970 = vunpack.c.l.b16 %v6949
          %v6971 = vunpack.c.h.b16 %v6949
          %v6972 = vunpack.c.l.b16 %v6950
          %v6973 = vunpack.c.h.b16 %v6950
          %v6974 = vunpack.c.l.b16 %v6951
          %v6975 = vunpack.c.h.b16 %v6951
          %v6976 = vpack.c.b16 %v6962, %v6960
          %v6977 = vpack.c.b16 %v6963, %v6961
          %v6978 = vpack.c.b16 %v6966, %v6964
          %v6979 = vpack.c.b16 %v6967, %v6965
          %v6980 = vpack.c.b16 %v6970, %v6968
          %v6981 = vpack.c.b16 %v6971, %v6969
          %v6982 = vpack.c.b16 %v6974, %v6972
          %v6983 = vpack.c.b16 %v6975, %v6973
          %v6993 = vsel %vm6628, %v6555, 0
          %v6996 = vsel %vm6628, %v6556, 0
          %v6999 = vsel %vm6628, %v6557, 0
          %v7002 = vsel %vm6628, %v6558, 0
          %v7005 = vsel %vm6628, %v6559, 0
          %v7008 = vsel %vm6628, %v6560, 0
          %v7011 = vsel %vm6628, %v6561, 0
          %v7014 = vsel %vm6628, %v6562, 0
          %7016 = vmatprep.subr.bf16.mxu0 %v6977
          %7017 = vmatpush1.bf16.msra.mxu0 %v6976
          %7018 = vmatprep.subr.bf16.mxu0 %v6979
          %7019 = vmatpush1.bf16.msra.mxu0 %v6978
          %7020 = vmatprep.subr.bf16.mxu0 %v6981
          %7021 = vmatpush1.bf16.msra.mxu0 %v6980
          %7022 = vmatprep.subr.bf16.mxu0 %v6983
          %7023 = vmatpush1.bf16.msra.mxu0 %v6982
          %7024 = vmatprep.subr.bf16.mxu0 0
          %7025 = vmatpush1.bf16.msra.mxu0 0
          %7026 = vmatprep.subr.bf16.mxu0 0
          %7027 = vmatpush1.bf16.msra.mxu0 0
          %7028 = vmatprep.subr.bf16.mxu0 0
          %7029 = vmatpush1.bf16.msra.mxu0 0
          %7030 = vmatprep.subr.bf16.mxu0 0
          %7031 = vmatpush1.bf16.msra.mxu0 0
          %7032 = vmatprep.subr.bf16.mxu0 0
          %7033 = vmatpush1.bf16.msra.mxu0 0
          %7034 = vmatprep.subr.bf16.mxu0 0
          %7035 = vmatpush1.bf16.msra.mxu0 0
          %7036 = vmatprep.subr.bf16.mxu0 0
          %7037 = vmatpush1.bf16.msra.mxu0 0
          %7038 = vmatprep.subr.bf16.mxu0 0
          %7039 = vmatpush1.bf16.msra.mxu0 0
          %7040 = vmatprep.subr.bf16.mxu0 0
          %7041 = vmatpush1.bf16.msra.mxu0 0
          %7042 = vmatprep.subr.bf16.mxu0 0
          %7043 = vmatpush1.bf16.msra.mxu0 0
          %7044 = vmatprep.subr.bf16.mxu0 0
          %7045 = vmatpush1.bf16.msra.mxu0 0
          %7046 = vmatprep.subr.bf16.mxu0 0
          %7047 = vmatpush1.bf16.msra.mxu0 0
          %7048 = vmatprep.mubr.bf16.mxu0 0
          %7049 = vmatmul.mubr.bf16.gmra.mrb[0].mxu0 %v6993
          %v7050 = vpop.f32.mrb[0].mxu0
          %v7051 = vadd.f32 0.0, %v7050
          %v7052 = vpop.f32.mrb[0].mxu0
          %v7053 = vadd.f32 0.0, %v7052
          %v7054 = vpop.f32.mrb[0].mxu0
          %v7055 = vadd.f32 0.0, %v7054
          %v7056 = vpop.f32.mrb[0].mxu0
          %v7057 = vadd.f32 0.0, %v7056
          %7058 = vmatprep.mubr.bf16.mxu0 0
          %7059 = vmatmul.mubr.bf16.gmra.mrb[0].mxu0 %v6996
          %v7060 = vpop.f32.mrb[0].mxu0
          %v7061 = vadd.f32 0.0, %v7060
          %v7062 = vpop.f32.mrb[0].mxu0
          %v7063 = vadd.f32 0.0, %v7062
          %v7064 = vpop.f32.mrb[0].mxu0
          %v7065 = vadd.f32 0.0, %v7064
          %v7066 = vpop.f32.mrb[0].mxu0
          %v7067 = vadd.f32 0.0, %v7066
          %7068 = vmatprep.mubr.bf16.mxu0 0
          %7069 = vmatmul.mubr.bf16.gmra.mrb[0].mxu0 %v6999
          %v7070 = vpop.f32.mrb[0].mxu0
          %v7071 = vadd.f32 0.0, %v7070
          %v7072 = vpop.f32.mrb[0].mxu0
          %v7073 = vadd.f32 0.0, %v7072
          %v7074 = vpop.f32.mrb[0].mxu0
          %v7075 = vadd.f32 0.0, %v7074
          %v7076 = vpop.f32.mrb[0].mxu0
          %v7077 = vadd.f32 0.0, %v7076
          %7078 = vmatprep.mubr.bf16.mxu0 0
          %7079 = vmatmul.mubr.bf16.gmra.mrb[0].mxu0 %v7002
          %v7080 = vpop.f32.mrb[0].mxu0
          %v7081 = vadd.f32 0.0, %v7080
          %v7082 = vpop.f32.mrb[0].mxu0
          %v7083 = vadd.f32 0.0, %v7082
          %v7084 = vpop.f32.mrb[0].mxu0
          %v7085 = vadd.f32 0.0, %v7084
          %v7086 = vpop.f32.mrb[0].mxu0
          %v7087 = vadd.f32 0.0, %v7086
          %7088 = vmatprep.mubr.bf16.mxu0 0
          %7089 = vmatmul.mubr.bf16.gmra.mrb[0].mxu0 %v7005
          %v7090 = vpop.f32.mrb[0].mxu0
          %v7091 = vadd.f32 0.0, %v7090
          %v7092 = vpop.f32.mrb[0].mxu0
          %v7093 = vadd.f32 0.0, %v7092
          %v7094 = vpop.f32.mrb[0].mxu0
          %v7095 = vadd.f32 0.0, %v7094
          %v7096 = vpop.f32.mrb[0].mxu0
          %v7097 = vadd.f32 0.0, %v7096
          %7098 = vmatprep.mubr.bf16.mxu0 0
          %7099 = vmatmul.mubr.bf16.gmra.mrb[0].mxu0 %v7008
          %v7100 = vpop.f32.mrb[0].mxu0
          %v7101 = vadd.f32 0.0, %v7100
          %v7102 = vpop.f32.mrb[0].mxu0
          %v7103 = vadd.f32 0.0, %v7102
          %v7104 = vpop.f32.mrb[0].mxu0
          %v7105 = vadd.f32 0.0, %v7104
          %v7106 = vpop.f32.mrb[0].mxu0
          %v7107 = vadd.f32 0.0, %v7106
          %7108 = vmatprep.mubr.bf16.mxu0 0
          %7109 = vmatmul.mubr.bf16.gmra.mrb[0].mxu0 %v7011
          %v7110 = vpop.f32.mrb[0].mxu0
          %v7111 = vadd.f32 0.0, %v7110
          %v7112 = vpop.f32.mrb[0].mxu0
          %v7113 = vadd.f32 0.0, %v7112
          %v7114 = vpop.f32.mrb[0].mxu0
          %v7115 = vadd.f32 0.0, %v7114
          %v7116 = vpop.f32.mrb[0].mxu0
          %v7117 = vadd.f32 0.0, %v7116
          %7118 = vmatprep.mubr.bf16.mxu0 0
          %7119 = vmatmul.mubr.bf16.gmra.mrb[0].mxu0 %v7014
          %v7120 = vpop.f32.mrb[0].mxu0
          %v7121 = vadd.f32 0.0, %v7120
          %v7122 = vpop.f32.mrb[0].mxu0
          %v7123 = vadd.f32 0.0, %v7122
          %v7124 = vpop.f32.mrb[0].mxu0
          %v7125 = vadd.f32 0.0, %v7124
          %v7126 = vpop.f32.mrb[0].mxu0
          %v7127 = vadd.f32 0.0, %v7126
          %7128 = vdwg.mxu0
          %v7129 = vadd.f32 %v6865, %v7051
          %v7130 = vadd.f32 %v6867, %v7053
          %v7131 = vadd.f32 %v6869, %v7055
          %v7132 = vadd.f32 %v6871, %v7057
          %v7133 = vadd.f32 %v6875, %v7061
          %v7134 = vadd.f32 %v6877, %v7063
          %v7135 = vadd.f32 %v6879, %v7065
          %v7136 = vadd.f32 %v6881, %v7067
          %v7137 = vadd.f32 %v6885, %v7071
          %v7138 = vadd.f32 %v6887, %v7073
          %v7139 = vadd.f32 %v6889, %v7075
          %v7140 = vadd.f32 %v6891, %v7077
          %v7141 = vadd.f32 %v6895, %v7081
          %v7142 = vadd.f32 %v6897, %v7083
          %v7143 = vadd.f32 %v6899, %v7085
          %v7144 = vadd.f32 %v6901, %v7087
          %v7145 = vadd.f32 %v6905, %v7091
          %v7146 = vadd.f32 %v6907, %v7093
          %v7147 = vadd.f32 %v6909, %v7095
          %v7148 = vadd.f32 %v6911, %v7097
          %v7149 = vadd.f32 %v6915, %v7101
          %v7150 = vadd.f32 %v6917, %v7103
          %v7151 = vadd.f32 %v6919, %v7105
          %v7152 = vadd.f32 %v6921, %v7107
          %v7153 = vadd.f32 %v6925, %v7111
          %v7154 = vadd.f32 %v6927, %v7113
          %v7155 = vadd.f32 %v6929, %v7115
          %v7156 = vadd.f32 %v6931, %v7117
          %v7157 = vadd.f32 %v6935, %v7121
          %v7158 = vadd.f32 %v6937, %v7123
          %v7159 = vadd.f32 %v6939, %v7125
          %v7160 = vadd.f32 %v6941, %v7127
          %s7161 = scalar_lea.vmem [#allocation19], 192
          %v7162 = vld [vmem:[%s7161] sm:$0xff]
          %v7163 = vld [vmem:[%s7161 + $0x8] sm:$0xff]
          %v7164 = vld [vmem:[%s7161 + $0x10] sm:$0xff]
          %v7165 = vld [vmem:[%s7161 + $0x18] sm:$0xff]
          %v7166 = vld [vmem:[%s7161 + $0x20] sm:$0xff]
          %v7167 = vld [vmem:[%s7161 + $0x28] sm:$0xff]
          %v7168 = vld [vmem:[%s7161 + $0x30] sm:$0xff]
          %v7169 = vld [vmem:[%s7161 + $0x38] sm:$0xff]
          %v7178 = vunpack.c.l.b16 %v7162
          %v7179 = vunpack.c.h.b16 %v7162
          %v7180 = vunpack.c.l.b16 %v7163
          %v7181 = vunpack.c.h.b16 %v7163
          %v7182 = vunpack.c.l.b16 %v7164
          %v7183 = vunpack.c.h.b16 %v7164
          %v7184 = vunpack.c.l.b16 %v7165
          %v7185 = vunpack.c.h.b16 %v7165
          %v7186 = vunpack.c.l.b16 %v7166
          %v7187 = vunpack.c.h.b16 %v7166
          %v7188 = vunpack.c.l.b16 %v7167
          %v7189 = vunpack.c.h.b16 %v7167
          %v7190 = vunpack.c.l.b16 %v7168
          %v7191 = vunpack.c.h.b16 %v7168
          %v7192 = vunpack.c.l.b16 %v7169
          %v7193 = vunpack.c.h.b16 %v7169
          %v7194 = vpack.c.b16 %v7180, %v7178
          %v7195 = vpack.c.b16 %v7181, %v7179
          %v7196 = vpack.c.b16 %v7184, %v7182
          %v7197 = vpack.c.b16 %v7185, %v7183
          %v7198 = vpack.c.b16 %v7188, %v7186
          %v7199 = vpack.c.b16 %v7189, %v7187
          %v7200 = vpack.c.b16 %v7192, %v7190
          %v7201 = vpack.c.b16 %v7193, %v7191
          %v7211 = vsel %vm6628, %v6563, 0
          %v7214 = vsel %vm6628, %v6564, 0
          %v7217 = vsel %vm6628, %v6565, 0
          %v7220 = vsel %vm6628, %v6566, 0
          %v7223 = vsel %vm6628, %v6567, 0
          %v7226 = vsel %vm6628, %v6568, 0
          %v7229 = vsel %vm6628, %v6569, 0
          %v7232 = vsel %vm6628, %v6570, 0
          %7234 = vmatprep.subr.bf16.mxu0 %v7195
          %7235 = vmatpush1.bf16.msra.mxu0 %v7194
          %7236 = vmatprep.subr.bf16.mxu0 %v7197
          %7237 = vmatpush1.bf16.msra.mxu0 %v7196
          %7238 = vmatprep.subr.bf16.mxu0 %v7199
          %7239 = vmatpush1.bf16.msra.mxu0 %v7198
          %7240 = vmatprep.subr.bf16.mxu0 %v7201
          %7241 = vmatpush1.bf16.msra.mxu0 %v7200
          %7242 = vmatprep.subr.bf16.mxu0 0
          %7243 = vmatpush1.bf16.msra.mxu0 0
          %7244 = vmatprep.subr.bf16.mxu0 0
          %7245 = vmatpush1.bf16.msra.mxu0 0
          %7246 = vmatprep.subr.bf16.mxu0 0
          %7247 = vmatpush1.bf16.msra.mxu0 0
          %7248 = vmatprep.subr.bf16.mxu0 0
          %7249 = vmatpush1.bf16.msra.mxu0 0
          %7250 = vmatprep.subr.bf16.mxu0 0
          %7251 = vmatpush1.bf16.msra.mxu0 0
          %7252 = vmatprep.subr.bf16.mxu0 0
          %7253 = vmatpush1.bf16.msra.mxu0 0
          %7254 = vmatprep.subr.bf16.mxu0 0
          %7255 = vmatpush1.bf16.msra.mxu0 0
          %7256 = vmatprep.subr.bf16.mxu0 0
          %7257 = vmatpush1.bf16.msra.mxu0 0
          %7258 = vmatprep.subr.bf16.mxu0 0
          %7259 = vmatpush1.bf16.msra.mxu0 0
          %7260 = vmatprep.subr.bf16.mxu0 0
          %7261 = vmatpush1.bf16.msra.mxu0 0
          %7262 = vmatprep.subr.bf16.mxu0 0
          %7263 = vmatpush1.bf16.msra.mxu0 0
          %7264 = vmatprep.subr.bf16.mxu0 0
          %7265 = vmatpush1.bf16.msra.mxu0 0
          %7266 = vmatprep.mubr.bf16.mxu0 0
          %7267 = vmatmul.mubr.bf16.gmra.mrb[0].mxu0 %v7211
          %v7268 = vpop.f32.mrb[0].mxu0
          %v7269 = vadd.f32 0.0, %v7268
          %v7270 = vpop.f32.mrb[0].mxu0
          %v7271 = vadd.f32 0.0, %v7270
          %v7272 = vpop.f32.mrb[0].mxu0
          %v7273 = vadd.f32 0.0, %v7272
          %v7274 = vpop.f32.mrb[0].mxu0
          %v7275 = vadd.f32 0.0, %v7274
          %7276 = vmatprep.mubr.bf16.mxu0 0
          %7277 = vmatmul.mubr.bf16.gmra.mrb[0].mxu0 %v7214
          %v7278 = vpop.f32.mrb[0].mxu0
          %v7279 = vadd.f32 0.0, %v7278
          %v7280 = vpop.f32.mrb[0].mxu0
          %v7281 = vadd.f32 0.0, %v7280
          %v7282 = vpop.f32.mrb[0].mxu0
          %v7283 = vadd.f32 0.0, %v7282
          %v7284 = vpop.f32.mrb[0].mxu0
          %v7285 = vadd.f32 0.0, %v7284
          %7286 = vmatprep.mubr.bf16.mxu0 0
          %7287 = vmatmul.mubr.bf16.gmra.mrb[0].mxu0 %v7217
          %v7288 = vpop.f32.mrb[0].mxu0
          %v7289 = vadd.f32 0.0, %v7288
          %v7290 = vpop.f32.mrb[0].mxu0
          %v7291 = vadd.f32 0.0, %v7290
          %v7292 = vpop.f32.mrb[0].mxu0
          %v7293 = vadd.f32 0.0, %v7292
          %v7294 = vpop.f32.mrb[0].mxu0
          %v7295 = vadd.f32 0.0, %v7294
          %7296 = vmatprep.mubr.bf16.mxu0 0
          %7297 = vmatmul.mubr.bf16.gmra.mrb[0].mxu0 %v7220
          %v7298 = vpop.f32.mrb[0].mxu0
          %v7299 = vadd.f32 0.0, %v7298
          %v7300 = vpop.f32.mrb[0].mxu0
          %v7301 = vadd.f32 0.0, %v7300
          %v7302 = vpop.f32.mrb[0].mxu0
          %v7303 = vadd.f32 0.0, %v7302
          %v7304 = vpop.f32.mrb[0].mxu0
          %v7305 = vadd.f32 0.0, %v7304
          %7306 = vmatprep.mubr.bf16.mxu0 0
          %7307 = vmatmul.mubr.bf16.gmra.mrb[0].mxu0 %v7223
          %v7308 = vpop.f32.mrb[0].mxu0
          %v7309 = vadd.f32 0.0, %v7308
          %v7310 = vpop.f32.mrb[0].mxu0
          %v7311 = vadd.f32 0.0, %v7310
          %v7312 = vpop.f32.mrb[0].mxu0
          %v7313 = vadd.f32 0.0, %v7312
          %v7314 = vpop.f32.mrb[0].mxu0
          %v7315 = vadd.f32 0.0, %v7314
          %7316 = vmatprep.mubr.bf16.mxu0 0
          %7317 = vmatmul.mubr.bf16.gmra.mrb[0].mxu0 %v7226
          %v7318 = vpop.f32.mrb[0].mxu0
          %v7319 = vadd.f32 0.0, %v7318
          %v7320 = vpop.f32.mrb[0].mxu0
          %v7321 = vadd.f32 0.0, %v7320
          %v7322 = vpop.f32.mrb[0].mxu0
          %v7323 = vadd.f32 0.0, %v7322
          %v7324 = vpop.f32.mrb[0].mxu0
          %v7325 = vadd.f32 0.0, %v7324
          %7326 = vmatprep.mubr.bf16.mxu0 0
          %7327 = vmatmul.mubr.bf16.gmra.mrb[0].mxu0 %v7229
          %v7328 = vpop.f32.mrb[0].mxu0
          %v7329 = vadd.f32 0.0, %v7328
          %v7330 = vpop.f32.mrb[0].mxu0
          %v7331 = vadd.f32 0.0, %v7330
          %v7332 = vpop.f32.mrb[0].mxu0
          %v7333 = vadd.f32 0.0, %v7332
          %v7334 = vpop.f32.mrb[0].mxu0
          %v7335 = vadd.f32 0.0, %v7334
          %7336 = vmatprep.mubr.bf16.mxu0 0
          %7337 = vmatmul.mubr.bf16.gmra.mrb[0].mxu0 %v7232
          %v7338 = vpop.f32.mrb[0].mxu0
          %v7339 = vadd.f32 0.0, %v7338
          %v7340 = vpop.f32.mrb[0].mxu0
          %v7341 = vadd.f32 0.0, %v7340
          %v7342 = vpop.f32.mrb[0].mxu0
          %v7343 = vadd.f32 0.0, %v7342
          %v7344 = vpop.f32.mrb[0].mxu0
          %v7345 = vadd.f32 0.0, %v7344
          %7346 = vdwg.mxu0
          %v7347 = vadd.f32 %v7129, %v7269
          %v7348 = vadd.f32 %v7130, %v7271
          %v7349 = vadd.f32 %v7131, %v7273
          %v7350 = vadd.f32 %v7132, %v7275
          %v7351 = vadd.f32 %v7133, %v7279
          %v7352 = vadd.f32 %v7134, %v7281
          %v7353 = vadd.f32 %v7135, %v7283
          %v7354 = vadd.f32 %v7136, %v7285
          %v7355 = vadd.f32 %v7137, %v7289
          %v7356 = vadd.f32 %v7138, %v7291
          %v7357 = vadd.f32 %v7139, %v7293
          %v7358 = vadd.f32 %v7140, %v7295
          %v7359 = vadd.f32 %v7141, %v7299
          %v7360 = vadd.f32 %v7142, %v7301
          %v7361 = vadd.f32 %v7143, %v7303
          %v7362 = vadd.f32 %v7144, %v7305
          %v7363 = vadd.f32 %v7145, %v7309
          %v7364 = vadd.f32 %v7146, %v7311
          %v7365 = vadd.f32 %v7147, %v7313
          %v7366 = vadd.f32 %v7148, %v7315
          %v7367 = vadd.f32 %v7149, %v7319
          %v7368 = vadd.f32 %v7150, %v7321
          %v7369 = vadd.f32 %v7151, %v7323
          %v7370 = vadd.f32 %v7152, %v7325
          %v7371 = vadd.f32 %v7153, %v7329
          %v7372 = vadd.f32 %v7154, %v7331
          %v7373 = vadd.f32 %v7155, %v7333
          %v7374 = vadd.f32 %v7156, %v7335
          %v7375 = vadd.f32 %v7157, %v7339
          %v7376 = vadd.f32 %v7158, %v7341
          %v7377 = vadd.f32 %v7159, %v7343
          %v7378 = vadd.f32 %v7160, %v7345
          %v7379 = vld [vmem:[%s452] sm:$0xff]
          %v7380 = vld [vmem:[%s452 + $0x8] sm:$0xff]
          %v7381 = vld [vmem:[%s452 + $0x10] sm:$0xff]
          %v7382 = vld [vmem:[%s452 + $0x18] sm:$0xff]
          %v7383 = vld [vmem:[%s452 + $0x20] sm:$0xff]
          %v7384 = vld [vmem:[%s452 + $0x28] sm:$0xff]
          %v7385 = vld [vmem:[%s452 + $0x30] sm:$0xff]
          %v7386 = vld [vmem:[%s452 + $0x38] sm:$0xff]
          %v7387 = vld [vmem:[%s452 + $0x40] sm:$0xff]
          %v7388 = vld [vmem:[%s452 + $0x48] sm:$0xff]
          %v7389 = vld [vmem:[%s452 + $0x50] sm:$0xff]
          %v7390 = vld [vmem:[%s452 + $0x58] sm:$0xff]
          %v7391 = vld [vmem:[%s452 + $0x60] sm:$0xff]
          %v7392 = vld [vmem:[%s452 + $0x68] sm:$0xff]
          %v7393 = vld [vmem:[%s452 + $0x70] sm:$0xff]
          %v7394 = vld [vmem:[%s452 + $0x78] sm:$0xff]
          %v7395 = vld [vmem:[%s452 + $0x80] sm:$0xff]
          %v7396 = vld [vmem:[%s452 + $0x88] sm:$0xff]
          %v7397 = vld [vmem:[%s452 + $0x90] sm:$0xff]
          %v7398 = vld [vmem:[%s452 + $0x98] sm:$0xff]
          %v7399 = vld [vmem:[%s452 + $0xa0] sm:$0xff]
          %v7400 = vld [vmem:[%s452 + $0xa8] sm:$0xff]
          %v7401 = vld [vmem:[%s452 + $0xb0] sm:$0xff]
          %v7402 = vld [vmem:[%s452 + $0xb8] sm:$0xff]
          %v7403 = vld [vmem:[%s452 + $0xc0] sm:$0xff]
          %v7404 = vld [vmem:[%s452 + $0xc8] sm:$0xff]
          %v7405 = vld [vmem:[%s452 + $0xd0] sm:$0xff]
          %v7406 = vld [vmem:[%s452 + $0xd8] sm:$0xff]
          %v7407 = vld [vmem:[%s452 + $0xe0] sm:$0xff]
          %v7408 = vld [vmem:[%s452 + $0xe8] sm:$0xff]
          %v7409 = vld [vmem:[%s452 + $0xf0] sm:$0xff]
          %v7410 = vld [vmem:[%s452 + $0xf8] sm:$0xff]
          %v7411 = vadd.f32 %v7379, %v7347
          %v7412 = vadd.f32 %v7380, %v7348
          %v7413 = vadd.f32 %v7381, %v7349
          %v7414 = vadd.f32 %v7382, %v7350
          %v7415 = vadd.f32 %v7383, %v7351
          %v7416 = vadd.f32 %v7384, %v7352
          %v7417 = vadd.f32 %v7385, %v7353
          %v7418 = vadd.f32 %v7386, %v7354
          %v7419 = vadd.f32 %v7387, %v7355
          %v7420 = vadd.f32 %v7388, %v7356
          %v7421 = vadd.f32 %v7389, %v7357
          %v7422 = vadd.f32 %v7390, %v7358
          %v7423 = vadd.f32 %v7391, %v7359
          %v7424 = vadd.f32 %v7392, %v7360
          %v7425 = vadd.f32 %v7393, %v7361
          %v7426 = vadd.f32 %v7394, %v7362
          %v7427 = vadd.f32 %v7395, %v7363
          %v7428 = vadd.f32 %v7396, %v7364
          %v7429 = vadd.f32 %v7397, %v7365
          %v7430 = vadd.f32 %v7398, %v7366
          %v7431 = vadd.f32 %v7399, %v7367
          %v7432 = vadd.f32 %v7400, %v7368
          %v7433 = vadd.f32 %v7401, %v7369
          %v7434 = vadd.f32 %v7402, %v7370
          %v7435 = vadd.f32 %v7403, %v7371
          %v7436 = vadd.f32 %v7404, %v7372
          %v7437 = vadd.f32 %v7405, %v7373
          %v7438 = vadd.f32 %v7406, %v7374
          %v7439 = vadd.f32 %v7407, %v7375
          %v7440 = vadd.f32 %v7408, %v7376
          %v7441 = vadd.f32 %v7409, %v7377
          %v7442 = vadd.f32 %v7410, %v7378
          %7443 = vst [vmem:[%s530] sm:$0xff] %v7411
          %7444 = vst [vmem:[%s530 + $0x8] sm:$0xff] %v7412
          %7445 = vst [vmem:[%s530 + $0x10] sm:$0xff] %v7413
          %7446 = vst [vmem:[%s530 + $0x18] sm:$0xff] %v7414
          %7447 = vst [vmem:[%s530 + $0x20] sm:$0xff] %v7415
          %7448 = vst [vmem:[%s530 + $0x28] sm:$0xff] %v7416
          %7449 = vst [vmem:[%s530 + $0x30] sm:$0xff] %v7417
          %7450 = vst [vmem:[%s530 + $0x38] sm:$0xff] %v7418
          %7451 = vst [vmem:[%s530 + $0x40] sm:$0xff] %v7419
          %7452 = vst [vmem:[%s530 + $0x48] sm:$0xff] %v7420
          %7453 = vst [vmem:[%s530 + $0x50] sm:$0xff] %v7421
          %7454 = vst [vmem:[%s530 + $0x58] sm:$0xff] %v7422
          %7455 = vst [vmem:[%s530 + $0x60] sm:$0xff] %v7423
          %7456 = vst [vmem:[%s530 + $0x68] sm:$0xff] %v7424
          %7457 = vst [vmem:[%s530 + $0x70] sm:$0xff] %v7425
          %7458 = vst [vmem:[%s530 + $0x78] sm:$0xff] %v7426
          %7459 = vst [vmem:[%s530 + $0x80] sm:$0xff] %v7427
          %7460 = vst [vmem:[%s530 + $0x88] sm:$0xff] %v7428
          %7461 = vst [vmem:[%s530 + $0x90] sm:$0xff] %v7429
          %7462 = vst [vmem:[%s530 + $0x98] sm:$0xff] %v7430
          %7463 = vst [vmem:[%s530 + $0xa0] sm:$0xff] %v7431
          %7464 = vst [vmem:[%s530 + $0xa8] sm:$0xff] %v7432
          %7465 = vst [vmem:[%s530 + $0xb0] sm:$0xff] %v7433
          %7466 = vst [vmem:[%s530 + $0xb8] sm:$0xff] %v7434
          %7467 = vst [vmem:[%s530 + $0xc0] sm:$0xff] %v7435
          %7468 = vst [vmem:[%s530 + $0xc8] sm:$0xff] %v7436
          %7469 = vst [vmem:[%s530 + $0xd0] sm:$0xff] %v7437
          %7470 = vst [vmem:[%s530 + $0xd8] sm:$0xff] %v7438
          %7471 = vst [vmem:[%s530 + $0xe0] sm:$0xff] %v7439
          %7472 = vst [vmem:[%s530 + $0xe8] sm:$0xff] %v7440
          %7473 = vst [vmem:[%s530 + $0xf0] sm:$0xff] %v7441
          %7474 = vst [vmem:[%s530 + $0xf8] sm:$0xff] %v7442
        $region100: #{tpu_custom_call.1} parent=55 // pred_fallthru
          _
        %s7475 = sand.u32 %s276, 1
        %s7476 = scalar_lea.sflag [#allocation10], %s7475
        %s7477 = sand.u32 %s276, 1
        %s7478 = smul.addr %s7477, 256
        %s7479 = scalar_lea.vmem [#allocation20], %s7478
        // Predicated region
        $region101: #{tpu_custom_call.1} parent=55 // pred_check
          %p7480 = pneg %p286
        $region102: #{tpu_custom_call.1} parent=55 // pred_check_branch
          %7482 = sbr.rel (%p7480) target = $region104
        $region103: #{tpu_custom_call.1} parent=55 // pred_region
          %s7483 = smul.u32 16, %s37
          %s7485 = ssub.s32 4096, 4096
          %7486 = vsyncadd %s7476, %s7485
          %s7487 = smul.addr %s7483, 2
          %s7488 = smul.addr %s36, 64
          %s7489 = sadd.s32 %s7487, %s7488
          %s7490 = smul.addr %s7489, 128
          %s7491 = scalar_lea.hbm %s9, %s7490
          %s7492 = sshll.u32 %s7479, 4
          %s7493 = int_to_ptr.vmem [resolvable:$true] %s7492
          %7498 = dma.vmem_to_hbm [thread:$0]  %s7493, 4096, %s7491, %s7476, 256, 256, 16
        $region104: #{tpu_custom_call.1} parent=55 // pred_fallthru
          _
      $region56: #{tpu_custom_call.1} parent=5 // pred_fallthru
        _
      %p7499 = scmp.le.s32.totalorder 2, %s26
      // Predicated region
      $region105: #{tpu_custom_call.1} parent=5 // pred_check
        %p7500 = pneg %p7499
      $region106: #{tpu_custom_call.1} parent=5 // pred_check_branch
        %7502 = sbr.rel (%p7500) target = $region108
      $region107: #{tpu_custom_call.1} parent=5 // pred_region
        %s7503 = ssub.s32 %s26, 2
        // Predicated region
        $region109: #{tpu_custom_call.1} parent=107 // pred_check
          %p7504 = pneg %p292
        $region110: #{tpu_custom_call.1} parent=107 // pred_check_branch
          %7506 = sbr.rel (%p7504) target = $region112
        $region111: #{tpu_custom_call.1} parent=107 // pred_region
          %s7507 = sand.u32 %s277, 1
          %s7508 = scalar_lea.sflag [#allocation10], %s7507
          %s7509 = sand.u32 %s277, 1
          %s7510 = smul.addr %s7509, 256
          %s7511 = scalar_lea.vmem [#allocation20], %s7510
          %7512 = dma.done %s7508, 4096
        $region112: #{tpu_custom_call.1} parent=107 // pred_fallthru
          _
      $region108: #{tpu_custom_call.1} parent=5 // pred_fallthru
        _
    $region6: #{tpu_custom_call.1} parent=1 // loop_footer
      %s30 = sadd.s32 1, %s26
    $region7: #{tpu_custom_call.1} parent=1 // loop_footer_branch
      %25 = sbr.rel target = $region3
    $region8: #{tpu_custom_call.1} parent=1 // loop_exit
      _
    %7513 = vsyncpa [#allocation9], 1
    %s7514 = scalar_lea.sflag [#allocation9], 1
    %7515 = vsyncpa %s7514, 1
    %7516 = vsyncpa [#allocation12], 1
    %s7517 = scalar_lea.sflag [#allocation12], 1
    %7518 = vsyncpa %s7517, 1
    %7519 = vsyncpa [#allocation15], 1
    %7520 = vsyncpa [#allocation18], 1
    %7521 = vsyncpa [#allocation10], 1
    %s7522 = scalar_lea.sflag [#allocation10], 1
    %7523 = vsyncpa %s7522, 1

</llo_original>
